<compile_context>
chip_gen: v7x
topology: tpu7x:2x2x1
jax: 0.10.0
libtpu: 0.0.40
codegen_flags: <defaults>
</compile_context>

<pallas_src>
import jax
import jax.numpy as jnp
from jax.experimental import pallas as pl
from jax.experimental.pallas import tpu as pltpu

LRELU_SLOPE = 0.1
BN_EPS = 1e-5

# (Cin, Cout) per conv layer of Encoder_up(nf=32); strides are (1, 1, 2, 1, 2, 1).
CHANNELS = ((3, 32), (32, 32), (32, 64), (64, 64), (64, 128), (128, 128))
STRIDES = (1, 1, 2, 1, 2, 1)


# -----------------------------------------------------------------------------
# compiler params (generation-aware VMEM limit)
# -----------------------------------------------------------------------------
def _vmem_limit_bytes():
    """~100 MiB on 128-MiB parts (v5e/v6e), 48 MiB on 64-MiB parts (v7x), 64 MiB fallback."""
    try:
        cap = int(pltpu.get_tpu_info().vmem_capacity_bytes)
    except Exception:
        return 64 * 1024 * 1024
    if cap <= 64 * 1024 * 1024:
        return 48 * 1024 * 1024
    return 100 * 1024 * 1024


def _compiler_params():
    return pltpu.CompilerParams(dimension_semantics=("parallel",),
                                vmem_limit_bytes=_vmem_limit_bytes())


# -----------------------------------------------------------------------------
# in-kernel helpers
# -----------------------------------------------------------------------------
def _lrelu(v):
    return jnp.where(v > 0.0, v, LRELU_SLOPE * v)


def _conv_from_cols(cols, w_ref, s_ref, b_ref):
    """cols: (rows, 9*Cin). One bf16 MXU matmul (f32 acc) + folded BN affine + LeakyReLU."""
    y = jnp.dot(cols.astype(jnp.bfloat16), w_ref[...],
                preferred_element_type=jnp.float32)
    return _lrelu(y * s_ref[...] + b_ref[...])


def _conv_per_tap(tap_fn, w_ref, s_ref, b_ref):
    """3x3 conv as 9 per-tap K=Cin MXU matmuls accumulated in f32.

    Avoids materializing the 9x-wide im2col cols temporary for the wide-channel layers
    (per-tap K of 64 / 128 still keeps the MXU reduction busy).
    """
    cin = w_ref.shape[0] // 9
    acc = None
    for t in range(9):
        tap = tap_fn(t).astype(jnp.bfloat16)                      # (rows, cin)
        part = jnp.dot(tap, w_ref[t * cin:(t + 1) * cin, :],
                       preferred_element_type=jnp.float32)
        acc = part if acc is None else acc + part
    return _lrelu(acc * s_ref[...] + b_ref[...])


def _taps_from_padded(ref, Ho, Wo, C):
    """im2col of a stride-1 3x3 conv from a zero-padded (Ho+2, Wo+2, C) VMEM scratch.

    Nine unit-stride static slices concatenated on the lane axis -> (Ho*Wo, 9*C).
    """
    taps = [ref[ky:ky + Ho, kx:kx + Wo, :] for ky in range(3) for kx in range(3)]
    return jnp.concatenate(taps, axis=-1).reshape(Ho * Wo, 9 * C)


def _taps_from_packed(ref, Ho, Wo, C):
    """im2col of a stride-2 3x3 conv from a space-to-depth packed (Ho+1, Wo+1, 4*C) block.

    packed[hq, wq, (ph*2+pw)*C + c] == zero_padded_input[2*hq+ph, 2*wq+pw, c], so every tap is
    a unit-stride spatial slice plus a static lane-offset slice.
    """
    taps = []
    for ky in range(3):
        for kx in range(3):
            q = (ky % 2) * 2 + (kx % 2)
            taps.append(ref[ky // 2:ky // 2 + Ho, kx // 2:kx // 2 + Wo, q * C:(q + 1) * C])
    return jnp.concatenate(taps, axis=-1).reshape(Ho * Wo, 9 * C)


def _zero_border(pad_ref):
    """Zero only the 1-pixel halo strips (the interior is fully overwritten every step)."""
    Hp, Wp, C = pad_ref.shape
    z_row = jnp.zeros((1, Wp, C), pad_ref.dtype)
    z_col = jnp.zeros((Hp, 1, C), pad_ref.dtype)
    pad_ref[0:1, :, :] = z_row
    pad_ref[Hp - 1:Hp, :, :] = z_row
    pad_ref[:, 0:1, :] = z_col
    pad_ref[:, Wp - 1:Wp, :] = z_col


def _pack_s2d_from_padded(pad_ref, Hq, Wq, dtype):
    """Space-to-depth pack (with halo) of a zero-padded (2*Hq, 2*Wq, C) scratch -> (Hq, Wq, 4C).

    out[hq, wq, (ph*2+pw)*C + c] = pad[2*hq+ph, 2*wq+pw, c]; each group is one strided read.
    """
    groups = [pad_ref[pl.ds(ph, Hq, 2), pl.ds(pw, Wq, 2), :].astype(dtype)
              for ph in range(2) for pw in range(2)]
    return jnp.concatenate(groups, axis=-1)


# -----------------------------------------------------------------------------
# kernel bodies
# -----------------------------------------------------------------------------
def _pair_a_kernel(xc_ref, w1_ref, s1_ref, b1_ref, w2_ref, s2_ref, b2_ref,
                   o_ref, pad_ref):
    H = pad_ref.shape[0] - 2
    W = pad_ref.shape[1] - 2
    c = pad_ref.shape[2]                       # 32 (layer-1 out == layer-2 out)
    Hq, Wq = o_ref.shape[0], o_ref.shape[1]

    _zero_border(pad_ref)

    # layer 1: wrapper-provided im2col (K = 27), single MXU matmul
    y1 = _conv_from_cols(xc_ref[...], w1_ref, s1_ref, b1_ref)            # (H*W, 32) f32
    pad_ref[1:H + 1, 1:W + 1, :] = y1.reshape(H, W, c)

    # layer 2: taps from the zero-halo VMEM scratch, single K = 288 matmul
    y2 = _conv_from_cols(_taps_from_padded(pad_ref, H, W, c), w2_ref, s2_ref, b2_ref)

    # restage y2 into the same scratch (halo still zero) and emit the space-to-depth packed,
    # lane-dense (Hq, Wq, 128) bf16 block (halo included) for the stride-2 consumer.
    pad_ref[1:H + 1, 1:W + 1, :] = y2.reshape(H, W, c)
    o_ref[...] = _pack_s2d_from_padded(pad_ref, Hq, Wq, o_ref.dtype)


def _fused_bc_kernel(pk_ref, w3_ref, s3_ref, b3_ref, w4_ref, s4_ref, b4_ref,
                     w5_ref, s5_ref, b5_ref, w6_ref, s6_ref, b6_ref, ibp_ref,
                     o_ref, pad34_ref, pad56_ref):
    H2 = pad34_ref.shape[0] - 2
    W2 = pad34_ref.shape[1] - 2
    c34 = pad34_ref.shape[2]                   # 64  (layer-3 out == layer-4 in/out)
    H4 = pad56_ref.shape[0] - 2
    W4 = pad56_ref.shape[1] - 2
    c56 = pad56_ref.shape[2]                   # 128 (layer-5 out == layer-6 in/out)
    cin3 = pk_ref.shape[-1] // 4               # 32
    rh = o_ref.shape[0] // H4
    rw = o_ref.shape[1] // W4

    _zero_border(pad34_ref)
    _zero_border(pad56_ref)

    # layer 3 (stride 2, 32->64): unit-stride taps from the lane-dense packed bf16 input
    y3 = _conv_from_cols(_taps_from_packed(pk_ref, H2, W2, cin3),
                         w3_ref, s3_ref, b3_ref)                          # (H2*W2, 64)

    # layer 4 (stride 1, 64->64): runs off the zero-halo VMEM scratch
    pad34_ref[1:H2 + 1, 1:W2 + 1, :] = y3.reshape(H2, W2, c34)
    y4 = _conv_from_cols(_taps_from_padded(pad34_ref, H2, W2, c34),
                         w4_ref, s4_ref, b4_ref)                          # (H2*W2, 64)

    # layer 5 (stride 2, 64->128): per-tap K=64 matmuls from stride-2 reads of the reused
    # pad34 scratch (y4 restaged; halo still zero)
    pad34_ref[1:H2 + 1, 1:W2 + 1, :] = y4.reshape(H2, W2, c34)

    def tap5(t):
        ky, kx = t // 3, t % 3
        return pad34_ref[pl.ds(ky, H4, 2), pl.ds(kx, W4, 2), :].reshape(H4 * W4, c34)

    y5 = _conv_per_tap(tap5, w5_ref, s5_ref, b5_ref)                      # (H4*W4, 128)

    # layer 6 (stride 1, 128->128): per-tap K=128 matmuls from unit-stride reads
    pad56_ref[1:H4 + 1, 1:W4 + 1, :] = y5.reshape(H4, W4, c56)

    def tap6(t):
        ky, kx = t // 3, t % 3
        return pad56_ref[ky:ky + H4, kx:kx + W4, :].reshape(H4 * W4, c56)

    y6 = _conv_per_tap(tap6, w6_ref, s6_ref, b6_ref)                      # (H4*W4, 128)

    # rep = conv6 + IBP_rep (per-channel), then nearest 4x upsample, lane-dense NHWC store
    rep = y6.reshape(H4, W4, c56) + ibp_ref[...]
    w_up = jnp.broadcast_to(rep[:, :, None, :], (H4, W4, rw, c56)).reshape(H4, W4 * rw, c56)
    full = jnp.broadcast_to(w_up[:, None, :, :], (H4, rh, W4 * rw, c56))
    o_ref[...] = full.reshape(H4 * rh, W4 * rw, c56)


# -----------------------------------------------------------------------------
# pallas_call wrappers
# -----------------------------------------------------------------------------
def _weight_specs(*layers):
    specs = []
    for (w, sc, bi) in layers:
        specs += [pl.BlockSpec(w.shape, lambda b: (0, 0)),
                  pl.BlockSpec(sc.shape, lambda b: (0, 0)),
                  pl.BlockSpec(bi.shape, lambda b: (0, 0))]
    return specs


def _call_pair_a(x_cols, l1, l2, H, W):
    B, HW, K1 = x_cols.shape
    w1, s1, b1 = l1
    w2, s2, b2 = l2
    c = w2.shape[1]
    assert w1.shape[1] == c, "pair A scratch reuse assumes layer-1/2 widths match"
    Hq, Wq = H // 2 + 1, W // 2 + 1
    return pl.pallas_call(
        _pair_a_kernel,
        out_shape=jax.ShapeDtypeStruct((B, Hq, Wq, 4 * c), jnp.bfloat16),
        grid=(B,),
        in_specs=[pl.BlockSpec((None, HW, K1), lambda b: (b, 0, 0))] + _weight_specs(l1, l2),
        out_specs=pl.BlockSpec((None, Hq, Wq, 4 * c), lambda b: (b, 0, 0, 0)),
        scratch_shapes=[pltpu.VMEM((H + 2, W + 2, c), jnp.float32)],
        compiler_params=_compiler_params(),
    )(x_cols, w1, s1, b1, w2, s2, b2)


def _call_fused_bc(packed, l3, l4, l5, l6, ibp, H, W):
    B, Hq, Wq, C4 = packed.shape
    c34 = l4[0].shape[1]
    c56 = l6[0].shape[1]
    assert l3[0].shape[1] == c34 and l5[0].shape[1] == c56
    H2, W2 = H // 2, W // 2
    H4, W4 = H // 4, W // 4
    ibp3 = ibp.astype(jnp.float32).reshape(B, 1, c56)
    wspecs = _weight_specs(l3, l4, l5, l6)
    return pl.pallas_call(
        _fused_bc_kernel,
        out_shape=jax.ShapeDtypeStruct((B, H, W, c56), jnp.float32),
        grid=(B,),
        in_specs=([pl.BlockSpec((None, Hq, Wq, C4), lambda b: (b, 0, 0, 0))]
                  + wspecs
                  + [pl.BlockSpec((None, 1, c56), lambda b: (b, 0, 0))]),
        out_specs=pl.BlockSpec((None, H, W, c56), lambda b: (b, 0, 0, 0)),
        scratch_shapes=[pltpu.VMEM((H2 + 2, W2 + 2, c34), jnp.float32),
                        pltpu.VMEM((H4 + 2, W4 + 2, c56), jnp.float32)],
        compiler_params=_compiler_params(),
    )(packed, *l3, *l4, *l5, *l6, ibp3)


# -----------------------------------------------------------------------------
# wrapper-side (XLA) glue
# -----------------------------------------------------------------------------
def _im2col_3x3_s1(x):
    """Wrapper-side im2col for the first conv (Cin=3): (B, H, W, C) -> (B, H*W, 9*C)."""
    B, H, W, C = x.shape
    xp = jnp.pad(x, ((0, 0), (1, 1), (1, 1), (0, 0)))
    taps = [xp[:, ky:ky + H, kx:kx + W, :] for ky in range(3) for kx in range(3)]
    return jnp.concatenate(taps, axis=-1).reshape(B, H * W, 9 * C)


def _prep(params):
    """Flatten 3x3 weights to (9*Cin, Cout) tap-major in bf16; BN affine stays f32 (1, Cout)."""
    out = []
    for (w, scale, bias) in params:
        kh, kw, cin, cout = w.shape
        out.append((w.reshape(kh * kw * cin, cout).astype(jnp.bfloat16),
                    scale.reshape(1, cout).astype(jnp.float32),
                    bias.reshape(1, cout).astype(jnp.float32)))
    return out


# -----------------------------------------------------------------------------
# Full module forward (NCHW in / NCHW out, like PyTorch)
# -----------------------------------------------------------------------------
def ranker_128_up_forward(x_nchw, ibp_rep, params, *, nhwc_out=False):
    B, _, H, W = x_nchw.shape
    assert H % 4 == 0 and W % 4 == 0, \
        "two stride-2 convs + integer nearest upsample need H, W divisible by 4"
    p = _prep(params)
    x = jnp.transpose(x_nchw, (0, 2, 3, 1)).astype(jnp.float32)          # NCHW -> NHWC
    x_cols = _im2col_3x3_s1(x).astype(jnp.bfloat16)                      # (B, H*W, 27)

    packed = _call_pair_a(x_cols, p[0], p[1], H, W)                      # (B, H/2+1, W/2+1, 128) bf16
    fea = _call_fused_bc(packed, p[2], p[3], p[4], p[5], ibp_rep, H, W)  # (B, H, W, 128) f32
    if nhwc_out:
        return fea                                                       # skip the HBM transpose pass
    return jnp.transpose(fea, (0, 3, 1, 2))                              # NHWC -> NCHW


# -----------------------------------------------------------------------------
# Deterministic synthetic parameters (conv + eval-mode BN folded to scale/bias)
# -----------------------------------------------------------------------------
def init_params(key):
    params = []
    for (cin, cout) in CHANNELS:
        key, k1, k2, k3, k4, k5, k6 = jax.random.split(key, 7)
        w = jax.random.normal(k1, (3, 3, cin, cout), jnp.float32) / jnp.sqrt(9.0 * cin)
        b_conv = 0.01 * jax.random.normal(k2, (cout,), jnp.float32)
        gamma = 1.0 + 0.1 * jax.random.normal(k3, (cout,), jnp.float32)
        beta = 0.1 * jax.random.normal(k4, (cout,), jnp.float32)
        running_mean = 0.1 * jax.random.normal(k5, (cout,), jnp.float32)
        running_var = 0.5 + jax.random.uniform(k6, (cout,), jnp.float32)
        scale = gamma / jnp.sqrt(running_var + BN_EPS)
        bias = beta + (b_conv - running_mean) * scale
        params.append((w, scale, bias))
    return params


# -----------------------------------------------------------------------------
# Pure-JAX f32 reference (for numeric verification)
# -----------------------------------------------------------------------------
def ref_forward(x_nchw, ibp_rep, params):
    H, W = x_nchw.shape[2], x_nchw.shape[3]
    out = jnp.transpose(x_nchw, (0, 2, 3, 1))
    for (w, scale, bias), s in zip(params, STRIDES):
        out = jax.lax.conv_general_dilated(
            out, w, window_strides=(s, s), padding=((1, 1), (1, 1)),
            dimension_numbers=("NHWC", "HWIO", "NHWC"))
        out = out * scale + bias
        out = jnp.where(out > 0.0, out, LRELU_SLOPE * out)
    out = out + ibp_rep[:, None, None, :]
    Ho, Wo = out.shape[1], out.shape[2]
    out = jnp.repeat(jnp.repeat(out, H // Ho, axis=1), W // Wo, axis=2)
    return jnp.transpose(out, (0, 3, 1, 2))


if __name__ == "__main__":
    key = jax.random.PRNGKey(0)
    kx, ki, kp = jax.random.split(key, 3)

    B, C, H, W = 2, 3, 16, 16
    x = jax.random.normal(kx, (B, C, H, W), jnp.float32)
    ibp_rep = jax.random.normal(ki, (B, 128), jnp.float32)
    params = init_params(kp)

    fwd = jax.jit(ranker_128_up_forward)
    out = jax.block_until_ready(fwd(x, ibp_rep, params))
    assert out.shape == (B, 128, H, W), out.shape

    ref = jax.block_until_ready(ref_forward(x, ibp_rep, params))
    # bf16 MXU inputs through 6 cascaded convs -> use a relative L2 tolerance (per perf
    # review) rather than the previous 2e-3 absolute one; real indexing bugs give O(1) error.
    num = float(jnp.sqrt(jnp.sum((out - ref) ** 2)))
    den = float(jnp.sqrt(jnp.sum(ref ** 2)))
    rel = num / max(den, 1e-6)
    assert rel < 5e-2, f"mismatch vs f32 reference: rel l2 err = {rel}"

    print("KERNEL_OK")
</pallas_src>

<mosaic_0001>
module attributes {stable_mosaic.version = 11 : i64} {
  func.func @_pair_a_kernel(%arg0: i32, %arg1: memref<1x256x27xbf16, #tpu.memory_space<vmem>>, %arg2: memref<27x32xbf16, #tpu.memory_space<vmem>>, %arg3: memref<1x32xf32, #tpu.memory_space<vmem>>, %arg4: memref<1x32xf32, #tpu.memory_space<vmem>>, %arg5: memref<288x32xbf16, #tpu.memory_space<vmem>>, %arg6: memref<1x32xf32, #tpu.memory_space<vmem>>, %arg7: memref<1x32xf32, #tpu.memory_space<vmem>>, %arg8: memref<1x9x9x128xbf16, #tpu.memory_space<vmem>>, %arg9: memref<18x18x32xf32, #tpu.memory_space<vmem>>) attributes {dimension_semantics = [#tpu.dimension_semantics<parallel>], iteration_bounds = array<i64: 2>, scalar_prefetch = 0 : i64, scratch_operands = 1 : i64, tpu.core_type = #tpu.core_type<tc>, window_params = [{transform_indices = @transform_0, window_bounds = array<i64: 1, 256, 27>}, {pipeline_mode = #tpu.pipeline_mode<synchronous>, transform_indices = @transform_1, window_bounds = array<i64: 27, 32>}, {pipeline_mode = #tpu.pipeline_mode<synchronous>, transform_indices = @transform_2, window_bounds = array<i64: 1, 32>}, {pipeline_mode = #tpu.pipeline_mode<synchronous>, transform_indices = @transform_3, window_bounds = array<i64: 1, 32>}, {pipeline_mode = #tpu.pipeline_mode<synchronous>, transform_indices = @transform_4, window_bounds = array<i64: 288, 32>}, {pipeline_mode = #tpu.pipeline_mode<synchronous>, transform_indices = @transform_5, window_bounds = array<i64: 1, 32>}, {pipeline_mode = #tpu.pipeline_mode<synchronous>, transform_indices = @transform_6, window_bounds = array<i64: 1, 32>}, {transform_indices = @transform_7, window_bounds = array<i64: 1, 9, 9, 128>}]} {
    %cst = arith.constant 0.000000e+00 : f32
    %0 = vector.broadcast %cst : f32 to vector<1x18x32xf32>
    %cst_0 = arith.constant 0.000000e+00 : f32
    %1 = vector.broadcast %cst_0 : f32 to vector<18x1x32xf32>
    %c0 = arith.constant 0 : index
    %c0_1 = arith.constant 0 : index
    %c0_2 = arith.constant 0 : index
    %2 = vector.load %arg9[%c0, %c0_1, %c0_2] : memref<18x18x32xf32, #tpu.memory_space<vmem>>, vector<1x18x32xf32>
    tpu.vector_store %arg9[%c0, %c0_1, %c0_2], %0 {strides = array<i32>} : memref<18x18x32xf32, #tpu.memory_space<vmem>>, vector<1x18x32xf32>,
    %c17 = arith.constant 17 : index
    %c0_3 = arith.constant 0 : index
    %c0_4 = arith.constant 0 : index
    %3 = vector.load %arg9[%c17, %c0_3, %c0_4] : memref<18x18x32xf32, #tpu.memory_space<vmem>>, vector<1x18x32xf32>
    tpu.vector_store %arg9[%c17, %c0_3, %c0_4], %0 {strides = array<i32>} : memref<18x18x32xf32, #tpu.memory_space<vmem>>, vector<1x18x32xf32>,
    %c0_5 = arith.constant 0 : index
    %c0_6 = arith.constant 0 : index
    %c0_7 = arith.constant 0 : index
    %4 = vector.load %arg9[%c0_5, %c0_6, %c0_7] : memref<18x18x32xf32, #tpu.memory_space<vmem>>, vector<18x1x32xf32>
    tpu.vector_store %arg9[%c0_5, %c0_6, %c0_7], %1 {strides = array<i32>} : memref<18x18x32xf32, #tpu.memory_space<vmem>>, vector<18x1x32xf32>,
    %c0_8 = arith.constant 0 : index
    %c17_9 = arith.constant 17 : index
    %c0_10 = arith.constant 0 : index
    %5 = vector.load %arg9[%c0_8, %c17_9, %c0_10] : memref<18x18x32xf32, #tpu.memory_space<vmem>>, vector<18x1x32xf32>
    tpu.vector_store %arg9[%c0_8, %c17_9, %c0_10], %1 {strides = array<i32>} : memref<18x18x32xf32, #tpu.memory_space<vmem>>, vector<18x1x32xf32>,
    %c0_11 = arith.constant 0 : index
    %c0_12 = arith.constant 0 : index
    %c0_13 = arith.constant 0 : index
    %6 = vector.load %arg1[%c0_11, %c0_12, %c0_13] : memref<1x256x27xbf16, #tpu.memory_space<vmem>>, vector<1x256x27xbf16>
    %7 = vector.shape_cast %6 : vector<1x256x27xbf16> to vector<256x27xbf16>
    %c0_14 = arith.constant 0 : index
    %c0_15 = arith.constant 0 : index
    %8 = vector.load %arg2[%c0_14, %c0_15] : memref<27x32xbf16, #tpu.memory_space<vmem>>, vector<27x32xbf16>
    %cst_16 = arith.constant dense<0.000000e+00> : vector<256x32xf32>
    %9 = tpu.matmul %7, %8, %cst_16 {dimension_numbers = #tpu.dot_dimension_numbers<[1], [0], [0], [1], [0, 0, 1, 1], [], []>} : vector<256x27xbf16>, vector<27x32xbf16>, vector<256x32xf32> -> vector<256x32xf32>
    %c0_17 = arith.constant 0 : index
    %c0_18 = arith.constant 0 : index
    %10 = vector.load %arg3[%c0_17, %c0_18] : memref<1x32xf32, #tpu.memory_space<vmem>>, vector<1x32xf32>
    %11 = vector.broadcast %10 : vector<1x32xf32> to vector<256x32xf32>
    %12 = arith.mulf %9, %11 : vector<256x32xf32>
    %c0_19 = arith.constant 0 : index
    %c0_20 = arith.constant 0 : index
    %13 = vector.load %arg4[%c0_19, %c0_20] : memref<1x32xf32, #tpu.memory_space<vmem>>, vector<1x32xf32>
    %14 = vector.broadcast %13 : vector<1x32xf32> to vector<256x32xf32>
    %15 = arith.addf %12, %14 : vector<256x32xf32>
    %cst_21 = arith.constant 0.000000e+00 : f32
    %16 = vector.broadcast %cst_21 : f32 to vector<256x32xf32>
    %17 = arith.cmpf ogt, %15, %16 : vector<256x32xf32>
    %cst_22 = arith.constant 1.000000e-01 : f32
    %18 = vector.broadcast %cst_22 : f32 to vector<256x32xf32>
    %19 = arith.mulf %18, %15 : vector<256x32xf32>
    %20 = arith.select %17, %15, %19 : vector<256x32xi1>, vector<256x32xf32>
    %21 = vector.shape_cast %20 : vector<256x32xf32> to vector<16x16x32xf32>
    %c1 = arith.constant 1 : index
    %c1_23 = arith.constant 1 : index
    %c0_24 = arith.constant 0 : index
    %22 = vector.load %arg9[%c1, %c1_23, %c0_24] : memref<18x18x32xf32, #tpu.memory_space<vmem>>, vector<16x16x32xf32>
    tpu.vector_store %arg9[%c1, %c1_23, %c0_24], %21 {strides = array<i32>} : memref<18x18x32xf32, #tpu.memory_space<vmem>>, vector<16x16x32xf32>,
    %c0_25 = arith.constant 0 : index
    %c0_26 = arith.constant 0 : index
    %c0_27 = arith.constant 0 : index
    %23 = vector.load %arg9[%c0_25, %c0_26, %c0_27] : memref<18x18x32xf32, #tpu.memory_space<vmem>>, vector<16x16x32xf32>
    %c0_28 = arith.constant 0 : index
    %c1_29 = arith.constant 1 : index
    %c0_30 = arith.constant 0 : index
    %24 = vector.load %arg9[%c0_28, %c1_29, %c0_30] : memref<18x18x32xf32, #tpu.memory_space<vmem>>, vector<16x16x32xf32>
    %c0_31 = arith.constant 0 : index
    %c2 = arith.constant 2 : index
    %c0_32 = arith.constant 0 : index
    %25 = vector.load %arg9[%c0_31, %c2, %c0_32] : memref<18x18x32xf32, #tpu.memory_space<vmem>>, vector<16x16x32xf32>
    %c1_33 = arith.constant 1 : index
    %c0_34 = arith.constant 0 : index
    %c0_35 = arith.constant 0 : index
    %26 = vector.load %arg9[%c1_33, %c0_34, %c0_35] : memref<18x18x32xf32, #tpu.memory_space<vmem>>, vector<16x16x32xf32>
    %c1_36 = arith.constant 1 : index
    %c1_37 = arith.constant 1 : index
    %c0_38 = arith.constant 0 : index
    %27 = vector.load %arg9[%c1_36, %c1_37, %c0_38] : memref<18x18x32xf32, #tpu.memory_space<vmem>>, vector<16x16x32xf32>
    %c1_39 = arith.constant 1 : index
    %c2_40 = arith.constant 2 : index
    %c0_41 = arith.constant 0 : index
    %28 = vector.load %arg9[%c1_39, %c2_40, %c0_41] : memref<18x18x32xf32, #tpu.memory_space<vmem>>, vector<16x16x32xf32>
    %c2_42 = arith.constant 2 : index
    %c0_43 = arith.constant 0 : index
    %c0_44 = arith.constant 0 : index
    %29 = vector.load %arg9[%c2_42, %c0_43, %c0_44] : memref<18x18x32xf32, #tpu.memory_space<vmem>>, vector<16x16x32xf32>
    %c2_45 = arith.constant 2 : index
    %c1_46 = arith.constant 1 : index
    %c0_47 = arith.constant 0 : index
    %30 = vector.load %arg9[%c2_45, %c1_46, %c0_47] : memref<18x18x32xf32, #tpu.memory_space<vmem>>, vector<16x16x32xf32>
    %c2_48 = arith.constant 2 : index
    %c2_49 = arith.constant 2 : index
    %c0_50 = arith.constant 0 : index
    %31 = vector.load %arg9[%c2_48, %c2_49, %c0_50] : memref<18x18x32xf32, #tpu.memory_space<vmem>>, vector<16x16x32xf32>
    %32 = tpu.concatenate %23, %24, %25, %26, %27, %28, %29, %30, %31 in 2 : vector<16x16x32xf32>, vector<16x16x32xf32>, vector<16x16x32xf32>, vector<16x16x32xf32>, vector<16x16x32xf32>, vector<16x16x32xf32>, vector<16x16x32xf32>, vector<16x16x32xf32>, vector<16x16x32xf32> -> vector<16x16x288xf32>
    %33 = vector.shape_cast %32 : vector<16x16x288xf32> to vector<256x288xf32>
    %34 = arith.truncf %33 : vector<256x288xf32> to vector<256x288xbf16>
    %c0_51 = arith.constant 0 : index
    %c0_52 = arith.constant 0 : index
    %35 = vector.load %arg5[%c0_51, %c0_52] : memref<288x32xbf16, #tpu.memory_space<vmem>>, vector<288x32xbf16>
    %cst_53 = arith.constant dense<0.000000e+00> : vector<256x32xf32>
    %36 = tpu.matmul %34, %35, %cst_53 {dimension_numbers = #tpu.dot_dimension_numbers<[1], [0], [0], [1], [0, 0, 1, 1], [], []>} : vector<256x288xbf16>, vector<288x32xbf16>, vector<256x32xf32> -> vector<256x32xf32>
    %c0_54 = arith.constant 0 : index
    %c0_55 = arith.constant 0 : index
    %37 = vector.load %arg6[%c0_54, %c0_55] : memref<1x32xf32, #tpu.memory_space<vmem>>, vector<1x32xf32>
    %38 = vector.broadcast %37 : vector<1x32xf32> to vector<256x32xf32>
    %39 = arith.mulf %36, %38 : vector<256x32xf32>
    %c0_56 = arith.constant 0 : index
    %c0_57 = arith.constant 0 : index
    %40 = vector.load %arg7[%c0_56, %c0_57] : memref<1x32xf32, #tpu.memory_space<vmem>>, vector<1x32xf32>
    %41 = vector.broadcast %40 : vector<1x32xf32> to vector<256x32xf32>
    %42 = arith.addf %39, %41 : vector<256x32xf32>
    %cst_58 = arith.constant 0.000000e+00 : f32
    %43 = vector.broadcast %cst_58 : f32 to vector<256x32xf32>
    %44 = arith.cmpf ogt, %42, %43 : vector<256x32xf32>
    %cst_59 = arith.constant 1.000000e-01 : f32
    %45 = vector.broadcast %cst_59 : f32 to vector<256x32xf32>
    %46 = arith.mulf %45, %42 : vector<256x32xf32>
    %47 = arith.select %44, %42, %46 : vector<256x32xi1>, vector<256x32xf32>
    %48 = vector.shape_cast %47 : vector<256x32xf32> to vector<16x16x32xf32>
    %c1_60 = arith.constant 1 : index
    %c1_61 = arith.constant 1 : index
    %c0_62 = arith.constant 0 : index
    %49 = vector.load %arg9[%c1_60, %c1_61, %c0_62] : memref<18x18x32xf32, #tpu.memory_space<vmem>>, vector<16x16x32xf32>
    tpu.vector_store %arg9[%c1_60, %c1_61, %c0_62], %48 {strides = array<i32>} : memref<18x18x32xf32, #tpu.memory_space<vmem>>, vector<16x16x32xf32>,
    %c0_63 = arith.constant 0 : index
    %c0_64 = arith.constant 0 : index
    %c0_65 = arith.constant 0 : index
    %50 = tpu.strided_load %arg9[%c0_63, %c0_64, %c0_65] {strides = array<i32: 2, 2, 1>} : memref<18x18x32xf32, #tpu.memory_space<vmem>>, vector<9x9x32xf32>
    %51 = arith.truncf %50 : vector<9x9x32xf32> to vector<9x9x32xbf16>
    %c0_66 = arith.constant 0 : index
    %c1_67 = arith.constant 1 : index
    %c0_68 = arith.constant 0 : index
    %52 = tpu.strided_load %arg9[%c0_66, %c1_67, %c0_68] {strides = array<i32: 2, 2, 1>} : memref<18x18x32xf32, #tpu.memory_space<vmem>>, vector<9x9x32xf32>
    %53 = arith.truncf %52 : vector<9x9x32xf32> to vector<9x9x32xbf16>
    %c1_69 = arith.constant 1 : index
    %c0_70 = arith.constant 0 : index
    %c0_71 = arith.constant 0 : index
    %54 = tpu.strided_load %arg9[%c1_69, %c0_70, %c0_71] {strides = array<i32: 2, 2, 1>} : memref<18x18x32xf32, #tpu.memory_space<vmem>>, vector<9x9x32xf32>
    %55 = arith.truncf %54 : vector<9x9x32xf32> to vector<9x9x32xbf16>
    %c1_72 = arith.constant 1 : index
    %c1_73 = arith.constant 1 : index
    %c0_74 = arith.constant 0 : index
    %56 = tpu.strided_load %arg9[%c1_72, %c1_73, %c0_74] {strides = array<i32: 2, 2, 1>} : memref<18x18x32xf32, #tpu.memory_space<vmem>>, vector<9x9x32xf32>
    %57 = arith.truncf %56 : vector<9x9x32xf32> to vector<9x9x32xbf16>
    %58 = tpu.concatenate %51, %53, %55, %57 in 2 : vector<9x9x32xbf16>, vector<9x9x32xbf16>, vector<9x9x32xbf16>, vector<9x9x32xbf16> -> vector<9x9x128xbf16>
    %c0_75 = arith.constant 0 : index
    %c0_76 = arith.constant 0 : index
    %c0_77 = arith.constant 0 : index
    %c0_78 = arith.constant 0 : index
    %59 = vector.load %arg8[%c0_75, %c0_76, %c0_77, %c0_78] : memref<1x9x9x128xbf16, #tpu.memory_space<vmem>>, vector<1x9x9x128xbf16>
    %60 = vector.shape_cast %59 : vector<1x9x9x128xbf16> to vector<9x9x128xbf16>
    %61 = vector.shape_cast %58 : vector<9x9x128xbf16> to vector<1x9x9x128xbf16>
    tpu.vector_store %arg8[%c0_75, %c0_76, %c0_77, %c0_78], %61 {strides = array<i32>} : memref<1x9x9x128xbf16, #tpu.memory_space<vmem>>, vector<1x9x9x128xbf16>,
    return
  }
  func.func @transform_0(%arg0: i32) -> (i32, i32, i32) {
    %c0_i32 = arith.constant 0 : i32
    %c0_i32_0 = arith.constant 0 : i32
    %c0_i32_1 = arith.constant 0 : i32
    return %arg0, %c0_i32, %c0_i32_0 : i32, i32, i32
  }
  func.func @transform_1(%arg0: i32) -> (i32, i32) {
    %c0_i32 = arith.constant 0 : i32
    %c0_i32_0 = arith.constant 0 : i32
    %c0_i32_1 = arith.constant 0 : i32
    return %c0_i32, %c0_i32_0 : i32, i32
  }
  func.func @transform_2(%arg0: i32) -> (i32, i32) {
    %c0_i32 = arith.constant 0 : i32
    %c0_i32_0 = arith.constant 0 : i32
    %c0_i32_1 = arith.constant 0 : i32
    return %c0_i32, %c0_i32_0 : i32, i32
  }
  func.func @transform_3(%arg0: i32) -> (i32, i32) {
    %c0_i32 = arith.constant 0 : i32
    %c0_i32_0 = arith.constant 0 : i32
    %c0_i32_1 = arith.constant 0 : i32
    return %c0_i32, %c0_i32_0 : i32, i32
  }
  func.func @transform_4(%arg0: i32) -> (i32, i32) {
    %c0_i32 = arith.constant 0 : i32
    %c0_i32_0 = arith.constant 0 : i32
    %c0_i32_1 = arith.constant 0 : i32
    return %c0_i32, %c0_i32_0 : i32, i32
  }
  func.func @transform_5(%arg0: i32) -> (i32, i32) {
    %c0_i32 = arith.constant 0 : i32
    %c0_i32_0 = arith.constant 0 : i32
    %c0_i32_1 = arith.constant 0 : i32
    return %c0_i32, %c0_i32_0 : i32, i32
  }
  func.func @transform_6(%arg0: i32) -> (i32, i32) {
    %c0_i32 = arith.constant 0 : i32
    %c0_i32_0 = arith.constant 0 : i32
    %c0_i32_1 = arith.constant 0 : i32
    return %c0_i32, %c0_i32_0 : i32, i32
  }
  func.func @transform_7(%arg0: i32) -> (i32, i32, i32, i32) {
    %c0_i32 = arith.constant 0 : i32
    %c0_i32_0 = arith.constant 0 : i32
    %c0_i32_1 = arith.constant 0 : i32
    %c0_i32_2 = arith.constant 0 : i32
    return %arg0, %c0_i32, %c0_i32_0, %c0_i32_1 : i32, i32, i32, i32
  }
}

module attributes {stable_mosaic.version = 11 : i64} {
  func.func @_fused_bc_kernel(%arg0: i32, %arg1: memref<1x9x9x128xbf16, #tpu.memory_space<vmem>>, %arg2: memref<288x64xbf16, #tpu.memory_space<vmem>>, %arg3: memref<1x64xf32, #tpu.memory_space<vmem>>, %arg4: memref<1x64xf32, #tpu.memory_space<vmem>>, %arg5: memref<576x64xbf16, #tpu.memory_space<vmem>>, %arg6: memref<1x64xf32, #tpu.memory_space<vmem>>, %arg7: memref<1x64xf32, #tpu.memory_space<vmem>>, %arg8: memref<576x128xbf16, #tpu.memory_space<vmem>>, %arg9: memref<1x128xf32, #tpu.memory_space<vmem>>, %arg10: memref<1x128xf32, #tpu.memory_space<vmem>>, %arg11: memref<1152x128xbf16, #tpu.memory_space<vmem>>, %arg12: memref<1x128xf32, #tpu.memory_space<vmem>>, %arg13: memref<1x128xf32, #tpu.memory_space<vmem>>, %arg14: memref<1x1x128xf32, #tpu.memory_space<vmem>>, %arg15: memref<1x16x16x128xf32, #tpu.memory_space<vmem>>, %arg16: memref<10x10x64xf32, #tpu.memory_space<vmem>>, %arg17: memref<6x6x128xf32, #tpu.memory_space<vmem>>) attributes {dimension_semantics = [#tpu.dimension_semantics<parallel>], iteration_bounds = array<i64: 2>, scalar_prefetch = 0 : i64, scratch_operands = 2 : i64, tpu.core_type = #tpu.core_type<tc>, window_params = [{transform_indices = @transform_0, window_bounds = array<i64: 1, 9, 9, 128>}, {pipeline_mode = #tpu.pipeline_mode<synchronous>, transform_indices = @transform_1, window_bounds = array<i64: 288, 64>}, {pipeline_mode = #tpu.pipeline_mode<synchronous>, transform_indices = @transform_2, window_bounds = array<i64: 1, 64>}, {pipeline_mode = #tpu.pipeline_mode<synchronous>, transform_indices = @transform_3, window_bounds = array<i64: 1, 64>}, {pipeline_mode = #tpu.pipeline_mode<synchronous>, transform_indices = @transform_4, window_bounds = array<i64: 576, 64>}, {pipeline_mode = #tpu.pipeline_mode<synchronous>, transform_indices = @transform_5, window_bounds = array<i64: 1, 64>}, {pipeline_mode = #tpu.pipeline_mode<synchronous>, transform_indices = @transform_6, window_bounds = array<i64: 1, 64>}, {pipeline_mode = #tpu.pipeline_mode<synchronous>, transform_indices = @transform_7, window_bounds = array<i64: 576, 128>}, {pipeline_mode = #tpu.pipeline_mode<synchronous>, transform_indices = @transform_8, window_bounds = array<i64: 1, 128>}, {pipeline_mode = #tpu.pipeline_mode<synchronous>, transform_indices = @transform_9, window_bounds = array<i64: 1, 128>}, {pipeline_mode = #tpu.pipeline_mode<synchronous>, transform_indices = @transform_10, window_bounds = array<i64: 1152, 128>}, {pipeline_mode = #tpu.pipeline_mode<synchronous>, transform_indices = @transform_11, window_bounds = array<i64: 1, 128>}, {pipeline_mode = #tpu.pipeline_mode<synchronous>, transform_indices = @transform_12, window_bounds = array<i64: 1, 128>}, {transform_indices = @transform_13, window_bounds = array<i64: 1, 1, 128>}, {transform_indices = @transform_14, window_bounds = array<i64: 1, 16, 16, 128>}]} {
    %cst = arith.constant 0.000000e+00 : f32
    %0 = vector.broadcast %cst : f32 to vector<1x10x64xf32>
    %cst_0 = arith.constant 0.000000e+00 : f32
    %1 = vector.broadcast %cst_0 : f32 to vector<10x1x64xf32>
    %c0 = arith.constant 0 : index
    %c0_1 = arith.constant 0 : index
    %c0_2 = arith.constant 0 : index
    %2 = vector.load %arg16[%c0, %c0_1, %c0_2] : memref<10x10x64xf32, #tpu.memory_space<vmem>>, vector<1x10x64xf32>
    tpu.vector_store %arg16[%c0, %c0_1, %c0_2], %0 {strides = array<i32>} : memref<10x10x64xf32, #tpu.memory_space<vmem>>, vector<1x10x64xf32>,
    %c9 = arith.constant 9 : index
    %c0_3 = arith.constant 0 : index
    %c0_4 = arith.constant 0 : index
    %3 = vector.load %arg16[%c9, %c0_3, %c0_4] : memref<10x10x64xf32, #tpu.memory_space<vmem>>, vector<1x10x64xf32>
    tpu.vector_store %arg16[%c9, %c0_3, %c0_4], %0 {strides = array<i32>} : memref<10x10x64xf32, #tpu.memory_space<vmem>>, vector<1x10x64xf32>,
    %c0_5 = arith.constant 0 : index
    %c0_6 = arith.constant 0 : index
    %c0_7 = arith.constant 0 : index
    %4 = vector.load %arg16[%c0_5, %c0_6, %c0_7] : memref<10x10x64xf32, #tpu.memory_space<vmem>>, vector<10x1x64xf32>
    tpu.vector_store %arg16[%c0_5, %c0_6, %c0_7], %1 {strides = array<i32>} : memref<10x10x64xf32, #tpu.memory_space<vmem>>, vector<10x1x64xf32>,
    %c0_8 = arith.constant 0 : index
    %c9_9 = arith.constant 9 : index
    %c0_10 = arith.constant 0 : index
    %5 = vector.load %arg16[%c0_8, %c9_9, %c0_10] : memref<10x10x64xf32, #tpu.memory_space<vmem>>, vector<10x1x64xf32>
    tpu.vector_store %arg16[%c0_8, %c9_9, %c0_10], %1 {strides = array<i32>} : memref<10x10x64xf32, #tpu.memory_space<vmem>>, vector<10x1x64xf32>,
    %cst_11 = arith.constant 0.000000e+00 : f32
    %6 = vector.broadcast %cst_11 : f32 to vector<1x6x128xf32>
    %cst_12 = arith.constant 0.000000e+00 : f32
    %7 = vector.broadcast %cst_12 : f32 to vector<6x1x128xf32>
    %c0_13 = arith.constant 0 : index
    %c0_14 = arith.constant 0 : index
    %c0_15 = arith.constant 0 : index
    %8 = vector.load %arg17[%c0_13, %c0_14, %c0_15] : memref<6x6x128xf32, #tpu.memory_space<vmem>>, vector<1x6x128xf32>
    tpu.vector_store %arg17[%c0_13, %c0_14, %c0_15], %6 {strides = array<i32>} : memref<6x6x128xf32, #tpu.memory_space<vmem>>, vector<1x6x128xf32>,
    %c5 = arith.constant 5 : index
    %c0_16 = arith.constant 0 : index
    %c0_17 = arith.constant 0 : index
    %9 = vector.load %arg17[%c5, %c0_16, %c0_17] : memref<6x6x128xf32, #tpu.memory_space<vmem>>, vector<1x6x128xf32>
    tpu.vector_store %arg17[%c5, %c0_16, %c0_17], %6 {strides = array<i32>} : memref<6x6x128xf32, #tpu.memory_space<vmem>>, vector<1x6x128xf32>,
    %c0_18 = arith.constant 0 : index
    %c0_19 = arith.constant 0 : index
    %c0_20 = arith.constant 0 : index
    %10 = vector.load %arg17[%c0_18, %c0_19, %c0_20] : memref<6x6x128xf32, #tpu.memory_space<vmem>>, vector<6x1x128xf32>
    tpu.vector_store %arg17[%c0_18, %c0_19, %c0_20], %7 {strides = array<i32>} : memref<6x6x128xf32, #tpu.memory_space<vmem>>, vector<6x1x128xf32>,
    %c0_21 = arith.constant 0 : index
    %c5_22 = arith.constant 5 : index
    %c0_23 = arith.constant 0 : index
    %11 = vector.load %arg17[%c0_21, %c5_22, %c0_23] : memref<6x6x128xf32, #tpu.memory_space<vmem>>, vector<6x1x128xf32>
    tpu.vector_store %arg17[%c0_21, %c5_22, %c0_23], %7 {strides = array<i32>} : memref<6x6x128xf32, #tpu.memory_space<vmem>>, vector<6x1x128xf32>,
    %c0_24 = arith.constant 0 : index
    %c0_25 = arith.constant 0 : index
    %c0_26 = arith.constant 0 : index
    %c0_27 = arith.constant 0 : index
    %12 = vector.load %arg1[%c0_24, %c0_25, %c0_26, %c0_27] : memref<1x9x9x128xbf16, #tpu.memory_space<vmem>>, vector<1x8x8x32xbf16>
    %13 = vector.shape_cast %12 : vector<1x8x8x32xbf16> to vector<8x8x32xbf16>
    %c0_28 = arith.constant 0 : index
    %c0_29 = arith.constant 0 : index
    %c0_30 = arith.constant 0 : index
    %c32 = arith.constant 32 : index
    %14 = vector.load %arg1[%c0_28, %c0_29, %c0_30, %c32] : memref<1x9x9x128xbf16, #tpu.memory_space<vmem>>, vector<1x8x8x32xbf16>
    %15 = vector.shape_cast %14 : vector<1x8x8x32xbf16> to vector<8x8x32xbf16>
    %c0_31 = arith.constant 0 : index
    %c0_32 = arith.constant 0 : index
    %c1 = arith.constant 1 : index
    %c0_33 = arith.constant 0 : index
    %16 = vector.load %arg1[%c0_31, %c0_32, %c1, %c0_33] : memref<1x9x9x128xbf16, #tpu.memory_space<vmem>>, vector<1x8x8x32xbf16>
    %17 = vector.shape_cast %16 : vector<1x8x8x32xbf16> to vector<8x8x32xbf16>
    %c0_34 = arith.constant 0 : index
    %c0_35 = arith.constant 0 : index
    %c0_36 = arith.constant 0 : index
    %c64 = arith.constant 64 : index
    %18 = vector.load %arg1[%c0_34, %c0_35, %c0_36, %c64] : memref<1x9x9x128xbf16, #tpu.memory_space<vmem>>, vector<1x8x8x32xbf16>
    %19 = vector.shape_cast %18 : vector<1x8x8x32xbf16> to vector<8x8x32xbf16>
    %c0_37 = arith.constant 0 : index
    %c0_38 = arith.constant 0 : index
    %c0_39 = arith.constant 0 : index
    %c96 = arith.constant 96 : index
    %20 = vector.load %arg1[%c0_37, %c0_38, %c0_39, %c96] : memref<1x9x9x128xbf16, #tpu.memory_space<vmem>>, vector<1x8x8x32xbf16>
    %21 = vector.shape_cast %20 : vector<1x8x8x32xbf16> to vector<8x8x32xbf16>
    %c0_40 = arith.constant 0 : index
    %c0_41 = arith.constant 0 : index
    %c1_42 = arith.constant 1 : index
    %c64_43 = arith.constant 64 : index
    %22 = vector.load %arg1[%c0_40, %c0_41, %c1_42, %c64_43] : memref<1x9x9x128xbf16, #tpu.memory_space<vmem>>, vector<1x8x8x32xbf16>
    %23 = vector.shape_cast %22 : vector<1x8x8x32xbf16> to vector<8x8x32xbf16>
    %c0_44 = arith.constant 0 : index
    %c1_45 = arith.constant 1 : index
    %c0_46 = arith.constant 0 : index
    %c0_47 = arith.constant 0 : index
    %24 = vector.load %arg1[%c0_44, %c1_45, %c0_46, %c0_47] : memref<1x9x9x128xbf16, #tpu.memory_space<vmem>>, vector<1x8x8x32xbf16>
    %25 = vector.shape_cast %24 : vector<1x8x8x32xbf16> to vector<8x8x32xbf16>
    %c0_48 = arith.constant 0 : index
    %c1_49 = arith.constant 1 : index
    %c0_50 = arith.constant 0 : index
    %c32_51 = arith.constant 32 : index
    %26 = vector.load %arg1[%c0_48, %c1_49, %c0_50, %c32_51] : memref<1x9x9x128xbf16, #tpu.memory_space<vmem>>, vector<1x8x8x32xbf16>
    %27 = vector.shape_cast %26 : vector<1x8x8x32xbf16> to vector<8x8x32xbf16>
    %c0_52 = arith.constant 0 : index
    %c1_53 = arith.constant 1 : index
    %c1_54 = arith.constant 1 : index
    %c0_55 = arith.constant 0 : index
    %28 = vector.load %arg1[%c0_52, %c1_53, %c1_54, %c0_55] : memref<1x9x9x128xbf16, #tpu.memory_space<vmem>>, vector<1x8x8x32xbf16>
    %29 = vector.shape_cast %28 : vector<1x8x8x32xbf16> to vector<8x8x32xbf16>
    %30 = tpu.concatenate %13, %15, %17, %19, %21, %23, %25, %27, %29 in 2 : vector<8x8x32xbf16>, vector<8x8x32xbf16>, vector<8x8x32xbf16>, vector<8x8x32xbf16>, vector<8x8x32xbf16>, vector<8x8x32xbf16>, vector<8x8x32xbf16>, vector<8x8x32xbf16>, vector<8x8x32xbf16> -> vector<8x8x288xbf16>
    %31 = vector.shape_cast %30 : vector<8x8x288xbf16> to vector<64x288xbf16>
    %c0_56 = arith.constant 0 : index
    %c0_57 = arith.constant 0 : index
    %32 = vector.load %arg2[%c0_56, %c0_57] : memref<288x64xbf16, #tpu.memory_space<vmem>>, vector<288x64xbf16>
    %cst_58 = arith.constant dense<0.000000e+00> : vector<64x64xf32>
    %33 = tpu.matmul %31, %32, %cst_58 {dimension_numbers = #tpu.dot_dimension_numbers<[1], [0], [0], [1], [0, 0, 1, 1], [], []>} : vector<64x288xbf16>, vector<288x64xbf16>, vector<64x64xf32> -> vector<64x64xf32>
    %c0_59 = arith.constant 0 : index
    %c0_60 = arith.constant 0 : index
    %34 = vector.load %arg3[%c0_59, %c0_60] : memref<1x64xf32, #tpu.memory_space<vmem>>, vector<1x64xf32>
    %35 = vector.broadcast %34 : vector<1x64xf32> to vector<64x64xf32>
    %36 = arith.mulf %33, %35 : vector<64x64xf32>
    %c0_61 = arith.constant 0 : index
    %c0_62 = arith.constant 0 : index
    %37 = vector.load %arg4[%c0_61, %c0_62] : memref<1x64xf32, #tpu.memory_space<vmem>>, vector<1x64xf32>
    %38 = vector.broadcast %37 : vector<1x64xf32> to vector<64x64xf32>
    %39 = arith.addf %36, %38 : vector<64x64xf32>
    %cst_63 = arith.constant 0.000000e+00 : f32
    %40 = vector.broadcast %cst_63 : f32 to vector<64x64xf32>
    %41 = arith.cmpf ogt, %39, %40 : vector<64x64xf32>
    %cst_64 = arith.constant 1.000000e-01 : f32
    %42 = vector.broadcast %cst_64 : f32 to vector<64x64xf32>
    %43 = arith.mulf %42, %39 : vector<64x64xf32>
    %44 = arith.select %41, %39, %43 : vector<64x64xi1>, vector<64x64xf32>
    %45 = vector.shape_cast %44 : vector<64x64xf32> to vector<8x8x64xf32>
    %c1_65 = arith.constant 1 : index
    %c1_66 = arith.constant 1 : index
    %c0_67 = arith.constant 0 : index
    %46 = vector.load %arg16[%c1_65, %c1_66, %c0_67] : memref<10x10x64xf32, #tpu.memory_space<vmem>>, vector<8x8x64xf32>
    tpu.vector_store %arg16[%c1_65, %c1_66, %c0_67], %45 {strides = array<i32>} : memref<10x10x64xf32, #tpu.memory_space<vmem>>, vector<8x8x64xf32>,
    %c0_68 = arith.constant 0 : index
    %c0_69 = arith.constant 0 : index
    %c0_70 = arith.constant 0 : index
    %47 = vector.load %arg16[%c0_68, %c0_69, %c0_70] : memref<10x10x64xf32, #tpu.memory_space<vmem>>, vector<8x8x64xf32>
    %c0_71 = arith.constant 0 : index
    %c1_72 = arith.constant 1 : index
    %c0_73 = arith.constant 0 : index
    %48 = vector.load %arg16[%c0_71, %c1_72, %c0_73] : memref<10x10x64xf32, #tpu.memory_space<vmem>>, vector<8x8x64xf32>
    %c0_74 = arith.constant 0 : index
    %c2 = arith.constant 2 : index
    %c0_75 = arith.constant 0 : index
    %49 = vector.load %arg16[%c0_74, %c2, %c0_75] : memref<10x10x64xf32, #tpu.memory_space<vmem>>, vector<8x8x64xf32>
    %c1_76 = arith.constant 1 : index
    %c0_77 = arith.constant 0 : index
    %c0_78 = arith.constant 0 : index
    %50 = vector.load %arg16[%c1_76, %c0_77, %c0_78] : memref<10x10x64xf32, #tpu.memory_space<vmem>>, vector<8x8x64xf32>
    %c1_79 = arith.constant 1 : index
    %c1_80 = arith.constant 1 : index
    %c0_81 = arith.constant 0 : index
    %51 = vector.load %arg16[%c1_79, %c1_80, %c0_81] : memref<10x10x64xf32, #tpu.memory_space<vmem>>, vector<8x8x64xf32>
    %c1_82 = arith.constant 1 : index
    %c2_83 = arith.constant 2 : index
    %c0_84 = arith.constant 0 : index
    %52 = vector.load %arg16[%c1_82, %c2_83, %c0_84] : memref<10x10x64xf32, #tpu.memory_space<vmem>>, vector<8x8x64xf32>
    %c2_85 = arith.constant 2 : index
    %c0_86 = arith.constant 0 : index
    %c0_87 = arith.constant 0 : index
    %53 = vector.load %arg16[%c2_85, %c0_86, %c0_87] : memref<10x10x64xf32, #tpu.memory_space<vmem>>, vector<8x8x64xf32>
    %c2_88 = arith.constant 2 : index
    %c1_89 = arith.constant 1 : index
    %c0_90 = arith.constant 0 : index
    %54 = vector.load %arg16[%c2_88, %c1_89, %c0_90] : memref<10x10x64xf32, #tpu.memory_space<vmem>>, vector<8x8x64xf32>
    %c2_91 = arith.constant 2 : index
    %c2_92 = arith.constant 2 : index
    %c0_93 = arith.constant 0 : index
    %55 = vector.load %arg16[%c2_91, %c2_92, %c0_93] : memref<10x10x64xf32, #tpu.memory_space<vmem>>, vector<8x8x64xf32>
    %56 = tpu.concatenate %47, %48, %49, %50, %51, %52, %53, %54, %55 in 2 : vector<8x8x64xf32>, vector<8x8x64xf32>, vector<8x8x64xf32>, vector<8x8x64xf32>, vector<8x8x64xf32>, vector<8x8x64xf32>, vector<8x8x64xf32>, vector<8x8x64xf32>, vector<8x8x64xf32> -> vector<8x8x576xf32>
    %57 = vector.shape_cast %56 : vector<8x8x576xf32> to vector<64x576xf32>
    %58 = arith.truncf %57 : vector<64x576xf32> to vector<64x576xbf16>
    %c0_94 = arith.constant 0 : index
    %c0_95 = arith.constant 0 : index
    %59 = vector.load %arg5[%c0_94, %c0_95] : memref<576x64xbf16, #tpu.memory_space<vmem>>, vector<576x64xbf16>
    %cst_96 = arith.constant dense<0.000000e+00> : vector<64x64xf32>
    %60 = tpu.matmul %58, %59, %cst_96 {dimension_numbers = #tpu.dot_dimension_numbers<[1], [0], [0], [1], [0, 0, 1, 1], [], []>} : vector<64x576xbf16>, vector<576x64xbf16>, vector<64x64xf32> -> vector<64x64xf32>
    %c0_97 = arith.constant 0 : index
    %c0_98 = arith.constant 0 : index
    %61 = vector.load %arg6[%c0_97, %c0_98] : memref<1x64xf32, #tpu.memory_space<vmem>>, vector<1x64xf32>
    %62 = vector.broadcast %61 : vector<1x64xf32> to vector<64x64xf32>
    %63 = arith.mulf %60, %62 : vector<64x64xf32>
    %c0_99 = arith.constant 0 : index
    %c0_100 = arith.constant 0 : index
    %64 = vector.load %arg7[%c0_99, %c0_100] : memref<1x64xf32, #tpu.memory_space<vmem>>, vector<1x64xf32>
    %65 = vector.broadcast %64 : vector<1x64xf32> to vector<64x64xf32>
    %66 = arith.addf %63, %65 : vector<64x64xf32>
    %cst_101 = arith.constant 0.000000e+00 : f32
    %67 = vector.broadcast %cst_101 : f32 to vector<64x64xf32>
    %68 = arith.cmpf ogt, %66, %67 : vector<64x64xf32>
    %cst_102 = arith.constant 1.000000e-01 : f32
    %69 = vector.broadcast %cst_102 : f32 to vector<64x64xf32>
    %70 = arith.mulf %69, %66 : vector<64x64xf32>
    %71 = arith.select %68, %66, %70 : vector<64x64xi1>, vector<64x64xf32>
    %72 = vector.shape_cast %71 : vector<64x64xf32> to vector<8x8x64xf32>
    %c1_103 = arith.constant 1 : index
    %c1_104 = arith.constant 1 : index
    %c0_105 = arith.constant 0 : index
    %73 = vector.load %arg16[%c1_103, %c1_104, %c0_105] : memref<10x10x64xf32, #tpu.memory_space<vmem>>, vector<8x8x64xf32>
    tpu.vector_store %arg16[%c1_103, %c1_104, %c0_105], %72 {strides = array<i32>} : memref<10x10x64xf32, #tpu.memory_space<vmem>>, vector<8x8x64xf32>,
    %c0_106 = arith.constant 0 : index
    %c0_107 = arith.constant 0 : index
    %c0_108 = arith.constant 0 : index
    %74 = tpu.strided_load %arg16[%c0_106, %c0_107, %c0_108] {strides = array<i32: 2, 2, 1>} : memref<10x10x64xf32, #tpu.memory_space<vmem>>, vector<4x4x64xf32>
    %75 = vector.shape_cast %74 : vector<4x4x64xf32> to vector<16x64xf32>
    %76 = arith.truncf %75 : vector<16x64xf32> to vector<16x64xbf16>
    %c0_109 = arith.constant 0 : index
    %c0_110 = arith.constant 0 : index
    %77 = vector.load %arg8[%c0_109, %c0_110] : memref<576x128xbf16, #tpu.memory_space<vmem>>, vector<64x128xbf16>
    %cst_111 = arith.constant dense<0.000000e+00> : vector<16x128xf32>
    %78 = tpu.matmul %76, %77, %cst_111 {dimension_numbers = #tpu.dot_dimension_numbers<[1], [0], [0], [1], [0, 0, 1, 1], [], []>} : vector<16x64xbf16>, vector<64x128xbf16>, vector<16x128xf32> -> vector<16x128xf32>
    %c0_112 = arith.constant 0 : index
    %c1_113 = arith.constant 1 : index
    %c0_114 = arith.constant 0 : index
    %79 = tpu.strided_load %arg16[%c0_112, %c1_113, %c0_114] {strides = array<i32: 2, 2, 1>} : memref<10x10x64xf32, #tpu.memory_space<vmem>>, vector<4x4x64xf32>
    %80 = vector.shape_cast %79 : vector<4x4x64xf32> to vector<16x64xf32>
    %81 = arith.truncf %80 : vector<16x64xf32> to vector<16x64xbf16>
    %c64_115 = arith.constant 64 : index
    %c0_116 = arith.constant 0 : index
    %82 = vector.load %arg8[%c64_115, %c0_116] : memref<576x128xbf16, #tpu.memory_space<vmem>>, vector<64x128xbf16>
    %cst_117 = arith.constant dense<0.000000e+00> : vector<16x128xf32>
    %83 = tpu.matmul %81, %82, %cst_117 {dimension_numbers = #tpu.dot_dimension_numbers<[1], [0], [0], [1], [0, 0, 1, 1], [], []>} : vector<16x64xbf16>, vector<64x128xbf16>, vector<16x128xf32> -> vector<16x128xf32>
    %84 = arith.addf %78, %83 : vector<16x128xf32>
    %c0_118 = arith.constant 0 : index
    %c2_119 = arith.constant 2 : index
    %c0_120 = arith.constant 0 : index
    %85 = tpu.strided_load %arg16[%c0_118, %c2_119, %c0_120] {strides = array<i32: 2, 2, 1>} : memref<10x10x64xf32, #tpu.memory_space<vmem>>, vector<4x4x64xf32>
    %86 = vector.shape_cast %85 : vector<4x4x64xf32> to vector<16x64xf32>
    %87 = arith.truncf %86 : vector<16x64xf32> to vector<16x64xbf16>
    %c128 = arith.constant 128 : index
    %c0_121 = arith.constant 0 : index
    %88 = vector.load %arg8[%c128, %c0_121] : memref<576x128xbf16, #tpu.memory_space<vmem>>, vector<64x128xbf16>
    %cst_122 = arith.constant dense<0.000000e+00> : vector<16x128xf32>
    %89 = tpu.matmul %87, %88, %cst_122 {dimension_numbers = #tpu.dot_dimension_numbers<[1], [0], [0], [1], [0, 0, 1, 1], [], []>} : vector<16x64xbf16>, vector<64x128xbf16>, vector<16x128xf32> -> vector<16x128xf32>
    %90 = arith.addf %84, %89 : vector<16x128xf32>
    %c1_123 = arith.constant 1 : index
    %c0_124 = arith.constant 0 : index
    %c0_125 = arith.constant 0 : index
    %91 = tpu.strided_load %arg16[%c1_123, %c0_124, %c0_125] {strides = array<i32: 2, 2, 1>} : memref<10x10x64xf32, #tpu.memory_space<vmem>>, vector<4x4x64xf32>
    %92 = vector.shape_cast %91 : vector<4x4x64xf32> to vector<16x64xf32>
    %93 = arith.truncf %92 : vector<16x64xf32> to vector<16x64xbf16>
    %c192 = arith.constant 192 : index
    %c0_126 = arith.constant 0 : index
    %94 = vector.load %arg8[%c192, %c0_126] : memref<576x128xbf16, #tpu.memory_space<vmem>>, vector<64x128xbf16>
    %cst_127 = arith.constant dense<0.000000e+00> : vector<16x128xf32>
    %95 = tpu.matmul %93, %94, %cst_127 {dimension_numbers = #tpu.dot_dimension_numbers<[1], [0], [0], [1], [0, 0, 1, 1], [], []>} : vector<16x64xbf16>, vector<64x128xbf16>, vector<16x128xf32> -> vector<16x128xf32>
    %96 = arith.addf %90, %95 : vector<16x128xf32>
    %c1_128 = arith.constant 1 : index
    %c1_129 = arith.constant 1 : index
    %c0_130 = arith.constant 0 : index
    %97 = tpu.strided_load %arg16[%c1_128, %c1_129, %c0_130] {strides = array<i32: 2, 2, 1>} : memref<10x10x64xf32, #tpu.memory_space<vmem>>, vector<4x4x64xf32>
    %98 = vector.shape_cast %97 : vector<4x4x64xf32> to vector<16x64xf32>
    %99 = arith.truncf %98 : vector<16x64xf32> to vector<16x64xbf16>
    %c256 = arith.constant 256 : index
    %c0_131 = arith.constant 0 : index
    %100 = vector.load %arg8[%c256, %c0_131] : memref<576x128xbf16, #tpu.memory_space<vmem>>, vector<64x128xbf16>
    %cst_132 = arith.constant dense<0.000000e+00> : vector<16x128xf32>
    %101 = tpu.matmul %99, %100, %cst_132 {dimension_numbers = #tpu.dot_dimension_numbers<[1], [0], [0], [1], [0, 0, 1, 1], [], []>} : vector<16x64xbf16>, vector<64x128xbf16>, vector<16x128xf32> -> vector<16x128xf32>
    %102 = arith.addf %96, %101 : vector<16x128xf32>
    %c1_133 = arith.constant 1 : index
    %c2_134 = arith.constant 2 : index
    %c0_135 = arith.constant 0 : index
    %103 = tpu.strided_load %arg16[%c1_133, %c2_134, %c0_135] {strides = array<i32: 2, 2, 1>} : memref<10x10x64xf32, #tpu.memory_space<vmem>>, vector<4x4x64xf32>
    %104 = vector.shape_cast %103 : vector<4x4x64xf32> to vector<16x64xf32>
    %105 = arith.truncf %104 : vector<16x64xf32> to vector<16x64xbf16>
    %c320 = arith.constant 320 : index
    %c0_136 = arith.constant 0 : index
    %106 = vector.load %arg8[%c320, %c0_136] : memref<576x128xbf16, #tpu.memory_space<vmem>>, vector<64x128xbf16>
    %cst_137 = arith.constant dense<0.000000e+00> : vector<16x128xf32>
    %107 = tpu.matmul %105, %106, %cst_137 {dimension_numbers = #tpu.dot_dimension_numbers<[1], [0], [0], [1], [0, 0, 1, 1], [], []>} : vector<16x64xbf16>, vector<64x128xbf16>, vector<16x128xf32> -> vector<16x128xf32>
    %108 = arith.addf %102, %107 : vector<16x128xf32>
    %c2_138 = arith.constant 2 : index
    %c0_139 = arith.constant 0 : index
    %c0_140 = arith.constant 0 : index
    %109 = tpu.strided_load %arg16[%c2_138, %c0_139, %c0_140] {strides = array<i32: 2, 2, 1>} : memref<10x10x64xf32, #tpu.memory_space<vmem>>, vector<4x4x64xf32>
    %110 = vector.shape_cast %109 : vector<4x4x64xf32> to vector<16x64xf32>
    %111 = arith.truncf %110 : vector<16x64xf32> to vector<16x64xbf16>
    %c384 = arith.constant 384 : index
    %c0_141 = arith.constant 0 : index
    %112 = vector.load %arg8[%c384, %c0_141] : memref<576x128xbf16, #tpu.memory_space<vmem>>, vector<64x128xbf16>
    %cst_142 = arith.constant dense<0.000000e+00> : vector<16x128xf32>
    %113 = tpu.matmul %111, %112, %cst_142 {dimension_numbers = #tpu.dot_dimension_numbers<[1], [0], [0], [1], [0, 0, 1, 1], [], []>} : vector<16x64xbf16>, vector<64x128xbf16>, vector<16x128xf32> -> vector<16x128xf32>
    %114 = arith.addf %108, %113 : vector<16x128xf32>
    %c2_143 = arith.constant 2 : index
    %c1_144 = arith.constant 1 : index
    %c0_145 = arith.constant 0 : index
    %115 = tpu.strided_load %arg16[%c2_143, %c1_144, %c0_145] {strides = array<i32: 2, 2, 1>} : memref<10x10x64xf32, #tpu.memory_space<vmem>>, vector<4x4x64xf32>
    %116 = vector.shape_cast %115 : vector<4x4x64xf32> to vector<16x64xf32>
    %117 = arith.truncf %116 : vector<16x64xf32> to vector<16x64xbf16>
    %c448 = arith.constant 448 : index
    %c0_146 = arith.constant 0 : index
    %118 = vector.load %arg8[%c448, %c0_146] : memref<576x128xbf16, #tpu.memory_space<vmem>>, vector<64x128xbf16>
    %cst_147 = arith.constant dense<0.000000e+00> : vector<16x128xf32>
    %119 = tpu.matmul %117, %118, %cst_147 {dimension_numbers = #tpu.dot_dimension_numbers<[1], [0], [0], [1], [0, 0, 1, 1], [], []>} : vector<16x64xbf16>, vector<64x128xbf16>, vector<16x128xf32> -> vector<16x128xf32>
    %120 = arith.addf %114, %119 : vector<16x128xf32>
    %c2_148 = arith.constant 2 : index
    %c2_149 = arith.constant 2 : index
    %c0_150 = arith.constant 0 : index
    %121 = tpu.strided_load %arg16[%c2_148, %c2_149, %c0_150] {strides = array<i32: 2, 2, 1>} : memref<10x10x64xf32, #tpu.memory_space<vmem>>, vector<4x4x64xf32>
    %122 = vector.shape_cast %121 : vector<4x4x64xf32> to vector<16x64xf32>
    %123 = arith.truncf %122 : vector<16x64xf32> to vector<16x64xbf16>
    %c512 = arith.constant 512 : index
    %c0_151 = arith.constant 0 : index
    %124 = vector.load %arg8[%c512, %c0_151] : memref<576x128xbf16, #tpu.memory_space<vmem>>, vector<64x128xbf16>
    %cst_152 = arith.constant dense<0.000000e+00> : vector<16x128xf32>
    %125 = tpu.matmul %123, %124, %cst_152 {dimension_numbers = #tpu.dot_dimension_numbers<[1], [0], [0], [1], [0, 0, 1, 1], [], []>} : vector<16x64xbf16>, vector<64x128xbf16>, vector<16x128xf32> -> vector<16x128xf32>
    %126 = arith.addf %120, %125 : vector<16x128xf32>
    %c0_153 = arith.constant 0 : index
    %c0_154 = arith.constant 0 : index
    %127 = vector.load %arg9[%c0_153, %c0_154] : memref<1x128xf32, #tpu.memory_space<vmem>>, vector<1x128xf32>
    %128 = vector.broadcast %127 : vector<1x128xf32> to vector<16x128xf32>
    %129 = arith.mulf %126, %128 : vector<16x128xf32>
    %c0_155 = arith.constant 0 : index
    %c0_156 = arith.constant 0 : index
    %130 = vector.load %arg10[%c0_155, %c0_156] : memref<1x128xf32, #tpu.memory_space<vmem>>, vector<1x128xf32>
    %131 = vector.broadcast %130 : vector<1x128xf32> to vector<16x128xf32>
    %132 = arith.addf %129, %131 : vector<16x128xf32>
    %cst_157 = arith.constant 0.000000e+00 : f32
    %133 = vector.broadcast %cst_157 : f32 to vector<16x128xf32>
    %134 = arith.cmpf ogt, %132, %133 : vector<16x128xf32>
    %cst_158 = arith.constant 1.000000e-01 : f32
    %135 = vector.broadcast %cst_158 : f32 to vector<16x128xf32>
    %136 = arith.mulf %135, %132 : vector<16x128xf32>
    %137 = arith.select %134, %132, %136 : vector<16x128xi1>, vector<16x128xf32>
    %138 = vector.shape_cast %137 : vector<16x128xf32> to vector<4x4x128xf32>
    %c1_159 = arith.constant 1 : index
    %c1_160 = arith.constant 1 : index
    %c0_161 = arith.constant 0 : index
    %139 = vector.load %arg17[%c1_159, %c1_160, %c0_161] : memref<6x6x128xf32, #tpu.memory_space<vmem>>, vector<4x4x128xf32>
    tpu.vector_store %arg17[%c1_159, %c1_160, %c0_161], %138 {strides = array<i32>} : memref<6x6x128xf32, #tpu.memory_space<vmem>>, vector<4x4x128xf32>,
    %c0_162 = arith.constant 0 : index
    %c0_163 = arith.constant 0 : index
    %c0_164 = arith.constant 0 : index
    %140 = vector.load %arg17[%c0_162, %c0_163, %c0_164] : memref<6x6x128xf32, #tpu.memory_space<vmem>>, vector<4x4x128xf32>
    %141 = vector.shape_cast %140 : vector<4x4x128xf32> to vector<16x128xf32>
    %142 = arith.truncf %141 : vector<16x128xf32> to vector<16x128xbf16>
    %c0_165 = arith.constant 0 : index
    %c0_166 = arith.constant 0 : index
    %143 = vector.load %arg11[%c0_165, %c0_166] : memref<1152x128xbf16, #tpu.memory_space<vmem>>, vector<128x128xbf16>
    %cst_167 = arith.constant dense<0.000000e+00> : vector<16x128xf32>
    %144 = tpu.matmul %142, %143, %cst_167 {dimension_numbers = #tpu.dot_dimension_numbers<[1], [0], [0], [1], [0, 0, 1, 1], [], []>} : vector<16x128xbf16>, vector<128x128xbf16>, vector<16x128xf32> -> vector<16x128xf32>
    %c0_168 = arith.constant 0 : index
    %c1_169 = arith.constant 1 : index
    %c0_170 = arith.constant 0 : index
    %145 = vector.load %arg17[%c0_168, %c1_169, %c0_170] : memref<6x6x128xf32, #tpu.memory_space<vmem>>, vector<4x4x128xf32>
    %146 = vector.shape_cast %145 : vector<4x4x128xf32> to vector<16x128xf32>
    %147 = arith.truncf %146 : vector<16x128xf32> to vector<16x128xbf16>
    %c128_171 = arith.constant 128 : index
    %c0_172 = arith.constant 0 : index
    %148 = vector.load %arg11[%c128_171, %c0_172] : memref<1152x128xbf16, #tpu.memory_space<vmem>>, vector<128x128xbf16>
    %cst_173 = arith.constant dense<0.000000e+00> : vector<16x128xf32>
    %149 = tpu.matmul %147, %148, %cst_173 {dimension_numbers = #tpu.dot_dimension_numbers<[1], [0], [0], [1], [0, 0, 1, 1], [], []>} : vector<16x128xbf16>, vector<128x128xbf16>, vector<16x128xf32> -> vector<16x128xf32>
    %150 = arith.addf %144, %149 : vector<16x128xf32>
    %c0_174 = arith.constant 0 : index
    %c2_175 = arith.constant 2 : index
    %c0_176 = arith.constant 0 : index
    %151 = vector.load %arg17[%c0_174, %c2_175, %c0_176] : memref<6x6x128xf32, #tpu.memory_space<vmem>>, vector<4x4x128xf32>
    %152 = vector.shape_cast %151 : vector<4x4x128xf32> to vector<16x128xf32>
    %153 = arith.truncf %152 : vector<16x128xf32> to vector<16x128xbf16>
    %c256_177 = arith.constant 256 : index
    %c0_178 = arith.constant 0 : index
    %154 = vector.load %arg11[%c256_177, %c0_178] : memref<1152x128xbf16, #tpu.memory_space<vmem>>, vector<128x128xbf16>
    %cst_179 = arith.constant dense<0.000000e+00> : vector<16x128xf32>
    %155 = tpu.matmul %153, %154, %cst_179 {dimension_numbers = #tpu.dot_dimension_numbers<[1], [0], [0], [1], [0, 0, 1, 1], [], []>} : vector<16x128xbf16>, vector<128x128xbf16>, vector<16x128xf32> -> vector<16x128xf32>
    %156 = arith.addf %150, %155 : vector<16x128xf32>
    %c1_180 = arith.constant 1 : index
    %c0_181 = arith.constant 0 : index
    %c0_182 = arith.constant 0 : index
    %157 = vector.load %arg17[%c1_180, %c0_181, %c0_182] : memref<6x6x128xf32, #tpu.memory_space<vmem>>, vector<4x4x128xf32>
    %158 = vector.shape_cast %157 : vector<4x4x128xf32> to vector<16x128xf32>
    %159 = arith.truncf %158 : vector<16x128xf32> to vector<16x128xbf16>
    %c384_183 = arith.constant 384 : index
    %c0_184 = arith.constant 0 : index
    %160 = vector.load %arg11[%c384_183, %c0_184] : memref<1152x128xbf16, #tpu.memory_space<vmem>>, vector<128x128xbf16>
    %cst_185 = arith.constant dense<0.000000e+00> : vector<16x128xf32>
    %161 = tpu.matmul %159, %160, %cst_185 {dimension_numbers = #tpu.dot_dimension_numbers<[1], [0], [0], [1], [0, 0, 1, 1], [], []>} : vector<16x128xbf16>, vector<128x128xbf16>, vector<16x128xf32> -> vector<16x128xf32>
    %162 = arith.addf %156, %161 : vector<16x128xf32>
    %c1_186 = arith.constant 1 : index
    %c1_187 = arith.constant 1 : index
    %c0_188 = arith.constant 0 : index
    %163 = vector.load %arg17[%c1_186, %c1_187, %c0_188] : memref<6x6x128xf32, #tpu.memory_space<vmem>>, vector<4x4x128xf32>
    %164 = vector.shape_cast %163 : vector<4x4x128xf32> to vector<16x128xf32>
    %165 = arith.truncf %164 : vector<16x128xf32> to vector<16x128xbf16>
    %c512_189 = arith.constant 512 : index
    %c0_190 = arith.constant 0 : index
    %166 = vector.load %arg11[%c512_189, %c0_190] : memref<1152x128xbf16, #tpu.memory_space<vmem>>, vector<128x128xbf16>
    %cst_191 = arith.constant dense<0.000000e+00> : vector<16x128xf32>
    %167 = tpu.matmul %165, %166, %cst_191 {dimension_numbers = #tpu.dot_dimension_numbers<[1], [0], [0], [1], [0, 0, 1, 1], [], []>} : vector<16x128xbf16>, vector<128x128xbf16>, vector<16x128xf32> -> vector<16x128xf32>
    %168 = arith.addf %162, %167 : vector<16x128xf32>
    %c1_192 = arith.constant 1 : index
    %c2_193 = arith.constant 2 : index
    %c0_194 = arith.constant 0 : index
    %169 = vector.load %arg17[%c1_192, %c2_193, %c0_194] : memref<6x6x128xf32, #tpu.memory_space<vmem>>, vector<4x4x128xf32>
    %170 = vector.shape_cast %169 : vector<4x4x128xf32> to vector<16x128xf32>
    %171 = arith.truncf %170 : vector<16x128xf32> to vector<16x128xbf16>
    %c640 = arith.constant 640 : index
    %c0_195 = arith.constant 0 : index
    %172 = vector.load %arg11[%c640, %c0_195] : memref<1152x128xbf16, #tpu.memory_space<vmem>>, vector<128x128xbf16>
    %cst_196 = arith.constant dense<0.000000e+00> : vector<16x128xf32>
    %173 = tpu.matmul %171, %172, %cst_196 {dimension_numbers = #tpu.dot_dimension_numbers<[1], [0], [0], [1], [0, 0, 1, 1], [], []>} : vector<16x128xbf16>, vector<128x128xbf16>, vector<16x128xf32> -> vector<16x128xf32>
    %174 = arith.addf %168, %173 : vector<16x128xf32>
    %c2_197 = arith.constant 2 : index
    %c0_198 = arith.constant 0 : index
    %c0_199 = arith.constant 0 : index
    %175 = vector.load %arg17[%c2_197, %c0_198, %c0_199] : memref<6x6x128xf32, #tpu.memory_space<vmem>>, vector<4x4x128xf32>
    %176 = vector.shape_cast %175 : vector<4x4x128xf32> to vector<16x128xf32>
    %177 = arith.truncf %176 : vector<16x128xf32> to vector<16x128xbf16>
    %c768 = arith.constant 768 : index
    %c0_200 = arith.constant 0 : index
    %178 = vector.load %arg11[%c768, %c0_200] : memref<1152x128xbf16, #tpu.memory_space<vmem>>, vector<128x128xbf16>
    %cst_201 = arith.constant dense<0.000000e+00> : vector<16x128xf32>
    %179 = tpu.matmul %177, %178, %cst_201 {dimension_numbers = #tpu.dot_dimension_numbers<[1], [0], [0], [1], [0, 0, 1, 1], [], []>} : vector<16x128xbf16>, vector<128x128xbf16>, vector<16x128xf32> -> vector<16x128xf32>
    %180 = arith.addf %174, %179 : vector<16x128xf32>
    %c2_202 = arith.constant 2 : index
    %c1_203 = arith.constant 1 : index
    %c0_204 = arith.constant 0 : index
    %181 = vector.load %arg17[%c2_202, %c1_203, %c0_204] : memref<6x6x128xf32, #tpu.memory_space<vmem>>, vector<4x4x128xf32>
    %182 = vector.shape_cast %181 : vector<4x4x128xf32> to vector<16x128xf32>
    %183 = arith.truncf %182 : vector<16x128xf32> to vector<16x128xbf16>
    %c896 = arith.constant 896 : index
    %c0_205 = arith.constant 0 : index
    %184 = vector.load %arg11[%c896, %c0_205] : memref<1152x128xbf16, #tpu.memory_space<vmem>>, vector<128x128xbf16>
    %cst_206 = arith.constant dense<0.000000e+00> : vector<16x128xf32>
    %185 = tpu.matmul %183, %184, %cst_206 {dimension_numbers = #tpu.dot_dimension_numbers<[1], [0], [0], [1], [0, 0, 1, 1], [], []>} : vector<16x128xbf16>, vector<128x128xbf16>, vector<16x128xf32> -> vector<16x128xf32>
    %186 = arith.addf %180, %185 : vector<16x128xf32>
    %c2_207 = arith.constant 2 : index
    %c2_208 = arith.constant 2 : index
    %c0_209 = arith.constant 0 : index
    %187 = vector.load %arg17[%c2_207, %c2_208, %c0_209] : memref<6x6x128xf32, #tpu.memory_space<vmem>>, vector<4x4x128xf32>
    %188 = vector.shape_cast %187 : vector<4x4x128xf32> to vector<16x128xf32>
    %189 = arith.truncf %188 : vector<16x128xf32> to vector<16x128xbf16>
    %c1024 = arith.constant 1024 : index
    %c0_210 = arith.constant 0 : index
    %190 = vector.load %arg11[%c1024, %c0_210] : memref<1152x128xbf16, #tpu.memory_space<vmem>>, vector<128x128xbf16>
    %cst_211 = arith.constant dense<0.000000e+00> : vector<16x128xf32>
    %191 = tpu.matmul %189, %190, %cst_211 {dimension_numbers = #tpu.dot_dimension_numbers<[1], [0], [0], [1], [0, 0, 1, 1], [], []>} : vector<16x128xbf16>, vector<128x128xbf16>, vector<16x128xf32> -> vector<16x128xf32>
    %192 = arith.addf %186, %191 : vector<16x128xf32>
    %c0_212 = arith.constant 0 : index
    %c0_213 = arith.constant 0 : index
    %193 = vector.load %arg12[%c0_212, %c0_213] : memref<1x128xf32, #tpu.memory_space<vmem>>, vector<1x128xf32>
    %194 = vector.broadcast %193 : vector<1x128xf32> to vector<16x128xf32>
    %195 = arith.mulf %192, %194 : vector<16x128xf32>
    %c0_214 = arith.constant 0 : index
    %c0_215 = arith.constant 0 : index
    %196 = vector.load %arg13[%c0_214, %c0_215] : memref<1x128xf32, #tpu.memory_space<vmem>>, vector<1x128xf32>
    %197 = vector.broadcast %196 : vector<1x128xf32> to vector<16x128xf32>
    %198 = arith.addf %195, %197 : vector<16x128xf32>
    %cst_216 = arith.constant 0.000000e+00 : f32
    %199 = vector.broadcast %cst_216 : f32 to vector<16x128xf32>
    %200 = arith.cmpf ogt, %198, %199 : vector<16x128xf32>
    %cst_217 = arith.constant 1.000000e-01 : f32
    %201 = vector.broadcast %cst_217 : f32 to vector<16x128xf32>
    %202 = arith.mulf %201, %198 : vector<16x128xf32>
    %203 = arith.select %200, %198, %202 : vector<16x128xi1>, vector<16x128xf32>
    %204 = vector.shape_cast %203 : vector<16x128xf32> to vector<4x4x128xf32>
    %c0_218 = arith.constant 0 : index
    %c0_219 = arith.constant 0 : index
    %c0_220 = arith.constant 0 : index
    %205 = vector.load %arg14[%c0_218, %c0_219, %c0_220] : memref<1x1x128xf32, #tpu.memory_space<vmem>>, vector<1x1x128xf32>
    %206 = vector.shape_cast %205 : vector<1x1x128xf32> to vector<1x128xf32>
    %207 = vector.shape_cast %206 : vector<1x128xf32> to vector<1x1x128xf32>
    %208 = vector.broadcast %207 : vector<1x1x128xf32> to vector<4x4x128xf32>
    %209 = arith.addf %204, %208 : vector<4x4x128xf32>
    %210 = vector.shape_cast %209 : vector<4x4x128xf32> to vector<4x4x1x128xf32>
    %211 = vector.shape_cast %210 : vector<4x4x1x128xf32> to vector<4x4x1x128xf32>
    %212 = vector.broadcast %211 : vector<4x4x1x128xf32> to vector<4x4x4x128xf32>
    %213 = vector.shape_cast %212 : vector<4x4x4x128xf32> to vector<4x16x128xf32>
    %214 = vector.shape_cast %213 : vector<4x16x128xf32> to vector<4x1x16x128xf32>
    %215 = vector.shape_cast %214 : vector<4x1x16x128xf32> to vector<4x1x16x128xf32>
    %216 = vector.broadcast %215 : vector<4x1x16x128xf32> to vector<4x4x16x128xf32>
    %217 = vector.shape_cast %216 : vector<4x4x16x128xf32> to vector<16x16x128xf32>
    %c0_221 = arith.constant 0 : index
    %c0_222 = arith.constant 0 : index
    %c0_223 = arith.constant 0 : index
    %c0_224 = arith.constant 0 : index
    %218 = vector.load %arg15[%c0_221, %c0_222, %c0_223, %c0_224] : memref<1x16x16x128xf32, #tpu.memory_space<vmem>>, vector<1x16x16x128xf32>
    %219 = vector.shape_cast %218 : vector<1x16x16x128xf32> to vector<16x16x128xf32>
    %220 = vector.shape_cast %217 : vector<16x16x128xf32> to vector<1x16x16x128xf32>
    tpu.vector_store %arg15[%c0_221, %c0_222, %c0_223, %c0_224], %220 {strides = array<i32>} : memref<1x16x16x128xf32, #tpu.memory_space<vmem>>, vector<1x16x16x128xf32>,
    return
  }
  func.func @transform_0(%arg0: i32) -> (i32, i32, i32, i32) {
    %c0_i32 = arith.constant 0 : i32
    %c0_i32_0 = arith.constant 0 : i32
    %c0_i32_1 = arith.constant 0 : i32
    %c0_i32_2 = arith.constant 0 : i32
    return %arg0, %c0_i32, %c0_i32_0, %c0_i32_1 : i32, i32, i32, i32
  }
  func.func @transform_1(%arg0: i32) -> (i32, i32) {
    %c0_i32 = arith.constant 0 : i32
    %c0_i32_0 = arith.constant 0 : i32
    %c0_i32_1 = arith.constant 0 : i32
    return %c0_i32, %c0_i32_0 : i32, i32
  }
  func.func @transform_2(%arg0: i32) -> (i32, i32) {
    %c0_i32 = arith.constant 0 : i32
    %c0_i32_0 = arith.constant 0 : i32
    %c0_i32_1 = arith.constant 0 : i32
    return %c0_i32, %c0_i32_0 : i32, i32
  }
  func.func @transform_3(%arg0: i32) -> (i32, i32) {
    %c0_i32 = arith.constant 0 : i32
    %c0_i32_0 = arith.constant 0 : i32
    %c0_i32_1 = arith.constant 0 : i32
    return %c0_i32, %c0_i32_0 : i32, i32
  }
  func.func @transform_4(%arg0: i32) -> (i32, i32) {
    %c0_i32 = arith.constant 0 : i32
    %c0_i32_0 = arith.constant 0 : i32
    %c0_i32_1 = arith.constant 0 : i32
    return %c0_i32, %c0_i32_0 : i32, i32
  }
  func.func @transform_5(%arg0: i32) -> (i32, i32) {
    %c0_i32 = arith.constant 0 : i32
    %c0_i32_0 = arith.constant 0 : i32
    %c0_i32_1 = arith.constant 0 : i32
    return %c0_i32, %c0_i32_0 : i32, i32
  }
  func.func @transform_6(%arg0: i32) -> (i32, i32) {
    %c0_i32 = arith.constant 0 : i32
    %c0_i32_0 = arith.constant 0 : i32
    %c0_i32_1 = arith.constant 0 : i32
    return %c0_i32, %c0_i32_0 : i32, i32
  }
  func.func @transform_7(%arg0: i32) -> (i32, i32) {
    %c0_i32 = arith.constant 0 : i32
    %c0_i32_0 = arith.constant 0 : i32
    %c0_i32_1 = arith.constant 0 : i32
    return %c0_i32, %c0_i32_0 : i32, i32
  }
  func.func @transform_8(%arg0: i32) -> (i32, i32) {
    %c0_i32 = arith.constant 0 : i32
    %c0_i32_0 = arith.constant 0 : i32
    %c0_i32_1 = arith.constant 0 : i32
    return %c0_i32, %c0_i32_0 : i32, i32
  }
  func.func @transform_9(%arg0: i32) -> (i32, i32) {
    %c0_i32 = arith.constant 0 : i32
    %c0_i32_0 = arith.constant 0 : i32
    %c0_i32_1 = arith.constant 0 : i32
    return %c0_i32, %c0_i32_0 : i32, i32
  }
  func.func @transform_10(%arg0: i32) -> (i32, i32) {
    %c0_i32 = arith.constant 0 : i32
    %c0_i32_0 = arith.constant 0 : i32
    %c0_i32_1 = arith.constant 0 : i32
    return %c0_i32, %c0_i32_0 : i32, i32
  }
  func.func @transform_11(%arg0: i32) -> (i32, i32) {
    %c0_i32 = arith.constant 0 : i32
    %c0_i32_0 = arith.constant 0 : i32
    %c0_i32_1 = arith.constant 0 : i32
    return %c0_i32, %c0_i32_0 : i32, i32
  }
  func.func @transform_12(%arg0: i32) -> (i32, i32) {
    %c0_i32 = arith.constant 0 : i32
    %c0_i32_0 = arith.constant 0 : i32
    %c0_i32_1 = arith.constant 0 : i32
    return %c0_i32, %c0_i32_0 : i32, i32
  }
  func.func @transform_13(%arg0: i32) -> (i32, i32, i32) {
    %c0_i32 = arith.constant 0 : i32
    %c0_i32_0 = arith.constant 0 : i32
    %c0_i32_1 = arith.constant 0 : i32
    return %arg0, %c0_i32, %c0_i32_0 : i32, i32, i32
  }
  func.func @transform_14(%arg0: i32) -> (i32, i32, i32, i32) {
    %c0_i32 = arith.constant 0 : i32
    %c0_i32_0 = arith.constant 0 : i32
    %c0_i32_1 = arith.constant 0 : i32
    %c0_i32_2 = arith.constant 0 : i32
    return %arg0, %c0_i32, %c0_i32_0, %c0_i32_1 : i32, i32, i32, i32
  }
}

</mosaic_0001>

<llo_original>
// kernel: ranker_128_up_forward.2
$region0: #{ranker_128_up_forward.2}
  #allocation0 [shape = 'u32[]', space=smem, size = 0x4, offset = 0x4, fixed_abs, tag = 'smem constant byte address 0x4 - core index']
  #allocation1 [shape = 'u32[144,128]{1,0:T(1,128)}', space=vmem, size = 0x12000, scoped, tag = 'internal scratch']
  #allocation2 [shape = 'f32[18,18,32]{2,1,0:T(8,128)}', space=vmem, size = 0x36000, scoped, tag = 'scratch operand']
  %s0 = inlined_call_operand.hbm [shape: bf16[2,256,27], index: 0, kind: input, shape index: {}]
  %s1 = inlined_call_operand.hbm [shape: bf16[27,32], index: 1, kind: input, shape index: {}]
  %s2 = inlined_call_operand.hbm [shape: f32[1,32], index: 2, kind: input, shape index: {}]
  %s3 = inlined_call_operand.hbm [shape: f32[1,32], index: 3, kind: input, shape index: {}]
  %s4 = inlined_call_operand.hbm [shape: bf16[288,32], index: 4, kind: input, shape index: {}]
  %s5 = inlined_call_operand.hbm [shape: f32[1,32], index: 5, kind: input, shape index: {}]
  %s6 = inlined_call_operand.hbm [shape: f32[1,32], index: 6, kind: input, shape index: {}]
  %s7 = inlined_call_operand.hbm [shape: bf16[2,9,9,128], index: 7, kind: output, shape index: {}]
  %s8 = sld [smem:[#allocation0]]
  $region89: #{ranker_128_up_forward.2} parent=0
    _
  %s10 = ssub.s32 1, %s8
  %s11 = scalar_select 0, %s10, %s8
  $region1: #{ranker_128_up_forward.2} parent=0
    #allocation3 [shape = 'u8[131072]{0}', space=vmem, size = 0x20000, scoped, tag = 'input window, operand 0']
    #allocation4 [shape = 's32[2]{0}', space=sflag, size = 0x8, scoped, tag = 'scoped memory for ranker_128_up_forward.2']
    #allocation5 [shape = 's32[2]{0}', space=sflag, size = 0x8, scoped, tag = 'scoped memory for ranker_128_up_forward.2']
    #allocation6 [shape = 'u8[8192]{0}', space=vmem, size = 0x2000, scoped, tag = 'input window, operand 1, single buffered']
    #allocation7 [shape = 's32[1]{0}', space=sflag, size = 0x4, scoped, tag = 'scoped memory for ranker_128_up_forward.2']
    #allocation8 [shape = 'u8[512]{0}', space=vmem, size = 0x400, scoped, tag = 'input window, operand 2, single buffered']
    #allocation9 [shape = 'u8[512]{0}', space=vmem, size = 0x400, scoped, tag = 'input window, operand 3, single buffered']
    #allocation10 [shape = 's32[1]{0}', space=sflag, size = 0x4, scoped, tag = 'scoped memory for ranker_128_up_forward.2']
    #allocation11 [shape = 'u8[73728]{0}', space=vmem, size = 0x12000, scoped, tag = 'input window, operand 4, single buffered']
    #allocation12 [shape = 'u8[512]{0}', space=vmem, size = 0x400, scoped, tag = 'input window, operand 5, single buffered']
    #allocation13 [shape = 's32[1]{0}', space=sflag, size = 0x4, scoped, tag = 'scoped memory for ranker_128_up_forward.2']
    #allocation14 [shape = 'u8[512]{0}', space=vmem, size = 0x400, scoped, tag = 'input window, operand 6, single buffered']
    #allocation15 [shape = 'u8[73728]{0}', space=vmem, size = 0x12000, scoped, tag = 'output window, operand 0']
    %12 = vsyncpa [#allocation4], 0
    %s13 = scalar_lea.sflag [#allocation4], 1
    %14 = vsyncpa %s13, 0
    %15 = vsyncpa [#allocation7], 0
    %16 = vsyncpa [#allocation10], 0
    %17 = vsyncpa [#allocation13], 0
    %18 = vsyncpa [#allocation5], 0
    %s19 = scalar_lea.sflag [#allocation5], 1
    %20 = vsyncpa %s19, 0
    loop: start=0, step=1, limit=4
    $region2: #{ranker_128_up_forward.2} parent=1 // loop_pre_header
      _
    $region3: #{ranker_128_up_forward.2} parent=1 // loop_header
      %s22 = sphi 0, %s26
      %p23 = scmp.ge.s32.totalorder %s22, 4
      %s32 = sphi 0, %s34
      %s35 = sphi 0, %s32
      %s36 = sphi 0, %s35
      %s52 = sphi 0, %s36
      %s56 = sphi 0, %s56
      %s58 = sphi 0, %s56
      %s59 = sphi 0, %s58
      %s73 = sphi 0, %s59
      %s77 = sphi 0, %s77
      %s79 = sphi 0, %s77
      %s80 = sphi 0, %s79
      %s94 = sphi 0, %s80
      %s98 = sphi 0, %s98
      %s100 = sphi 0, %s98
      %s101 = sphi 0, %s100
      %s115 = sphi 0, %s101
      %s119 = sphi 0, %s119
      %s121 = sphi 0, %s119
      %s122 = sphi 0, %s121
      %s136 = sphi 0, %s122
      %s140 = sphi 0, %s140
      %s142 = sphi 0, %s140
      %s143 = sphi 0, %s142
      %s157 = sphi 0, %s143
      %s161 = sphi 0, %s161
      %s163 = sphi 0, %s161
      %s164 = sphi 0, %s163
      %s178 = sphi 0, %s164
      %s184 = sphi 0, %s186
      %s187 = sphi 0, %s184
      %s188 = sphi 0, %s187
      %s204 = sphi 0, %s188
    $region4: #{ranker_128_up_forward.2} parent=1 // loop_header_branch
      %25 = sbr.rel (%p23) target = $region8
    $region5: #{ranker_128_up_forward.2} parent=1 // loop_body
      %s27 = ssub.s32 %s22, 1
      %s28 = ssub.s32 %s22, 2
      %s29 = sadd.s32 %s22, 1
      %s30 = ssub.s32 %s22, %s29
      %p31 = scmp.eq.s32.totalorder %s30, 0
      %s33 = sadd.s32 %s32, 1
      %s34 = scalar_select %p31, %s32, %s33
      %p37 = pneg %p31
      %p38 = scmp.eq.s32.totalorder %s22, 1
      %p39 = por %p37, %p38
      %p40 = scmp.ne.s32.totalorder %s32, %s35
      %p41 = scmp.eq.s32.totalorder %s22, 0
      %p42 = por %p40, %p41
      %p43 = scmp.ne.s32.totalorder %s32, %s35
      %p44 = scmp.eq.s32.totalorder %s27, 1
      %p45 = por %p43, %p44
      %p46 = scmp.ne.s32.totalorder %s35, %s36
      %p47 = scmp.eq.s32.totalorder %s27, 0
      %p48 = por %p46, %p47
      %p49 = scmp.ne.s32.totalorder %s35, %s36
      %p50 = scmp.eq.s32.totalorder %s28, 1
      %p51 = por %p49, %p50
      %p53 = scmp.ne.s32.totalorder %s36, %s52
      %p54 = scmp.eq.s32.totalorder %s28, 0
      %p55 = por %p53, %p54
      %s57 = sadd.s32 %s56, 1
      %p60 = scmp.eq.s32.totalorder %s22, 1
      %p61 = scmp.ne.s32.totalorder %s56, %s58
      %p62 = scmp.eq.s32.totalorder %s22, 0
      %p63 = por %p61, %p62
      %p64 = scmp.ne.s32.totalorder %s56, %s58
      %p65 = scmp.eq.s32.totalorder %s27, 1
      %p66 = por %p64, %p65
      %p67 = scmp.ne.s32.totalorder %s58, %s59
      %p68 = scmp.eq.s32.totalorder %s27, 0
      %p69 = por %p67, %p68
      %p70 = scmp.ne.s32.totalorder %s58, %s59
      %p71 = scmp.eq.s32.totalorder %s28, 1
      %p72 = por %p70, %p71
      %p74 = scmp.ne.s32.totalorder %s59, %s73
      %p75 = scmp.eq.s32.totalorder %s28, 0
      %p76 = por %p74, %p75
      %s78 = sadd.s32 %s77, 1
      %p81 = scmp.eq.s32.totalorder %s22, 1
      %p82 = scmp.ne.s32.totalorder %s77, %s79
      %p83 = scmp.eq.s32.totalorder %s22, 0
      %p84 = por %p82, %p83
      %p85 = scmp.ne.s32.totalorder %s77, %s79
      %p86 = scmp.eq.s32.totalorder %s27, 1
      %p87 = por %p85, %p86
      %p88 = scmp.ne.s32.totalorder %s79, %s80
      %p89 = scmp.eq.s32.totalorder %s27, 0
      %p90 = por %p88, %p89
      %p91 = scmp.ne.s32.totalorder %s79, %s80
      %p92 = scmp.eq.s32.totalorder %s28, 1
      %p93 = por %p91, %p92
      %p95 = scmp.ne.s32.totalorder %s80, %s94
      %p96 = scmp.eq.s32.totalorder %s28, 0
      %p97 = por %p95, %p96
      %s99 = sadd.s32 %s98, 1
      %p102 = scmp.eq.s32.totalorder %s22, 1
      %p103 = scmp.ne.s32.totalorder %s98, %s100
      %p104 = scmp.eq.s32.totalorder %s22, 0
      %p105 = por %p103, %p104
      %p106 = scmp.ne.s32.totalorder %s98, %s100
      %p107 = scmp.eq.s32.totalorder %s27, 1
      %p108 = por %p106, %p107
      %p109 = scmp.ne.s32.totalorder %s100, %s101
      %p110 = scmp.eq.s32.totalorder %s27, 0
      %p111 = por %p109, %p110
      %p112 = scmp.ne.s32.totalorder %s100, %s101
      %p113 = scmp.eq.s32.totalorder %s28, 1
      %p114 = por %p112, %p113
      %p116 = scmp.ne.s32.totalorder %s101, %s115
      %p117 = scmp.eq.s32.totalorder %s28, 0
      %p118 = por %p116, %p117
      %s120 = sadd.s32 %s119, 1
      %p123 = scmp.eq.s32.totalorder %s22, 1
      %p124 = scmp.ne.s32.totalorder %s119, %s121
      %p125 = scmp.eq.s32.totalorder %s22, 0
      %p126 = por %p124, %p125
      %p127 = scmp.ne.s32.totalorder %s119, %s121
      %p128 = scmp.eq.s32.totalorder %s27, 1
      %p129 = por %p127, %p128
      %p130 = scmp.ne.s32.totalorder %s121, %s122
      %p131 = scmp.eq.s32.totalorder %s27, 0
      %p132 = por %p130, %p131
      %p133 = scmp.ne.s32.totalorder %s121, %s122
      %p134 = scmp.eq.s32.totalorder %s28, 1
      %p135 = por %p133, %p134
      %p137 = scmp.ne.s32.totalorder %s122, %s136
      %p138 = scmp.eq.s32.totalorder %s28, 0
      %p139 = por %p137, %p138
      %s141 = sadd.s32 %s140, 1
      %p144 = scmp.eq.s32.totalorder %s22, 1
      %p145 = scmp.ne.s32.totalorder %s140, %s142
      %p146 = scmp.eq.s32.totalorder %s22, 0
      %p147 = por %p145, %p146
      %p148 = scmp.ne.s32.totalorder %s140, %s142
      %p149 = scmp.eq.s32.totalorder %s27, 1
      %p150 = por %p148, %p149
      %p151 = scmp.ne.s32.totalorder %s142, %s143
      %p152 = scmp.eq.s32.totalorder %s27, 0
      %p153 = por %p151, %p152
      %p154 = scmp.ne.s32.totalorder %s142, %s143
      %p155 = scmp.eq.s32.totalorder %s28, 1
      %p156 = por %p154, %p155
      %p158 = scmp.ne.s32.totalorder %s143, %s157
      %p159 = scmp.eq.s32.totalorder %s28, 0
      %p160 = por %p158, %p159
      %s162 = sadd.s32 %s161, 1
      %p165 = scmp.eq.s32.totalorder %s22, 1
      %p166 = scmp.ne.s32.totalorder %s161, %s163
      %p167 = scmp.eq.s32.totalorder %s22, 0
      %p168 = por %p166, %p167
      %p169 = scmp.ne.s32.totalorder %s161, %s163
      %p170 = scmp.eq.s32.totalorder %s27, 1
      %p171 = por %p169, %p170
      %p172 = scmp.ne.s32.totalorder %s163, %s164
      %p173 = scmp.eq.s32.totalorder %s27, 0
      %p174 = por %p172, %p173
      %p175 = scmp.ne.s32.totalorder %s163, %s164
      %p176 = scmp.eq.s32.totalorder %s28, 1
      %p177 = por %p175, %p176
      %p179 = scmp.ne.s32.totalorder %s164, %s178
      %p180 = scmp.eq.s32.totalorder %s28, 0
      %p181 = por %p179, %p180
      %s182 = ssub.s32 %s22, %s29
      %p183 = scmp.eq.s32.totalorder %s182, 0
      %s185 = sadd.s32 %s184, 1
      %s186 = scalar_select %p183, %s184, %s185
      %p189 = pneg %p183
      %p190 = scmp.eq.s32.totalorder %s22, 1
      %p191 = por %p189, %p190
      %p192 = scmp.ne.s32.totalorder %s184, %s187
      %p193 = scmp.eq.s32.totalorder %s22, 0
      %p194 = por %p192, %p193
      %p195 = scmp.ne.s32.totalorder %s184, %s187
      %p196 = scmp.eq.s32.totalorder %s27, 1
      %p197 = por %p195, %p196
      %p198 = scmp.ne.s32.totalorder %s187, %s188
      %p199 = scmp.eq.s32.totalorder %s27, 0
      %p200 = por %p198, %p199
      %p201 = scmp.ne.s32.totalorder %s187, %s188
      %p202 = scmp.eq.s32.totalorder %s28, 1
      %p203 = por %p201, %p202
      %p205 = scmp.ne.s32.totalorder %s188, %s204
      %p206 = scmp.eq.s32.totalorder %s28, 0
      %p207 = por %p205, %p206
      %p208 = scmp.le.s32.totalorder 1, %s22
      %p209 = scmp.lt.s32.totalorder %s22, 3
      %p210 = pnand %p208, %p209
      %p211 = pneg %p210
      // Predicated region
      $region9: #{ranker_128_up_forward.2} parent=5 // pred_check
        _
      $region10: #{ranker_128_up_forward.2} parent=5 // pred_check_branch
        %213 = sbr.rel (%p210) target = $region12
      $region11: #{ranker_128_up_forward.2} parent=5 // pred_region
        %s214 = ssub.s32 %s22, 1
        // Predicated region
        $region13: #{ranker_128_up_forward.2} parent=11 // pred_check
          %p215 = pneg %p69
        $region14: #{ranker_128_up_forward.2} parent=11 // pred_check_branch
          %217 = sbr.rel (%p215) target = $region16
        $region15: #{ranker_128_up_forward.2} parent=11 // pred_region
          %s219 = ssub.s32 256, 256
          %220 = vsyncadd [#allocation7], %s219
          %s221 = sshll.u32 [#allocation6], 4
          %s222 = int_to_ptr.vmem [resolvable:$true] %s221
          %227 = dma.hbm_to_vmem [thread:$0]  %s1, 256, %s222, [#allocation7], 64, 64, 4
        $region16: #{ranker_128_up_forward.2} parent=11 // pred_fallthru
          _
        // Predicated region
        $region17: #{ranker_128_up_forward.2} parent=11 // pred_check
          %p228 = pneg %p90
        $region18: #{ranker_128_up_forward.2} parent=11 // pred_check_branch
          %230 = sbr.rel (%p228) target = $region20
        $region19: #{ranker_128_up_forward.2} parent=11 // pred_region
          %s232 = ssub.s32 16, 16
          %233 = vsyncadd [#allocation7], %s232
          %s235 = sshll.u32 [#allocation8], 4
          %s236 = int_to_ptr.vmem [resolvable:$true] %s235
          %238 = dma.hbm_to_vmem [thread:$0]  %s2, 16, %s236, [#allocation7]
        $region20: #{ranker_128_up_forward.2} parent=11 // pred_fallthru
          _
        // Predicated region
        $region21: #{ranker_128_up_forward.2} parent=11 // pred_check
          %p239 = pneg %p111
        $region22: #{ranker_128_up_forward.2} parent=11 // pred_check_branch
          %241 = sbr.rel (%p239) target = $region24
        $region23: #{ranker_128_up_forward.2} parent=11 // pred_region
          %s243 = ssub.s32 16, 16
          %244 = vsyncadd [#allocation10], %s243
          %s246 = sshll.u32 [#allocation9], 4
          %s247 = int_to_ptr.vmem [resolvable:$true] %s246
          %249 = dma.hbm_to_vmem [thread:$0]  %s3, 16, %s247, [#allocation10]
        $region24: #{ranker_128_up_forward.2} parent=11 // pred_fallthru
          _
        // Predicated region
        $region25: #{ranker_128_up_forward.2} parent=11 // pred_check
          %p250 = pneg %p132
        $region26: #{ranker_128_up_forward.2} parent=11 // pred_check_branch
          %252 = sbr.rel (%p250) target = $region28
        $region27: #{ranker_128_up_forward.2} parent=11 // pred_region
          %s254 = ssub.s32 2304, 2304
          %255 = vsyncadd [#allocation10], %s254
          %s256 = sshll.u32 [#allocation11], 4
          %s257 = int_to_ptr.vmem [resolvable:$true] %s256
          %262 = dma.hbm_to_vmem [thread:$0]  %s4, 2304, %s257, [#allocation10], 64, 64, 4
        $region28: #{ranker_128_up_forward.2} parent=11 // pred_fallthru
          _
        // Predicated region
        $region29: #{ranker_128_up_forward.2} parent=11 // pred_check
          %p263 = pneg %p153
        $region30: #{ranker_128_up_forward.2} parent=11 // pred_check_branch
          %265 = sbr.rel (%p263) target = $region32
        $region31: #{ranker_128_up_forward.2} parent=11 // pred_region
          %s267 = ssub.s32 16, 16
          %268 = vsyncadd [#allocation13], %s267
          %s270 = sshll.u32 [#allocation12], 4
          %s271 = int_to_ptr.vmem [resolvable:$true] %s270
          %273 = dma.hbm_to_vmem [thread:$0]  %s5, 16, %s271, [#allocation13]
        $region32: #{ranker_128_up_forward.2} parent=11 // pred_fallthru
          _
        // Predicated region
        $region33: #{ranker_128_up_forward.2} parent=11 // pred_check
          %p274 = pneg %p174
        $region34: #{ranker_128_up_forward.2} parent=11 // pred_check_branch
          %276 = sbr.rel (%p274) target = $region36
        $region35: #{ranker_128_up_forward.2} parent=11 // pred_region
          %s278 = ssub.s32 16, 16
          %279 = vsyncadd [#allocation13], %s278
          %s281 = sshll.u32 [#allocation14], 4
          %s282 = int_to_ptr.vmem [resolvable:$true] %s281
          %284 = dma.hbm_to_vmem [thread:$0]  %s6, 16, %s282, [#allocation13]
        $region36: #{ranker_128_up_forward.2} parent=11 // pred_fallthru
          _
      $region12: #{ranker_128_up_forward.2} parent=5 // pred_fallthru
        _
      %p285 = scmp.lt.s32.totalorder %s22, 2
      // Predicated region
      $region37: #{ranker_128_up_forward.2} parent=5 // pred_check
        %p286 = pneg %p285
      $region38: #{ranker_128_up_forward.2} parent=5 // pred_check_branch
        %288 = sbr.rel (%p286) target = $region40
      $region39: #{ranker_128_up_forward.2} parent=5 // pred_region
        // Predicated region
        $region41: #{ranker_128_up_forward.2} parent=39 // pred_check
          %p289 = pneg %p42
        $region42: #{ranker_128_up_forward.2} parent=39 // pred_check_branch
          %291 = sbr.rel (%p289) target = $region44
        $region43: #{ranker_128_up_forward.2} parent=39 // pred_region
          %s292 = sand.u32 %s32, 1
          %s293 = scalar_lea.sflag [#allocation4], %s292
          %s294 = sand.u32 %s32, 1
          %s295 = smul.addr %s294, 128
          %s296 = scalar_lea.vmem [#allocation3], %s295
          %s298 = ssub.s32 2048, 2048
          %299 = vsyncadd %s293, %s298
          %s300 = smul.addr %s22, 32
          %s301 = smul.addr %s300, 64
          %s302 = scalar_lea.hbm %s0, %s301
          %s303 = sshll.u32 %s296, 4
          %s304 = int_to_ptr.vmem [resolvable:$true] %s303
          %309 = dma.hbm_to_vmem [thread:$0]  %s302, 2048, %s304, %s293, 64, 64, 4
        $region44: #{ranker_128_up_forward.2} parent=39 // pred_fallthru
          _
      $region40: #{ranker_128_up_forward.2} parent=5 // pred_fallthru
        _
      %p310 = scmp.le.s32.totalorder 1, %s22
      %p311 = scmp.lt.s32.totalorder %s22, 3
      %p312 = pnand %p310, %p311
      %p313 = pneg %p312
      // Predicated region
      $region45: #{ranker_128_up_forward.2} parent=5 // pred_check
        _
      $region46: #{ranker_128_up_forward.2} parent=5 // pred_check_branch
        %315 = sbr.rel (%p312) target = $region48
      $region47: #{ranker_128_up_forward.2} parent=5 // pred_region
        %s316 = ssub.s32 %s22, 1
        %s317 = sand.u32 %s35, 1
        %s318 = scalar_lea.sflag [#allocation4], %s317
        %s319 = sand.u32 %s35, 1
        %s320 = smul.addr %s319, 128
        %s321 = scalar_lea.vmem [#allocation3], %s320
        // Predicated region
        $region49: #{ranker_128_up_forward.2} parent=47 // pred_check
          %p322 = pneg %p48
        $region50: #{ranker_128_up_forward.2} parent=47 // pred_check_branch
          %324 = sbr.rel (%p322) target = $region52
        $region51: #{ranker_128_up_forward.2} parent=47 // pred_region
          %325 = dma.done %s318, 2048
        $region52: #{ranker_128_up_forward.2} parent=47 // pred_fallthru
          _
        // Predicated region
        $region53: #{ranker_128_up_forward.2} parent=47 // pred_check
          %p326 = pneg %p69
        $region54: #{ranker_128_up_forward.2} parent=47 // pred_check_branch
          %328 = sbr.rel (%p326) target = $region56
        $region55: #{ranker_128_up_forward.2} parent=47 // pred_region
          %329 = dma.done [#allocation7], 256
        $region56: #{ranker_128_up_forward.2} parent=47 // pred_fallthru
          _
        // Predicated region
        $region57: #{ranker_128_up_forward.2} parent=47 // pred_check
          %p330 = pneg %p90
        $region58: #{ranker_128_up_forward.2} parent=47 // pred_check_branch
          %332 = sbr.rel (%p330) target = $region60
        $region59: #{ranker_128_up_forward.2} parent=47 // pred_region
          %333 = dma.done [#allocation7], 16
        $region60: #{ranker_128_up_forward.2} parent=47 // pred_fallthru
          _
        // Predicated region
        $region61: #{ranker_128_up_forward.2} parent=47 // pred_check
          %p334 = pneg %p111
        $region62: #{ranker_128_up_forward.2} parent=47 // pred_check_branch
          %336 = sbr.rel (%p334) target = $region64
        $region63: #{ranker_128_up_forward.2} parent=47 // pred_region
          %337 = dma.done [#allocation10], 16
        $region64: #{ranker_128_up_forward.2} parent=47 // pred_fallthru
          _
        // Predicated region
        $region65: #{ranker_128_up_forward.2} parent=47 // pred_check
          %p338 = pneg %p132
        $region66: #{ranker_128_up_forward.2} parent=47 // pred_check_branch
          %340 = sbr.rel (%p338) target = $region68
        $region67: #{ranker_128_up_forward.2} parent=47 // pred_region
          %341 = dma.done [#allocation10], 2304
        $region68: #{ranker_128_up_forward.2} parent=47 // pred_fallthru
          _
        // Predicated region
        $region69: #{ranker_128_up_forward.2} parent=47 // pred_check
          %p342 = pneg %p153
        $region70: #{ranker_128_up_forward.2} parent=47 // pred_check_branch
          %344 = sbr.rel (%p342) target = $region72
        $region71: #{ranker_128_up_forward.2} parent=47 // pred_region
          %345 = dma.done [#allocation13], 16
        $region72: #{ranker_128_up_forward.2} parent=47 // pred_fallthru
          _
        // Predicated region
        $region73: #{ranker_128_up_forward.2} parent=47 // pred_check
          %p346 = pneg %p174
        $region74: #{ranker_128_up_forward.2} parent=47 // pred_check_branch
          %348 = sbr.rel (%p346) target = $region76
        $region75: #{ranker_128_up_forward.2} parent=47 // pred_region
          %349 = dma.done [#allocation13], 16
        $region76: #{ranker_128_up_forward.2} parent=47 // pred_fallthru
          _
        %s350 = sand.u32 %s35, 1
        %s351 = scalar_lea.sflag [#allocation4], %s350
        %s352 = sand.u32 %s35, 1
        %s353 = smul.addr %s352, 128
        %s354 = scalar_lea.vmem [#allocation3], %s353
        %p355 = pneg %p48
        %p356 = pneg %p45
        %p357 = pneg %p69
        %p358 = pneg %p66
        %p359 = pneg %p90
        %p360 = pneg %p87
        %p361 = pneg %p111
        %p362 = pneg %p108
        %p363 = pneg %p132
        %p364 = pneg %p129
        %p365 = pneg %p153
        %p366 = pneg %p150
        %p367 = pneg %p174
        %p368 = pneg %p171
        %p369 = pneg %p200
        %p370 = pneg %p197
        %s371 = sand.u32 %s187, 1
        %s372 = scalar_lea.sflag [#allocation5], %s371
        %s373 = sand.u32 %s187, 1
        %s374 = smul.addr %s373, 72
        %s375 = scalar_lea.vmem [#allocation15], %s374
        %vm377 = vcmask 261120
        %378 = vst.msk [vmem:[#allocation2] sm:$0xff] %vm377, 0.0
        %379 = vst.msk [vmem:[#allocation2 + $0x8] sm:$0xff] %vm377, 0.0
        %vm380 = vcmask 254976
        %381 = vst.msk [vmem:[#allocation2 + $0x10] sm:$0x3] %vm380, 0.0
        %s382 = scalar_lea.vmem [#allocation2], 408
        %383 = vst.msk [vmem:[%s382] sm:$0xff] %vm377, 0.0
        %384 = vst.msk [vmem:[%s382 + $0x8] sm:$0xff] %vm377, 0.0
        %385 = vst.msk [vmem:[%s382 + $0x10] sm:$0x3] %vm380, 0.0
        %vm386 = vcmask 253952
        %387 = vst.msk [vmem:[#allocation2] sm:$0x1] %vm386, 0.0
        %388 = vst.msk [vmem:[#allocation2 + $0x18] sm:$0x1] %vm386, 0.0
        %389 = vst.msk [vmem:[#allocation2 + $0x30] sm:$0x1] %vm386, 0.0
        %390 = vst.msk [vmem:[#allocation2 + $0x48] sm:$0x1] %vm386, 0.0
        %391 = vst.msk [vmem:[#allocation2 + $0x60] sm:$0x1] %vm386, 0.0
        %392 = vst.msk [vmem:[#allocation2 + $0x78] sm:$0x1] %vm386, 0.0
        %393 = vst.msk [vmem:[#allocation2 + $0x90] sm:$0x1] %vm386, 0.0
        %394 = vst.msk [vmem:[#allocation2 + $0xa8] sm:$0x1] %vm386, 0.0
        %395 = vst.msk [vmem:[#allocation2 + $0xc0] sm:$0x1] %vm386, 0.0
        %396 = vst.msk [vmem:[#allocation2 + $0xd8] sm:$0x1] %vm386, 0.0
        %397 = vst.msk [vmem:[#allocation2 + $0xf0] sm:$0x1] %vm386, 0.0
        %398 = vst.msk [vmem:[#allocation2 + $0x108] sm:$0x1] %vm386, 0.0
        %399 = vst.msk [vmem:[#allocation2 + $0x120] sm:$0x1] %vm386, 0.0
        %400 = vst.msk [vmem:[#allocation2 + $0x138] sm:$0x1] %vm386, 0.0
        %401 = vst.msk [vmem:[#allocation2 + $0x150] sm:$0x1] %vm386, 0.0
        %402 = vst.msk [vmem:[#allocation2 + $0x168] sm:$0x1] %vm386, 0.0
        %403 = vst.msk [vmem:[#allocation2 + $0x180] sm:$0x1] %vm386, 0.0
        %404 = vst.msk [vmem:[#allocation2 + $0x198] sm:$0x1] %vm386, 0.0
        %405 = vst.msk [vmem:[#allocation2 + $0x11] sm:$0x1] %vm386, 0.0
        %406 = vst.msk [vmem:[#allocation2 + $0x29] sm:$0x1] %vm386, 0.0
        %407 = vst.msk [vmem:[#allocation2 + $0x41] sm:$0x1] %vm386, 0.0
        %408 = vst.msk [vmem:[#allocation2 + $0x59] sm:$0x1] %vm386, 0.0
        %409 = vst.msk [vmem:[#allocation2 + $0x71] sm:$0x1] %vm386, 0.0
        %410 = vst.msk [vmem:[#allocation2 + $0x89] sm:$0x1] %vm386, 0.0
        %411 = vst.msk [vmem:[#allocation2 + $0xa1] sm:$0x1] %vm386, 0.0
        %412 = vst.msk [vmem:[#allocation2 + $0xb9] sm:$0x1] %vm386, 0.0
        %413 = vst.msk [vmem:[#allocation2 + $0xd1] sm:$0x1] %vm386, 0.0
        %414 = vst.msk [vmem:[#allocation2 + $0xe9] sm:$0x1] %vm386, 0.0
        %415 = vst.msk [vmem:[#allocation2 + $0x101] sm:$0x1] %vm386, 0.0
        %416 = vst.msk [vmem:[#allocation2 + $0x119] sm:$0x1] %vm386, 0.0
        %417 = vst.msk [vmem:[#allocation2 + $0x131] sm:$0x1] %vm386, 0.0
        %418 = vst.msk [vmem:[#allocation2 + $0x149] sm:$0x1] %vm386, 0.0
        %419 = vst.msk [vmem:[#allocation2 + $0x161] sm:$0x1] %vm386, 0.0
        %420 = vst.msk [vmem:[#allocation2 + $0x179] sm:$0x1] %vm386, 0.0
        %421 = vst.msk [vmem:[#allocation2 + $0x191] sm:$0x1] %vm386, 0.0
        %422 = vst.msk [vmem:[#allocation2 + $0x1a9] sm:$0x1] %vm386, 0.0
        %v423 = vld [vmem:[%s321] sm:$0xf]
        %v424 = vld [vmem:[%s321 + $0x4] sm:$0xf]
        %v425 = vld [vmem:[%s321 + $0x8] sm:$0xf]
        %v426 = vld [vmem:[%s321 + $0xc] sm:$0xf]
        %v427 = vld [vmem:[%s321 + $0x10] sm:$0xf]
        %v428 = vld [vmem:[%s321 + $0x14] sm:$0xf]
        %v429 = vld [vmem:[%s321 + $0x18] sm:$0xf]
        %v430 = vld [vmem:[%s321 + $0x1c] sm:$0xf]
        %v431 = vld [vmem:[%s321 + $0x20] sm:$0xf]
        %v432 = vld [vmem:[%s321 + $0x24] sm:$0xf]
        %v433 = vld [vmem:[%s321 + $0x28] sm:$0xf]
        %v434 = vld [vmem:[%s321 + $0x2c] sm:$0xf]
        %v435 = vld [vmem:[%s321 + $0x30] sm:$0xf]
        %v436 = vld [vmem:[%s321 + $0x34] sm:$0xf]
        %v437 = vld [vmem:[%s321 + $0x38] sm:$0xf]
        %v438 = vld [vmem:[%s321 + $0x3c] sm:$0xf]
        %v439 = vld [vmem:[%s321 + $0x40] sm:$0xf]
        %v440 = vld [vmem:[%s321 + $0x44] sm:$0xf]
        %v441 = vld [vmem:[%s321 + $0x48] sm:$0xf]
        %v442 = vld [vmem:[%s321 + $0x4c] sm:$0xf]
        %v443 = vld [vmem:[%s321 + $0x50] sm:$0xf]
        %v444 = vld [vmem:[%s321 + $0x54] sm:$0xf]
        %v445 = vld [vmem:[%s321 + $0x58] sm:$0xf]
        %v446 = vld [vmem:[%s321 + $0x5c] sm:$0xf]
        %v447 = vld [vmem:[%s321 + $0x60] sm:$0xf]
        %v448 = vld [vmem:[%s321 + $0x64] sm:$0xf]
        %v449 = vld [vmem:[%s321 + $0x68] sm:$0xf]
        %v450 = vld [vmem:[%s321 + $0x6c] sm:$0xf]
        %v451 = vld [vmem:[%s321 + $0x70] sm:$0xf]
        %v452 = vld [vmem:[%s321 + $0x74] sm:$0xf]
        %v453 = vld [vmem:[%s321 + $0x78] sm:$0xf]
        %v454 = vld [vmem:[%s321 + $0x7c] sm:$0xf]
        %v455 = vld [vmem:[#allocation6] sm:$0xf]
        %v456 = vld [vmem:[#allocation6 + $0x4] sm:$0xf]
        %v457 = vld [vmem:[#allocation6 + $0x8] sm:$0xf]
        %v458 = vld [vmem:[#allocation6 + $0xc] sm:$0x3]
        %v491 = vunpack.c.l.b16 %v423
        %v492 = vunpack.c.l.b16 %v424
        %v493 = vunpack.c.l.b16 %v425
        %v494 = vunpack.c.l.b16 %v426
        %v495 = vunpack.c.l.b16 %v427
        %v496 = vunpack.c.l.b16 %v428
        %v497 = vunpack.c.l.b16 %v429
        %v498 = vunpack.c.l.b16 %v430
        %v499 = vunpack.c.l.b16 %v431
        %v500 = vunpack.c.l.b16 %v432
        %v501 = vunpack.c.l.b16 %v433
        %v502 = vunpack.c.l.b16 %v434
        %v503 = vunpack.c.l.b16 %v435
        %v504 = vunpack.c.l.b16 %v436
        %v505 = vunpack.c.l.b16 %v437
        %v506 = vunpack.c.l.b16 %v438
        %v507 = vunpack.c.l.b16 %v439
        %v508 = vunpack.c.l.b16 %v440
        %v509 = vunpack.c.l.b16 %v441
        %v510 = vunpack.c.l.b16 %v442
        %v511 = vunpack.c.l.b16 %v443
        %v512 = vunpack.c.l.b16 %v444
        %v513 = vunpack.c.l.b16 %v445
        %v514 = vunpack.c.l.b16 %v446
        %v515 = vunpack.c.l.b16 %v447
        %v516 = vunpack.c.l.b16 %v448
        %v517 = vunpack.c.l.b16 %v449
        %v518 = vunpack.c.l.b16 %v450
        %v519 = vunpack.c.l.b16 %v451
        %v520 = vunpack.c.l.b16 %v452
        %v521 = vunpack.c.l.b16 %v453
        %v522 = vunpack.c.l.b16 %v454
        %v523 = vpack.c.b16 %v492, %v491
        %v524 = vpack.c.b16 %v494, %v493
        %v525 = vpack.c.b16 %v496, %v495
        %v526 = vpack.c.b16 %v498, %v497
        %v527 = vpack.c.b16 %v500, %v499
        %v528 = vpack.c.b16 %v502, %v501
        %v529 = vpack.c.b16 %v504, %v503
        %v530 = vpack.c.b16 %v506, %v505
        %v531 = vpack.c.b16 %v508, %v507
        %v532 = vpack.c.b16 %v510, %v509
        %v533 = vpack.c.b16 %v512, %v511
        %v534 = vpack.c.b16 %v514, %v513
        %v535 = vpack.c.b16 %v516, %v515
        %v536 = vpack.c.b16 %v518, %v517
        %v537 = vpack.c.b16 %v520, %v519
        %v538 = vpack.c.b16 %v522, %v521
        %v543 = vunpack.c.l.b16 %v455
        %v544 = vunpack.c.l.b16 %v456
        %v545 = vunpack.c.l.b16 %v457
        %v546 = vunpack.c.l.b16 %v458
        %v547 = vpack.c.b16 %v544, %v543
        %v548 = vpack.c.b16 %v546, %v545
        %vm550 = vcmask 220160
        %v552 = vsel %vm550, %v523, 0
        %v555 = vsel %vm550, %v524, 0
        %v558 = vsel %vm550, %v525, 0
        %v561 = vsel %vm550, %v526, 0
        %v564 = vsel %vm550, %v527, 0
        %v567 = vsel %vm550, %v528, 0
        %v570 = vsel %vm550, %v529, 0
        %v573 = vsel %vm550, %v530, 0
        %v576 = vsel %vm550, %v531, 0
        %v579 = vsel %vm550, %v532, 0
        %v582 = vsel %vm550, %v533, 0
        %v585 = vsel %vm550, %v534, 0
        %v588 = vsel %vm550, %v535, 0
        %v591 = vsel %vm550, %v536, 0
        %v594 = vsel %vm550, %v537, 0
        %v597 = vsel %vm550, %v538, 0
        %vm599 = vcmask 1044480
        %vm600 = vcmask 1045504
        %v601 = vsel %vm599, 4294967295, 65535
        %v602 = vsel %vm600, %v601, 0
        %v604 = vand.u32 %v548, %v602
        %606 = vmatprep.subr.bf16.mxu0 0
        %607 = vmatpush1.bf16.msra.mxu0 %v547
        %608 = vmatprep.subr.bf16.mxu0 0
        %609 = vmatpush1.bf16.msra.mxu0 %v604
        %610 = vmatprep.subr.bf16.mxu0 0
        %611 = vmatpush1.bf16.msra.mxu0 0
        %612 = vmatprep.subr.bf16.mxu0 0
        %613 = vmatpush1.bf16.msra.mxu0 0
        %614 = vmatprep.subr.bf16.mxu0 0
        %615 = vmatpush1.bf16.msra.mxu0 0
        %616 = vmatprep.subr.bf16.mxu0 0
        %617 = vmatpush1.bf16.msra.mxu0 0
        %618 = vmatprep.subr.bf16.mxu0 0
        %619 = vmatpush1.bf16.msra.mxu0 0
        %620 = vmatprep.subr.bf16.mxu0 0
        %621 = vmatpush1.bf16.msra.mxu0 0
        %622 = vmatprep.subr.bf16.mxu0 0
        %623 = vmatpush1.bf16.msra.mxu0 0
        %624 = vmatprep.subr.bf16.mxu0 0
        %625 = vmatpush1.bf16.msra.mxu0 0
        %626 = vmatprep.subr.bf16.mxu0 0
        %627 = vmatpush1.bf16.msra.mxu0 0
        %628 = vmatprep.subr.bf16.mxu0 0
        %629 = vmatpush1.bf16.msra.mxu0 0
        %630 = vmatprep.subr.bf16.mxu0 0
        %631 = vmatpush1.bf16.msra.mxu0 0
        %632 = vmatprep.subr.bf16.mxu0 0
        %633 = vmatpush1.bf16.msra.mxu0 0
        %634 = vmatprep.subr.bf16.mxu0 0
        %635 = vmatpush1.bf16.msra.mxu0 0
        %636 = vmatprep.subr.bf16.mxu0 0
        %637 = vmatpush1.bf16.msra.mxu0 0
        %638 = vmatprep.mubr.bf16.mxu0 0
        %639 = vmatmul.mubr.bf16.gmra.mrb[0].mxu0 %v552
        %v640 = vpop.f32.mrb[0].mxu0
        %v641 = vadd.f32 0.0, %v640
        %v642 = vpop.f32.mrb[0].mxu0
        %v643 = vpop.f32.mrb[0].mxu0
        %v644 = vadd.f32 0.0, %v643
        %v645 = vpop.f32.mrb[0].mxu0
        %646 = vmatprep.mubr.bf16.mxu0 0
        %647 = vmatmul.mubr.bf16.gmra.mrb[0].mxu0 %v555
        %v648 = vpop.f32.mrb[0].mxu0
        %v649 = vadd.f32 0.0, %v648
        %v650 = vpop.f32.mrb[0].mxu0
        %v651 = vpop.f32.mrb[0].mxu0
        %v652 = vadd.f32 0.0, %v651
        %v653 = vpop.f32.mrb[0].mxu0
        %654 = vmatprep.mubr.bf16.mxu0 0
        %655 = vmatmul.mubr.bf16.gmra.mrb[0].mxu0 %v558
        %v656 = vpop.f32.mrb[0].mxu0
        %v657 = vadd.f32 0.0, %v656
        %v658 = vpop.f32.mrb[0].mxu0
        %v659 = vpop.f32.mrb[0].mxu0
        %v660 = vadd.f32 0.0, %v659
        %v661 = vpop.f32.mrb[0].mxu0
        %662 = vmatprep.mubr.bf16.mxu0 0
        %663 = vmatmul.mubr.bf16.gmra.mrb[0].mxu0 %v561
        %v664 = vpop.f32.mrb[0].mxu0
        %v665 = vadd.f32 0.0, %v664
        %v666 = vpop.f32.mrb[0].mxu0
        %v667 = vpop.f32.mrb[0].mxu0
        %v668 = vadd.f32 0.0, %v667
        %v669 = vpop.f32.mrb[0].mxu0
        %670 = vmatprep.mubr.bf16.mxu0 0
        %671 = vmatmul.mubr.bf16.gmra.mrb[0].mxu0 %v564
        %v672 = vpop.f32.mrb[0].mxu0
        %v673 = vadd.f32 0.0, %v672
        %v674 = vpop.f32.mrb[0].mxu0
        %v675 = vpop.f32.mrb[0].mxu0
        %v676 = vadd.f32 0.0, %v675
        %v677 = vpop.f32.mrb[0].mxu0
        %678 = vmatprep.mubr.bf16.mxu0 0
        %679 = vmatmul.mubr.bf16.gmra.mrb[0].mxu0 %v567
        %v680 = vpop.f32.mrb[0].mxu0
        %v681 = vadd.f32 0.0, %v680
        %v682 = vpop.f32.mrb[0].mxu0
        %v683 = vpop.f32.mrb[0].mxu0
        %v684 = vadd.f32 0.0, %v683
        %v685 = vpop.f32.mrb[0].mxu0
        %686 = vmatprep.mubr.bf16.mxu0 0
        %687 = vmatmul.mubr.bf16.gmra.mrb[0].mxu0 %v570
        %v688 = vpop.f32.mrb[0].mxu0
        %v689 = vadd.f32 0.0, %v688
        %v690 = vpop.f32.mrb[0].mxu0
        %v691 = vpop.f32.mrb[0].mxu0
        %v692 = vadd.f32 0.0, %v691
        %v693 = vpop.f32.mrb[0].mxu0
        %694 = vmatprep.mubr.bf16.mxu0 0
        %695 = vmatmul.mubr.bf16.gmra.mrb[0].mxu0 %v573
        %v696 = vpop.f32.mrb[0].mxu0
        %v697 = vadd.f32 0.0, %v696
        %v698 = vpop.f32.mrb[0].mxu0
        %v699 = vpop.f32.mrb[0].mxu0
        %v700 = vadd.f32 0.0, %v699
        %v701 = vpop.f32.mrb[0].mxu0
        %702 = vmatprep.mubr.bf16.mxu0 0
        %703 = vmatmul.mubr.bf16.gmra.mrb[0].mxu0 %v576
        %v704 = vpop.f32.mrb[0].mxu0
        %v705 = vadd.f32 0.0, %v704
        %v706 = vpop.f32.mrb[0].mxu0
        %v707 = vpop.f32.mrb[0].mxu0
        %v708 = vadd.f32 0.0, %v707
        %v709 = vpop.f32.mrb[0].mxu0
        %710 = vmatprep.mubr.bf16.mxu0 0
        %711 = vmatmul.mubr.bf16.gmra.mrb[0].mxu0 %v579
        %v712 = vpop.f32.mrb[0].mxu0
        %v713 = vadd.f32 0.0, %v712
        %v714 = vpop.f32.mrb[0].mxu0
        %v715 = vpop.f32.mrb[0].mxu0
        %v716 = vadd.f32 0.0, %v715
        %v717 = vpop.f32.mrb[0].mxu0
        %718 = vmatprep.mubr.bf16.mxu0 0
        %719 = vmatmul.mubr.bf16.gmra.mrb[0].mxu0 %v582
        %v720 = vpop.f32.mrb[0].mxu0
        %v721 = vadd.f32 0.0, %v720
        %v722 = vpop.f32.mrb[0].mxu0
        %v723 = vpop.f32.mrb[0].mxu0
        %v724 = vadd.f32 0.0, %v723
        %v725 = vpop.f32.mrb[0].mxu0
        %726 = vmatprep.mubr.bf16.mxu0 0
        %727 = vmatmul.mubr.bf16.gmra.mrb[0].mxu0 %v585
        %v728 = vpop.f32.mrb[0].mxu0
        %v729 = vadd.f32 0.0, %v728
        %v730 = vpop.f32.mrb[0].mxu0
        %v731 = vpop.f32.mrb[0].mxu0
        %v732 = vadd.f32 0.0, %v731
        %v733 = vpop.f32.mrb[0].mxu0
        %734 = vmatprep.mubr.bf16.mxu0 0
        %735 = vmatmul.mubr.bf16.gmra.mrb[0].mxu0 %v588
        %v736 = vpop.f32.mrb[0].mxu0
        %v737 = vadd.f32 0.0, %v736
        %v738 = vpop.f32.mrb[0].mxu0
        %v739 = vpop.f32.mrb[0].mxu0
        %v740 = vadd.f32 0.0, %v739
        %v741 = vpop.f32.mrb[0].mxu0
        %742 = vmatprep.mubr.bf16.mxu0 0
        %743 = vmatmul.mubr.bf16.gmra.mrb[0].mxu0 %v591
        %v744 = vpop.f32.mrb[0].mxu0
        %v745 = vadd.f32 0.0, %v744
        %v746 = vpop.f32.mrb[0].mxu0
        %v747 = vpop.f32.mrb[0].mxu0
        %v748 = vadd.f32 0.0, %v747
        %v749 = vpop.f32.mrb[0].mxu0
        %750 = vmatprep.mubr.bf16.mxu0 0
        %751 = vmatmul.mubr.bf16.gmra.mrb[0].mxu0 %v594
        %v752 = vpop.f32.mrb[0].mxu0
        %v753 = vadd.f32 0.0, %v752
        %v754 = vpop.f32.mrb[0].mxu0
        %v755 = vpop.f32.mrb[0].mxu0
        %v756 = vadd.f32 0.0, %v755
        %v757 = vpop.f32.mrb[0].mxu0
        %758 = vmatprep.mubr.bf16.mxu0 0
        %759 = vmatmul.mubr.bf16.gmra.mrb[0].mxu0 %v597
        %v760 = vpop.f32.mrb[0].mxu0
        %v761 = vadd.f32 0.0, %v760
        %v762 = vpop.f32.mrb[0].mxu0
        %v763 = vpop.f32.mrb[0].mxu0
        %v764 = vadd.f32 0.0, %v763
        %v765 = vpop.f32.mrb[0].mxu0
        %766 = vdwg.mxu0
        %v767 = vld [vmem:[#allocation8] sm:$0x1]
        %v769 = vlaneseq
        %v770 = vshrl.u32 %v769, 7
        %v771 = vsub.s32 0, %v770
        %v772 = vrot.slane %v767, %v771
        %v774 = vmul.f32 %v641, %v772
        %v775 = vmul.f32 %v644, %v772
        %v776 = vmul.f32 %v649, %v772
        %v777 = vmul.f32 %v652, %v772
        %v778 = vmul.f32 %v657, %v772
        %v779 = vmul.f32 %v660, %v772
        %v780 = vmul.f32 %v665, %v772
        %v781 = vmul.f32 %v668, %v772
        %v782 = vmul.f32 %v673, %v772
        %v783 = vmul.f32 %v676, %v772
        %v784 = vmul.f32 %v681, %v772
        %v785 = vmul.f32 %v684, %v772
        %v786 = vmul.f32 %v689, %v772
        %v787 = vmul.f32 %v692, %v772
        %v788 = vmul.f32 %v697, %v772
        %v789 = vmul.f32 %v700, %v772
        %v790 = vmul.f32 %v705, %v772
        %v791 = vmul.f32 %v708, %v772
        %v792 = vmul.f32 %v713, %v772
        %v793 = vmul.f32 %v716, %v772
        %v794 = vmul.f32 %v721, %v772
        %v795 = vmul.f32 %v724, %v772
        %v796 = vmul.f32 %v729, %v772
        %v797 = vmul.f32 %v732, %v772
        %v798 = vmul.f32 %v737, %v772
        %v799 = vmul.f32 %v740, %v772
        %v800 = vmul.f32 %v745, %v772
        %v801 = vmul.f32 %v748, %v772
        %v802 = vmul.f32 %v753, %v772
        %v803 = vmul.f32 %v756, %v772
        %v804 = vmul.f32 %v761, %v772
        %v805 = vmul.f32 %v764, %v772
        %v806 = vld [vmem:[#allocation9] sm:$0x1]
        %v808 = vlaneseq
        %v809 = vshrl.u32 %v808, 7
        %v810 = vsub.s32 0, %v809
        %v811 = vrot.slane %v806, %v810
        %v813 = vadd.f32 %v774, %v811
        %v814 = vadd.f32 %v775, %v811
        %v815 = vadd.f32 %v776, %v811
        %v816 = vadd.f32 %v777, %v811
        %v817 = vadd.f32 %v778, %v811
        %v818 = vadd.f32 %v779, %v811
        %v819 = vadd.f32 %v780, %v811
        %v820 = vadd.f32 %v781, %v811
        %v821 = vadd.f32 %v782, %v811
        %v822 = vadd.f32 %v783, %v811
        %v823 = vadd.f32 %v784, %v811
        %v824 = vadd.f32 %v785, %v811
        %v825 = vadd.f32 %v786, %v811
        %v826 = vadd.f32 %v787, %v811
        %v827 = vadd.f32 %v788, %v811
        %v828 = vadd.f32 %v789, %v811
        %v829 = vadd.f32 %v790, %v811
        %v830 = vadd.f32 %v791, %v811
        %v831 = vadd.f32 %v792, %v811
        %v832 = vadd.f32 %v793, %v811
        %v833 = vadd.f32 %v794, %v811
        %v834 = vadd.f32 %v795, %v811
        %v835 = vadd.f32 %v796, %v811
        %v836 = vadd.f32 %v797, %v811
        %v837 = vadd.f32 %v798, %v811
        %v838 = vadd.f32 %v799, %v811
        %v839 = vadd.f32 %v800, %v811
        %v840 = vadd.f32 %v801, %v811
        %v841 = vadd.f32 %v802, %v811
        %v842 = vadd.f32 %v803, %v811
        %v843 = vadd.f32 %v804, %v811
        %v844 = vadd.f32 %v805, %v811
        %vm845 = vcmp.gt.f32.partialorder %v813, 0.0
        %vm846 = vcmp.gt.f32.partialorder %v814, 0.0
        %vm847 = vcmp.gt.f32.partialorder %v815, 0.0
        %vm848 = vcmp.gt.f32.partialorder %v816, 0.0
        %vm849 = vcmp.gt.f32.partialorder %v817, 0.0
        %vm850 = vcmp.gt.f32.partialorder %v818, 0.0
        %vm851 = vcmp.gt.f32.partialorder %v819, 0.0
        %vm852 = vcmp.gt.f32.partialorder %v820, 0.0
        %vm853 = vcmp.gt.f32.partialorder %v821, 0.0
        %vm854 = vcmp.gt.f32.partialorder %v822, 0.0
        %vm855 = vcmp.gt.f32.partialorder %v823, 0.0
        %vm856 = vcmp.gt.f32.partialorder %v824, 0.0
        %vm857 = vcmp.gt.f32.partialorder %v825, 0.0
        %vm858 = vcmp.gt.f32.partialorder %v826, 0.0
        %vm859 = vcmp.gt.f32.partialorder %v827, 0.0
        %vm860 = vcmp.gt.f32.partialorder %v828, 0.0
        %vm861 = vcmp.gt.f32.partialorder %v829, 0.0
        %vm862 = vcmp.gt.f32.partialorder %v830, 0.0
        %vm863 = vcmp.gt.f32.partialorder %v831, 0.0
        %vm864 = vcmp.gt.f32.partialorder %v832, 0.0
        %vm865 = vcmp.gt.f32.partialorder %v833, 0.0
        %vm866 = vcmp.gt.f32.partialorder %v834, 0.0
        %vm867 = vcmp.gt.f32.partialorder %v835, 0.0
        %vm868 = vcmp.gt.f32.partialorder %v836, 0.0
        %vm869 = vcmp.gt.f32.partialorder %v837, 0.0
        %vm870 = vcmp.gt.f32.partialorder %v838, 0.0
        %vm871 = vcmp.gt.f32.partialorder %v839, 0.0
        %vm872 = vcmp.gt.f32.partialorder %v840, 0.0
        %vm873 = vcmp.gt.f32.partialorder %v841, 0.0
        %vm874 = vcmp.gt.f32.partialorder %v842, 0.0
        %vm875 = vcmp.gt.f32.partialorder %v843, 0.0
        %vm876 = vcmp.gt.f32.partialorder %v844, 0.0
        %v877 = vmul.f32 %v813, 0.1
        %v878 = vmul.f32 %v814, 0.1
        %v879 = vmul.f32 %v815, 0.1
        %v880 = vmul.f32 %v816, 0.1
        %v881 = vmul.f32 %v817, 0.1
        %v882 = vmul.f32 %v818, 0.1
        %v883 = vmul.f32 %v819, 0.1
        %v884 = vmul.f32 %v820, 0.1
        %v885 = vmul.f32 %v821, 0.1
        %v886 = vmul.f32 %v822, 0.1
        %v887 = vmul.f32 %v823, 0.1
        %v888 = vmul.f32 %v824, 0.1
        %v889 = vmul.f32 %v825, 0.1
        %v890 = vmul.f32 %v826, 0.1
        %v891 = vmul.f32 %v827, 0.1
        %v892 = vmul.f32 %v828, 0.1
        %v893 = vmul.f32 %v829, 0.1
        %v894 = vmul.f32 %v830, 0.1
        %v895 = vmul.f32 %v831, 0.1
        %v896 = vmul.f32 %v832, 0.1
        %v897 = vmul.f32 %v833, 0.1
        %v898 = vmul.f32 %v834, 0.1
        %v899 = vmul.f32 %v835, 0.1
        %v900 = vmul.f32 %v836, 0.1
        %v901 = vmul.f32 %v837, 0.1
        %v902 = vmul.f32 %v838, 0.1
        %v903 = vmul.f32 %v839, 0.1
        %v904 = vmul.f32 %v840, 0.1
        %v905 = vmul.f32 %v841, 0.1
        %v906 = vmul.f32 %v842, 0.1
        %v907 = vmul.f32 %v843, 0.1
        %v908 = vmul.f32 %v844, 0.1
        %v909 = vsel %vm845, %v813, %v877
        %v910 = vsel %vm846, %v814, %v878
        %v911 = vsel %vm847, %v815, %v879
        %v912 = vsel %vm848, %v816, %v880
        %v913 = vsel %vm849, %v817, %v881
        %v914 = vsel %vm850, %v818, %v882
        %v915 = vsel %vm851, %v819, %v883
        %v916 = vsel %vm852, %v820, %v884
        %v917 = vsel %vm853, %v821, %v885
        %v918 = vsel %vm854, %v822, %v886
        %v919 = vsel %vm855, %v823, %v887
        %v920 = vsel %vm856, %v824, %v888
        %v921 = vsel %vm857, %v825, %v889
        %v922 = vsel %vm858, %v826, %v890
        %v923 = vsel %vm859, %v827, %v891
        %v924 = vsel %vm860, %v828, %v892
        %v925 = vsel %vm861, %v829, %v893
        %v926 = vsel %vm862, %v830, %v894
        %v927 = vsel %vm863, %v831, %v895
        %v928 = vsel %vm864, %v832, %v896
        %v929 = vsel %vm865, %v833, %v897
        %v930 = vsel %vm866, %v834, %v898
        %v931 = vsel %vm867, %v835, %v899
        %v932 = vsel %vm868, %v836, %v900
        %v933 = vsel %vm869, %v837, %v901
        %v934 = vsel %vm870, %v838, %v902
        %v935 = vsel %vm871, %v839, %v903
        %v936 = vsel %vm872, %v840, %v904
        %v937 = vsel %vm873, %v841, %v905
        %v938 = vsel %vm874, %v842, %v906
        %v939 = vsel %vm875, %v843, %v907
        %v940 = vsel %vm876, %v844, %v908
        %s941 = scalar_lea.vmem [#allocation2], 24
        %942 = vst.msk [vmem:[%s941 + $0x1] sm:$0xff] %vm377, %v909
        %943 = vst.msk [vmem:[%s941 + $0x9] sm:$0xff] %vm377, %v910
        %944 = vst.msk [vmem:[%s941 + $0x19] sm:$0xff] %vm377, %v911
        %945 = vst.msk [vmem:[%s941 + $0x21] sm:$0xff] %vm377, %v912
        %946 = vst.msk [vmem:[%s941 + $0x31] sm:$0xff] %vm377, %v913
        %947 = vst.msk [vmem:[%s941 + $0x39] sm:$0xff] %vm377, %v914
        %948 = vst.msk [vmem:[%s941 + $0x49] sm:$0xff] %vm377, %v915
        %949 = vst.msk [vmem:[%s941 + $0x51] sm:$0xff] %vm377, %v916
        %950 = vst.msk [vmem:[%s941 + $0x61] sm:$0xff] %vm377, %v917
        %951 = vst.msk [vmem:[%s941 + $0x69] sm:$0xff] %vm377, %v918
        %952 = vst.msk [vmem:[%s941 + $0x79] sm:$0xff] %vm377, %v919
        %953 = vst.msk [vmem:[%s941 + $0x81] sm:$0xff] %vm377, %v920
        %954 = vst.msk [vmem:[%s941 + $0x91] sm:$0xff] %vm377, %v921
        %955 = vst.msk [vmem:[%s941 + $0x99] sm:$0xff] %vm377, %v922
        %956 = vst.msk [vmem:[%s941 + $0xa9] sm:$0xff] %vm377, %v923
        %957 = vst.msk [vmem:[%s941 + $0xb1] sm:$0xff] %vm377, %v924
        %958 = vst.msk [vmem:[%s941 + $0xc1] sm:$0xff] %vm377, %v925
        %959 = vst.msk [vmem:[%s941 + $0xc9] sm:$0xff] %vm377, %v926
        %960 = vst.msk [vmem:[%s941 + $0xd9] sm:$0xff] %vm377, %v927
        %961 = vst.msk [vmem:[%s941 + $0xe1] sm:$0xff] %vm377, %v928
        %962 = vst.msk [vmem:[%s941 + $0xf1] sm:$0xff] %vm377, %v929
        %963 = vst.msk [vmem:[%s941 + $0xf9] sm:$0xff] %vm377, %v930
        %964 = vst.msk [vmem:[%s941 + $0x109] sm:$0xff] %vm377, %v931
        %965 = vst.msk [vmem:[%s941 + $0x111] sm:$0xff] %vm377, %v932
        %966 = vst.msk [vmem:[%s941 + $0x121] sm:$0xff] %vm377, %v933
        %967 = vst.msk [vmem:[%s941 + $0x129] sm:$0xff] %vm377, %v934
        %968 = vst.msk [vmem:[%s941 + $0x139] sm:$0xff] %vm377, %v935
        %969 = vst.msk [vmem:[%s941 + $0x141] sm:$0xff] %vm377, %v936
        %970 = vst.msk [vmem:[%s941 + $0x151] sm:$0xff] %vm377, %v937
        %971 = vst.msk [vmem:[%s941 + $0x159] sm:$0xff] %vm377, %v938
        %972 = vst.msk [vmem:[%s941 + $0x169] sm:$0xff] %vm377, %v939
        %973 = vst.msk [vmem:[%s941 + $0x171] sm:$0xff] %vm377, %v940
        %v974 = vld [vmem:[#allocation2] sm:$0xff]
        %v975 = vld [vmem:[#allocation2 + $0x8] sm:$0xff]
        %v976 = vld [vmem:[#allocation2 + $0x18] sm:$0xff]
        %v977 = vld [vmem:[#allocation2 + $0x20] sm:$0xff]
        %v978 = vld [vmem:[#allocation2 + $0x30] sm:$0xff]
        %v979 = vld [vmem:[#allocation2 + $0x38] sm:$0xff]
        %v980 = vld [vmem:[#allocation2 + $0x48] sm:$0xff]
        %v981 = vld [vmem:[#allocation2 + $0x50] sm:$0xff]
        %v982 = vld [vmem:[#allocation2 + $0x60] sm:$0xff]
        %v983 = vld [vmem:[#allocation2 + $0x68] sm:$0xff]
        %v984 = vld [vmem:[#allocation2 + $0x78] sm:$0xff]
        %v985 = vld [vmem:[#allocation2 + $0x80] sm:$0xff]
        %v986 = vld [vmem:[#allocation2 + $0x90] sm:$0xff]
        %v987 = vld [vmem:[#allocation2 + $0x98] sm:$0xff]
        %v988 = vld [vmem:[#allocation2 + $0xa8] sm:$0xff]
        %v989 = vld [vmem:[#allocation2 + $0xb0] sm:$0xff]
        %v990 = vld [vmem:[#allocation2 + $0xc0] sm:$0xff]
        %v991 = vld [vmem:[#allocation2 + $0xc8] sm:$0xff]
        %v992 = vld [vmem:[#allocation2 + $0xd8] sm:$0xff]
        %v993 = vld [vmem:[#allocation2 + $0xe0] sm:$0xff]
        %v994 = vld [vmem:[#allocation2 + $0xf0] sm:$0xff]
        %v995 = vld [vmem:[#allocation2 + $0xf8] sm:$0xff]
        %v996 = vld [vmem:[#allocation2 + $0x108] sm:$0xff]
        %v997 = vld [vmem:[#allocation2 + $0x110] sm:$0xff]
        %v998 = vld [vmem:[#allocation2 + $0x120] sm:$0xff]
        %v999 = vld [vmem:[#allocation2 + $0x128] sm:$0xff]
        %v1000 = vld [vmem:[#allocation2 + $0x138] sm:$0xff]
        %v1001 = vld [vmem:[#allocation2 + $0x140] sm:$0xff]
        %v1002 = vld [vmem:[#allocation2 + $0x150] sm:$0xff]
        %v1003 = vld [vmem:[#allocation2 + $0x158] sm:$0xff]
        %v1004 = vld [vmem:[#allocation2 + $0x168] sm:$0xff]
        %v1005 = vld [vmem:[#allocation2 + $0x170] sm:$0xff]
        %v1006 = vld [vmem:[#allocation2 + $0x1] sm:$0xff]
        %v1007 = vld [vmem:[#allocation2 + $0x9] sm:$0xff]
        %v1008 = vld [vmem:[#allocation2 + $0x19] sm:$0xff]
        %v1009 = vld [vmem:[#allocation2 + $0x21] sm:$0xff]
        %v1010 = vld [vmem:[#allocation2 + $0x31] sm:$0xff]
        %v1011 = vld [vmem:[#allocation2 + $0x39] sm:$0xff]
        %v1012 = vld [vmem:[#allocation2 + $0x49] sm:$0xff]
        %v1013 = vld [vmem:[#allocation2 + $0x51] sm:$0xff]
        %v1014 = vld [vmem:[#allocation2 + $0x61] sm:$0xff]
        %v1015 = vld [vmem:[#allocation2 + $0x69] sm:$0xff]
        %v1016 = vld [vmem:[#allocation2 + $0x79] sm:$0xff]
        %v1017 = vld [vmem:[#allocation2 + $0x81] sm:$0xff]
        %v1018 = vld [vmem:[#allocation2 + $0x91] sm:$0xff]
        %v1019 = vld [vmem:[#allocation2 + $0x99] sm:$0xff]
        %v1020 = vld [vmem:[#allocation2 + $0xa9] sm:$0xff]
        %v1021 = vld [vmem:[#allocation2 + $0xb1] sm:$0xff]
        %v1022 = vld [vmem:[#allocation2 + $0xc1] sm:$0xff]
        %v1023 = vld [vmem:[#allocation2 + $0xc9] sm:$0xff]
        %v1024 = vld [vmem:[#allocation2 + $0xd9] sm:$0xff]
        %v1025 = vld [vmem:[#allocation2 + $0xe1] sm:$0xff]
        %v1026 = vld [vmem:[#allocation2 + $0xf1] sm:$0xff]
        %v1027 = vld [vmem:[#allocation2 + $0xf9] sm:$0xff]
        %v1028 = vld [vmem:[#allocation2 + $0x109] sm:$0xff]
        %v1029 = vld [vmem:[#allocation2 + $0x111] sm:$0xff]
        %v1030 = vld [vmem:[#allocation2 + $0x121] sm:$0xff]
        %v1031 = vld [vmem:[#allocation2 + $0x129] sm:$0xff]
        %v1032 = vld [vmem:[#allocation2 + $0x139] sm:$0xff]
        %v1033 = vld [vmem:[#allocation2 + $0x141] sm:$0xff]
        %v1034 = vld [vmem:[#allocation2 + $0x151] sm:$0xff]
        %v1035 = vld [vmem:[#allocation2 + $0x159] sm:$0xff]
        %v1036 = vld [vmem:[#allocation2 + $0x169] sm:$0xff]
        %v1037 = vld [vmem:[#allocation2 + $0x171] sm:$0xff]
        %v1038 = vld [vmem:[#allocation2 + $0x2] sm:$0xff]
        %v1039 = vld [vmem:[#allocation2 + $0xa] sm:$0xff]
        %v1040 = vld [vmem:[#allocation2 + $0x1a] sm:$0xff]
        %v1041 = vld [vmem:[#allocation2 + $0x22] sm:$0xff]
        %v1042 = vld [vmem:[#allocation2 + $0x32] sm:$0xff]
        %v1043 = vld [vmem:[#allocation2 + $0x3a] sm:$0xff]
        %v1044 = vld [vmem:[#allocation2 + $0x4a] sm:$0xff]
        %v1045 = vld [vmem:[#allocation2 + $0x52] sm:$0xff]
        %v1046 = vld [vmem:[#allocation2 + $0x62] sm:$0xff]
        %v1047 = vld [vmem:[#allocation2 + $0x6a] sm:$0xff]
        %v1048 = vld [vmem:[#allocation2 + $0x7a] sm:$0xff]
        %v1049 = vld [vmem:[#allocation2 + $0x82] sm:$0xff]
        %v1050 = vld [vmem:[#allocation2 + $0x92] sm:$0xff]
        %v1051 = vld [vmem:[#allocation2 + $0x9a] sm:$0xff]
        %v1052 = vld [vmem:[#allocation2 + $0xaa] sm:$0xff]
        %v1053 = vld [vmem:[#allocation2 + $0xb2] sm:$0xff]
        %v1054 = vld [vmem:[#allocation2 + $0xc2] sm:$0xff]
        %v1055 = vld [vmem:[#allocation2 + $0xca] sm:$0xff]
        %v1056 = vld [vmem:[#allocation2 + $0xda] sm:$0xff]
        %v1057 = vld [vmem:[#allocation2 + $0xe2] sm:$0xff]
        %v1058 = vld [vmem:[#allocation2 + $0xf2] sm:$0xff]
        %v1059 = vld [vmem:[#allocation2 + $0xfa] sm:$0xff]
        %v1060 = vld [vmem:[#allocation2 + $0x10a] sm:$0xff]
        %v1061 = vld [vmem:[#allocation2 + $0x112] sm:$0xff]
        %v1062 = vld [vmem:[#allocation2 + $0x122] sm:$0xff]
        %v1063 = vld [vmem:[#allocation2 + $0x12a] sm:$0xff]
        %v1064 = vld [vmem:[#allocation2 + $0x13a] sm:$0xff]
        %v1065 = vld [vmem:[#allocation2 + $0x142] sm:$0xff]
        %v1066 = vld [vmem:[#allocation2 + $0x152] sm:$0xff]
        %v1067 = vld [vmem:[#allocation2 + $0x15a] sm:$0xff]
        %v1068 = vld [vmem:[#allocation2 + $0x16a] sm:$0xff]
        %v1069 = vld [vmem:[#allocation2 + $0x172] sm:$0xff]
        %v1070 = vld [vmem:[%s941] sm:$0xff]
        %v1071 = vld [vmem:[%s941 + $0x8] sm:$0xff]
        %v1072 = vld [vmem:[%s941 + $0x18] sm:$0xff]
        %v1073 = vld [vmem:[%s941 + $0x20] sm:$0xff]
        %v1074 = vld [vmem:[%s941 + $0x30] sm:$0xff]
        %v1075 = vld [vmem:[%s941 + $0x38] sm:$0xff]
        %v1076 = vld [vmem:[%s941 + $0x48] sm:$0xff]
        %v1077 = vld [vmem:[%s941 + $0x50] sm:$0xff]
        %v1078 = vld [vmem:[%s941 + $0x60] sm:$0xff]
        %v1079 = vld [vmem:[%s941 + $0x68] sm:$0xff]
        %v1080 = vld [vmem:[%s941 + $0x78] sm:$0xff]
        %v1081 = vld [vmem:[%s941 + $0x80] sm:$0xff]
        %v1082 = vld [vmem:[%s941 + $0x90] sm:$0xff]
        %v1083 = vld [vmem:[%s941 + $0x98] sm:$0xff]
        %v1084 = vld [vmem:[%s941 + $0xa8] sm:$0xff]
        %v1085 = vld [vmem:[%s941 + $0xb0] sm:$0xff]
        %v1086 = vld [vmem:[%s941 + $0xc0] sm:$0xff]
        %v1087 = vld [vmem:[%s941 + $0xc8] sm:$0xff]
        %v1088 = vld [vmem:[%s941 + $0xd8] sm:$0xff]
        %v1089 = vld [vmem:[%s941 + $0xe0] sm:$0xff]
        %v1090 = vld [vmem:[%s941 + $0xf0] sm:$0xff]
        %v1091 = vld [vmem:[%s941 + $0xf8] sm:$0xff]
        %v1092 = vld [vmem:[%s941 + $0x108] sm:$0xff]
        %v1093 = vld [vmem:[%s941 + $0x110] sm:$0xff]
        %v1094 = vld [vmem:[%s941 + $0x120] sm:$0xff]
        %v1095 = vld [vmem:[%s941 + $0x128] sm:$0xff]
        %v1096 = vld [vmem:[%s941 + $0x138] sm:$0xff]
        %v1097 = vld [vmem:[%s941 + $0x140] sm:$0xff]
        %v1098 = vld [vmem:[%s941 + $0x150] sm:$0xff]
        %v1099 = vld [vmem:[%s941 + $0x158] sm:$0xff]
        %v1100 = vld [vmem:[%s941 + $0x168] sm:$0xff]
        %v1101 = vld [vmem:[%s941 + $0x170] sm:$0xff]
        %v1102 = vld [vmem:[%s941 + $0x1] sm:$0xff]
        %v1103 = vld [vmem:[%s941 + $0x9] sm:$0xff]
        %v1104 = vld [vmem:[%s941 + $0x19] sm:$0xff]
        %v1105 = vld [vmem:[%s941 + $0x21] sm:$0xff]
        %v1106 = vld [vmem:[%s941 + $0x31] sm:$0xff]
        %v1107 = vld [vmem:[%s941 + $0x39] sm:$0xff]
        %v1108 = vld [vmem:[%s941 + $0x49] sm:$0xff]
        %v1109 = vld [vmem:[%s941 + $0x51] sm:$0xff]
        %v1110 = vld [vmem:[%s941 + $0x61] sm:$0xff]
        %v1111 = vld [vmem:[%s941 + $0x69] sm:$0xff]
        %v1112 = vld [vmem:[%s941 + $0x79] sm:$0xff]
        %v1113 = vld [vmem:[%s941 + $0x81] sm:$0xff]
        %v1114 = vld [vmem:[%s941 + $0x91] sm:$0xff]
        %v1115 = vld [vmem:[%s941 + $0x99] sm:$0xff]
        %v1116 = vld [vmem:[%s941 + $0xa9] sm:$0xff]
        %v1117 = vld [vmem:[%s941 + $0xb1] sm:$0xff]
        %v1118 = vld [vmem:[%s941 + $0xc1] sm:$0xff]
        %v1119 = vld [vmem:[%s941 + $0xc9] sm:$0xff]
        %v1120 = vld [vmem:[%s941 + $0xd9] sm:$0xff]
        %v1121 = vld [vmem:[%s941 + $0xe1] sm:$0xff]
        %v1122 = vld [vmem:[%s941 + $0xf1] sm:$0xff]
        %v1123 = vld [vmem:[%s941 + $0xf9] sm:$0xff]
        %v1124 = vld [vmem:[%s941 + $0x109] sm:$0xff]
        %v1125 = vld [vmem:[%s941 + $0x111] sm:$0xff]
        %v1126 = vld [vmem:[%s941 + $0x121] sm:$0xff]
        %v1127 = vld [vmem:[%s941 + $0x129] sm:$0xff]
        %v1128 = vld [vmem:[%s941 + $0x139] sm:$0xff]
        %v1129 = vld [vmem:[%s941 + $0x141] sm:$0xff]
        %v1130 = vld [vmem:[%s941 + $0x151] sm:$0xff]
        %v1131 = vld [vmem:[%s941 + $0x159] sm:$0xff]
        %v1132 = vld [vmem:[%s941 + $0x169] sm:$0xff]
        %v1133 = vld [vmem:[%s941 + $0x171] sm:$0xff]
        %v1134 = vld [vmem:[%s941 + $0x2] sm:$0xff]
        %v1135 = vld [vmem:[%s941 + $0xa] sm:$0xff]
        %v1136 = vld [vmem:[%s941 + $0x1a] sm:$0xff]
        %v1137 = vld [vmem:[%s941 + $0x22] sm:$0xff]
        %v1138 = vld [vmem:[%s941 + $0x32] sm:$0xff]
        %v1139 = vld [vmem:[%s941 + $0x3a] sm:$0xff]
        %v1140 = vld [vmem:[%s941 + $0x4a] sm:$0xff]
        %v1141 = vld [vmem:[%s941 + $0x52] sm:$0xff]
        %v1142 = vld [vmem:[%s941 + $0x62] sm:$0xff]
        %v1143 = vld [vmem:[%s941 + $0x6a] sm:$0xff]
        %v1144 = vld [vmem:[%s941 + $0x7a] sm:$0xff]
        %v1145 = vld [vmem:[%s941 + $0x82] sm:$0xff]
        %v1146 = vld [vmem:[%s941 + $0x92] sm:$0xff]
        %v1147 = vld [vmem:[%s941 + $0x9a] sm:$0xff]
        %v1148 = vld [vmem:[%s941 + $0xaa] sm:$0xff]
        %v1149 = vld [vmem:[%s941 + $0xb2] sm:$0xff]
        %v1150 = vld [vmem:[%s941 + $0xc2] sm:$0xff]
        %v1151 = vld [vmem:[%s941 + $0xca] sm:$0xff]
        %v1152 = vld [vmem:[%s941 + $0xda] sm:$0xff]
        %v1153 = vld [vmem:[%s941 + $0xe2] sm:$0xff]
        %v1154 = vld [vmem:[%s941 + $0xf2] sm:$0xff]
        %v1155 = vld [vmem:[%s941 + $0xfa] sm:$0xff]
        %v1156 = vld [vmem:[%s941 + $0x10a] sm:$0xff]
        %v1157 = vld [vmem:[%s941 + $0x112] sm:$0xff]
        %v1158 = vld [vmem:[%s941 + $0x122] sm:$0xff]
        %v1159 = vld [vmem:[%s941 + $0x12a] sm:$0xff]
        %v1160 = vld [vmem:[%s941 + $0x13a] sm:$0xff]
        %v1161 = vld [vmem:[%s941 + $0x142] sm:$0xff]
        %v1162 = vld [vmem:[%s941 + $0x152] sm:$0xff]
        %v1163 = vld [vmem:[%s941 + $0x15a] sm:$0xff]
        %v1164 = vld [vmem:[%s941 + $0x16a] sm:$0xff]
        %v1165 = vld [vmem:[%s941 + $0x172] sm:$0xff]
        %s1166 = scalar_lea.vmem [#allocation2], 48
        %v1167 = vld [vmem:[%s1166] sm:$0xff]
        %v1168 = vld [vmem:[%s1166 + $0x8] sm:$0xff]
        %v1169 = vld [vmem:[%s1166 + $0x18] sm:$0xff]
        %v1170 = vld [vmem:[%s1166 + $0x20] sm:$0xff]
        %v1171 = vld [vmem:[%s1166 + $0x30] sm:$0xff]
        %v1172 = vld [vmem:[%s1166 + $0x38] sm:$0xff]
        %v1173 = vld [vmem:[%s1166 + $0x48] sm:$0xff]
        %v1174 = vld [vmem:[%s1166 + $0x50] sm:$0xff]
        %v1175 = vld [vmem:[%s1166 + $0x60] sm:$0xff]
        %v1176 = vld [vmem:[%s1166 + $0x68] sm:$0xff]
        %v1177 = vld [vmem:[%s1166 + $0x78] sm:$0xff]
        %v1178 = vld [vmem:[%s1166 + $0x80] sm:$0xff]
        %v1179 = vld [vmem:[%s1166 + $0x90] sm:$0xff]
        %v1180 = vld [vmem:[%s1166 + $0x98] sm:$0xff]
        %v1181 = vld [vmem:[%s1166 + $0xa8] sm:$0xff]
        %v1182 = vld [vmem:[%s1166 + $0xb0] sm:$0xff]
        %v1183 = vld [vmem:[%s1166 + $0xc0] sm:$0xff]
        %v1184 = vld [vmem:[%s1166 + $0xc8] sm:$0xff]
        %v1185 = vld [vmem:[%s1166 + $0xd8] sm:$0xff]
        %v1186 = vld [vmem:[%s1166 + $0xe0] sm:$0xff]
        %v1187 = vld [vmem:[%s1166 + $0xf0] sm:$0xff]
        %v1188 = vld [vmem:[%s1166 + $0xf8] sm:$0xff]
        %v1189 = vld [vmem:[%s1166 + $0x108] sm:$0xff]
        %v1190 = vld [vmem:[%s1166 + $0x110] sm:$0xff]
        %v1191 = vld [vmem:[%s1166 + $0x120] sm:$0xff]
        %v1192 = vld [vmem:[%s1166 + $0x128] sm:$0xff]
        %v1193 = vld [vmem:[%s1166 + $0x138] sm:$0xff]
        %v1194 = vld [vmem:[%s1166 + $0x140] sm:$0xff]
        %v1195 = vld [vmem:[%s1166 + $0x150] sm:$0xff]
        %v1196 = vld [vmem:[%s1166 + $0x158] sm:$0xff]
        %v1197 = vld [vmem:[%s1166 + $0x168] sm:$0xff]
        %v1198 = vld [vmem:[%s1166 + $0x170] sm:$0xff]
        %v1199 = vld [vmem:[%s1166 + $0x1] sm:$0xff]
        %v1200 = vld [vmem:[%s1166 + $0x9] sm:$0xff]
        %v1201 = vld [vmem:[%s1166 + $0x19] sm:$0xff]
        %v1202 = vld [vmem:[%s1166 + $0x21] sm:$0xff]
        %v1203 = vld [vmem:[%s1166 + $0x31] sm:$0xff]
        %v1204 = vld [vmem:[%s1166 + $0x39] sm:$0xff]
        %v1205 = vld [vmem:[%s1166 + $0x49] sm:$0xff]
        %v1206 = vld [vmem:[%s1166 + $0x51] sm:$0xff]
        %v1207 = vld [vmem:[%s1166 + $0x61] sm:$0xff]
        %v1208 = vld [vmem:[%s1166 + $0x69] sm:$0xff]
        %v1209 = vld [vmem:[%s1166 + $0x79] sm:$0xff]
        %v1210 = vld [vmem:[%s1166 + $0x81] sm:$0xff]
        %v1211 = vld [vmem:[%s1166 + $0x91] sm:$0xff]
        %v1212 = vld [vmem:[%s1166 + $0x99] sm:$0xff]
        %v1213 = vld [vmem:[%s1166 + $0xa9] sm:$0xff]
        %v1214 = vld [vmem:[%s1166 + $0xb1] sm:$0xff]
        %v1215 = vld [vmem:[%s1166 + $0xc1] sm:$0xff]
        %v1216 = vld [vmem:[%s1166 + $0xc9] sm:$0xff]
        %v1217 = vld [vmem:[%s1166 + $0xd9] sm:$0xff]
        %v1218 = vld [vmem:[%s1166 + $0xe1] sm:$0xff]
        %v1219 = vld [vmem:[%s1166 + $0xf1] sm:$0xff]
        %v1220 = vld [vmem:[%s1166 + $0xf9] sm:$0xff]
        %v1221 = vld [vmem:[%s1166 + $0x109] sm:$0xff]
        %v1222 = vld [vmem:[%s1166 + $0x111] sm:$0xff]
        %v1223 = vld [vmem:[%s1166 + $0x121] sm:$0xff]
        %v1224 = vld [vmem:[%s1166 + $0x129] sm:$0xff]
        %v1225 = vld [vmem:[%s1166 + $0x139] sm:$0xff]
        %v1226 = vld [vmem:[%s1166 + $0x141] sm:$0xff]
        %v1227 = vld [vmem:[%s1166 + $0x151] sm:$0xff]
        %v1228 = vld [vmem:[%s1166 + $0x159] sm:$0xff]
        %v1229 = vld [vmem:[%s1166 + $0x169] sm:$0xff]
        %v1230 = vld [vmem:[%s1166 + $0x171] sm:$0xff]
        %v1231 = vld [vmem:[%s1166 + $0x2] sm:$0xff]
        %v1232 = vld [vmem:[%s1166 + $0xa] sm:$0xff]
        %v1233 = vld [vmem:[%s1166 + $0x1a] sm:$0xff]
        %v1234 = vld [vmem:[%s1166 + $0x22] sm:$0xff]
        %v1235 = vld [vmem:[%s1166 + $0x32] sm:$0xff]
        %v1236 = vld [vmem:[%s1166 + $0x3a] sm:$0xff]
        %v1237 = vld [vmem:[%s1166 + $0x4a] sm:$0xff]
        %v1238 = vld [vmem:[%s1166 + $0x52] sm:$0xff]
        %v1239 = vld [vmem:[%s1166 + $0x62] sm:$0xff]
        %v1240 = vld [vmem:[%s1166 + $0x6a] sm:$0xff]
        %v1241 = vld [vmem:[%s1166 + $0x7a] sm:$0xff]
        %v1242 = vld [vmem:[%s1166 + $0x82] sm:$0xff]
        %v1243 = vld [vmem:[%s1166 + $0x92] sm:$0xff]
        %v1244 = vld [vmem:[%s1166 + $0x9a] sm:$0xff]
        %v1245 = vld [vmem:[%s1166 + $0xaa] sm:$0xff]
        %v1246 = vld [vmem:[%s1166 + $0xb2] sm:$0xff]
        %v1247 = vld [vmem:[%s1166 + $0xc2] sm:$0xff]
        %v1248 = vld [vmem:[%s1166 + $0xca] sm:$0xff]
        %v1249 = vld [vmem:[%s1166 + $0xda] sm:$0xff]
        %v1250 = vld [vmem:[%s1166 + $0xe2] sm:$0xff]
        %v1251 = vld [vmem:[%s1166 + $0xf2] sm:$0xff]
        %v1252 = vld [vmem:[%s1166 + $0xfa] sm:$0xff]
        %v1253 = vld [vmem:[%s1166 + $0x10a] sm:$0xff]
        %v1254 = vld [vmem:[%s1166 + $0x112] sm:$0xff]
        %v1255 = vld [vmem:[%s1166 + $0x122] sm:$0xff]
        %v1256 = vld [vmem:[%s1166 + $0x12a] sm:$0xff]
        %v1257 = vld [vmem:[%s1166 + $0x13a] sm:$0xff]
        %v1258 = vld [vmem:[%s1166 + $0x142] sm:$0xff]
        %v1259 = vld [vmem:[%s1166 + $0x152] sm:$0xff]
        %v1260 = vld [vmem:[%s1166 + $0x15a] sm:$0xff]
        %v1261 = vld [vmem:[%s1166 + $0x16a] sm:$0xff]
        %v1262 = vld [vmem:[%s1166 + $0x172] sm:$0xff]
        %1295 = vrot.lane.b32.xlu0 %v1006, 32
        %v1296 = vpop.permute.xlu0 %1295
        %1297 = vrot.lane.b32.xlu0 %v1007, 32
        %v1298 = vpop.permute.xlu0 %1297
        %1299 = vrot.lane.b32.xlu0 %v1008, 32
        %v1300 = vpop.permute.xlu0 %1299
        %1301 = vrot.lane.b32.xlu0 %v1009, 32
        %v1302 = vpop.permute.xlu0 %1301
        %1303 = vrot.lane.b32.xlu0 %v1010, 32
        %v1304 = vpop.permute.xlu0 %1303
        %1305 = vrot.lane.b32.xlu0 %v1011, 32
        %v1306 = vpop.permute.xlu0 %1305
        %1307 = vrot.lane.b32.xlu0 %v1012, 32
        %v1308 = vpop.permute.xlu0 %1307
        %1309 = vrot.lane.b32.xlu0 %v1013, 32
        %v1310 = vpop.permute.xlu0 %1309
        %1311 = vrot.lane.b32.xlu0 %v1014, 32
        %v1312 = vpop.permute.xlu0 %1311
        %1313 = vrot.lane.b32.xlu0 %v1015, 32
        %v1314 = vpop.permute.xlu0 %1313
        %1315 = vrot.lane.b32.xlu0 %v1016, 32
        %v1316 = vpop.permute.xlu0 %1315
        %1317 = vrot.lane.b32.xlu0 %v1017, 32
        %v1318 = vpop.permute.xlu0 %1317
        %1319 = vrot.lane.b32.xlu0 %v1018, 32
        %v1320 = vpop.permute.xlu0 %1319
        %1321 = vrot.lane.b32.xlu0 %v1019, 32
        %v1322 = vpop.permute.xlu0 %1321
        %1323 = vrot.lane.b32.xlu0 %v1020, 32
        %v1324 = vpop.permute.xlu0 %1323
        %1325 = vrot.lane.b32.xlu0 %v1021, 32
        %v1326 = vpop.permute.xlu0 %1325
        %1327 = vrot.lane.b32.xlu0 %v1022, 32
        %v1328 = vpop.permute.xlu0 %1327
        %1329 = vrot.lane.b32.xlu0 %v1023, 32
        %v1330 = vpop.permute.xlu0 %1329
        %1331 = vrot.lane.b32.xlu0 %v1024, 32
        %v1332 = vpop.permute.xlu0 %1331
        %1333 = vrot.lane.b32.xlu0 %v1025, 32
        %v1334 = vpop.permute.xlu0 %1333
        %1335 = vrot.lane.b32.xlu0 %v1026, 32
        %v1336 = vpop.permute.xlu0 %1335
        %1337 = vrot.lane.b32.xlu0 %v1027, 32
        %v1338 = vpop.permute.xlu0 %1337
        %1339 = vrot.lane.b32.xlu0 %v1028, 32
        %v1340 = vpop.permute.xlu0 %1339
        %1341 = vrot.lane.b32.xlu0 %v1029, 32
        %v1342 = vpop.permute.xlu0 %1341
        %1343 = vrot.lane.b32.xlu0 %v1030, 32
        %v1344 = vpop.permute.xlu0 %1343
        %1345 = vrot.lane.b32.xlu0 %v1031, 32
        %v1346 = vpop.permute.xlu0 %1345
        %1347 = vrot.lane.b32.xlu0 %v1032, 32
        %v1348 = vpop.permute.xlu0 %1347
        %1349 = vrot.lane.b32.xlu0 %v1033, 32
        %v1350 = vpop.permute.xlu0 %1349
        %1351 = vrot.lane.b32.xlu0 %v1034, 32
        %v1352 = vpop.permute.xlu0 %1351
        %1353 = vrot.lane.b32.xlu0 %v1035, 32
        %v1354 = vpop.permute.xlu0 %1353
        %1355 = vrot.lane.b32.xlu0 %v1036, 32
        %v1356 = vpop.permute.xlu0 %1355
        %1357 = vrot.lane.b32.xlu0 %v1037, 32
        %v1358 = vpop.permute.xlu0 %1357
        %1423 = vrot.lane.b32.xlu0 %v1038, 64
        %v1424 = vpop.permute.xlu0 %1423
        %1425 = vrot.lane.b32.xlu0 %v1039, 64
        %v1426 = vpop.permute.xlu0 %1425
        %1427 = vrot.lane.b32.xlu0 %v1040, 64
        %v1428 = vpop.permute.xlu0 %1427
        %1429 = vrot.lane.b32.xlu0 %v1041, 64
        %v1430 = vpop.permute.xlu0 %1429
        %1431 = vrot.lane.b32.xlu0 %v1042, 64
        %v1432 = vpop.permute.xlu0 %1431
        %1433 = vrot.lane.b32.xlu0 %v1043, 64
        %v1434 = vpop.permute.xlu0 %1433
        %1435 = vrot.lane.b32.xlu0 %v1044, 64
        %v1436 = vpop.permute.xlu0 %1435
        %1437 = vrot.lane.b32.xlu0 %v1045, 64
        %v1438 = vpop.permute.xlu0 %1437
        %1439 = vrot.lane.b32.xlu0 %v1046, 64
        %v1440 = vpop.permute.xlu0 %1439
        %1441 = vrot.lane.b32.xlu0 %v1047, 64
        %v1442 = vpop.permute.xlu0 %1441
        %1443 = vrot.lane.b32.xlu0 %v1048, 64
        %v1444 = vpop.permute.xlu0 %1443
        %1445 = vrot.lane.b32.xlu0 %v1049, 64
        %v1446 = vpop.permute.xlu0 %1445
        %1447 = vrot.lane.b32.xlu0 %v1050, 64
        %v1448 = vpop.permute.xlu0 %1447
        %1449 = vrot.lane.b32.xlu0 %v1051, 64
        %v1450 = vpop.permute.xlu0 %1449
        %1451 = vrot.lane.b32.xlu0 %v1052, 64
        %v1452 = vpop.permute.xlu0 %1451
        %1453 = vrot.lane.b32.xlu0 %v1053, 64
        %v1454 = vpop.permute.xlu0 %1453
        %1455 = vrot.lane.b32.xlu0 %v1054, 64
        %v1456 = vpop.permute.xlu0 %1455
        %1457 = vrot.lane.b32.xlu0 %v1055, 64
        %v1458 = vpop.permute.xlu0 %1457
        %1459 = vrot.lane.b32.xlu0 %v1056, 64
        %v1460 = vpop.permute.xlu0 %1459
        %1461 = vrot.lane.b32.xlu0 %v1057, 64
        %v1462 = vpop.permute.xlu0 %1461
        %1463 = vrot.lane.b32.xlu0 %v1058, 64
        %v1464 = vpop.permute.xlu0 %1463
        %1465 = vrot.lane.b32.xlu0 %v1059, 64
        %v1466 = vpop.permute.xlu0 %1465
        %1467 = vrot.lane.b32.xlu0 %v1060, 64
        %v1468 = vpop.permute.xlu0 %1467
        %1469 = vrot.lane.b32.xlu0 %v1061, 64
        %v1470 = vpop.permute.xlu0 %1469
        %1471 = vrot.lane.b32.xlu0 %v1062, 64
        %v1472 = vpop.permute.xlu0 %1471
        %1473 = vrot.lane.b32.xlu0 %v1063, 64
        %v1474 = vpop.permute.xlu0 %1473
        %1475 = vrot.lane.b32.xlu0 %v1064, 64
        %v1476 = vpop.permute.xlu0 %1475
        %1477 = vrot.lane.b32.xlu0 %v1065, 64
        %v1478 = vpop.permute.xlu0 %1477
        %1479 = vrot.lane.b32.xlu0 %v1066, 64
        %v1480 = vpop.permute.xlu0 %1479
        %1481 = vrot.lane.b32.xlu0 %v1067, 64
        %v1482 = vpop.permute.xlu0 %1481
        %1483 = vrot.lane.b32.xlu0 %v1068, 64
        %v1484 = vpop.permute.xlu0 %1483
        %1485 = vrot.lane.b32.xlu0 %v1069, 64
        %v1486 = vpop.permute.xlu0 %1485
        %1551 = vrot.lane.b32.xlu0 %v1070, 96
        %v1552 = vpop.permute.xlu0 %1551
        %1553 = vrot.lane.b32.xlu0 %v1071, 96
        %v1554 = vpop.permute.xlu0 %1553
        %1555 = vrot.lane.b32.xlu0 %v1072, 96
        %v1556 = vpop.permute.xlu0 %1555
        %1557 = vrot.lane.b32.xlu0 %v1073, 96
        %v1558 = vpop.permute.xlu0 %1557
        %1559 = vrot.lane.b32.xlu0 %v1074, 96
        %v1560 = vpop.permute.xlu0 %1559
        %1561 = vrot.lane.b32.xlu0 %v1075, 96
        %v1562 = vpop.permute.xlu0 %1561
        %1563 = vrot.lane.b32.xlu0 %v1076, 96
        %v1564 = vpop.permute.xlu0 %1563
        %1565 = vrot.lane.b32.xlu0 %v1077, 96
        %v1566 = vpop.permute.xlu0 %1565
        %1567 = vrot.lane.b32.xlu0 %v1078, 96
        %v1568 = vpop.permute.xlu0 %1567
        %1569 = vrot.lane.b32.xlu0 %v1079, 96
        %v1570 = vpop.permute.xlu0 %1569
        %1571 = vrot.lane.b32.xlu0 %v1080, 96
        %v1572 = vpop.permute.xlu0 %1571
        %1573 = vrot.lane.b32.xlu0 %v1081, 96
        %v1574 = vpop.permute.xlu0 %1573
        %1575 = vrot.lane.b32.xlu0 %v1082, 96
        %v1576 = vpop.permute.xlu0 %1575
        %1577 = vrot.lane.b32.xlu0 %v1083, 96
        %v1578 = vpop.permute.xlu0 %1577
        %1579 = vrot.lane.b32.xlu0 %v1084, 96
        %v1580 = vpop.permute.xlu0 %1579
        %1581 = vrot.lane.b32.xlu0 %v1085, 96
        %v1582 = vpop.permute.xlu0 %1581
        %1583 = vrot.lane.b32.xlu0 %v1086, 96
        %v1584 = vpop.permute.xlu0 %1583
        %1585 = vrot.lane.b32.xlu0 %v1087, 96
        %v1586 = vpop.permute.xlu0 %1585
        %1587 = vrot.lane.b32.xlu0 %v1088, 96
        %v1588 = vpop.permute.xlu0 %1587
        %1589 = vrot.lane.b32.xlu0 %v1089, 96
        %v1590 = vpop.permute.xlu0 %1589
        %1591 = vrot.lane.b32.xlu0 %v1090, 96
        %v1592 = vpop.permute.xlu0 %1591
        %1593 = vrot.lane.b32.xlu0 %v1091, 96
        %v1594 = vpop.permute.xlu0 %1593
        %1595 = vrot.lane.b32.xlu0 %v1092, 96
        %v1596 = vpop.permute.xlu0 %1595
        %1597 = vrot.lane.b32.xlu0 %v1093, 96
        %v1598 = vpop.permute.xlu0 %1597
        %1599 = vrot.lane.b32.xlu0 %v1094, 96
        %v1600 = vpop.permute.xlu0 %1599
        %1601 = vrot.lane.b32.xlu0 %v1095, 96
        %v1602 = vpop.permute.xlu0 %1601
        %1603 = vrot.lane.b32.xlu0 %v1096, 96
        %v1604 = vpop.permute.xlu0 %1603
        %1605 = vrot.lane.b32.xlu0 %v1097, 96
        %v1606 = vpop.permute.xlu0 %1605
        %1607 = vrot.lane.b32.xlu0 %v1098, 96
        %v1608 = vpop.permute.xlu0 %1607
        %1609 = vrot.lane.b32.xlu0 %v1099, 96
        %v1610 = vpop.permute.xlu0 %1609
        %1611 = vrot.lane.b32.xlu0 %v1100, 96
        %v1612 = vpop.permute.xlu0 %1611
        %1613 = vrot.lane.b32.xlu0 %v1101, 96
        %v1614 = vpop.permute.xlu0 %1613
        %1679 = vrot.lane.b32.xlu0 %v1134, 32
        %v1680 = vpop.permute.xlu0 %1679
        %1681 = vrot.lane.b32.xlu0 %v1135, 32
        %v1682 = vpop.permute.xlu0 %1681
        %1683 = vrot.lane.b32.xlu0 %v1136, 32
        %v1684 = vpop.permute.xlu0 %1683
        %1685 = vrot.lane.b32.xlu0 %v1137, 32
        %v1686 = vpop.permute.xlu0 %1685
        %1687 = vrot.lane.b32.xlu0 %v1138, 32
        %v1688 = vpop.permute.xlu0 %1687
        %1689 = vrot.lane.b32.xlu0 %v1139, 32
        %v1690 = vpop.permute.xlu0 %1689
        %1691 = vrot.lane.b32.xlu0 %v1140, 32
        %v1692 = vpop.permute.xlu0 %1691
        %1693 = vrot.lane.b32.xlu0 %v1141, 32
        %v1694 = vpop.permute.xlu0 %1693
        %1695 = vrot.lane.b32.xlu0 %v1142, 32
        %v1696 = vpop.permute.xlu0 %1695
        %1697 = vrot.lane.b32.xlu0 %v1143, 32
        %v1698 = vpop.permute.xlu0 %1697
        %1699 = vrot.lane.b32.xlu0 %v1144, 32
        %v1700 = vpop.permute.xlu0 %1699
        %1701 = vrot.lane.b32.xlu0 %v1145, 32
        %v1702 = vpop.permute.xlu0 %1701
        %1703 = vrot.lane.b32.xlu0 %v1146, 32
        %v1704 = vpop.permute.xlu0 %1703
        %1705 = vrot.lane.b32.xlu0 %v1147, 32
        %v1706 = vpop.permute.xlu0 %1705
        %1707 = vrot.lane.b32.xlu0 %v1148, 32
        %v1708 = vpop.permute.xlu0 %1707
        %1709 = vrot.lane.b32.xlu0 %v1149, 32
        %v1710 = vpop.permute.xlu0 %1709
        %1711 = vrot.lane.b32.xlu0 %v1150, 32
        %v1712 = vpop.permute.xlu0 %1711
        %1713 = vrot.lane.b32.xlu0 %v1151, 32
        %v1714 = vpop.permute.xlu0 %1713
        %1715 = vrot.lane.b32.xlu0 %v1152, 32
        %v1716 = vpop.permute.xlu0 %1715
        %1717 = vrot.lane.b32.xlu0 %v1153, 32
        %v1718 = vpop.permute.xlu0 %1717
        %1719 = vrot.lane.b32.xlu0 %v1154, 32
        %v1720 = vpop.permute.xlu0 %1719
        %1721 = vrot.lane.b32.xlu0 %v1155, 32
        %v1722 = vpop.permute.xlu0 %1721
        %1723 = vrot.lane.b32.xlu0 %v1156, 32
        %v1724 = vpop.permute.xlu0 %1723
        %1725 = vrot.lane.b32.xlu0 %v1157, 32
        %v1726 = vpop.permute.xlu0 %1725
        %1727 = vrot.lane.b32.xlu0 %v1158, 32
        %v1728 = vpop.permute.xlu0 %1727
        %1729 = vrot.lane.b32.xlu0 %v1159, 32
        %v1730 = vpop.permute.xlu0 %1729
        %1731 = vrot.lane.b32.xlu0 %v1160, 32
        %v1732 = vpop.permute.xlu0 %1731
        %1733 = vrot.lane.b32.xlu0 %v1161, 32
        %v1734 = vpop.permute.xlu0 %1733
        %1735 = vrot.lane.b32.xlu0 %v1162, 32
        %v1736 = vpop.permute.xlu0 %1735
        %1737 = vrot.lane.b32.xlu0 %v1163, 32
        %v1738 = vpop.permute.xlu0 %1737
        %1739 = vrot.lane.b32.xlu0 %v1164, 32
        %v1740 = vpop.permute.xlu0 %1739
        %1741 = vrot.lane.b32.xlu0 %v1165, 32
        %v1742 = vpop.permute.xlu0 %1741
        %1807 = vrot.lane.b32.xlu0 %v1167, 64
        %v1808 = vpop.permute.xlu0 %1807
        %1809 = vrot.lane.b32.xlu0 %v1168, 64
        %v1810 = vpop.permute.xlu0 %1809
        %1811 = vrot.lane.b32.xlu0 %v1169, 64
        %v1812 = vpop.permute.xlu0 %1811
        %1813 = vrot.lane.b32.xlu0 %v1170, 64
        %v1814 = vpop.permute.xlu0 %1813
        %1815 = vrot.lane.b32.xlu0 %v1171, 64
        %v1816 = vpop.permute.xlu0 %1815
        %1817 = vrot.lane.b32.xlu0 %v1172, 64
        %v1818 = vpop.permute.xlu0 %1817
        %1819 = vrot.lane.b32.xlu0 %v1173, 64
        %v1820 = vpop.permute.xlu0 %1819
        %1821 = vrot.lane.b32.xlu0 %v1174, 64
        %v1822 = vpop.permute.xlu0 %1821
        %1823 = vrot.lane.b32.xlu0 %v1175, 64
        %v1824 = vpop.permute.xlu0 %1823
        %1825 = vrot.lane.b32.xlu0 %v1176, 64
        %v1826 = vpop.permute.xlu0 %1825
        %1827 = vrot.lane.b32.xlu0 %v1177, 64
        %v1828 = vpop.permute.xlu0 %1827
        %1829 = vrot.lane.b32.xlu0 %v1178, 64
        %v1830 = vpop.permute.xlu0 %1829
        %1831 = vrot.lane.b32.xlu0 %v1179, 64
        %v1832 = vpop.permute.xlu0 %1831
        %1833 = vrot.lane.b32.xlu0 %v1180, 64
        %v1834 = vpop.permute.xlu0 %1833
        %1835 = vrot.lane.b32.xlu0 %v1181, 64
        %v1836 = vpop.permute.xlu0 %1835
        %1837 = vrot.lane.b32.xlu0 %v1182, 64
        %v1838 = vpop.permute.xlu0 %1837
        %1839 = vrot.lane.b32.xlu0 %v1183, 64
        %v1840 = vpop.permute.xlu0 %1839
        %1841 = vrot.lane.b32.xlu0 %v1184, 64
        %v1842 = vpop.permute.xlu0 %1841
        %1843 = vrot.lane.b32.xlu0 %v1185, 64
        %v1844 = vpop.permute.xlu0 %1843
        %1845 = vrot.lane.b32.xlu0 %v1186, 64
        %v1846 = vpop.permute.xlu0 %1845
        %1847 = vrot.lane.b32.xlu0 %v1187, 64
        %v1848 = vpop.permute.xlu0 %1847
        %1849 = vrot.lane.b32.xlu0 %v1188, 64
        %v1850 = vpop.permute.xlu0 %1849
        %1851 = vrot.lane.b32.xlu0 %v1189, 64
        %v1852 = vpop.permute.xlu0 %1851
        %1853 = vrot.lane.b32.xlu0 %v1190, 64
        %v1854 = vpop.permute.xlu0 %1853
        %1855 = vrot.lane.b32.xlu0 %v1191, 64
        %v1856 = vpop.permute.xlu0 %1855
        %1857 = vrot.lane.b32.xlu0 %v1192, 64
        %v1858 = vpop.permute.xlu0 %1857
        %1859 = vrot.lane.b32.xlu0 %v1193, 64
        %v1860 = vpop.permute.xlu0 %1859
        %1861 = vrot.lane.b32.xlu0 %v1194, 64
        %v1862 = vpop.permute.xlu0 %1861
        %1863 = vrot.lane.b32.xlu0 %v1195, 64
        %v1864 = vpop.permute.xlu0 %1863
        %1865 = vrot.lane.b32.xlu0 %v1196, 64
        %v1866 = vpop.permute.xlu0 %1865
        %1867 = vrot.lane.b32.xlu0 %v1197, 64
        %v1868 = vpop.permute.xlu0 %1867
        %1869 = vrot.lane.b32.xlu0 %v1198, 64
        %v1870 = vpop.permute.xlu0 %1869
        %1935 = vrot.lane.b32.xlu0 %v1199, 96
        %v1936 = vpop.permute.xlu0 %1935
        %1937 = vrot.lane.b32.xlu0 %v1200, 96
        %v1938 = vpop.permute.xlu0 %1937
        %1939 = vrot.lane.b32.xlu0 %v1201, 96
        %v1940 = vpop.permute.xlu0 %1939
        %1941 = vrot.lane.b32.xlu0 %v1202, 96
        %v1942 = vpop.permute.xlu0 %1941
        %1943 = vrot.lane.b32.xlu0 %v1203, 96
        %v1944 = vpop.permute.xlu0 %1943
        %1945 = vrot.lane.b32.xlu0 %v1204, 96
        %v1946 = vpop.permute.xlu0 %1945
        %1947 = vrot.lane.b32.xlu0 %v1205, 96
        %v1948 = vpop.permute.xlu0 %1947
        %1949 = vrot.lane.b32.xlu0 %v1206, 96
        %v1950 = vpop.permute.xlu0 %1949
        %1951 = vrot.lane.b32.xlu0 %v1207, 96
        %v1952 = vpop.permute.xlu0 %1951
        %1953 = vrot.lane.b32.xlu0 %v1208, 96
        %v1954 = vpop.permute.xlu0 %1953
        %1955 = vrot.lane.b32.xlu0 %v1209, 96
        %v1956 = vpop.permute.xlu0 %1955
        %1957 = vrot.lane.b32.xlu0 %v1210, 96
        %v1958 = vpop.permute.xlu0 %1957
        %1959 = vrot.lane.b32.xlu0 %v1211, 96
        %v1960 = vpop.permute.xlu0 %1959
        %1961 = vrot.lane.b32.xlu0 %v1212, 96
        %v1962 = vpop.permute.xlu0 %1961
        %1963 = vrot.lane.b32.xlu0 %v1213, 96
        %v1964 = vpop.permute.xlu0 %1963
        %1965 = vrot.lane.b32.xlu0 %v1214, 96
        %v1966 = vpop.permute.xlu0 %1965
        %1967 = vrot.lane.b32.xlu0 %v1215, 96
        %v1968 = vpop.permute.xlu0 %1967
        %1969 = vrot.lane.b32.xlu0 %v1216, 96
        %v1970 = vpop.permute.xlu0 %1969
        %1971 = vrot.lane.b32.xlu0 %v1217, 96
        %v1972 = vpop.permute.xlu0 %1971
        %1973 = vrot.lane.b32.xlu0 %v1218, 96
        %v1974 = vpop.permute.xlu0 %1973
        %1975 = vrot.lane.b32.xlu0 %v1219, 96
        %v1976 = vpop.permute.xlu0 %1975
        %1977 = vrot.lane.b32.xlu0 %v1220, 96
        %v1978 = vpop.permute.xlu0 %1977
        %1979 = vrot.lane.b32.xlu0 %v1221, 96
        %v1980 = vpop.permute.xlu0 %1979
        %1981 = vrot.lane.b32.xlu0 %v1222, 96
        %v1982 = vpop.permute.xlu0 %1981
        %1983 = vrot.lane.b32.xlu0 %v1223, 96
        %v1984 = vpop.permute.xlu0 %1983
        %1985 = vrot.lane.b32.xlu0 %v1224, 96
        %v1986 = vpop.permute.xlu0 %1985
        %1987 = vrot.lane.b32.xlu0 %v1225, 96
        %v1988 = vpop.permute.xlu0 %1987
        %1989 = vrot.lane.b32.xlu0 %v1226, 96
        %v1990 = vpop.permute.xlu0 %1989
        %1991 = vrot.lane.b32.xlu0 %v1227, 96
        %v1992 = vpop.permute.xlu0 %1991
        %1993 = vrot.lane.b32.xlu0 %v1228, 96
        %v1994 = vpop.permute.xlu0 %1993
        %1995 = vrot.lane.b32.xlu0 %v1229, 96
        %v1996 = vpop.permute.xlu0 %1995
        %1997 = vrot.lane.b32.xlu0 %v1230, 96
        %v1998 = vpop.permute.xlu0 %1997
        %v2031 = vsel %vm377, %v974, %v1296
        %v2032 = vsel %vm377, %v975, %v1298
        %v2033 = vsel %vm377, %v976, %v1300
        %v2034 = vsel %vm377, %v977, %v1302
        %v2035 = vsel %vm377, %v978, %v1304
        %v2036 = vsel %vm377, %v979, %v1306
        %v2037 = vsel %vm377, %v980, %v1308
        %v2038 = vsel %vm377, %v981, %v1310
        %v2039 = vsel %vm377, %v982, %v1312
        %v2040 = vsel %vm377, %v983, %v1314
        %v2041 = vsel %vm377, %v984, %v1316
        %v2042 = vsel %vm377, %v985, %v1318
        %v2043 = vsel %vm377, %v986, %v1320
        %v2044 = vsel %vm377, %v987, %v1322
        %v2045 = vsel %vm377, %v988, %v1324
        %v2046 = vsel %vm377, %v989, %v1326
        %v2047 = vsel %vm377, %v990, %v1328
        %v2048 = vsel %vm377, %v991, %v1330
        %v2049 = vsel %vm377, %v992, %v1332
        %v2050 = vsel %vm377, %v993, %v1334
        %v2051 = vsel %vm377, %v994, %v1336
        %v2052 = vsel %vm377, %v995, %v1338
        %v2053 = vsel %vm377, %v996, %v1340
        %v2054 = vsel %vm377, %v997, %v1342
        %v2055 = vsel %vm377, %v998, %v1344
        %v2056 = vsel %vm377, %v999, %v1346
        %v2057 = vsel %vm377, %v1000, %v1348
        %v2058 = vsel %vm377, %v1001, %v1350
        %v2059 = vsel %vm377, %v1002, %v1352
        %v2060 = vsel %vm377, %v1003, %v1354
        %v2061 = vsel %vm377, %v1004, %v1356
        %v2062 = vsel %vm377, %v1005, %v1358
        %vm2063 = vcmask 523264
        %v2064 = vsel %vm2063, %v2031, %v1424
        %v2065 = vsel %vm2063, %v2032, %v1426
        %v2066 = vsel %vm2063, %v2033, %v1428
        %v2067 = vsel %vm2063, %v2034, %v1430
        %v2068 = vsel %vm2063, %v2035, %v1432
        %v2069 = vsel %vm2063, %v2036, %v1434
        %v2070 = vsel %vm2063, %v2037, %v1436
        %v2071 = vsel %vm2063, %v2038, %v1438
        %v2072 = vsel %vm2063, %v2039, %v1440
        %v2073 = vsel %vm2063, %v2040, %v1442
        %v2074 = vsel %vm2063, %v2041, %v1444
        %v2075 = vsel %vm2063, %v2042, %v1446
        %v2076 = vsel %vm2063, %v2043, %v1448
        %v2077 = vsel %vm2063, %v2044, %v1450
        %v2078 = vsel %vm2063, %v2045, %v1452
        %v2079 = vsel %vm2063, %v2046, %v1454
        %v2080 = vsel %vm2063, %v2047, %v1456
        %v2081 = vsel %vm2063, %v2048, %v1458
        %v2082 = vsel %vm2063, %v2049, %v1460
        %v2083 = vsel %vm2063, %v2050, %v1462
        %v2084 = vsel %vm2063, %v2051, %v1464
        %v2085 = vsel %vm2063, %v2052, %v1466
        %v2086 = vsel %vm2063, %v2053, %v1468
        %v2087 = vsel %vm2063, %v2054, %v1470
        %v2088 = vsel %vm2063, %v2055, %v1472
        %v2089 = vsel %vm2063, %v2056, %v1474
        %v2090 = vsel %vm2063, %v2057, %v1476
        %v2091 = vsel %vm2063, %v2058, %v1478
        %v2092 = vsel %vm2063, %v2059, %v1480
        %v2093 = vsel %vm2063, %v2060, %v1482
        %v2094 = vsel %vm2063, %v2061, %v1484
        %v2095 = vsel %vm2063, %v2062, %v1486
        %vm2096 = vcmask 785408
        %v2097 = vsel %vm2096, %v2064, %v1552
        %v2098 = vsel %vm2096, %v2065, %v1554
        %v2099 = vsel %vm2096, %v2066, %v1556
        %v2100 = vsel %vm2096, %v2067, %v1558
        %v2101 = vsel %vm2096, %v2068, %v1560
        %v2102 = vsel %vm2096, %v2069, %v1562
        %v2103 = vsel %vm2096, %v2070, %v1564
        %v2104 = vsel %vm2096, %v2071, %v1566
        %v2105 = vsel %vm2096, %v2072, %v1568
        %v2106 = vsel %vm2096, %v2073, %v1570
        %v2107 = vsel %vm2096, %v2074, %v1572
        %v2108 = vsel %vm2096, %v2075, %v1574
        %v2109 = vsel %vm2096, %v2076, %v1576
        %v2110 = vsel %vm2096, %v2077, %v1578
        %v2111 = vsel %vm2096, %v2078, %v1580
        %v2112 = vsel %vm2096, %v2079, %v1582
        %v2113 = vsel %vm2096, %v2080, %v1584
        %v2114 = vsel %vm2096, %v2081, %v1586
        %v2115 = vsel %vm2096, %v2082, %v1588
        %v2116 = vsel %vm2096, %v2083, %v1590
        %v2117 = vsel %vm2096, %v2084, %v1592
        %v2118 = vsel %vm2096, %v2085, %v1594
        %v2119 = vsel %vm2096, %v2086, %v1596
        %v2120 = vsel %vm2096, %v2087, %v1598
        %v2121 = vsel %vm2096, %v2088, %v1600
        %v2122 = vsel %vm2096, %v2089, %v1602
        %v2123 = vsel %vm2096, %v2090, %v1604
        %v2124 = vsel %vm2096, %v2091, %v1606
        %v2125 = vsel %vm2096, %v2092, %v1608
        %v2126 = vsel %vm2096, %v2093, %v1610
        %v2127 = vsel %vm2096, %v2094, %v1612
        %v2128 = vsel %vm2096, %v2095, %v1614
        %v2129 = vsel %vm377, %v1102, %v1680
        %v2130 = vsel %vm377, %v1103, %v1682
        %v2131 = vsel %vm377, %v1104, %v1684
        %v2132 = vsel %vm377, %v1105, %v1686
        %v2133 = vsel %vm377, %v1106, %v1688
        %v2134 = vsel %vm377, %v1107, %v1690
        %v2135 = vsel %vm377, %v1108, %v1692
        %v2136 = vsel %vm377, %v1109, %v1694
        %v2137 = vsel %vm377, %v1110, %v1696
        %v2138 = vsel %vm377, %v1111, %v1698
        %v2139 = vsel %vm377, %v1112, %v1700
        %v2140 = vsel %vm377, %v1113, %v1702
        %v2141 = vsel %vm377, %v1114, %v1704
        %v2142 = vsel %vm377, %v1115, %v1706
        %v2143 = vsel %vm377, %v1116, %v1708
        %v2144 = vsel %vm377, %v1117, %v1710
        %v2145 = vsel %vm377, %v1118, %v1712
        %v2146 = vsel %vm377, %v1119, %v1714
        %v2147 = vsel %vm377, %v1120, %v1716
        %v2148 = vsel %vm377, %v1121, %v1718
        %v2149 = vsel %vm377, %v1122, %v1720
        %v2150 = vsel %vm377, %v1123, %v1722
        %v2151 = vsel %vm377, %v1124, %v1724
        %v2152 = vsel %vm377, %v1125, %v1726
        %v2153 = vsel %vm377, %v1126, %v1728
        %v2154 = vsel %vm377, %v1127, %v1730
        %v2155 = vsel %vm377, %v1128, %v1732
        %v2156 = vsel %vm377, %v1129, %v1734
        %v2157 = vsel %vm377, %v1130, %v1736
        %v2158 = vsel %vm377, %v1131, %v1738
        %v2159 = vsel %vm377, %v1132, %v1740
        %v2160 = vsel %vm377, %v1133, %v1742
        %v2161 = vsel %vm2063, %v2129, %v1808
        %v2162 = vsel %vm2063, %v2130, %v1810
        %v2163 = vsel %vm2063, %v2131, %v1812
        %v2164 = vsel %vm2063, %v2132, %v1814
        %v2165 = vsel %vm2063, %v2133, %v1816
        %v2166 = vsel %vm2063, %v2134, %v1818
        %v2167 = vsel %vm2063, %v2135, %v1820
        %v2168 = vsel %vm2063, %v2136, %v1822
        %v2169 = vsel %vm2063, %v2137, %v1824
        %v2170 = vsel %vm2063, %v2138, %v1826
        %v2171 = vsel %vm2063, %v2139, %v1828
        %v2172 = vsel %vm2063, %v2140, %v1830
        %v2173 = vsel %vm2063, %v2141, %v1832
        %v2174 = vsel %vm2063, %v2142, %v1834
        %v2175 = vsel %vm2063, %v2143, %v1836
        %v2176 = vsel %vm2063, %v2144, %v1838
        %v2177 = vsel %vm2063, %v2145, %v1840
        %v2178 = vsel %vm2063, %v2146, %v1842
        %v2179 = vsel %vm2063, %v2147, %v1844
        %v2180 = vsel %vm2063, %v2148, %v1846
        %v2181 = vsel %vm2063, %v2149, %v1848
        %v2182 = vsel %vm2063, %v2150, %v1850
        %v2183 = vsel %vm2063, %v2151, %v1852
        %v2184 = vsel %vm2063, %v2152, %v1854
        %v2185 = vsel %vm2063, %v2153, %v1856
        %v2186 = vsel %vm2063, %v2154, %v1858
        %v2187 = vsel %vm2063, %v2155, %v1860
        %v2188 = vsel %vm2063, %v2156, %v1862
        %v2189 = vsel %vm2063, %v2157, %v1864
        %v2190 = vsel %vm2063, %v2158, %v1866
        %v2191 = vsel %vm2063, %v2159, %v1868
        %v2192 = vsel %vm2063, %v2160, %v1870
        %v2193 = vsel %vm2096, %v2161, %v1936
        %v2194 = vsel %vm2096, %v2162, %v1938
        %v2195 = vsel %vm2096, %v2163, %v1940
        %v2196 = vsel %vm2096, %v2164, %v1942
        %v2197 = vsel %vm2096, %v2165, %v1944
        %v2198 = vsel %vm2096, %v2166, %v1946
        %v2199 = vsel %vm2096, %v2167, %v1948
        %v2200 = vsel %vm2096, %v2168, %v1950
        %v2201 = vsel %vm2096, %v2169, %v1952
        %v2202 = vsel %vm2096, %v2170, %v1954
        %v2203 = vsel %vm2096, %v2171, %v1956
        %v2204 = vsel %vm2096, %v2172, %v1958
        %v2205 = vsel %vm2096, %v2173, %v1960
        %v2206 = vsel %vm2096, %v2174, %v1962
        %v2207 = vsel %vm2096, %v2175, %v1964
        %v2208 = vsel %vm2096, %v2176, %v1966
        %v2209 = vsel %vm2096, %v2177, %v1968
        %v2210 = vsel %vm2096, %v2178, %v1970
        %v2211 = vsel %vm2096, %v2179, %v1972
        %v2212 = vsel %vm2096, %v2180, %v1974
        %v2213 = vsel %vm2096, %v2181, %v1976
        %v2214 = vsel %vm2096, %v2182, %v1978
        %v2215 = vsel %vm2096, %v2183, %v1980
        %v2216 = vsel %vm2096, %v2184, %v1982
        %v2217 = vsel %vm2096, %v2185, %v1984
        %v2218 = vsel %vm2096, %v2186, %v1986
        %v2219 = vsel %vm2096, %v2187, %v1988
        %v2220 = vsel %vm2096, %v2188, %v1990
        %v2221 = vsel %vm2096, %v2189, %v1992
        %v2222 = vsel %vm2096, %v2190, %v1994
        %v2223 = vsel %vm2096, %v2191, %v1996
        %v2224 = vsel %vm2096, %v2192, %v1998
        %v2225 = vpack.c.bf16 %v2098, %v2097
        %v2226 = vpack.c.bf16 %v2194, %v2193
        %v2227 = vpack.c.bf16 %v1232, %v1231
        %v2228 = vpack.c.bf16 %v2100, %v2099
        %v2229 = vpack.c.bf16 %v2196, %v2195
        %v2230 = vpack.c.bf16 %v1234, %v1233
        %v2231 = vpack.c.bf16 %v2102, %v2101
        %v2232 = vpack.c.bf16 %v2198, %v2197
        %v2233 = vpack.c.bf16 %v1236, %v1235
        %v2234 = vpack.c.bf16 %v2104, %v2103
        %v2235 = vpack.c.bf16 %v2200, %v2199
        %v2236 = vpack.c.bf16 %v1238, %v1237
        %v2237 = vpack.c.bf16 %v2106, %v2105
        %v2238 = vpack.c.bf16 %v2202, %v2201
        %v2239 = vpack.c.bf16 %v1240, %v1239
        %v2240 = vpack.c.bf16 %v2108, %v2107
        %v2241 = vpack.c.bf16 %v2204, %v2203
        %v2242 = vpack.c.bf16 %v1242, %v1241
        %v2243 = vpack.c.bf16 %v2110, %v2109
        %v2244 = vpack.c.bf16 %v2206, %v2205
        %v2245 = vpack.c.bf16 %v1244, %v1243
        %v2246 = vpack.c.bf16 %v2112, %v2111
        %v2247 = vpack.c.bf16 %v2208, %v2207
        %v2248 = vpack.c.bf16 %v1246, %v1245
        %v2249 = vpack.c.bf16 %v2114, %v2113
        %v2250 = vpack.c.bf16 %v2210, %v2209
        %v2251 = vpack.c.bf16 %v1248, %v1247
        %v2252 = vpack.c.bf16 %v2116, %v2115
        %v2253 = vpack.c.bf16 %v2212, %v2211
        %v2254 = vpack.c.bf16 %v1250, %v1249
        %v2255 = vpack.c.bf16 %v2118, %v2117
        %v2256 = vpack.c.bf16 %v2214, %v2213
        %v2257 = vpack.c.bf16 %v1252, %v1251
        %v2258 = vpack.c.bf16 %v2120, %v2119
        %v2259 = vpack.c.bf16 %v2216, %v2215
        %v2260 = vpack.c.bf16 %v1254, %v1253
        %v2261 = vpack.c.bf16 %v2122, %v2121
        %v2262 = vpack.c.bf16 %v2218, %v2217
        %v2263 = vpack.c.bf16 %v1256, %v1255
        %v2264 = vpack.c.bf16 %v2124, %v2123
        %v2265 = vpack.c.bf16 %v2220, %v2219
        %v2266 = vpack.c.bf16 %v1258, %v1257
        %v2267 = vpack.c.bf16 %v2126, %v2125
        %v2268 = vpack.c.bf16 %v2222, %v2221
        %v2269 = vpack.c.bf16 %v1260, %v1259
        %v2270 = vpack.c.bf16 %v2128, %v2127
        %v2271 = vpack.c.bf16 %v2224, %v2223
        %v2272 = vpack.c.bf16 %v1262, %v1261
        %v2273 = vld [vmem:[#allocation11] sm:$0xf]
        %v2274 = vld [vmem:[#allocation11 + $0x4] sm:$0xf]
        %v2275 = vld [vmem:[#allocation11 + $0x8] sm:$0xf]
        %v2276 = vld [vmem:[#allocation11 + $0xc] sm:$0xf]
        %v2277 = vld [vmem:[#allocation11 + $0x10] sm:$0xf]
        %v2278 = vld [vmem:[#allocation11 + $0x14] sm:$0xf]
        %v2279 = vld [vmem:[#allocation11 + $0x18] sm:$0xf]
        %v2280 = vld [vmem:[#allocation11 + $0x1c] sm:$0xf]
        %v2281 = vld [vmem:[#allocation11 + $0x20] sm:$0xf]
        %v2282 = vld [vmem:[#allocation11 + $0x24] sm:$0xf]
        %v2283 = vld [vmem:[#allocation11 + $0x28] sm:$0xf]
        %v2284 = vld [vmem:[#allocation11 + $0x2c] sm:$0xf]
        %v2285 = vld [vmem:[#allocation11 + $0x30] sm:$0xf]
        %v2286 = vld [vmem:[#allocation11 + $0x34] sm:$0xf]
        %v2287 = vld [vmem:[#allocation11 + $0x38] sm:$0xf]
        %v2288 = vld [vmem:[#allocation11 + $0x3c] sm:$0xf]
        %v2289 = vld [vmem:[#allocation11 + $0x40] sm:$0xf]
        %v2290 = vld [vmem:[#allocation11 + $0x44] sm:$0xf]
        %v2291 = vld [vmem:[#allocation11 + $0x48] sm:$0xf]
        %v2292 = vld [vmem:[#allocation11 + $0x4c] sm:$0xf]
        %v2293 = vld [vmem:[#allocation11 + $0x50] sm:$0xf]
        %v2294 = vld [vmem:[#allocation11 + $0x54] sm:$0xf]
        %v2295 = vld [vmem:[#allocation11 + $0x58] sm:$0xf]
        %v2296 = vld [vmem:[#allocation11 + $0x5c] sm:$0xf]
        %v2297 = vld [vmem:[#allocation11 + $0x60] sm:$0xf]
        %v2298 = vld [vmem:[#allocation11 + $0x64] sm:$0xf]
        %v2299 = vld [vmem:[#allocation11 + $0x68] sm:$0xf]
        %v2300 = vld [vmem:[#allocation11 + $0x6c] sm:$0xf]
        %v2301 = vld [vmem:[#allocation11 + $0x70] sm:$0xf]
        %v2302 = vld [vmem:[#allocation11 + $0x74] sm:$0xf]
        %v2303 = vld [vmem:[#allocation11 + $0x78] sm:$0xf]
        %v2304 = vld [vmem:[#allocation11 + $0x7c] sm:$0xf]
        %v2305 = vld [vmem:[#allocation11 + $0x80] sm:$0xf]
        %v2306 = vld [vmem:[#allocation11 + $0x84] sm:$0xf]
        %v2307 = vld [vmem:[#allocation11 + $0x88] sm:$0xf]
        %v2308 = vld [vmem:[#allocation11 + $0x8c] sm:$0xf]
        %v2345 = vunpack.c.l.b16 %v2273
        %v2346 = vunpack.c.l.b16 %v2274
        %v2347 = vunpack.c.l.b16 %v2275
        %v2348 = vunpack.c.l.b16 %v2276
        %v2349 = vunpack.c.l.b16 %v2277
        %v2350 = vunpack.c.l.b16 %v2278
        %v2351 = vunpack.c.l.b16 %v2279
        %v2352 = vunpack.c.l.b16 %v2280
        %v2353 = vunpack.c.l.b16 %v2281
        %v2354 = vunpack.c.l.b16 %v2282
        %v2355 = vunpack.c.l.b16 %v2283
        %v2356 = vunpack.c.l.b16 %v2284
        %v2357 = vunpack.c.l.b16 %v2285
        %v2358 = vunpack.c.l.b16 %v2286
        %v2359 = vunpack.c.l.b16 %v2287
        %v2360 = vunpack.c.l.b16 %v2288
        %v2361 = vunpack.c.l.b16 %v2289
        %v2362 = vunpack.c.l.b16 %v2290
        %v2363 = vunpack.c.l.b16 %v2291
        %v2364 = vunpack.c.l.b16 %v2292
        %v2365 = vunpack.c.l.b16 %v2293
        %v2366 = vunpack.c.l.b16 %v2294
        %v2367 = vunpack.c.l.b16 %v2295
        %v2368 = vunpack.c.l.b16 %v2296
        %v2369 = vunpack.c.l.b16 %v2297
        %v2370 = vunpack.c.l.b16 %v2298
        %v2371 = vunpack.c.l.b16 %v2299
        %v2372 = vunpack.c.l.b16 %v2300
        %v2373 = vunpack.c.l.b16 %v2301
        %v2374 = vunpack.c.l.b16 %v2302
        %v2375 = vunpack.c.l.b16 %v2303
        %v2376 = vunpack.c.l.b16 %v2304
        %v2377 = vunpack.c.l.b16 %v2305
        %v2378 = vunpack.c.l.b16 %v2306
        %v2379 = vunpack.c.l.b16 %v2307
        %v2380 = vunpack.c.l.b16 %v2308
        %v2381 = vpack.c.b16 %v2346, %v2345
        %v2382 = vpack.c.b16 %v2348, %v2347
        %v2383 = vpack.c.b16 %v2350, %v2349
        %v2384 = vpack.c.b16 %v2352, %v2351
        %v2385 = vpack.c.b16 %v2354, %v2353
        %v2386 = vpack.c.b16 %v2356, %v2355
        %v2387 = vpack.c.b16 %v2358, %v2357
        %v2388 = vpack.c.b16 %v2360, %v2359
        %v2389 = vpack.c.b16 %v2362, %v2361
        %v2390 = vpack.c.b16 %v2364, %v2363
        %v2391 = vpack.c.b16 %v2366, %v2365
        %v2392 = vpack.c.b16 %v2368, %v2367
        %v2393 = vpack.c.b16 %v2370, %v2369
        %v2394 = vpack.c.b16 %v2372, %v2371
        %v2395 = vpack.c.b16 %v2374, %v2373
        %v2396 = vpack.c.b16 %v2376, %v2375
        %v2397 = vpack.c.b16 %v2378, %v2377
        %v2398 = vpack.c.b16 %v2380, %v2379
        %v2418 = vsel %vm377, %v2227, 0
        %v2421 = vsel %vm377, %v2230, 0
        %v2424 = vsel %vm377, %v2233, 0
        %v2427 = vsel %vm377, %v2236, 0
        %v2430 = vsel %vm377, %v2239, 0
        %v2433 = vsel %vm377, %v2242, 0
        %v2436 = vsel %vm377, %v2245, 0
        %v2439 = vsel %vm377, %v2248, 0
        %v2442 = vsel %vm377, %v2251, 0
        %v2445 = vsel %vm377, %v2254, 0
        %v2448 = vsel %vm377, %v2257, 0
        %v2451 = vsel %vm377, %v2260, 0
        %v2454 = vsel %vm377, %v2263, 0
        %v2457 = vsel %vm377, %v2266, 0
        %v2460 = vsel %vm377, %v2269, 0
        %v2463 = vsel %vm377, %v2272, 0
        %2465 = vmatprep.subr.bf16.mxu0 0
        %2466 = vmatpush1.bf16.msra.mxu0 %v2381
        %2467 = vmatprep.subr.bf16.mxu0 0
        %2468 = vmatpush1.bf16.msra.mxu0 %v2382
        %2469 = vmatprep.subr.bf16.mxu0 0
        %2470 = vmatpush1.bf16.msra.mxu0 %v2383
        %2471 = vmatprep.subr.bf16.mxu0 0
        %2472 = vmatpush1.bf16.msra.mxu0 %v2384
        %2473 = vmatprep.subr.bf16.mxu0 0
        %2474 = vmatpush1.bf16.msra.mxu0 %v2385
        %2475 = vmatprep.subr.bf16.mxu0 0
        %2476 = vmatpush1.bf16.msra.mxu0 %v2386
        %2477 = vmatprep.subr.bf16.mxu0 0
        %2478 = vmatpush1.bf16.msra.mxu0 %v2387
        %2479 = vmatprep.subr.bf16.mxu0 0
        %2480 = vmatpush1.bf16.msra.mxu0 %v2388
        %2481 = vmatprep.subr.bf16.mxu0 0
        %2482 = vmatpush1.bf16.msra.mxu0 %v2389
        %2483 = vmatprep.subr.bf16.mxu0 0
        %2484 = vmatpush1.bf16.msra.mxu0 %v2390
        %2485 = vmatprep.subr.bf16.mxu0 0
        %2486 = vmatpush1.bf16.msra.mxu0 %v2391
        %2487 = vmatprep.subr.bf16.mxu0 0
        %2488 = vmatpush1.bf16.msra.mxu0 %v2392
        %2489 = vmatprep.subr.bf16.mxu0 0
        %2490 = vmatpush1.bf16.msra.mxu0 %v2393
        %2491 = vmatprep.subr.bf16.mxu0 0
        %2492 = vmatpush1.bf16.msra.mxu0 %v2394
        %2493 = vmatprep.subr.bf16.mxu0 0
        %2494 = vmatpush1.bf16.msra.mxu0 %v2395
        %2495 = vmatprep.subr.bf16.mxu0 0
        %2496 = vmatpush1.bf16.msra.mxu0 %v2396
        %2497 = vmatprep.mubr.bf16.mxu0 %v2226
        %2498 = vmatmul.mubr.bf16.gmra.mrb[0].mxu0 %v2225
        %v2499 = vpop.f32.mrb[0].mxu0
        %v2500 = vadd.f32 0.0, %v2499
        %v2501 = vpop.f32.mrb[0].mxu0
        %v2502 = vpop.f32.mrb[0].mxu0
        %v2503 = vadd.f32 0.0, %v2502
        %v2504 = vpop.f32.mrb[0].mxu0
        %2505 = vmatprep.mubr.bf16.mxu0 %v2229
        %2506 = vmatmul.mubr.bf16.gmra.mrb[0].mxu0 %v2228
        %v2507 = vpop.f32.mrb[0].mxu0
        %v2508 = vadd.f32 0.0, %v2507
        %v2509 = vpop.f32.mrb[0].mxu0
        %v2510 = vpop.f32.mrb[0].mxu0
        %v2511 = vadd.f32 0.0, %v2510
        %v2512 = vpop.f32.mrb[0].mxu0
        %2513 = vmatprep.mubr.bf16.mxu0 %v2232
        %2514 = vmatmul.mubr.bf16.gmra.mrb[0].mxu0 %v2231
        %v2515 = vpop.f32.mrb[0].mxu0
        %v2516 = vadd.f32 0.0, %v2515
        %v2517 = vpop.f32.mrb[0].mxu0
        %v2518 = vpop.f32.mrb[0].mxu0
        %v2519 = vadd.f32 0.0, %v2518
        %v2520 = vpop.f32.mrb[0].mxu0
        %2521 = vmatprep.mubr.bf16.mxu0 %v2235
        %2522 = vmatmul.mubr.bf16.gmra.mrb[0].mxu0 %v2234
        %v2523 = vpop.f32.mrb[0].mxu0
        %v2524 = vadd.f32 0.0, %v2523
        %v2525 = vpop.f32.mrb[0].mxu0
        %v2526 = vpop.f32.mrb[0].mxu0
        %v2527 = vadd.f32 0.0, %v2526
        %v2528 = vpop.f32.mrb[0].mxu0
        %2529 = vmatprep.mubr.bf16.mxu0 %v2238
        %2530 = vmatmul.mubr.bf16.gmra.mrb[0].mxu0 %v2237
        %v2531 = vpop.f32.mrb[0].mxu0
        %v2532 = vadd.f32 0.0, %v2531
        %v2533 = vpop.f32.mrb[0].mxu0
        %v2534 = vpop.f32.mrb[0].mxu0
        %v2535 = vadd.f32 0.0, %v2534
        %v2536 = vpop.f32.mrb[0].mxu0
        %2537 = vmatprep.mubr.bf16.mxu0 %v2241
        %2538 = vmatmul.mubr.bf16.gmra.mrb[0].mxu0 %v2240
        %v2539 = vpop.f32.mrb[0].mxu0
        %v2540 = vadd.f32 0.0, %v2539
        %v2541 = vpop.f32.mrb[0].mxu0
        %v2542 = vpop.f32.mrb[0].mxu0
        %v2543 = vadd.f32 0.0, %v2542
        %v2544 = vpop.f32.mrb[0].mxu0
        %2545 = vmatprep.mubr.bf16.mxu0 %v2244
        %2546 = vmatmul.mubr.bf16.gmra.mrb[0].mxu0 %v2243
        %v2547 = vpop.f32.mrb[0].mxu0
        %v2548 = vadd.f32 0.0, %v2547
        %v2549 = vpop.f32.mrb[0].mxu0
        %v2550 = vpop.f32.mrb[0].mxu0
        %v2551 = vadd.f32 0.0, %v2550
        %v2552 = vpop.f32.mrb[0].mxu0
        %2553 = vmatprep.mubr.bf16.mxu0 %v2247
        %2554 = vmatmul.mubr.bf16.gmra.mrb[0].mxu0 %v2246
        %v2555 = vpop.f32.mrb[0].mxu0
        %v2556 = vadd.f32 0.0, %v2555
        %v2557 = vpop.f32.mrb[0].mxu0
        %v2558 = vpop.f32.mrb[0].mxu0
        %v2559 = vadd.f32 0.0, %v2558
        %v2560 = vpop.f32.mrb[0].mxu0
        %2561 = vmatprep.mubr.bf16.mxu0 %v2250
        %2562 = vmatmul.mubr.bf16.gmra.mrb[0].mxu0 %v2249
        %v2563 = vpop.f32.mrb[0].mxu0
        %v2564 = vadd.f32 0.0, %v2563
        %v2565 = vpop.f32.mrb[0].mxu0
        %v2566 = vpop.f32.mrb[0].mxu0
        %v2567 = vadd.f32 0.0, %v2566
        %v2568 = vpop.f32.mrb[0].mxu0
        %2569 = vmatprep.mubr.bf16.mxu0 %v2253
        %2570 = vmatmul.mubr.bf16.gmra.mrb[0].mxu0 %v2252
        %v2571 = vpop.f32.mrb[0].mxu0
        %v2572 = vadd.f32 0.0, %v2571
        %v2573 = vpop.f32.mrb[0].mxu0
        %v2574 = vpop.f32.mrb[0].mxu0
        %v2575 = vadd.f32 0.0, %v2574
        %v2576 = vpop.f32.mrb[0].mxu0
        %2577 = vmatprep.mubr.bf16.mxu0 %v2256
        %2578 = vmatmul.mubr.bf16.gmra.mrb[0].mxu0 %v2255
        %v2579 = vpop.f32.mrb[0].mxu0
        %v2580 = vadd.f32 0.0, %v2579
        %v2581 = vpop.f32.mrb[0].mxu0
        %v2582 = vpop.f32.mrb[0].mxu0
        %v2583 = vadd.f32 0.0, %v2582
        %v2584 = vpop.f32.mrb[0].mxu0
        %2585 = vmatprep.mubr.bf16.mxu0 %v2259
        %2586 = vmatmul.mubr.bf16.gmra.mrb[0].mxu0 %v2258
        %v2587 = vpop.f32.mrb[0].mxu0
        %v2588 = vadd.f32 0.0, %v2587
        %v2589 = vpop.f32.mrb[0].mxu0
        %v2590 = vpop.f32.mrb[0].mxu0
        %v2591 = vadd.f32 0.0, %v2590
        %v2592 = vpop.f32.mrb[0].mxu0
        %2593 = vmatprep.mubr.bf16.mxu0 %v2262
        %2594 = vmatmul.mubr.bf16.gmra.mrb[0].mxu0 %v2261
        %v2595 = vpop.f32.mrb[0].mxu0
        %v2596 = vadd.f32 0.0, %v2595
        %v2597 = vpop.f32.mrb[0].mxu0
        %v2598 = vpop.f32.mrb[0].mxu0
        %v2599 = vadd.f32 0.0, %v2598
        %v2600 = vpop.f32.mrb[0].mxu0
        %2601 = vmatprep.mubr.bf16.mxu0 %v2265
        %2602 = vmatmul.mubr.bf16.gmra.mrb[0].mxu0 %v2264
        %v2603 = vpop.f32.mrb[0].mxu0
        %v2604 = vadd.f32 0.0, %v2603
        %v2605 = vpop.f32.mrb[0].mxu0
        %v2606 = vpop.f32.mrb[0].mxu0
        %v2607 = vadd.f32 0.0, %v2606
        %v2608 = vpop.f32.mrb[0].mxu0
        %2609 = vmatprep.mubr.bf16.mxu0 %v2268
        %2610 = vmatmul.mubr.bf16.gmra.mrb[0].mxu0 %v2267
        %v2611 = vpop.f32.mrb[0].mxu0
        %v2612 = vadd.f32 0.0, %v2611
        %v2613 = vpop.f32.mrb[0].mxu0
        %v2614 = vpop.f32.mrb[0].mxu0
        %v2615 = vadd.f32 0.0, %v2614
        %v2616 = vpop.f32.mrb[0].mxu0
        %2617 = vmatprep.mubr.bf16.mxu0 %v2271
        %2618 = vmatmul.mubr.bf16.gmra.mrb[0].mxu0 %v2270
        %v2619 = vpop.f32.mrb[0].mxu0
        %v2620 = vadd.f32 0.0, %v2619
        %v2621 = vpop.f32.mrb[0].mxu0
        %v2622 = vpop.f32.mrb[0].mxu0
        %v2623 = vadd.f32 0.0, %v2622
        %v2624 = vpop.f32.mrb[0].mxu0
        %2625 = vdwg.mxu0
        %2626 = vmatprep.subr.bf16.mxu0 0
        %2627 = vmatpush1.bf16.msra.mxu0 %v2397
        %2628 = vmatprep.subr.bf16.mxu0 0
        %2629 = vmatpush1.bf16.msra.mxu0 %v2398
        %2630 = vmatprep.subr.bf16.mxu0 0
        %2631 = vmatpush1.bf16.msra.mxu0 0
        %2632 = vmatprep.subr.bf16.mxu0 0
        %2633 = vmatpush1.bf16.msra.mxu0 0
        %2634 = vmatprep.subr.bf16.mxu0 0
        %2635 = vmatpush1.bf16.msra.mxu0 0
        %2636 = vmatprep.subr.bf16.mxu0 0
        %2637 = vmatpush1.bf16.msra.mxu0 0
        %2638 = vmatprep.subr.bf16.mxu0 0
        %2639 = vmatpush1.bf16.msra.mxu0 0
        %2640 = vmatprep.subr.bf16.mxu0 0
        %2641 = vmatpush1.bf16.msra.mxu0 0
        %2642 = vmatprep.subr.bf16.mxu0 0
        %2643 = vmatpush1.bf16.msra.mxu0 0
        %2644 = vmatprep.subr.bf16.mxu0 0
        %2645 = vmatpush1.bf16.msra.mxu0 0
        %2646 = vmatprep.subr.bf16.mxu0 0
        %2647 = vmatpush1.bf16.msra.mxu0 0
        %2648 = vmatprep.subr.bf16.mxu0 0
        %2649 = vmatpush1.bf16.msra.mxu0 0
        %2650 = vmatprep.subr.bf16.mxu0 0
        %2651 = vmatpush1.bf16.msra.mxu0 0
        %2652 = vmatprep.subr.bf16.mxu0 0
        %2653 = vmatpush1.bf16.msra.mxu0 0
        %2654 = vmatprep.subr.bf16.mxu0 0
        %2655 = vmatpush1.bf16.msra.mxu0 0
        %2656 = vmatprep.subr.bf16.mxu0 0
        %2657 = vmatpush1.bf16.msra.mxu0 0
        %2658 = vmatprep.mubr.bf16.mxu0 0
        %2659 = vmatmul.mubr.bf16.gmra.mrb[0].mxu0 %v2418
        %v2660 = vpop.f32.mrb[0].mxu0
        %v2661 = vadd.f32 %v2500, %v2660
        %v2662 = vpop.f32.mrb[0].mxu0
        %v2663 = vpop.f32.mrb[0].mxu0
        %v2664 = vadd.f32 %v2503, %v2663
        %v2665 = vpop.f32.mrb[0].mxu0
        %2666 = vmatprep.mubr.bf16.mxu0 0
        %2667 = vmatmul.mubr.bf16.gmra.mrb[0].mxu0 %v2421
        %v2668 = vpop.f32.mrb[0].mxu0
        %v2669 = vadd.f32 %v2508, %v2668
        %v2670 = vpop.f32.mrb[0].mxu0
        %v2671 = vpop.f32.mrb[0].mxu0
        %v2672 = vadd.f32 %v2511, %v2671
        %v2673 = vpop.f32.mrb[0].mxu0
        %2674 = vmatprep.mubr.bf16.mxu0 0
        %2675 = vmatmul.mubr.bf16.gmra.mrb[0].mxu0 %v2424
        %v2676 = vpop.f32.mrb[0].mxu0
        %v2677 = vadd.f32 %v2516, %v2676
        %v2678 = vpop.f32.mrb[0].mxu0
        %v2679 = vpop.f32.mrb[0].mxu0
        %v2680 = vadd.f32 %v2519, %v2679
        %v2681 = vpop.f32.mrb[0].mxu0
        %2682 = vmatprep.mubr.bf16.mxu0 0
        %2683 = vmatmul.mubr.bf16.gmra.mrb[0].mxu0 %v2427
        %v2684 = vpop.f32.mrb[0].mxu0
        %v2685 = vadd.f32 %v2524, %v2684
        %v2686 = vpop.f32.mrb[0].mxu0
        %v2687 = vpop.f32.mrb[0].mxu0
        %v2688 = vadd.f32 %v2527, %v2687
        %v2689 = vpop.f32.mrb[0].mxu0
        %2690 = vmatprep.mubr.bf16.mxu0 0
        %2691 = vmatmul.mubr.bf16.gmra.mrb[0].mxu0 %v2430
        %v2692 = vpop.f32.mrb[0].mxu0
        %v2693 = vadd.f32 %v2532, %v2692
        %v2694 = vpop.f32.mrb[0].mxu0
        %v2695 = vpop.f32.mrb[0].mxu0
        %v2696 = vadd.f32 %v2535, %v2695
        %v2697 = vpop.f32.mrb[0].mxu0
        %2698 = vmatprep.mubr.bf16.mxu0 0
        %2699 = vmatmul.mubr.bf16.gmra.mrb[0].mxu0 %v2433
        %v2700 = vpop.f32.mrb[0].mxu0
        %v2701 = vadd.f32 %v2540, %v2700
        %v2702 = vpop.f32.mrb[0].mxu0
        %v2703 = vpop.f32.mrb[0].mxu0
        %v2704 = vadd.f32 %v2543, %v2703
        %v2705 = vpop.f32.mrb[0].mxu0
        %2706 = vmatprep.mubr.bf16.mxu0 0
        %2707 = vmatmul.mubr.bf16.gmra.mrb[0].mxu0 %v2436
        %v2708 = vpop.f32.mrb[0].mxu0
        %v2709 = vadd.f32 %v2548, %v2708
        %v2710 = vpop.f32.mrb[0].mxu0
        %v2711 = vpop.f32.mrb[0].mxu0
        %v2712 = vadd.f32 %v2551, %v2711
        %v2713 = vpop.f32.mrb[0].mxu0
        %2714 = vmatprep.mubr.bf16.mxu0 0
        %2715 = vmatmul.mubr.bf16.gmra.mrb[0].mxu0 %v2439
        %v2716 = vpop.f32.mrb[0].mxu0
        %v2717 = vadd.f32 %v2556, %v2716
        %v2718 = vpop.f32.mrb[0].mxu0
        %v2719 = vpop.f32.mrb[0].mxu0
        %v2720 = vadd.f32 %v2559, %v2719
        %v2721 = vpop.f32.mrb[0].mxu0
        %2722 = vmatprep.mubr.bf16.mxu0 0
        %2723 = vmatmul.mubr.bf16.gmra.mrb[0].mxu0 %v2442
        %v2724 = vpop.f32.mrb[0].mxu0
        %v2725 = vadd.f32 %v2564, %v2724
        %v2726 = vpop.f32.mrb[0].mxu0
        %v2727 = vpop.f32.mrb[0].mxu0
        %v2728 = vadd.f32 %v2567, %v2727
        %v2729 = vpop.f32.mrb[0].mxu0
        %2730 = vmatprep.mubr.bf16.mxu0 0
        %2731 = vmatmul.mubr.bf16.gmra.mrb[0].mxu0 %v2445
        %v2732 = vpop.f32.mrb[0].mxu0
        %v2733 = vadd.f32 %v2572, %v2732
        %v2734 = vpop.f32.mrb[0].mxu0
        %v2735 = vpop.f32.mrb[0].mxu0
        %v2736 = vadd.f32 %v2575, %v2735
        %v2737 = vpop.f32.mrb[0].mxu0
        %2738 = vmatprep.mubr.bf16.mxu0 0
        %2739 = vmatmul.mubr.bf16.gmra.mrb[0].mxu0 %v2448
        %v2740 = vpop.f32.mrb[0].mxu0
        %v2741 = vadd.f32 %v2580, %v2740
        %v2742 = vpop.f32.mrb[0].mxu0
        %v2743 = vpop.f32.mrb[0].mxu0
        %v2744 = vadd.f32 %v2583, %v2743
        %v2745 = vpop.f32.mrb[0].mxu0
        %2746 = vmatprep.mubr.bf16.mxu0 0
        %2747 = vmatmul.mubr.bf16.gmra.mrb[0].mxu0 %v2451
        %v2748 = vpop.f32.mrb[0].mxu0
        %v2749 = vadd.f32 %v2588, %v2748
        %v2750 = vpop.f32.mrb[0].mxu0
        %v2751 = vpop.f32.mrb[0].mxu0
        %v2752 = vadd.f32 %v2591, %v2751
        %v2753 = vpop.f32.mrb[0].mxu0
        %2754 = vmatprep.mubr.bf16.mxu0 0
        %2755 = vmatmul.mubr.bf16.gmra.mrb[0].mxu0 %v2454
        %v2756 = vpop.f32.mrb[0].mxu0
        %v2757 = vadd.f32 %v2596, %v2756
        %v2758 = vpop.f32.mrb[0].mxu0
        %v2759 = vpop.f32.mrb[0].mxu0
        %v2760 = vadd.f32 %v2599, %v2759
        %v2761 = vpop.f32.mrb[0].mxu0
        %2762 = vmatprep.mubr.bf16.mxu0 0
        %2763 = vmatmul.mubr.bf16.gmra.mrb[0].mxu0 %v2457
        %v2764 = vpop.f32.mrb[0].mxu0
        %v2765 = vadd.f32 %v2604, %v2764
        %v2766 = vpop.f32.mrb[0].mxu0
        %v2767 = vpop.f32.mrb[0].mxu0
        %v2768 = vadd.f32 %v2607, %v2767
        %v2769 = vpop.f32.mrb[0].mxu0
        %2770 = vmatprep.mubr.bf16.mxu0 0
        %2771 = vmatmul.mubr.bf16.gmra.mrb[0].mxu0 %v2460
        %v2772 = vpop.f32.mrb[0].mxu0
        %v2773 = vadd.f32 %v2612, %v2772
        %v2774 = vpop.f32.mrb[0].mxu0
        %v2775 = vpop.f32.mrb[0].mxu0
        %v2776 = vadd.f32 %v2615, %v2775
        %v2777 = vpop.f32.mrb[0].mxu0
        %2778 = vmatprep.mubr.bf16.mxu0 0
        %2779 = vmatmul.mubr.bf16.gmra.mrb[0].mxu0 %v2463
        %v2780 = vpop.f32.mrb[0].mxu0
        %v2781 = vadd.f32 %v2620, %v2780
        %v2782 = vpop.f32.mrb[0].mxu0
        %v2783 = vpop.f32.mrb[0].mxu0
        %v2784 = vadd.f32 %v2623, %v2783
        %v2785 = vpop.f32.mrb[0].mxu0
        %2786 = vdwg.mxu0
        %v2787 = vld [vmem:[#allocation12] sm:$0x1]
        %v2789 = vlaneseq
        %v2790 = vshrl.u32 %v2789, 7
        %v2791 = vsub.s32 0, %v2790
        %v2792 = vrot.slane %v2787, %v2791
        %v2794 = vmul.f32 %v2661, %v2792
        %v2795 = vmul.f32 %v2664, %v2792
        %v2796 = vmul.f32 %v2669, %v2792
        %v2797 = vmul.f32 %v2672, %v2792
        %v2798 = vmul.f32 %v2677, %v2792
        %v2799 = vmul.f32 %v2680, %v2792
        %v2800 = vmul.f32 %v2685, %v2792
        %v2801 = vmul.f32 %v2688, %v2792
        %v2802 = vmul.f32 %v2693, %v2792
        %v2803 = vmul.f32 %v2696, %v2792
        %v2804 = vmul.f32 %v2701, %v2792
        %v2805 = vmul.f32 %v2704, %v2792
        %v2806 = vmul.f32 %v2709, %v2792
        %v2807 = vmul.f32 %v2712, %v2792
        %v2808 = vmul.f32 %v2717, %v2792
        %v2809 = vmul.f32 %v2720, %v2792
        %v2810 = vmul.f32 %v2725, %v2792
        %v2811 = vmul.f32 %v2728, %v2792
        %v2812 = vmul.f32 %v2733, %v2792
        %v2813 = vmul.f32 %v2736, %v2792
        %v2814 = vmul.f32 %v2741, %v2792
        %v2815 = vmul.f32 %v2744, %v2792
        %v2816 = vmul.f32 %v2749, %v2792
        %v2817 = vmul.f32 %v2752, %v2792
        %v2818 = vmul.f32 %v2757, %v2792
        %v2819 = vmul.f32 %v2760, %v2792
        %v2820 = vmul.f32 %v2765, %v2792
        %v2821 = vmul.f32 %v2768, %v2792
        %v2822 = vmul.f32 %v2773, %v2792
        %v2823 = vmul.f32 %v2776, %v2792
        %v2824 = vmul.f32 %v2781, %v2792
        %v2825 = vmul.f32 %v2784, %v2792
        %v2826 = vld [vmem:[#allocation14] sm:$0x1]
        %v2828 = vlaneseq
        %v2829 = vshrl.u32 %v2828, 7
        %v2830 = vsub.s32 0, %v2829
        %v2831 = vrot.slane %v2826, %v2830
        %v2833 = vadd.f32 %v2794, %v2831
        %v2834 = vadd.f32 %v2795, %v2831
        %v2835 = vadd.f32 %v2796, %v2831
        %v2836 = vadd.f32 %v2797, %v2831
        %v2837 = vadd.f32 %v2798, %v2831
        %v2838 = vadd.f32 %v2799, %v2831
        %v2839 = vadd.f32 %v2800, %v2831
        %v2840 = vadd.f32 %v2801, %v2831
        %v2841 = vadd.f32 %v2802, %v2831
        %v2842 = vadd.f32 %v2803, %v2831
        %v2843 = vadd.f32 %v2804, %v2831
        %v2844 = vadd.f32 %v2805, %v2831
        %v2845 = vadd.f32 %v2806, %v2831
        %v2846 = vadd.f32 %v2807, %v2831
        %v2847 = vadd.f32 %v2808, %v2831
        %v2848 = vadd.f32 %v2809, %v2831
        %v2849 = vadd.f32 %v2810, %v2831
        %v2850 = vadd.f32 %v2811, %v2831
        %v2851 = vadd.f32 %v2812, %v2831
        %v2852 = vadd.f32 %v2813, %v2831
        %v2853 = vadd.f32 %v2814, %v2831
        %v2854 = vadd.f32 %v2815, %v2831
        %v2855 = vadd.f32 %v2816, %v2831
        %v2856 = vadd.f32 %v2817, %v2831
        %v2857 = vadd.f32 %v2818, %v2831
        %v2858 = vadd.f32 %v2819, %v2831
        %v2859 = vadd.f32 %v2820, %v2831
        %v2860 = vadd.f32 %v2821, %v2831
        %v2861 = vadd.f32 %v2822, %v2831
        %v2862 = vadd.f32 %v2823, %v2831
        %v2863 = vadd.f32 %v2824, %v2831
        %v2864 = vadd.f32 %v2825, %v2831
        %vm2865 = vcmp.gt.f32.partialorder %v2833, 0.0
        %vm2866 = vcmp.gt.f32.partialorder %v2834, 0.0
        %vm2867 = vcmp.gt.f32.partialorder %v2835, 0.0
        %vm2868 = vcmp.gt.f32.partialorder %v2836, 0.0
        %vm2869 = vcmp.gt.f32.partialorder %v2837, 0.0
        %vm2870 = vcmp.gt.f32.partialorder %v2838, 0.0
        %vm2871 = vcmp.gt.f32.partialorder %v2839, 0.0
        %vm2872 = vcmp.gt.f32.partialorder %v2840, 0.0
        %vm2873 = vcmp.gt.f32.partialorder %v2841, 0.0
        %vm2874 = vcmp.gt.f32.partialorder %v2842, 0.0
        %vm2875 = vcmp.gt.f32.partialorder %v2843, 0.0
        %vm2876 = vcmp.gt.f32.partialorder %v2844, 0.0
        %vm2877 = vcmp.gt.f32.partialorder %v2845, 0.0
        %vm2878 = vcmp.gt.f32.partialorder %v2846, 0.0
        %vm2879 = vcmp.gt.f32.partialorder %v2847, 0.0
        %vm2880 = vcmp.gt.f32.partialorder %v2848, 0.0
        %vm2881 = vcmp.gt.f32.partialorder %v2849, 0.0
        %vm2882 = vcmp.gt.f32.partialorder %v2850, 0.0
        %vm2883 = vcmp.gt.f32.partialorder %v2851, 0.0
        %vm2884 = vcmp.gt.f32.partialorder %v2852, 0.0
        %vm2885 = vcmp.gt.f32.partialorder %v2853, 0.0
        %vm2886 = vcmp.gt.f32.partialorder %v2854, 0.0
        %vm2887 = vcmp.gt.f32.partialorder %v2855, 0.0
        %vm2888 = vcmp.gt.f32.partialorder %v2856, 0.0
        %vm2889 = vcmp.gt.f32.partialorder %v2857, 0.0
        %vm2890 = vcmp.gt.f32.partialorder %v2858, 0.0
        %vm2891 = vcmp.gt.f32.partialorder %v2859, 0.0
        %vm2892 = vcmp.gt.f32.partialorder %v2860, 0.0
        %vm2893 = vcmp.gt.f32.partialorder %v2861, 0.0
        %vm2894 = vcmp.gt.f32.partialorder %v2862, 0.0
        %vm2895 = vcmp.gt.f32.partialorder %v2863, 0.0
        %vm2896 = vcmp.gt.f32.partialorder %v2864, 0.0
        %v2897 = vmul.f32 %v2833, 0.1
        %v2898 = vmul.f32 %v2834, 0.1
        %v2899 = vmul.f32 %v2835, 0.1
        %v2900 = vmul.f32 %v2836, 0.1
        %v2901 = vmul.f32 %v2837, 0.1
        %v2902 = vmul.f32 %v2838, 0.1
        %v2903 = vmul.f32 %v2839, 0.1
        %v2904 = vmul.f32 %v2840, 0.1
        %v2905 = vmul.f32 %v2841, 0.1
        %v2906 = vmul.f32 %v2842, 0.1
        %v2907 = vmul.f32 %v2843, 0.1
        %v2908 = vmul.f32 %v2844, 0.1
        %v2909 = vmul.f32 %v2845, 0.1
        %v2910 = vmul.f32 %v2846, 0.1
        %v2911 = vmul.f32 %v2847, 0.1
        %v2912 = vmul.f32 %v2848, 0.1
        %v2913 = vmul.f32 %v2849, 0.1
        %v2914 = vmul.f32 %v2850, 0.1
        %v2915 = vmul.f32 %v2851, 0.1
        %v2916 = vmul.f32 %v2852, 0.1
        %v2917 = vmul.f32 %v2853, 0.1
        %v2918 = vmul.f32 %v2854, 0.1
        %v2919 = vmul.f32 %v2855, 0.1
        %v2920 = vmul.f32 %v2856, 0.1
        %v2921 = vmul.f32 %v2857, 0.1
        %v2922 = vmul.f32 %v2858, 0.1
        %v2923 = vmul.f32 %v2859, 0.1
        %v2924 = vmul.f32 %v2860, 0.1
        %v2925 = vmul.f32 %v2861, 0.1
        %v2926 = vmul.f32 %v2862, 0.1
        %v2927 = vmul.f32 %v2863, 0.1
        %v2928 = vmul.f32 %v2864, 0.1
        %v2929 = vsel %vm2865, %v2833, %v2897
        %v2930 = vsel %vm2866, %v2834, %v2898
        %v2931 = vsel %vm2867, %v2835, %v2899
        %v2932 = vsel %vm2868, %v2836, %v2900
        %v2933 = vsel %vm2869, %v2837, %v2901
        %v2934 = vsel %vm2870, %v2838, %v2902
        %v2935 = vsel %vm2871, %v2839, %v2903
        %v2936 = vsel %vm2872, %v2840, %v2904
        %v2937 = vsel %vm2873, %v2841, %v2905
        %v2938 = vsel %vm2874, %v2842, %v2906
        %v2939 = vsel %vm2875, %v2843, %v2907
        %v2940 = vsel %vm2876, %v2844, %v2908
        %v2941 = vsel %vm2877, %v2845, %v2909
        %v2942 = vsel %vm2878, %v2846, %v2910
        %v2943 = vsel %vm2879, %v2847, %v2911
        %v2944 = vsel %vm2880, %v2848, %v2912
        %v2945 = vsel %vm2881, %v2849, %v2913
        %v2946 = vsel %vm2882, %v2850, %v2914
        %v2947 = vsel %vm2883, %v2851, %v2915
        %v2948 = vsel %vm2884, %v2852, %v2916
        %v2949 = vsel %vm2885, %v2853, %v2917
        %v2950 = vsel %vm2886, %v2854, %v2918
        %v2951 = vsel %vm2887, %v2855, %v2919
        %v2952 = vsel %vm2888, %v2856, %v2920
        %v2953 = vsel %vm2889, %v2857, %v2921
        %v2954 = vsel %vm2890, %v2858, %v2922
        %v2955 = vsel %vm2891, %v2859, %v2923
        %v2956 = vsel %vm2892, %v2860, %v2924
        %v2957 = vsel %vm2893, %v2861, %v2925
        %v2958 = vsel %vm2894, %v2862, %v2926
        %v2959 = vsel %vm2895, %v2863, %v2927
        %v2960 = vsel %vm2896, %v2864, %v2928
        %2961 = vst.msk [vmem:[%s941 + $0x1] sm:$0xff] %vm377, %v2929
        %2962 = vst.msk [vmem:[%s941 + $0x9] sm:$0xff] %vm377, %v2930
        %2963 = vst.msk [vmem:[%s941 + $0x19] sm:$0xff] %vm377, %v2931
        %2964 = vst.msk [vmem:[%s941 + $0x21] sm:$0xff] %vm377, %v2932
        %2965 = vst.msk [vmem:[%s941 + $0x31] sm:$0xff] %vm377, %v2933
        %2966 = vst.msk [vmem:[%s941 + $0x39] sm:$0xff] %vm377, %v2934
        %2967 = vst.msk [vmem:[%s941 + $0x49] sm:$0xff] %vm377, %v2935
        %2968 = vst.msk [vmem:[%s941 + $0x51] sm:$0xff] %vm377, %v2936
        %2969 = vst.msk [vmem:[%s941 + $0x61] sm:$0xff] %vm377, %v2937
        %2970 = vst.msk [vmem:[%s941 + $0x69] sm:$0xff] %vm377, %v2938
        %2971 = vst.msk [vmem:[%s941 + $0x79] sm:$0xff] %vm377, %v2939
        %2972 = vst.msk [vmem:[%s941 + $0x81] sm:$0xff] %vm377, %v2940
        %2973 = vst.msk [vmem:[%s941 + $0x91] sm:$0xff] %vm377, %v2941
        %2974 = vst.msk [vmem:[%s941 + $0x99] sm:$0xff] %vm377, %v2942
        %2975 = vst.msk [vmem:[%s941 + $0xa9] sm:$0xff] %vm377, %v2943
        %2976 = vst.msk [vmem:[%s941 + $0xb1] sm:$0xff] %vm377, %v2944
        %2977 = vst.msk [vmem:[%s941 + $0xc1] sm:$0xff] %vm377, %v2945
        %2978 = vst.msk [vmem:[%s941 + $0xc9] sm:$0xff] %vm377, %v2946
        %2979 = vst.msk [vmem:[%s941 + $0xd9] sm:$0xff] %vm377, %v2947
        %2980 = vst.msk [vmem:[%s941 + $0xe1] sm:$0xff] %vm377, %v2948
        %2981 = vst.msk [vmem:[%s941 + $0xf1] sm:$0xff] %vm377, %v2949
        %2982 = vst.msk [vmem:[%s941 + $0xf9] sm:$0xff] %vm377, %v2950
        %2983 = vst.msk [vmem:[%s941 + $0x109] sm:$0xff] %vm377, %v2951
        %2984 = vst.msk [vmem:[%s941 + $0x111] sm:$0xff] %vm377, %v2952
        %2985 = vst.msk [vmem:[%s941 + $0x121] sm:$0xff] %vm377, %v2953
        %2986 = vst.msk [vmem:[%s941 + $0x129] sm:$0xff] %vm377, %v2954
        %2987 = vst.msk [vmem:[%s941 + $0x139] sm:$0xff] %vm377, %v2955
        %2988 = vst.msk [vmem:[%s941 + $0x141] sm:$0xff] %vm377, %v2956
        %2989 = vst.msk [vmem:[%s941 + $0x151] sm:$0xff] %vm377, %v2957
        %2990 = vst.msk [vmem:[%s941 + $0x159] sm:$0xff] %vm377, %v2958
        %2991 = vst.msk [vmem:[%s941 + $0x169] sm:$0xff] %vm377, %v2959
        %2992 = vst.msk [vmem:[%s941 + $0x171] sm:$0xff] %vm377, %v2960
        %v2993 = vld [vmem:[#allocation2] ss:$2 sm:$0xff]
        %s2994 = scalar_lea.vmem [#allocation2], 16
        %v2995 = vld [vmem:[%s2994] ss:$2 sm:$0x1]
        %s2996 = scalar_lea.vmem [#allocation2], 48
        %v2997 = vld [vmem:[%s2996] ss:$2 sm:$0xff]
        %s2998 = scalar_lea.vmem [#allocation2], 64
        %v2999 = vld [vmem:[%s2998] ss:$2 sm:$0x1]
        %s3000 = scalar_lea.vmem [#allocation2], 96
        %v3001 = vld [vmem:[%s3000] ss:$2 sm:$0xff]
        %s3002 = scalar_lea.vmem [#allocation2], 112
        %v3003 = vld [vmem:[%s3002] ss:$2 sm:$0x1]
        %s3004 = scalar_lea.vmem [#allocation2], 144
        %v3005 = vld [vmem:[%s3004] ss:$2 sm:$0xff]
        %s3006 = scalar_lea.vmem [#allocation2], 160
        %v3007 = vld [vmem:[%s3006] ss:$2 sm:$0x1]
        %s3008 = scalar_lea.vmem [#allocation2], 192
        %v3009 = vld [vmem:[%s3008] ss:$2 sm:$0xff]
        %s3010 = scalar_lea.vmem [#allocation2], 208
        %v3011 = vld [vmem:[%s3010] ss:$2 sm:$0x1]
        %s3012 = scalar_lea.vmem [#allocation2], 240
        %v3013 = vld [vmem:[%s3012] ss:$2 sm:$0xff]
        %s3014 = scalar_lea.vmem [#allocation2], 256
        %v3015 = vld [vmem:[%s3014] ss:$2 sm:$0x1]
        %s3016 = scalar_lea.vmem [#allocation2], 288
        %v3017 = vld [vmem:[%s3016] ss:$2 sm:$0xff]
        %s3018 = scalar_lea.vmem [#allocation2], 304
        %v3019 = vld [vmem:[%s3018] ss:$2 sm:$0x1]
        %s3020 = scalar_lea.vmem [#allocation2], 336
        %v3021 = vld [vmem:[%s3020] ss:$2 sm:$0xff]
        %s3022 = scalar_lea.vmem [#allocation2], 352
        %v3023 = vld [vmem:[%s3022] ss:$2 sm:$0x1]
        %s3024 = scalar_lea.vmem [#allocation2], 384
        %v3025 = vld [vmem:[%s3024] ss:$2 sm:$0xff]
        %s3026 = scalar_lea.vmem [#allocation2], 400
        %v3027 = vld [vmem:[%s3026] ss:$2 sm:$0x1]
        %v3028 = vpack.c.bf16 %v2995, %v2993
        %v3029 = vpack.c.bf16 %v2999, %v2997
        %v3030 = vpack.c.bf16 %v3003, %v3001
        %v3031 = vpack.c.bf16 %v3007, %v3005
        %v3032 = vpack.c.bf16 %v3011, %v3009
        %v3033 = vpack.c.bf16 %v3015, %v3013
        %v3034 = vpack.c.bf16 %v3019, %v3017
        %v3035 = vpack.c.bf16 %v3023, %v3021
        %v3036 = vpack.c.bf16 %v3027, %v3025
        %s3037 = scalar_lea.vmem [#allocation2], 1
        %v3038 = vld [vmem:[%s3037] ss:$2 sm:$0xff]
        %s3039 = scalar_lea.vmem [#allocation2], 17
        %v3040 = vld [vmem:[%s3039] ss:$2 sm:$0x1]
        %s3041 = scalar_lea.vmem [#allocation2], 49
        %v3042 = vld [vmem:[%s3041] ss:$2 sm:$0xff]
        %s3043 = scalar_lea.vmem [#allocation2], 65
        %v3044 = vld [vmem:[%s3043] ss:$2 sm:$0x1]
        %s3045 = scalar_lea.vmem [#allocation2], 97
        %v3046 = vld [vmem:[%s3045] ss:$2 sm:$0xff]
        %s3047 = scalar_lea.vmem [#allocation2], 113
        %v3048 = vld [vmem:[%s3047] ss:$2 sm:$0x1]
        %s3049 = scalar_lea.vmem [#allocation2], 145
        %v3050 = vld [vmem:[%s3049] ss:$2 sm:$0xff]
        %s3051 = scalar_lea.vmem [#allocation2], 161
        %v3052 = vld [vmem:[%s3051] ss:$2 sm:$0x1]
        %s3053 = scalar_lea.vmem [#allocation2], 193
        %v3054 = vld [vmem:[%s3053] ss:$2 sm:$0xff]
        %s3055 = scalar_lea.vmem [#allocation2], 209
        %v3056 = vld [vmem:[%s3055] ss:$2 sm:$0x1]
        %s3057 = scalar_lea.vmem [#allocation2], 241
        %v3058 = vld [vmem:[%s3057] ss:$2 sm:$0xff]
        %s3059 = scalar_lea.vmem [#allocation2], 257
        %v3060 = vld [vmem:[%s3059] ss:$2 sm:$0x1]
        %s3061 = scalar_lea.vmem [#allocation2], 289
        %v3062 = vld [vmem:[%s3061] ss:$2 sm:$0xff]
        %s3063 = scalar_lea.vmem [#allocation2], 305
        %v3064 = vld [vmem:[%s3063] ss:$2 sm:$0x1]
        %s3065 = scalar_lea.vmem [#allocation2], 337
        %v3066 = vld [vmem:[%s3065] ss:$2 sm:$0xff]
        %s3067 = scalar_lea.vmem [#allocation2], 353
        %v3068 = vld [vmem:[%s3067] ss:$2 sm:$0x1]
        %s3069 = scalar_lea.vmem [#allocation2], 385
        %v3070 = vld [vmem:[%s3069] ss:$2 sm:$0xff]
        %s3071 = scalar_lea.vmem [#allocation2], 401
        %v3072 = vld [vmem:[%s3071] ss:$2 sm:$0x1]
        %v3073 = vpack.c.bf16 %v3040, %v3038
        %v3074 = vpack.c.bf16 %v3044, %v3042
        %v3075 = vpack.c.bf16 %v3048, %v3046
        %v3076 = vpack.c.bf16 %v3052, %v3050
        %v3077 = vpack.c.bf16 %v3056, %v3054
        %v3078 = vpack.c.bf16 %v3060, %v3058
        %v3079 = vpack.c.bf16 %v3064, %v3062
        %v3080 = vpack.c.bf16 %v3068, %v3066
        %v3081 = vpack.c.bf16 %v3072, %v3070
        %v3082 = vld [vmem:[%s941] ss:$2 sm:$0xff]
        %s3083 = scalar_lea.vmem %s941, 16 [#allocation2]
        %v3084 = vld [vmem:[%s3083] ss:$2 sm:$0x1]
        %s3085 = scalar_lea.vmem %s941, 48 [#allocation2]
        %v3086 = vld [vmem:[%s3085] ss:$2 sm:$0xff]
        %s3087 = scalar_lea.vmem %s941, 64 [#allocation2]
        %v3088 = vld [vmem:[%s3087] ss:$2 sm:$0x1]
        %s3089 = scalar_lea.vmem %s941, 96 [#allocation2]
        %v3090 = vld [vmem:[%s3089] ss:$2 sm:$0xff]
        %s3091 = scalar_lea.vmem %s941, 112 [#allocation2]
        %v3092 = vld [vmem:[%s3091] ss:$2 sm:$0x1]
        %s3093 = scalar_lea.vmem %s941, 144 [#allocation2]
        %v3094 = vld [vmem:[%s3093] ss:$2 sm:$0xff]
        %s3095 = scalar_lea.vmem %s941, 160 [#allocation2]
        %v3096 = vld [vmem:[%s3095] ss:$2 sm:$0x1]
        %s3097 = scalar_lea.vmem %s941, 192 [#allocation2]
        %v3098 = vld [vmem:[%s3097] ss:$2 sm:$0xff]
        %s3099 = scalar_lea.vmem %s941, 208 [#allocation2]
        %v3100 = vld [vmem:[%s3099] ss:$2 sm:$0x1]
        %s3101 = scalar_lea.vmem %s941, 240 [#allocation2]
        %v3102 = vld [vmem:[%s3101] ss:$2 sm:$0xff]
        %s3103 = scalar_lea.vmem %s941, 256 [#allocation2]
        %v3104 = vld [vmem:[%s3103] ss:$2 sm:$0x1]
        %s3105 = scalar_lea.vmem %s941, 288 [#allocation2]
        %v3106 = vld [vmem:[%s3105] ss:$2 sm:$0xff]
        %s3107 = scalar_lea.vmem %s941, 304 [#allocation2]
        %v3108 = vld [vmem:[%s3107] ss:$2 sm:$0x1]
        %s3109 = scalar_lea.vmem %s941, 336 [#allocation2]
        %v3110 = vld [vmem:[%s3109] ss:$2 sm:$0xff]
        %s3111 = scalar_lea.vmem %s941, 352 [#allocation2]
        %v3112 = vld [vmem:[%s3111] ss:$2 sm:$0x1]
        %s3113 = scalar_lea.vmem %s941, 384 [#allocation2]
        %v3114 = vld [vmem:[%s3113] ss:$2 sm:$0xff]
        %s3115 = scalar_lea.vmem %s941, 400 [#allocation2]
        %v3116 = vld [vmem:[%s3115] ss:$2 sm:$0x1]
        %v3117 = vpack.c.bf16 %v3084, %v3082
        %v3118 = vpack.c.bf16 %v3088, %v3086
        %v3119 = vpack.c.bf16 %v3092, %v3090
        %v3120 = vpack.c.bf16 %v3096, %v3094
        %v3121 = vpack.c.bf16 %v3100, %v3098
        %v3122 = vpack.c.bf16 %v3104, %v3102
        %v3123 = vpack.c.bf16 %v3108, %v3106
        %v3124 = vpack.c.bf16 %v3112, %v3110
        %v3125 = vpack.c.bf16 %v3116, %v3114
        %s3126 = scalar_lea.vmem %s941, 1 [#allocation2]
        %v3127 = vld [vmem:[%s3126] ss:$2 sm:$0xff]
        %s3128 = scalar_lea.vmem %s941, 17 [#allocation2]
        %v3129 = vld [vmem:[%s3128] ss:$2 sm:$0x1]
        %s3130 = scalar_lea.vmem %s941, 49 [#allocation2]
        %v3131 = vld [vmem:[%s3130] ss:$2 sm:$0xff]
        %s3132 = scalar_lea.vmem %s941, 65 [#allocation2]
        %v3133 = vld [vmem:[%s3132] ss:$2 sm:$0x1]
        %s3134 = scalar_lea.vmem %s941, 97 [#allocation2]
        %v3135 = vld [vmem:[%s3134] ss:$2 sm:$0xff]
        %s3136 = scalar_lea.vmem %s941, 113 [#allocation2]
        %v3137 = vld [vmem:[%s3136] ss:$2 sm:$0x1]
        %s3138 = scalar_lea.vmem %s941, 145 [#allocation2]
        %v3139 = vld [vmem:[%s3138] ss:$2 sm:$0xff]
        %s3140 = scalar_lea.vmem %s941, 161 [#allocation2]
        %v3141 = vld [vmem:[%s3140] ss:$2 sm:$0x1]
        %s3142 = scalar_lea.vmem %s941, 193 [#allocation2]
        %v3143 = vld [vmem:[%s3142] ss:$2 sm:$0xff]
        %s3144 = scalar_lea.vmem %s941, 209 [#allocation2]
        %v3145 = vld [vmem:[%s3144] ss:$2 sm:$0x1]
        %s3146 = scalar_lea.vmem %s941, 241 [#allocation2]
        %v3147 = vld [vmem:[%s3146] ss:$2 sm:$0xff]
        %s3148 = scalar_lea.vmem %s941, 257 [#allocation2]
        %v3149 = vld [vmem:[%s3148] ss:$2 sm:$0x1]
        %s3150 = scalar_lea.vmem %s941, 289 [#allocation2]
        %v3151 = vld [vmem:[%s3150] ss:$2 sm:$0xff]
        %s3152 = scalar_lea.vmem %s941, 305 [#allocation2]
        %v3153 = vld [vmem:[%s3152] ss:$2 sm:$0x1]
        %s3154 = scalar_lea.vmem %s941, 337 [#allocation2]
        %v3155 = vld [vmem:[%s3154] ss:$2 sm:$0xff]
        %s3156 = scalar_lea.vmem %s941, 353 [#allocation2]
        %v3157 = vld [vmem:[%s3156] ss:$2 sm:$0x1]
        %s3158 = scalar_lea.vmem %s941, 385 [#allocation2]
        %v3159 = vld [vmem:[%s3158] ss:$2 sm:$0xff]
        %s3160 = scalar_lea.vmem %s941, 401 [#allocation2]
        %v3161 = vld [vmem:[%s3160] ss:$2 sm:$0x1]
        %v3162 = vpack.c.bf16 %v3129, %v3127
        %v3163 = vpack.c.bf16 %v3133, %v3131
        %v3164 = vpack.c.bf16 %v3137, %v3135
        %v3165 = vpack.c.bf16 %v3141, %v3139
        %v3166 = vpack.c.bf16 %v3145, %v3143
        %v3167 = vpack.c.bf16 %v3149, %v3147
        %v3168 = vpack.c.bf16 %v3153, %v3151
        %v3169 = vpack.c.bf16 %v3157, %v3155
        %v3170 = vpack.c.bf16 %v3161, %v3159
        %3180 = vrot.lane.b32.xlu0 %v3073, 32
        %v3181 = vpop.permute.xlu0 %3180
        %3182 = vrot.lane.b32.xlu0 %v3074, 32
        %v3183 = vpop.permute.xlu0 %3182
        %3184 = vrot.lane.b32.xlu0 %v3075, 32
        %v3185 = vpop.permute.xlu0 %3184
        %3186 = vrot.lane.b32.xlu0 %v3076, 32
        %v3187 = vpop.permute.xlu0 %3186
        %3188 = vrot.lane.b32.xlu0 %v3077, 32
        %v3189 = vpop.permute.xlu0 %3188
        %3190 = vrot.lane.b32.xlu0 %v3078, 32
        %v3191 = vpop.permute.xlu0 %3190
        %3192 = vrot.lane.b32.xlu0 %v3079, 32
        %v3193 = vpop.permute.xlu0 %3192
        %3194 = vrot.lane.b32.xlu0 %v3080, 32
        %v3195 = vpop.permute.xlu0 %3194
        %3196 = vrot.lane.b32.xlu0 %v3081, 32
        %v3197 = vpop.permute.xlu0 %3196
        %3207 = vrot.lane.b32.xlu0 %v3117, 64
        %v3208 = vpop.permute.xlu0 %3207
        %3209 = vrot.lane.b32.xlu0 %v3118, 64
        %v3210 = vpop.permute.xlu0 %3209
        %3211 = vrot.lane.b32.xlu0 %v3119, 64
        %v3212 = vpop.permute.xlu0 %3211
        %3213 = vrot.lane.b32.xlu0 %v3120, 64
        %v3214 = vpop.permute.xlu0 %3213
        %3215 = vrot.lane.b32.xlu0 %v3121, 64
        %v3216 = vpop.permute.xlu0 %3215
        %3217 = vrot.lane.b32.xlu0 %v3122, 64
        %v3218 = vpop.permute.xlu0 %3217
        %3219 = vrot.lane.b32.xlu0 %v3123, 64
        %v3220 = vpop.permute.xlu0 %3219
        %3221 = vrot.lane.b32.xlu0 %v3124, 64
        %v3222 = vpop.permute.xlu0 %3221
        %3223 = vrot.lane.b32.xlu0 %v3125, 64
        %v3224 = vpop.permute.xlu0 %3223
        %3234 = vrot.lane.b32.xlu0 %v3162, 96
        %v3235 = vpop.permute.xlu0 %3234
        %3236 = vrot.lane.b32.xlu0 %v3163, 96
        %v3237 = vpop.permute.xlu0 %3236
        %3238 = vrot.lane.b32.xlu0 %v3164, 96
        %v3239 = vpop.permute.xlu0 %3238
        %3240 = vrot.lane.b32.xlu0 %v3165, 96
        %v3241 = vpop.permute.xlu0 %3240
        %3242 = vrot.lane.b32.xlu0 %v3166, 96
        %v3243 = vpop.permute.xlu0 %3242
        %3244 = vrot.lane.b32.xlu0 %v3167, 96
        %v3245 = vpop.permute.xlu0 %3244
        %3246 = vrot.lane.b32.xlu0 %v3168, 96
        %v3247 = vpop.permute.xlu0 %3246
        %3248 = vrot.lane.b32.xlu0 %v3169, 96
        %v3249 = vpop.permute.xlu0 %3248
        %3250 = vrot.lane.b32.xlu0 %v3170, 96
        %v3251 = vpop.permute.xlu0 %3250
        %v3254 = vsel %vm377, %v3028, %v3181
        %v3257 = vsel %vm377, %v3029, %v3183
        %v3260 = vsel %vm377, %v3030, %v3185
        %v3263 = vsel %vm377, %v3031, %v3187
        %v3266 = vsel %vm377, %v3032, %v3189
        %v3269 = vsel %vm377, %v3033, %v3191
        %v3272 = vsel %vm377, %v3034, %v3193
        %v3275 = vsel %vm377, %v3035, %v3195
        %v3278 = vsel %vm377, %v3036, %v3197
        %v3280 = vsel %vm2063, %v3254, %v3208
        %v3282 = vsel %vm2063, %v3257, %v3210
        %v3284 = vsel %vm2063, %v3260, %v3212
        %v3286 = vsel %vm2063, %v3263, %v3214
        %v3288 = vsel %vm2063, %v3266, %v3216
        %v3290 = vsel %vm2063, %v3269, %v3218
        %v3292 = vsel %vm2063, %v3272, %v3220
        %v3294 = vsel %vm2063, %v3275, %v3222
        %v3296 = vsel %vm2063, %v3278, %v3224
        %v3298 = vsel %vm2096, %v3280, %v3235
        %v3300 = vsel %vm2096, %v3282, %v3237
        %v3302 = vsel %vm2096, %v3284, %v3239
        %v3304 = vsel %vm2096, %v3286, %v3241
        %v3306 = vsel %vm2096, %v3288, %v3243
        %v3308 = vsel %vm2096, %v3290, %v3245
        %v3310 = vsel %vm2096, %v3292, %v3247
        %v3312 = vsel %vm2096, %v3294, %v3249
        %v3314 = vsel %vm2096, %v3296, %v3251
        %v3324 = vunpack.c.l.b16 %v3298
        %v3325 = vunpack.c.h.b16 %v3298
        %v3326 = vunpack.c.l.b16 %v3300
        %v3327 = vunpack.c.h.b16 %v3300
        %v3328 = vunpack.c.l.b16 %v3302
        %v3329 = vunpack.c.h.b16 %v3302
        %v3330 = vunpack.c.l.b16 %v3304
        %v3331 = vunpack.c.h.b16 %v3304
        %v3332 = vunpack.c.l.b16 %v3306
        %v3333 = vunpack.c.h.b16 %v3306
        %v3334 = vunpack.c.l.b16 %v3308
        %v3335 = vunpack.c.h.b16 %v3308
        %v3336 = vunpack.c.l.b16 %v3310
        %v3337 = vunpack.c.h.b16 %v3310
        %v3338 = vunpack.c.l.b16 %v3312
        %v3339 = vunpack.c.h.b16 %v3312
        %v3340 = vunpack.c.l.b16 %v3314
        %v3341 = vunpack.c.h.b16 %v3314
        %v3342 = vpack.c.b16 %v3324, %v3324
        %v3343 = vpack.c.b16 %v3325, %v3325
        %v3344 = vpack.c.b16 %v3326, %v3326
        %v3345 = vpack.c.b16 %v3327, %v3327
        %v3346 = vpack.c.b16 %v3328, %v3328
        %v3347 = vpack.c.b16 %v3329, %v3329
        %v3348 = vpack.c.b16 %v3330, %v3330
        %v3349 = vpack.c.b16 %v3331, %v3331
        %v3350 = vpack.c.b16 %v3332, %v3332
        %v3351 = vpack.c.b16 %v3333, %v3333
        %v3352 = vpack.c.b16 %v3334, %v3334
        %v3353 = vpack.c.b16 %v3335, %v3335
        %v3354 = vpack.c.b16 %v3336, %v3336
        %v3355 = vpack.c.b16 %v3337, %v3337
        %v3356 = vpack.c.b16 %v3338, %v3338
        %v3357 = vpack.c.b16 %v3339, %v3339
        %v3358 = vpack.c.b16 %v3340, %v3340
        %v3359 = vpack.c.b16 %v3341, %v3341
        %3378 = vst [vmem:[%s375] sm:$0xf] %v3342
        %vm3379 = vcmask 1040384
        %vm3380 = vsmask.f32 256
        %vm3381 = vmand %vm3379, %vm3380
        %v3382 = vld [vmem:[%s375 + $0x4] sm:$0x1]
        %v3383 = vsel %vm3381, %v3343, %v3382
        %3384 = vst [vmem:[%s375 + $0x4] sm:$0x1] %v3383
        %3385 = vst [vmem:[%s375 + $0x8] sm:$0xf] %v3344
        %v3386 = vld [vmem:[%s375 + $0xc] sm:$0x1]
        %v3387 = vsel %vm3381, %v3345, %v3386
        %3388 = vst [vmem:[%s375 + $0xc] sm:$0x1] %v3387
        %3389 = vst [vmem:[%s375 + $0x10] sm:$0xf] %v3346
        %v3390 = vld [vmem:[%s375 + $0x14] sm:$0x1]
        %v3391 = vsel %vm3381, %v3347, %v3390
        %3392 = vst [vmem:[%s375 + $0x14] sm:$0x1] %v3391
        %3393 = vst [vmem:[%s375 + $0x18] sm:$0xf] %v3348
        %v3394 = vld [vmem:[%s375 + $0x1c] sm:$0x1]
        %v3395 = vsel %vm3381, %v3349, %v3394
        %3396 = vst [vmem:[%s375 + $0x1c] sm:$0x1] %v3395
        %3397 = vst [vmem:[%s375 + $0x20] sm:$0xf] %v3350
        %v3398 = vld [vmem:[%s375 + $0x24] sm:$0x1]
        %v3399 = vsel %vm3381, %v3351, %v3398
        %3400 = vst [vmem:[%s375 + $0x24] sm:$0x1] %v3399
        %3401 = vst [vmem:[%s375 + $0x28] sm:$0xf] %v3352
        %v3402 = vld [vmem:[%s375 + $0x2c] sm:$0x1]
        %v3403 = vsel %vm3381, %v3353, %v3402
        %3404 = vst [vmem:[%s375 + $0x2c] sm:$0x1] %v3403
        %3405 = vst [vmem:[%s375 + $0x30] sm:$0xf] %v3354
        %v3406 = vld [vmem:[%s375 + $0x34] sm:$0x1]
        %v3407 = vsel %vm3381, %v3355, %v3406
        %3408 = vst [vmem:[%s375 + $0x34] sm:$0x1] %v3407
        %3409 = vst [vmem:[%s375 + $0x38] sm:$0xf] %v3356
        %v3410 = vld [vmem:[%s375 + $0x3c] sm:$0x1]
        %v3411 = vsel %vm3381, %v3357, %v3410
        %3412 = vst [vmem:[%s375 + $0x3c] sm:$0x1] %v3411
        %3413 = vst [vmem:[%s375 + $0x40] sm:$0xf] %v3358
        %v3414 = vld [vmem:[%s375 + $0x44] sm:$0x1]
        %v3415 = vsel %vm3381, %v3359, %v3414
        %3416 = vst [vmem:[%s375 + $0x44] sm:$0x1] %v3415
        %s3417 = sand.u32 %s187, 1
        %s3418 = scalar_lea.sflag [#allocation5], %s3417
        %s3419 = sand.u32 %s187, 1
        %s3420 = smul.addr %s3419, 72
        %s3421 = scalar_lea.vmem [#allocation15], %s3420
        // Predicated region
        $region77: #{ranker_128_up_forward.2} parent=47 // pred_check
          %p3422 = pneg %p197
        $region78: #{ranker_128_up_forward.2} parent=47 // pred_check_branch
          %3424 = sbr.rel (%p3422) target = $region80
        $region79: #{ranker_128_up_forward.2} parent=47 // pred_region
          %s3426 = ssub.s32 1152, 1152
          %3427 = vsyncadd %s3418, %s3426
          %s3428 = smul.addr %s27, 18
          %s3429 = smul.addr %s3428, 64
          %s3430 = scalar_lea.hbm %s7, %s3429
          %s3431 = sshll.u32 %s3421, 4
          %s3432 = int_to_ptr.vmem [resolvable:$true] %s3431
          %3437 = dma.vmem_to_hbm [thread:$0]  %s3432, 1152, %s3430, %s3418, 64, 64, 4
        $region80: #{ranker_128_up_forward.2} parent=47 // pred_fallthru
          _
      $region48: #{ranker_128_up_forward.2} parent=5 // pred_fallthru
        _
      %p3438 = scmp.le.s32.totalorder 2, %s22
      // Predicated region
      $region81: #{ranker_128_up_forward.2} parent=5 // pred_check
        %p3439 = pneg %p3438
      $region82: #{ranker_128_up_forward.2} parent=5 // pred_check_branch
        %3441 = sbr.rel (%p3439) target = $region84
      $region83: #{ranker_128_up_forward.2} parent=5 // pred_region
        %s3442 = ssub.s32 %s22, 2
        // Predicated region
        $region85: #{ranker_128_up_forward.2} parent=83 // pred_check
          %p3443 = pneg %p203
        $region86: #{ranker_128_up_forward.2} parent=83 // pred_check_branch
          %3445 = sbr.rel (%p3443) target = $region88
        $region87: #{ranker_128_up_forward.2} parent=83 // pred_region
          %s3446 = sand.u32 %s188, 1
          %s3447 = scalar_lea.sflag [#allocation5], %s3446
          %s3448 = sand.u32 %s188, 1
          %s3449 = smul.addr %s3448, 72
          %s3450 = scalar_lea.vmem [#allocation15], %s3449
          %3451 = dma.done %s3447, 1152
        $region88: #{ranker_128_up_forward.2} parent=83 // pred_fallthru
          _
      $region84: #{ranker_128_up_forward.2} parent=5 // pred_fallthru
        _
    $region6: #{ranker_128_up_forward.2} parent=1 // loop_footer
      %s26 = sadd.s32 1, %s22
    $region7: #{ranker_128_up_forward.2} parent=1 // loop_footer_branch
      %21 = sbr.rel target = $region3
    $region8: #{ranker_128_up_forward.2} parent=1 // loop_exit
      _
    %3452 = vsyncpa [#allocation4], 1
    %s3453 = scalar_lea.sflag [#allocation4], 1
    %3454 = vsyncpa %s3453, 1
    %3455 = vsyncpa [#allocation7], 1
    %3456 = vsyncpa [#allocation10], 1
    %3457 = vsyncpa [#allocation13], 1
    %3458 = vsyncpa [#allocation5], 1
    %s3459 = scalar_lea.sflag [#allocation5], 1
    %3460 = vsyncpa %s3459, 1

// kernel: ranker_128_up_forward.3
$region0: #{ranker_128_up_forward.3}
  #allocation0 [shape = 'u32[]', space=smem, size = 0x4, offset = 0x4, fixed_abs, tag = 'smem constant byte address 0x4 - core index']
  #allocation1 [shape = 'u32[144,128]{1,0:T(1,128)}', space=vmem, size = 0x12000, scoped, tag = 'internal scratch']
  #allocation2 [shape = 'f32[10,10,64]{2,1,0:T(8,128)}', space=vmem, size = 0x14000, scoped, tag = 'scratch operand']
  #allocation3 [shape = 'f32[6,6,128]{2,1,0:T(8,128)}', space=vmem, size = 0x6000, scoped, tag = 'scratch operand']
  %s0 = inlined_call_operand.hbm [shape: bf16[2,9,9,128], index: 0, kind: input, shape index: {}]
  %s1 = inlined_call_operand.hbm [shape: bf16[288,64], index: 1, kind: input, shape index: {}]
  %s2 = inlined_call_operand.hbm [shape: f32[1,64], index: 2, kind: input, shape index: {}]
  %s3 = inlined_call_operand.hbm [shape: f32[1,64], index: 3, kind: input, shape index: {}]
  %s4 = inlined_call_operand.hbm [shape: bf16[576,64], index: 4, kind: input, shape index: {}]
  %s5 = inlined_call_operand.hbm [shape: f32[1,64], index: 5, kind: input, shape index: {}]
  %s6 = inlined_call_operand.hbm [shape: f32[1,64], index: 6, kind: input, shape index: {}]
  %s7 = inlined_call_operand.hbm [shape: bf16[576,128], index: 7, kind: input, shape index: {}]
  %s8 = inlined_call_operand.hbm [shape: f32[1,128], index: 8, kind: input, shape index: {}]
  %s9 = inlined_call_operand.hbm [shape: f32[1,128], index: 9, kind: input, shape index: {}]
  %s10 = inlined_call_operand.hbm [shape: bf16[1152,128], index: 10, kind: input, shape index: {}]
  %s11 = inlined_call_operand.hbm [shape: f32[1,128], index: 11, kind: input, shape index: {}]
  %s12 = inlined_call_operand.hbm [shape: f32[1,128], index: 12, kind: input, shape index: {}]
  %s13 = inlined_call_operand.hbm [shape: f32[2,1,128], index: 13, kind: input, shape index: {}]
  %s14 = inlined_call_operand.hbm [shape: f32[2,16,16,128], index: 14, kind: output, shape index: {}]
  %s15 = sld [smem:[#allocation0]]
  $region145: #{ranker_128_up_forward.3} parent=0
    _
  %s17 = ssub.s32 1, %s15
  %s18 = scalar_select 0, %s17, %s15
  $region1: #{ranker_128_up_forward.3} parent=0
    #allocation4 [shape = 'u8[73728]{0}', space=vmem, size = 0x12000, scoped, tag = 'input window, operand 0']
    #allocation5 [shape = 's32[2]{0}', space=sflag, size = 0x8, scoped, tag = 'scoped memory for ranker_128_up_forward.3']
    #allocation6 [shape = 's32[2]{0}', space=sflag, size = 0x8, scoped, tag = 'scoped memory for ranker_128_up_forward.3']
    #allocation7 [shape = 'u8[73728]{0}', space=vmem, size = 0x12000, scoped, tag = 'input window, operand 1, single buffered']
    #allocation8 [shape = 's32[1]{0}', space=sflag, size = 0x4, scoped, tag = 'scoped memory for ranker_128_up_forward.3']
    #allocation9 [shape = 'u8[512]{0}', space=vmem, size = 0x400, scoped, tag = 'input window, operand 2, single buffered']
    #allocation10 [shape = 'u8[512]{0}', space=vmem, size = 0x400, scoped, tag = 'input window, operand 3, single buffered']
    #allocation11 [shape = 's32[1]{0}', space=sflag, size = 0x4, scoped, tag = 'scoped memory for ranker_128_up_forward.3']
    #allocation12 [shape = 'u8[147456]{0}', space=vmem, size = 0x24000, scoped, tag = 'input window, operand 4, single buffered']
    #allocation13 [shape = 'u8[512]{0}', space=vmem, size = 0x400, scoped, tag = 'input window, operand 5, single buffered']
    #allocation14 [shape = 's32[1]{0}', space=sflag, size = 0x4, scoped, tag = 'scoped memory for ranker_128_up_forward.3']
    #allocation15 [shape = 'u8[512]{0}', space=vmem, size = 0x400, scoped, tag = 'input window, operand 6, single buffered']
    #allocation16 [shape = 'u8[147456]{0}', space=vmem, size = 0x24000, scoped, tag = 'input window, operand 7, single buffered']
    #allocation17 [shape = 's32[1]{0}', space=sflag, size = 0x4, scoped, tag = 'scoped memory for ranker_128_up_forward.3']
    #allocation18 [shape = 'u8[512]{0}', space=vmem, size = 0x400, scoped, tag = 'input window, operand 8, single buffered']
    #allocation19 [shape = 'u8[512]{0}', space=vmem, size = 0x400, scoped, tag = 'input window, operand 9, single buffered']
    #allocation20 [shape = 's32[1]{0}', space=sflag, size = 0x4, scoped, tag = 'scoped memory for ranker_128_up_forward.3']
    #allocation21 [shape = 'u8[294912]{0}', space=vmem, size = 0x48000, scoped, tag = 'input window, operand 10, single buffered']
    #allocation22 [shape = 'u8[512]{0}', space=vmem, size = 0x400, scoped, tag = 'input window, operand 11, single buffered']
    #allocation23 [shape = 's32[1]{0}', space=sflag, size = 0x4, scoped, tag = 'scoped memory for ranker_128_up_forward.3']
    #allocation24 [shape = 'u8[512]{0}', space=vmem, size = 0x400, scoped, tag = 'input window, operand 12, single buffered']
    #allocation25 [shape = 'u8[1024]{0}', space=vmem, size = 0x400, scoped, tag = 'input window, operand 13']
    #allocation26 [shape = 's32[2]{0}', space=sflag, size = 0x8, scoped, tag = 'scoped memory for ranker_128_up_forward.3']
    #allocation27 [shape = 'u8[262144]{0}', space=vmem, size = 0x40000, scoped, tag = 'output window, operand 0']
    %19 = vsyncpa [#allocation5], 0
    %s20 = scalar_lea.sflag [#allocation5], 1
    %21 = vsyncpa %s20, 0
    %22 = vsyncpa [#allocation8], 0
    %23 = vsyncpa [#allocation11], 0
    %24 = vsyncpa [#allocation14], 0
    %25 = vsyncpa [#allocation17], 0
    %26 = vsyncpa [#allocation20], 0
    %27 = vsyncpa [#allocation23], 0
    %28 = vsyncpa [#allocation26], 0
    %s29 = scalar_lea.sflag [#allocation26], 1
    %30 = vsyncpa %s29, 0
    %31 = vsyncpa [#allocation6], 0
    %s32 = scalar_lea.sflag [#allocation6], 1
    %33 = vsyncpa %s32, 0
    loop: start=0, step=1, limit=4
    $region2: #{ranker_128_up_forward.3} parent=1 // loop_pre_header
      _
    $region3: #{ranker_128_up_forward.3} parent=1 // loop_header
      %s35 = sphi 0, %s39
      %p36 = scmp.ge.s32.totalorder %s35, 4
      %s45 = sphi 0, %s47
      %s48 = sphi 0, %s45
      %s49 = sphi 0, %s48
      %s65 = sphi 0, %s49
      %s69 = sphi 0, %s69
      %s71 = sphi 0, %s69
      %s72 = sphi 0, %s71
      %s86 = sphi 0, %s72
      %s90 = sphi 0, %s90
      %s92 = sphi 0, %s90
      %s93 = sphi 0, %s92
      %s107 = sphi 0, %s93
      %s111 = sphi 0, %s111
      %s113 = sphi 0, %s111
      %s114 = sphi 0, %s113
      %s128 = sphi 0, %s114
      %s132 = sphi 0, %s132
      %s134 = sphi 0, %s132
      %s135 = sphi 0, %s134
      %s149 = sphi 0, %s135
      %s153 = sphi 0, %s153
      %s155 = sphi 0, %s153
      %s156 = sphi 0, %s155
      %s170 = sphi 0, %s156
      %s174 = sphi 0, %s174
      %s176 = sphi 0, %s174
      %s177 = sphi 0, %s176
      %s191 = sphi 0, %s177
      %s195 = sphi 0, %s195
      %s197 = sphi 0, %s195
      %s198 = sphi 0, %s197
      %s212 = sphi 0, %s198
      %s216 = sphi 0, %s216
      %s218 = sphi 0, %s216
      %s219 = sphi 0, %s218
      %s233 = sphi 0, %s219
      %s237 = sphi 0, %s237
      %s239 = sphi 0, %s237
      %s240 = sphi 0, %s239
      %s254 = sphi 0, %s240
      %s258 = sphi 0, %s258
      %s260 = sphi 0, %s258
      %s261 = sphi 0, %s260
      %s275 = sphi 0, %s261
      %s279 = sphi 0, %s279
      %s281 = sphi 0, %s279
      %s282 = sphi 0, %s281
      %s296 = sphi 0, %s282
      %s300 = sphi 0, %s300
      %s302 = sphi 0, %s300
      %s303 = sphi 0, %s302
      %s317 = sphi 0, %s303
      %s323 = sphi 0, %s325
      %s326 = sphi 0, %s323
      %s327 = sphi 0, %s326
      %s343 = sphi 0, %s327
      %s349 = sphi 0, %s351
      %s352 = sphi 0, %s349
      %s353 = sphi 0, %s352
      %s369 = sphi 0, %s353
    $region4: #{ranker_128_up_forward.3} parent=1 // loop_header_branch
      %38 = sbr.rel (%p36) target = $region8
    $region5: #{ranker_128_up_forward.3} parent=1 // loop_body
      %s40 = ssub.s32 %s35, 1
      %s41 = ssub.s32 %s35, 2
      %s42 = sadd.s32 %s35, 1
      %s43 = ssub.s32 %s35, %s42
      %p44 = scmp.eq.s32.totalorder %s43, 0
      %s46 = sadd.s32 %s45, 1
      %s47 = scalar_select %p44, %s45, %s46
      %p50 = pneg %p44
      %p51 = scmp.eq.s32.totalorder %s35, 1
      %p52 = por %p50, %p51
      %p53 = scmp.ne.s32.totalorder %s45, %s48
      %p54 = scmp.eq.s32.totalorder %s35, 0
      %p55 = por %p53, %p54
      %p56 = scmp.ne.s32.totalorder %s45, %s48
      %p57 = scmp.eq.s32.totalorder %s40, 1
      %p58 = por %p56, %p57
      %p59 = scmp.ne.s32.totalorder %s48, %s49
      %p60 = scmp.eq.s32.totalorder %s40, 0
      %p61 = por %p59, %p60
      %p62 = scmp.ne.s32.totalorder %s48, %s49
      %p63 = scmp.eq.s32.totalorder %s41, 1
      %p64 = por %p62, %p63
      %p66 = scmp.ne.s32.totalorder %s49, %s65
      %p67 = scmp.eq.s32.totalorder %s41, 0
      %p68 = por %p66, %p67
      %s70 = sadd.s32 %s69, 1
      %p73 = scmp.eq.s32.totalorder %s35, 1
      %p74 = scmp.ne.s32.totalorder %s69, %s71
      %p75 = scmp.eq.s32.totalorder %s35, 0
      %p76 = por %p74, %p75
      %p77 = scmp.ne.s32.totalorder %s69, %s71
      %p78 = scmp.eq.s32.totalorder %s40, 1
      %p79 = por %p77, %p78
      %p80 = scmp.ne.s32.totalorder %s71, %s72
      %p81 = scmp.eq.s32.totalorder %s40, 0
      %p82 = por %p80, %p81
      %p83 = scmp.ne.s32.totalorder %s71, %s72
      %p84 = scmp.eq.s32.totalorder %s41, 1
      %p85 = por %p83, %p84
      %p87 = scmp.ne.s32.totalorder %s72, %s86
      %p88 = scmp.eq.s32.totalorder %s41, 0
      %p89 = por %p87, %p88
      %s91 = sadd.s32 %s90, 1
      %p94 = scmp.eq.s32.totalorder %s35, 1
      %p95 = scmp.ne.s32.totalorder %s90, %s92
      %p96 = scmp.eq.s32.totalorder %s35, 0
      %p97 = por %p95, %p96
      %p98 = scmp.ne.s32.totalorder %s90, %s92
      %p99 = scmp.eq.s32.totalorder %s40, 1
      %p100 = por %p98, %p99
      %p101 = scmp.ne.s32.totalorder %s92, %s93
      %p102 = scmp.eq.s32.totalorder %s40, 0
      %p103 = por %p101, %p102
      %p104 = scmp.ne.s32.totalorder %s92, %s93
      %p105 = scmp.eq.s32.totalorder %s41, 1
      %p106 = por %p104, %p105
      %p108 = scmp.ne.s32.totalorder %s93, %s107
      %p109 = scmp.eq.s32.totalorder %s41, 0
      %p110 = por %p108, %p109
      %s112 = sadd.s32 %s111, 1
      %p115 = scmp.eq.s32.totalorder %s35, 1
      %p116 = scmp.ne.s32.totalorder %s111, %s113
      %p117 = scmp.eq.s32.totalorder %s35, 0
      %p118 = por %p116, %p117
      %p119 = scmp.ne.s32.totalorder %s111, %s113
      %p120 = scmp.eq.s32.totalorder %s40, 1
      %p121 = por %p119, %p120
      %p122 = scmp.ne.s32.totalorder %s113, %s114
      %p123 = scmp.eq.s32.totalorder %s40, 0
      %p124 = por %p122, %p123
      %p125 = scmp.ne.s32.totalorder %s113, %s114
      %p126 = scmp.eq.s32.totalorder %s41, 1
      %p127 = por %p125, %p126
      %p129 = scmp.ne.s32.totalorder %s114, %s128
      %p130 = scmp.eq.s32.totalorder %s41, 0
      %p131 = por %p129, %p130
      %s133 = sadd.s32 %s132, 1
      %p136 = scmp.eq.s32.totalorder %s35, 1
      %p137 = scmp.ne.s32.totalorder %s132, %s134
      %p138 = scmp.eq.s32.totalorder %s35, 0
      %p139 = por %p137, %p138
      %p140 = scmp.ne.s32.totalorder %s132, %s134
      %p141 = scmp.eq.s32.totalorder %s40, 1
      %p142 = por %p140, %p141
      %p143 = scmp.ne.s32.totalorder %s134, %s135
      %p144 = scmp.eq.s32.totalorder %s40, 0
      %p145 = por %p143, %p144
      %p146 = scmp.ne.s32.totalorder %s134, %s135
      %p147 = scmp.eq.s32.totalorder %s41, 1
      %p148 = por %p146, %p147
      %p150 = scmp.ne.s32.totalorder %s135, %s149
      %p151 = scmp.eq.s32.totalorder %s41, 0
      %p152 = por %p150, %p151
      %s154 = sadd.s32 %s153, 1
      %p157 = scmp.eq.s32.totalorder %s35, 1
      %p158 = scmp.ne.s32.totalorder %s153, %s155
      %p159 = scmp.eq.s32.totalorder %s35, 0
      %p160 = por %p158, %p159
      %p161 = scmp.ne.s32.totalorder %s153, %s155
      %p162 = scmp.eq.s32.totalorder %s40, 1
      %p163 = por %p161, %p162
      %p164 = scmp.ne.s32.totalorder %s155, %s156
      %p165 = scmp.eq.s32.totalorder %s40, 0
      %p166 = por %p164, %p165
      %p167 = scmp.ne.s32.totalorder %s155, %s156
      %p168 = scmp.eq.s32.totalorder %s41, 1
      %p169 = por %p167, %p168
      %p171 = scmp.ne.s32.totalorder %s156, %s170
      %p172 = scmp.eq.s32.totalorder %s41, 0
      %p173 = por %p171, %p172
      %s175 = sadd.s32 %s174, 1
      %p178 = scmp.eq.s32.totalorder %s35, 1
      %p179 = scmp.ne.s32.totalorder %s174, %s176
      %p180 = scmp.eq.s32.totalorder %s35, 0
      %p181 = por %p179, %p180
      %p182 = scmp.ne.s32.totalorder %s174, %s176
      %p183 = scmp.eq.s32.totalorder %s40, 1
      %p184 = por %p182, %p183
      %p185 = scmp.ne.s32.totalorder %s176, %s177
      %p186 = scmp.eq.s32.totalorder %s40, 0
      %p187 = por %p185, %p186
      %p188 = scmp.ne.s32.totalorder %s176, %s177
      %p189 = scmp.eq.s32.totalorder %s41, 1
      %p190 = por %p188, %p189
      %p192 = scmp.ne.s32.totalorder %s177, %s191
      %p193 = scmp.eq.s32.totalorder %s41, 0
      %p194 = por %p192, %p193
      %s196 = sadd.s32 %s195, 1
      %p199 = scmp.eq.s32.totalorder %s35, 1
      %p200 = scmp.ne.s32.totalorder %s195, %s197
      %p201 = scmp.eq.s32.totalorder %s35, 0
      %p202 = por %p200, %p201
      %p203 = scmp.ne.s32.totalorder %s195, %s197
      %p204 = scmp.eq.s32.totalorder %s40, 1
      %p205 = por %p203, %p204
      %p206 = scmp.ne.s32.totalorder %s197, %s198
      %p207 = scmp.eq.s32.totalorder %s40, 0
      %p208 = por %p206, %p207
      %p209 = scmp.ne.s32.totalorder %s197, %s198
      %p210 = scmp.eq.s32.totalorder %s41, 1
      %p211 = por %p209, %p210
      %p213 = scmp.ne.s32.totalorder %s198, %s212
      %p214 = scmp.eq.s32.totalorder %s41, 0
      %p215 = por %p213, %p214
      %s217 = sadd.s32 %s216, 1
      %p220 = scmp.eq.s32.totalorder %s35, 1
      %p221 = scmp.ne.s32.totalorder %s216, %s218
      %p222 = scmp.eq.s32.totalorder %s35, 0
      %p223 = por %p221, %p222
      %p224 = scmp.ne.s32.totalorder %s216, %s218
      %p225 = scmp.eq.s32.totalorder %s40, 1
      %p226 = por %p224, %p225
      %p227 = scmp.ne.s32.totalorder %s218, %s219
      %p228 = scmp.eq.s32.totalorder %s40, 0
      %p229 = por %p227, %p228
      %p230 = scmp.ne.s32.totalorder %s218, %s219
      %p231 = scmp.eq.s32.totalorder %s41, 1
      %p232 = por %p230, %p231
      %p234 = scmp.ne.s32.totalorder %s219, %s233
      %p235 = scmp.eq.s32.totalorder %s41, 0
      %p236 = por %p234, %p235
      %s238 = sadd.s32 %s237, 1
      %p241 = scmp.eq.s32.totalorder %s35, 1
      %p242 = scmp.ne.s32.totalorder %s237, %s239
      %p243 = scmp.eq.s32.totalorder %s35, 0
      %p244 = por %p242, %p243
      %p245 = scmp.ne.s32.totalorder %s237, %s239
      %p246 = scmp.eq.s32.totalorder %s40, 1
      %p247 = por %p245, %p246
      %p248 = scmp.ne.s32.totalorder %s239, %s240
      %p249 = scmp.eq.s32.totalorder %s40, 0
      %p250 = por %p248, %p249
      %p251 = scmp.ne.s32.totalorder %s239, %s240
      %p252 = scmp.eq.s32.totalorder %s41, 1
      %p253 = por %p251, %p252
      %p255 = scmp.ne.s32.totalorder %s240, %s254
      %p256 = scmp.eq.s32.totalorder %s41, 0
      %p257 = por %p255, %p256
      %s259 = sadd.s32 %s258, 1
      %p262 = scmp.eq.s32.totalorder %s35, 1
      %p263 = scmp.ne.s32.totalorder %s258, %s260
      %p264 = scmp.eq.s32.totalorder %s35, 0
      %p265 = por %p263, %p264
      %p266 = scmp.ne.s32.totalorder %s258, %s260
      %p267 = scmp.eq.s32.totalorder %s40, 1
      %p268 = por %p266, %p267
      %p269 = scmp.ne.s32.totalorder %s260, %s261
      %p270 = scmp.eq.s32.totalorder %s40, 0
      %p271 = por %p269, %p270
      %p272 = scmp.ne.s32.totalorder %s260, %s261
      %p273 = scmp.eq.s32.totalorder %s41, 1
      %p274 = por %p272, %p273
      %p276 = scmp.ne.s32.totalorder %s261, %s275
      %p277 = scmp.eq.s32.totalorder %s41, 0
      %p278 = por %p276, %p277
      %s280 = sadd.s32 %s279, 1
      %p283 = scmp.eq.s32.totalorder %s35, 1
      %p284 = scmp.ne.s32.totalorder %s279, %s281
      %p285 = scmp.eq.s32.totalorder %s35, 0
      %p286 = por %p284, %p285
      %p287 = scmp.ne.s32.totalorder %s279, %s281
      %p288 = scmp.eq.s32.totalorder %s40, 1
      %p289 = por %p287, %p288
      %p290 = scmp.ne.s32.totalorder %s281, %s282
      %p291 = scmp.eq.s32.totalorder %s40, 0
      %p292 = por %p290, %p291
      %p293 = scmp.ne.s32.totalorder %s281, %s282
      %p294 = scmp.eq.s32.totalorder %s41, 1
      %p295 = por %p293, %p294
      %p297 = scmp.ne.s32.totalorder %s282, %s296
      %p298 = scmp.eq.s32.totalorder %s41, 0
      %p299 = por %p297, %p298
      %s301 = sadd.s32 %s300, 1
      %p304 = scmp.eq.s32.totalorder %s35, 1
      %p305 = scmp.ne.s32.totalorder %s300, %s302
      %p306 = scmp.eq.s32.totalorder %s35, 0
      %p307 = por %p305, %p306
      %p308 = scmp.ne.s32.totalorder %s300, %s302
      %p309 = scmp.eq.s32.totalorder %s40, 1
      %p310 = por %p308, %p309
      %p311 = scmp.ne.s32.totalorder %s302, %s303
      %p312 = scmp.eq.s32.totalorder %s40, 0
      %p313 = por %p311, %p312
      %p314 = scmp.ne.s32.totalorder %s302, %s303
      %p315 = scmp.eq.s32.totalorder %s41, 1
      %p316 = por %p314, %p315
      %p318 = scmp.ne.s32.totalorder %s303, %s317
      %p319 = scmp.eq.s32.totalorder %s41, 0
      %p320 = por %p318, %p319
      %s321 = ssub.s32 %s35, %s42
      %p322 = scmp.eq.s32.totalorder %s321, 0
      %s324 = sadd.s32 %s323, 1
      %s325 = scalar_select %p322, %s323, %s324
      %p328 = pneg %p322
      %p329 = scmp.eq.s32.totalorder %s35, 1
      %p330 = por %p328, %p329
      %p331 = scmp.ne.s32.totalorder %s323, %s326
      %p332 = scmp.eq.s32.totalorder %s35, 0
      %p333 = por %p331, %p332
      %p334 = scmp.ne.s32.totalorder %s323, %s326
      %p335 = scmp.eq.s32.totalorder %s40, 1
      %p336 = por %p334, %p335
      %p337 = scmp.ne.s32.totalorder %s326, %s327
      %p338 = scmp.eq.s32.totalorder %s40, 0
      %p339 = por %p337, %p338
      %p340 = scmp.ne.s32.totalorder %s326, %s327
      %p341 = scmp.eq.s32.totalorder %s41, 1
      %p342 = por %p340, %p341
      %p344 = scmp.ne.s32.totalorder %s327, %s343
      %p345 = scmp.eq.s32.totalorder %s41, 0
      %p346 = por %p344, %p345
      %s347 = ssub.s32 %s35, %s42
      %p348 = scmp.eq.s32.totalorder %s347, 0
      %s350 = sadd.s32 %s349, 1
      %s351 = scalar_select %p348, %s349, %s350
      %p354 = pneg %p348
      %p355 = scmp.eq.s32.totalorder %s35, 1
      %p356 = por %p354, %p355
      %p357 = scmp.ne.s32.totalorder %s349, %s352
      %p358 = scmp.eq.s32.totalorder %s35, 0
      %p359 = por %p357, %p358
      %p360 = scmp.ne.s32.totalorder %s349, %s352
      %p361 = scmp.eq.s32.totalorder %s40, 1
      %p362 = por %p360, %p361
      %p363 = scmp.ne.s32.totalorder %s352, %s353
      %p364 = scmp.eq.s32.totalorder %s40, 0
      %p365 = por %p363, %p364
      %p366 = scmp.ne.s32.totalorder %s352, %s353
      %p367 = scmp.eq.s32.totalorder %s41, 1
      %p368 = por %p366, %p367
      %p370 = scmp.ne.s32.totalorder %s353, %s369
      %p371 = scmp.eq.s32.totalorder %s41, 0
      %p372 = por %p370, %p371
      %p373 = scmp.le.s32.totalorder 1, %s35
      %p374 = scmp.lt.s32.totalorder %s35, 3
      %p375 = pnand %p373, %p374
      %p376 = pneg %p375
      // Predicated region
      $region9: #{ranker_128_up_forward.3} parent=5 // pred_check
        _
      $region10: #{ranker_128_up_forward.3} parent=5 // pred_check_branch
        %378 = sbr.rel (%p375) target = $region12
      $region11: #{ranker_128_up_forward.3} parent=5 // pred_region
        %s379 = ssub.s32 %s35, 1
        // Predicated region
        $region13: #{ranker_128_up_forward.3} parent=11 // pred_check
          %p380 = pneg %p82
        $region14: #{ranker_128_up_forward.3} parent=11 // pred_check_branch
          %382 = sbr.rel (%p380) target = $region16
        $region15: #{ranker_128_up_forward.3} parent=11 // pred_region
          %s384 = ssub.s32 2304, 2304
          %385 = vsyncadd [#allocation8], %s384
          %s386 = sshll.u32 [#allocation7], 4
          %s387 = int_to_ptr.vmem [resolvable:$true] %s386
          %392 = dma.hbm_to_vmem [thread:$0]  %s1, 2304, %s387, [#allocation8], 64, 64, 4
        $region16: #{ranker_128_up_forward.3} parent=11 // pred_fallthru
          _
        // Predicated region
        $region17: #{ranker_128_up_forward.3} parent=11 // pred_check
          %p393 = pneg %p103
        $region18: #{ranker_128_up_forward.3} parent=11 // pred_check_branch
          %395 = sbr.rel (%p393) target = $region20
        $region19: #{ranker_128_up_forward.3} parent=11 // pred_region
          %s397 = ssub.s32 16, 16
          %398 = vsyncadd [#allocation8], %s397
          %s400 = sshll.u32 [#allocation9], 4
          %s401 = int_to_ptr.vmem [resolvable:$true] %s400
          %403 = dma.hbm_to_vmem [thread:$0]  %s2, 16, %s401, [#allocation8]
        $region20: #{ranker_128_up_forward.3} parent=11 // pred_fallthru
          _
        // Predicated region
        $region21: #{ranker_128_up_forward.3} parent=11 // pred_check
          %p404 = pneg %p124
        $region22: #{ranker_128_up_forward.3} parent=11 // pred_check_branch
          %406 = sbr.rel (%p404) target = $region24
        $region23: #{ranker_128_up_forward.3} parent=11 // pred_region
          %s408 = ssub.s32 16, 16
          %409 = vsyncadd [#allocation11], %s408
          %s411 = sshll.u32 [#allocation10], 4
          %s412 = int_to_ptr.vmem [resolvable:$true] %s411
          %414 = dma.hbm_to_vmem [thread:$0]  %s3, 16, %s412, [#allocation11]
        $region24: #{ranker_128_up_forward.3} parent=11 // pred_fallthru
          _
        // Predicated region
        $region25: #{ranker_128_up_forward.3} parent=11 // pred_check
          %p415 = pneg %p145
        $region26: #{ranker_128_up_forward.3} parent=11 // pred_check_branch
          %417 = sbr.rel (%p415) target = $region28
        $region27: #{ranker_128_up_forward.3} parent=11 // pred_region
          %s419 = ssub.s32 4608, 4608
          %420 = vsyncadd [#allocation11], %s419
          %s421 = sshll.u32 [#allocation12], 4
          %s422 = int_to_ptr.vmem [resolvable:$true] %s421
          %427 = dma.hbm_to_vmem [thread:$0]  %s4, 4608, %s422, [#allocation11], 64, 64, 4
        $region28: #{ranker_128_up_forward.3} parent=11 // pred_fallthru
          _
        // Predicated region
        $region29: #{ranker_128_up_forward.3} parent=11 // pred_check
          %p428 = pneg %p166
        $region30: #{ranker_128_up_forward.3} parent=11 // pred_check_branch
          %430 = sbr.rel (%p428) target = $region32
        $region31: #{ranker_128_up_forward.3} parent=11 // pred_region
          %s432 = ssub.s32 16, 16
          %433 = vsyncadd [#allocation14], %s432
          %s435 = sshll.u32 [#allocation13], 4
          %s436 = int_to_ptr.vmem [resolvable:$true] %s435
          %438 = dma.hbm_to_vmem [thread:$0]  %s5, 16, %s436, [#allocation14]
        $region32: #{ranker_128_up_forward.3} parent=11 // pred_fallthru
          _
        // Predicated region
        $region33: #{ranker_128_up_forward.3} parent=11 // pred_check
          %p439 = pneg %p187
        $region34: #{ranker_128_up_forward.3} parent=11 // pred_check_branch
          %441 = sbr.rel (%p439) target = $region36
        $region35: #{ranker_128_up_forward.3} parent=11 // pred_region
          %s443 = ssub.s32 16, 16
          %444 = vsyncadd [#allocation14], %s443
          %s446 = sshll.u32 [#allocation15], 4
          %s447 = int_to_ptr.vmem [resolvable:$true] %s446
          %449 = dma.hbm_to_vmem [thread:$0]  %s6, 16, %s447, [#allocation14]
        $region36: #{ranker_128_up_forward.3} parent=11 // pred_fallthru
          _
        // Predicated region
        $region37: #{ranker_128_up_forward.3} parent=11 // pred_check
          %p450 = pneg %p208
        $region38: #{ranker_128_up_forward.3} parent=11 // pred_check_branch
          %452 = sbr.rel (%p450) target = $region40
        $region39: #{ranker_128_up_forward.3} parent=11 // pred_region
          %s454 = ssub.s32 4608, 4608
          %455 = vsyncadd [#allocation17], %s454
          %s456 = sshll.u32 [#allocation16], 4
          %s457 = int_to_ptr.vmem [resolvable:$true] %s456
          %462 = dma.hbm_to_vmem [thread:$0]  %s7, 4608, %s457, [#allocation17], 64, 64, 4
        $region40: #{ranker_128_up_forward.3} parent=11 // pred_fallthru
          _
        // Predicated region
        $region41: #{ranker_128_up_forward.3} parent=11 // pred_check
          %p463 = pneg %p229
        $region42: #{ranker_128_up_forward.3} parent=11 // pred_check_branch
          %465 = sbr.rel (%p463) target = $region44
        $region43: #{ranker_128_up_forward.3} parent=11 // pred_region
          %s467 = ssub.s32 16, 16
          %468 = vsyncadd [#allocation17], %s467
          %s470 = sshll.u32 [#allocation18], 4
          %s471 = int_to_ptr.vmem [resolvable:$true] %s470
          %473 = dma.hbm_to_vmem [thread:$0]  %s8, 16, %s471, [#allocation17]
        $region44: #{ranker_128_up_forward.3} parent=11 // pred_fallthru
          _
        // Predicated region
        $region45: #{ranker_128_up_forward.3} parent=11 // pred_check
          %p474 = pneg %p250
        $region46: #{ranker_128_up_forward.3} parent=11 // pred_check_branch
          %476 = sbr.rel (%p474) target = $region48
        $region47: #{ranker_128_up_forward.3} parent=11 // pred_region
          %s478 = ssub.s32 16, 16
          %479 = vsyncadd [#allocation20], %s478
          %s481 = sshll.u32 [#allocation19], 4
          %s482 = int_to_ptr.vmem [resolvable:$true] %s481
          %484 = dma.hbm_to_vmem [thread:$0]  %s9, 16, %s482, [#allocation20]
        $region48: #{ranker_128_up_forward.3} parent=11 // pred_fallthru
          _
        // Predicated region
        $region49: #{ranker_128_up_forward.3} parent=11 // pred_check
          %p485 = pneg %p271
        $region50: #{ranker_128_up_forward.3} parent=11 // pred_check_branch
          %487 = sbr.rel (%p485) target = $region52
        $region51: #{ranker_128_up_forward.3} parent=11 // pred_region
          %s489 = ssub.s32 9216, 9216
          %490 = vsyncadd [#allocation20], %s489
          %s491 = sshll.u32 [#allocation21], 4
          %s492 = int_to_ptr.vmem [resolvable:$true] %s491
          %497 = dma.hbm_to_vmem [thread:$0]  %s10, 9216, %s492, [#allocation20], 64, 64, 4
        $region52: #{ranker_128_up_forward.3} parent=11 // pred_fallthru
          _
        // Predicated region
        $region53: #{ranker_128_up_forward.3} parent=11 // pred_check
          %p498 = pneg %p292
        $region54: #{ranker_128_up_forward.3} parent=11 // pred_check_branch
          %500 = sbr.rel (%p498) target = $region56
        $region55: #{ranker_128_up_forward.3} parent=11 // pred_region
          %s502 = ssub.s32 16, 16
          %503 = vsyncadd [#allocation23], %s502
          %s505 = sshll.u32 [#allocation22], 4
          %s506 = int_to_ptr.vmem [resolvable:$true] %s505
          %508 = dma.hbm_to_vmem [thread:$0]  %s11, 16, %s506, [#allocation23]
        $region56: #{ranker_128_up_forward.3} parent=11 // pred_fallthru
          _
        // Predicated region
        $region57: #{ranker_128_up_forward.3} parent=11 // pred_check
          %p509 = pneg %p313
        $region58: #{ranker_128_up_forward.3} parent=11 // pred_check_branch
          %511 = sbr.rel (%p509) target = $region60
        $region59: #{ranker_128_up_forward.3} parent=11 // pred_region
          %s513 = ssub.s32 16, 16
          %514 = vsyncadd [#allocation23], %s513
          %s516 = sshll.u32 [#allocation24], 4
          %s517 = int_to_ptr.vmem [resolvable:$true] %s516
          %519 = dma.hbm_to_vmem [thread:$0]  %s12, 16, %s517, [#allocation23]
        $region60: #{ranker_128_up_forward.3} parent=11 // pred_fallthru
          _
      $region12: #{ranker_128_up_forward.3} parent=5 // pred_fallthru
        _
      %p520 = scmp.lt.s32.totalorder %s35, 2
      // Predicated region
      $region61: #{ranker_128_up_forward.3} parent=5 // pred_check
        %p521 = pneg %p520
      $region62: #{ranker_128_up_forward.3} parent=5 // pred_check_branch
        %523 = sbr.rel (%p521) target = $region64
      $region63: #{ranker_128_up_forward.3} parent=5 // pred_region
        // Predicated region
        $region65: #{ranker_128_up_forward.3} parent=63 // pred_check
          %p524 = pneg %p55
        $region66: #{ranker_128_up_forward.3} parent=63 // pred_check_branch
          %526 = sbr.rel (%p524) target = $region68
        $region67: #{ranker_128_up_forward.3} parent=63 // pred_region
          %s527 = sand.u32 %s45, 1
          %s528 = scalar_lea.sflag [#allocation5], %s527
          %s529 = sand.u32 %s45, 1
          %s530 = smul.addr %s529, 72
          %s531 = scalar_lea.vmem [#allocation4], %s530
          %s533 = ssub.s32 1152, 1152
          %534 = vsyncadd %s528, %s533
          %s535 = smul.addr %s35, 18
          %s536 = smul.addr %s535, 64
          %s537 = scalar_lea.hbm %s0, %s536
          %s538 = sshll.u32 %s531, 4
          %s539 = int_to_ptr.vmem [resolvable:$true] %s538
          %544 = dma.hbm_to_vmem [thread:$0]  %s537, 1152, %s539, %s528, 64, 64, 4
        $region68: #{ranker_128_up_forward.3} parent=63 // pred_fallthru
          _
        // Predicated region
        $region69: #{ranker_128_up_forward.3} parent=63 // pred_check
          %p545 = pneg %p333
        $region70: #{ranker_128_up_forward.3} parent=63 // pred_check_branch
          %547 = sbr.rel (%p545) target = $region72
        $region71: #{ranker_128_up_forward.3} parent=63 // pred_region
          %s548 = sand.u32 %s323, 1
          %s549 = scalar_lea.sflag [#allocation26], %s548
          %s550 = sand.u32 %s323, 1
          %s551 = scalar_lea.vmem [#allocation25], %s550
          %s553 = ssub.s32 16, 16
          %554 = vsyncadd %s549, %s553
          %s555 = smul.addr %s35, 16
          %s556 = scalar_lea.hbm %s13, %s555
          %s558 = sshll.u32 %s551, 4
          %s559 = int_to_ptr.vmem [resolvable:$true] %s558
          %561 = dma.hbm_to_vmem [thread:$0]  %s556, 16, %s559, %s549
        $region72: #{ranker_128_up_forward.3} parent=63 // pred_fallthru
          _
      $region64: #{ranker_128_up_forward.3} parent=5 // pred_fallthru
        _
      %p562 = scmp.le.s32.totalorder 1, %s35
      %p563 = scmp.lt.s32.totalorder %s35, 3
      %p564 = pnand %p562, %p563
      %p565 = pneg %p564
      // Predicated region
      $region73: #{ranker_128_up_forward.3} parent=5 // pred_check
        _
      $region74: #{ranker_128_up_forward.3} parent=5 // pred_check_branch
        %567 = sbr.rel (%p564) target = $region76
      $region75: #{ranker_128_up_forward.3} parent=5 // pred_region
        %s568 = ssub.s32 %s35, 1
        %s569 = sand.u32 %s48, 1
        %s570 = scalar_lea.sflag [#allocation5], %s569
        %s571 = sand.u32 %s48, 1
        %s572 = smul.addr %s571, 72
        %s573 = scalar_lea.vmem [#allocation4], %s572
        // Predicated region
        $region77: #{ranker_128_up_forward.3} parent=75 // pred_check
          %p574 = pneg %p61
        $region78: #{ranker_128_up_forward.3} parent=75 // pred_check_branch
          %576 = sbr.rel (%p574) target = $region80
        $region79: #{ranker_128_up_forward.3} parent=75 // pred_region
          %577 = dma.done %s570, 1152
        $region80: #{ranker_128_up_forward.3} parent=75 // pred_fallthru
          _
        // Predicated region
        $region81: #{ranker_128_up_forward.3} parent=75 // pred_check
          %p578 = pneg %p82
        $region82: #{ranker_128_up_forward.3} parent=75 // pred_check_branch
          %580 = sbr.rel (%p578) target = $region84
        $region83: #{ranker_128_up_forward.3} parent=75 // pred_region
          %581 = dma.done [#allocation8], 2304
        $region84: #{ranker_128_up_forward.3} parent=75 // pred_fallthru
          _
        // Predicated region
        $region85: #{ranker_128_up_forward.3} parent=75 // pred_check
          %p582 = pneg %p103
        $region86: #{ranker_128_up_forward.3} parent=75 // pred_check_branch
          %584 = sbr.rel (%p582) target = $region88
        $region87: #{ranker_128_up_forward.3} parent=75 // pred_region
          %585 = dma.done [#allocation8], 16
        $region88: #{ranker_128_up_forward.3} parent=75 // pred_fallthru
          _
        // Predicated region
        $region89: #{ranker_128_up_forward.3} parent=75 // pred_check
          %p586 = pneg %p124
        $region90: #{ranker_128_up_forward.3} parent=75 // pred_check_branch
          %588 = sbr.rel (%p586) target = $region92
        $region91: #{ranker_128_up_forward.3} parent=75 // pred_region
          %589 = dma.done [#allocation11], 16
        $region92: #{ranker_128_up_forward.3} parent=75 // pred_fallthru
          _
        // Predicated region
        $region93: #{ranker_128_up_forward.3} parent=75 // pred_check
          %p590 = pneg %p145
        $region94: #{ranker_128_up_forward.3} parent=75 // pred_check_branch
          %592 = sbr.rel (%p590) target = $region96
        $region95: #{ranker_128_up_forward.3} parent=75 // pred_region
          %593 = dma.done [#allocation11], 4608
        $region96: #{ranker_128_up_forward.3} parent=75 // pred_fallthru
          _
        // Predicated region
        $region97: #{ranker_128_up_forward.3} parent=75 // pred_check
          %p594 = pneg %p166
        $region98: #{ranker_128_up_forward.3} parent=75 // pred_check_branch
          %596 = sbr.rel (%p594) target = $region100
        $region99: #{ranker_128_up_forward.3} parent=75 // pred_region
          %597 = dma.done [#allocation14], 16
        $region100: #{ranker_128_up_forward.3} parent=75 // pred_fallthru
          _
        // Predicated region
        $region101: #{ranker_128_up_forward.3} parent=75 // pred_check
          %p598 = pneg %p187
        $region102: #{ranker_128_up_forward.3} parent=75 // pred_check_branch
          %600 = sbr.rel (%p598) target = $region104
        $region103: #{ranker_128_up_forward.3} parent=75 // pred_region
          %601 = dma.done [#allocation14], 16
        $region104: #{ranker_128_up_forward.3} parent=75 // pred_fallthru
          _
        // Predicated region
        $region105: #{ranker_128_up_forward.3} parent=75 // pred_check
          %p602 = pneg %p208
        $region106: #{ranker_128_up_forward.3} parent=75 // pred_check_branch
          %604 = sbr.rel (%p602) target = $region108
        $region107: #{ranker_128_up_forward.3} parent=75 // pred_region
          %605 = dma.done [#allocation17], 4608
        $region108: #{ranker_128_up_forward.3} parent=75 // pred_fallthru
          _
        // Predicated region
        $region109: #{ranker_128_up_forward.3} parent=75 // pred_check
          %p606 = pneg %p229
        $region110: #{ranker_128_up_forward.3} parent=75 // pred_check_branch
          %608 = sbr.rel (%p606) target = $region112
        $region111: #{ranker_128_up_forward.3} parent=75 // pred_region
          %609 = dma.done [#allocation17], 16
        $region112: #{ranker_128_up_forward.3} parent=75 // pred_fallthru
          _
        // Predicated region
        $region113: #{ranker_128_up_forward.3} parent=75 // pred_check
          %p610 = pneg %p250
        $region114: #{ranker_128_up_forward.3} parent=75 // pred_check_branch
          %612 = sbr.rel (%p610) target = $region116
        $region115: #{ranker_128_up_forward.3} parent=75 // pred_region
          %613 = dma.done [#allocation20], 16
        $region116: #{ranker_128_up_forward.3} parent=75 // pred_fallthru
          _
        // Predicated region
        $region117: #{ranker_128_up_forward.3} parent=75 // pred_check
          %p614 = pneg %p271
        $region118: #{ranker_128_up_forward.3} parent=75 // pred_check_branch
          %616 = sbr.rel (%p614) target = $region120
        $region119: #{ranker_128_up_forward.3} parent=75 // pred_region
          %617 = dma.done [#allocation20], 9216
        $region120: #{ranker_128_up_forward.3} parent=75 // pred_fallthru
          _
        // Predicated region
        $region121: #{ranker_128_up_forward.3} parent=75 // pred_check
          %p618 = pneg %p292
        $region122: #{ranker_128_up_forward.3} parent=75 // pred_check_branch
          %620 = sbr.rel (%p618) target = $region124
        $region123: #{ranker_128_up_forward.3} parent=75 // pred_region
          %621 = dma.done [#allocation23], 16
        $region124: #{ranker_128_up_forward.3} parent=75 // pred_fallthru
          _
        // Predicated region
        $region125: #{ranker_128_up_forward.3} parent=75 // pred_check
          %p622 = pneg %p313
        $region126: #{ranker_128_up_forward.3} parent=75 // pred_check_branch
          %624 = sbr.rel (%p622) target = $region128
        $region127: #{ranker_128_up_forward.3} parent=75 // pred_region
          %625 = dma.done [#allocation23], 16
        $region128: #{ranker_128_up_forward.3} parent=75 // pred_fallthru
          _
        %s626 = sand.u32 %s326, 1
        %s627 = scalar_lea.sflag [#allocation26], %s626
        %s628 = sand.u32 %s326, 1
        %s629 = scalar_lea.vmem [#allocation25], %s628
        // Predicated region
        $region129: #{ranker_128_up_forward.3} parent=75 // pred_check
          %p630 = pneg %p339
        $region130: #{ranker_128_up_forward.3} parent=75 // pred_check_branch
          %632 = sbr.rel (%p630) target = $region132
        $region131: #{ranker_128_up_forward.3} parent=75 // pred_region
          %633 = dma.done %s627, 16
        $region132: #{ranker_128_up_forward.3} parent=75 // pred_fallthru
          _
        %s634 = sand.u32 %s48, 1
        %s635 = scalar_lea.sflag [#allocation5], %s634
        %s636 = sand.u32 %s48, 1
        %s637 = smul.addr %s636, 72
        %s638 = scalar_lea.vmem [#allocation4], %s637
        %p639 = pneg %p61
        %p640 = pneg %p58
        %p641 = pneg %p82
        %p642 = pneg %p79
        %p643 = pneg %p103
        %p644 = pneg %p100
        %p645 = pneg %p124
        %p646 = pneg %p121
        %p647 = pneg %p145
        %p648 = pneg %p142
        %p649 = pneg %p166
        %p650 = pneg %p163
        %p651 = pneg %p187
        %p652 = pneg %p184
        %p653 = pneg %p208
        %p654 = pneg %p205
        %p655 = pneg %p229
        %p656 = pneg %p226
        %p657 = pneg %p250
        %p658 = pneg %p247
        %p659 = pneg %p271
        %p660 = pneg %p268
        %p661 = pneg %p292
        %p662 = pneg %p289
        %p663 = pneg %p313
        %p664 = pneg %p310
        %s665 = sand.u32 %s326, 1
        %s666 = scalar_lea.sflag [#allocation26], %s665
        %s667 = sand.u32 %s326, 1
        %s668 = scalar_lea.vmem [#allocation25], %s667
        %p669 = pneg %p339
        %p670 = pneg %p336
        %p671 = pneg %p365
        %p672 = pneg %p362
        %s673 = sand.u32 %s352, 1
        %s674 = scalar_lea.sflag [#allocation6], %s673
        %s675 = sand.u32 %s352, 1
        %s676 = smul.addr %s675, 256
        %s677 = scalar_lea.vmem [#allocation27], %s676
        %vm679 = vcmask 523264
        %680 = vst.msk [vmem:[#allocation2] sm:$0xff] %vm679, 0.0
        %vm681 = vcmask 517120
        %682 = vst.msk [vmem:[#allocation2 + $0x8] sm:$0x3] %vm681, 0.0
        %s683 = scalar_lea.vmem [#allocation2], 144
        %684 = vst.msk [vmem:[%s683] sm:$0xff] %vm679, 0.0
        %685 = vst.msk [vmem:[%s683 + $0x8] sm:$0x3] %vm681, 0.0
        %vm686 = vcmask 516096
        %687 = vst.msk [vmem:[#allocation2] sm:$0x1] %vm686, 0.0
        %688 = vst.msk [vmem:[#allocation2 + $0x10] sm:$0x1] %vm686, 0.0
        %689 = vst.msk [vmem:[#allocation2 + $0x20] sm:$0x1] %vm686, 0.0
        %690 = vst.msk [vmem:[#allocation2 + $0x30] sm:$0x1] %vm686, 0.0
        %691 = vst.msk [vmem:[#allocation2 + $0x40] sm:$0x1] %vm686, 0.0
        %692 = vst.msk [vmem:[#allocation2 + $0x50] sm:$0x1] %vm686, 0.0
        %693 = vst.msk [vmem:[#allocation2 + $0x60] sm:$0x1] %vm686, 0.0
        %694 = vst.msk [vmem:[#allocation2 + $0x70] sm:$0x1] %vm686, 0.0
        %695 = vst.msk [vmem:[#allocation2 + $0x80] sm:$0x1] %vm686, 0.0
        %696 = vst.msk [vmem:[#allocation2 + $0x90] sm:$0x1] %vm686, 0.0
        %697 = vst.msk [vmem:[#allocation2 + $0x9] sm:$0x1] %vm686, 0.0
        %698 = vst.msk [vmem:[#allocation2 + $0x19] sm:$0x1] %vm686, 0.0
        %699 = vst.msk [vmem:[#allocation2 + $0x29] sm:$0x1] %vm686, 0.0
        %700 = vst.msk [vmem:[#allocation2 + $0x39] sm:$0x1] %vm686, 0.0
        %701 = vst.msk [vmem:[#allocation2 + $0x49] sm:$0x1] %vm686, 0.0
        %702 = vst.msk [vmem:[#allocation2 + $0x59] sm:$0x1] %vm686, 0.0
        %703 = vst.msk [vmem:[#allocation2 + $0x69] sm:$0x1] %vm686, 0.0
        %704 = vst.msk [vmem:[#allocation2 + $0x79] sm:$0x1] %vm686, 0.0
        %705 = vst.msk [vmem:[#allocation2 + $0x89] sm:$0x1] %vm686, 0.0
        %706 = vst.msk [vmem:[#allocation2 + $0x99] sm:$0x1] %vm686, 0.0
        %707 = vst [vmem:[#allocation3] sm:$0x3f] 0.0
        %s708 = scalar_lea.vmem [#allocation3], 40
        %709 = vst [vmem:[%s708] sm:$0x3f] 0.0
        %710 = vst [vmem:[#allocation3] sm:$0x1] 0.0
        %711 = vst [vmem:[#allocation3 + $0x8] sm:$0x1] 0.0
        %712 = vst [vmem:[#allocation3 + $0x10] sm:$0x1] 0.0
        %713 = vst [vmem:[#allocation3 + $0x18] sm:$0x1] 0.0
        %714 = vst [vmem:[#allocation3 + $0x20] sm:$0x1] 0.0
        %715 = vst [vmem:[#allocation3 + $0x28] sm:$0x1] 0.0
        %716 = vst [vmem:[#allocation3 + $0x5] sm:$0x1] 0.0
        %717 = vst [vmem:[#allocation3 + $0xd] sm:$0x1] 0.0
        %718 = vst [vmem:[#allocation3 + $0x15] sm:$0x1] 0.0
        %719 = vst [vmem:[#allocation3 + $0x1d] sm:$0x1] 0.0
        %720 = vst [vmem:[#allocation3 + $0x25] sm:$0x1] 0.0
        %721 = vst [vmem:[#allocation3 + $0x2d] sm:$0x1] 0.0
        %v722 = vld [vmem:[%s573] sm:$0xf]
        %v723 = vld [vmem:[%s573 + $0x8] sm:$0xf]
        %v724 = vld [vmem:[%s573 + $0x10] sm:$0xf]
        %v725 = vld [vmem:[%s573 + $0x18] sm:$0xf]
        %v726 = vld [vmem:[%s573 + $0x20] sm:$0xf]
        %v727 = vld [vmem:[%s573 + $0x28] sm:$0xf]
        %v728 = vld [vmem:[%s573 + $0x30] sm:$0xf]
        %v729 = vld [vmem:[%s573 + $0x38] sm:$0xf]
        %v730 = vld [vmem:[%s573 + $0x4] sm:$0x1]
        %v731 = vld [vmem:[%s573 + $0xc] sm:$0x1]
        %v732 = vld [vmem:[%s573 + $0x14] sm:$0x1]
        %v733 = vld [vmem:[%s573 + $0x1c] sm:$0x1]
        %v734 = vld [vmem:[%s573 + $0x24] sm:$0x1]
        %v735 = vld [vmem:[%s573 + $0x2c] sm:$0x1]
        %v736 = vld [vmem:[%s573 + $0x34] sm:$0x1]
        %v737 = vld [vmem:[%s573 + $0x3c] sm:$0x1]
        %s738 = scalar_lea.vmem %s573, 8 [#allocation4]
        %v739 = vld [vmem:[%s738] sm:$0xf]
        %v740 = vld [vmem:[%s738 + $0x8] sm:$0xf]
        %v741 = vld [vmem:[%s738 + $0x10] sm:$0xf]
        %v742 = vld [vmem:[%s738 + $0x18] sm:$0xf]
        %v743 = vld [vmem:[%s738 + $0x20] sm:$0xf]
        %v744 = vld [vmem:[%s738 + $0x28] sm:$0xf]
        %v745 = vld [vmem:[%s738 + $0x30] sm:$0xf]
        %v746 = vld [vmem:[%s738 + $0x38] sm:$0xf]
        %v747 = vld [vmem:[%s738 + $0x4] sm:$0x1]
        %v748 = vld [vmem:[%s738 + $0xc] sm:$0x1]
        %v749 = vld [vmem:[%s738 + $0x14] sm:$0x1]
        %v750 = vld [vmem:[%s738 + $0x1c] sm:$0x1]
        %v751 = vld [vmem:[%s738 + $0x24] sm:$0x1]
        %v752 = vld [vmem:[%s738 + $0x2c] sm:$0x1]
        %v753 = vld [vmem:[%s738 + $0x34] sm:$0x1]
        %v754 = vld [vmem:[%s738 + $0x3c] sm:$0x1]
        %v771 = vunpack.c.l.b16 %v722
        %v772 = vunpack.c.l.b16 %v730
        %v773 = vunpack.c.l.b16 %v723
        %v774 = vunpack.c.l.b16 %v731
        %v775 = vunpack.c.l.b16 %v724
        %v776 = vunpack.c.l.b16 %v732
        %v777 = vunpack.c.l.b16 %v725
        %v778 = vunpack.c.l.b16 %v733
        %v779 = vunpack.c.l.b16 %v726
        %v780 = vunpack.c.l.b16 %v734
        %v781 = vunpack.c.l.b16 %v727
        %v782 = vunpack.c.l.b16 %v735
        %v783 = vunpack.c.l.b16 %v728
        %v784 = vunpack.c.l.b16 %v736
        %v785 = vunpack.c.l.b16 %v729
        %v786 = vunpack.c.l.b16 %v737
        %v787 = vpack.c.b16 %v772, %v771
        %v788 = vpack.c.b16 %v774, %v773
        %v789 = vpack.c.b16 %v776, %v775
        %v790 = vpack.c.b16 %v778, %v777
        %v791 = vpack.c.b16 %v780, %v779
        %v792 = vpack.c.b16 %v782, %v781
        %v793 = vpack.c.b16 %v784, %v783
        %v794 = vpack.c.b16 %v786, %v785
        %v796 = vshrl.u32 %v787, 16
        %v798 = vshll.u32 %v787, 16
        %v800 = vrot.slane %v798, 1
        %v801 = vor.u32 %v796, %v800
        %v803 = vshrl.u32 %v788, 16
        %v805 = vshll.u32 %v788, 16
        %v807 = vrot.slane %v805, 1
        %v808 = vor.u32 %v803, %v807
        %v810 = vshrl.u32 %v789, 16
        %v812 = vshll.u32 %v789, 16
        %v814 = vrot.slane %v812, 1
        %v815 = vor.u32 %v810, %v814
        %v817 = vshrl.u32 %v790, 16
        %v819 = vshll.u32 %v790, 16
        %v821 = vrot.slane %v819, 1
        %v822 = vor.u32 %v817, %v821
        %v824 = vshrl.u32 %v791, 16
        %v826 = vshll.u32 %v791, 16
        %v828 = vrot.slane %v826, 1
        %v829 = vor.u32 %v824, %v828
        %v831 = vshrl.u32 %v792, 16
        %v833 = vshll.u32 %v792, 16
        %v835 = vrot.slane %v833, 1
        %v836 = vor.u32 %v831, %v835
        %v838 = vshrl.u32 %v793, 16
        %v840 = vshll.u32 %v793, 16
        %v842 = vrot.slane %v840, 1
        %v843 = vor.u32 %v838, %v842
        %v845 = vshrl.u32 %v794, 16
        %v847 = vshll.u32 %v794, 16
        %v849 = vrot.slane %v847, 1
        %v850 = vor.u32 %v845, %v849
        %851 = vrot.lane.b32.xlu0 %v801, 64
        %v852 = vpop.permute.xlu0 %851
        %853 = vrot.lane.b32.xlu0 %v808, 64
        %v854 = vpop.permute.xlu0 %853
        %855 = vrot.lane.b32.xlu0 %v815, 64
        %v856 = vpop.permute.xlu0 %855
        %857 = vrot.lane.b32.xlu0 %v822, 64
        %v858 = vpop.permute.xlu0 %857
        %859 = vrot.lane.b32.xlu0 %v829, 64
        %v860 = vpop.permute.xlu0 %859
        %861 = vrot.lane.b32.xlu0 %v836, 64
        %v862 = vpop.permute.xlu0 %861
        %863 = vrot.lane.b32.xlu0 %v843, 64
        %v864 = vpop.permute.xlu0 %863
        %865 = vrot.lane.b32.xlu0 %v850, 64
        %v866 = vpop.permute.xlu0 %865
        %v867 = vpack.c.b16 %v771, %v771
        %v868 = vpack.c.b16 %v773, %v773
        %v869 = vpack.c.b16 %v775, %v775
        %v870 = vpack.c.b16 %v777, %v777
        %v871 = vpack.c.b16 %v779, %v779
        %v872 = vpack.c.b16 %v781, %v781
        %v873 = vpack.c.b16 %v783, %v783
        %v874 = vpack.c.b16 %v785, %v785
        %875 = vrot.lane.b32.xlu0 %v867, 32
        %v876 = vpop.permute.xlu0 %875
        %877 = vrot.lane.b32.xlu0 %v868, 32
        %v878 = vpop.permute.xlu0 %877
        %879 = vrot.lane.b32.xlu0 %v869, 32
        %v880 = vpop.permute.xlu0 %879
        %881 = vrot.lane.b32.xlu0 %v870, 32
        %v882 = vpop.permute.xlu0 %881
        %883 = vrot.lane.b32.xlu0 %v871, 32
        %v884 = vpop.permute.xlu0 %883
        %885 = vrot.lane.b32.xlu0 %v872, 32
        %v886 = vpop.permute.xlu0 %885
        %887 = vrot.lane.b32.xlu0 %v873, 32
        %v888 = vpop.permute.xlu0 %887
        %889 = vrot.lane.b32.xlu0 %v874, 32
        %v890 = vpop.permute.xlu0 %889
        %891 = vrot.lane.b32.xlu0 %v801, 96
        %v892 = vpop.permute.xlu0 %891
        %893 = vrot.lane.b32.xlu0 %v808, 96
        %v894 = vpop.permute.xlu0 %893
        %895 = vrot.lane.b32.xlu0 %v815, 96
        %v896 = vpop.permute.xlu0 %895
        %897 = vrot.lane.b32.xlu0 %v822, 96
        %v898 = vpop.permute.xlu0 %897
        %899 = vrot.lane.b32.xlu0 %v829, 96
        %v900 = vpop.permute.xlu0 %899
        %901 = vrot.lane.b32.xlu0 %v836, 96
        %v902 = vpop.permute.xlu0 %901
        %903 = vrot.lane.b32.xlu0 %v843, 96
        %v904 = vpop.permute.xlu0 %903
        %905 = vrot.lane.b32.xlu0 %v850, 96
        %v906 = vpop.permute.xlu0 %905
        %v915 = vunpack.c.l.b16 %v739
        %v916 = vunpack.c.l.b16 %v740
        %v917 = vunpack.c.l.b16 %v741
        %v918 = vunpack.c.l.b16 %v742
        %v919 = vunpack.c.l.b16 %v743
        %v920 = vunpack.c.l.b16 %v744
        %v921 = vunpack.c.l.b16 %v745
        %v922 = vunpack.c.l.b16 %v746
        %v923 = vpack.c.b16 %v915, %v915
        %v924 = vpack.c.b16 %v916, %v916
        %v925 = vpack.c.b16 %v917, %v917
        %v926 = vpack.c.b16 %v918, %v918
        %v927 = vpack.c.b16 %v919, %v919
        %v928 = vpack.c.b16 %v920, %v920
        %v929 = vpack.c.b16 %v921, %v921
        %v930 = vpack.c.b16 %v922, %v922
        %931 = vrot.lane.b32.xlu0 %v923, 64
        %v932 = vpop.permute.xlu0 %931
        %933 = vrot.lane.b32.xlu0 %v924, 64
        %v934 = vpop.permute.xlu0 %933
        %935 = vrot.lane.b32.xlu0 %v925, 64
        %v936 = vpop.permute.xlu0 %935
        %937 = vrot.lane.b32.xlu0 %v926, 64
        %v938 = vpop.permute.xlu0 %937
        %939 = vrot.lane.b32.xlu0 %v927, 64
        %v940 = vpop.permute.xlu0 %939
        %941 = vrot.lane.b32.xlu0 %v928, 64
        %v942 = vpop.permute.xlu0 %941
        %943 = vrot.lane.b32.xlu0 %v929, 64
        %v944 = vpop.permute.xlu0 %943
        %945 = vrot.lane.b32.xlu0 %v930, 64
        %v946 = vpop.permute.xlu0 %945
        %v955 = vunpack.c.l.b16 %v747
        %v956 = vunpack.c.l.b16 %v748
        %v957 = vunpack.c.l.b16 %v749
        %v958 = vunpack.c.l.b16 %v750
        %v959 = vunpack.c.l.b16 %v751
        %v960 = vunpack.c.l.b16 %v752
        %v961 = vunpack.c.l.b16 %v753
        %v962 = vunpack.c.l.b16 %v754
        %v963 = vpack.c.b16 %v955, %v915
        %v964 = vpack.c.b16 %v956, %v916
        %v965 = vpack.c.b16 %v957, %v917
        %v966 = vpack.c.b16 %v958, %v918
        %v967 = vpack.c.b16 %v959, %v919
        %v968 = vpack.c.b16 %v960, %v920
        %v969 = vpack.c.b16 %v961, %v921
        %v970 = vpack.c.b16 %v962, %v922
        %v972 = vshrl.u32 %v963, 16
        %v974 = vshll.u32 %v963, 16
        %v976 = vrot.slane %v974, 1
        %v977 = vor.u32 %v972, %v976
        %v979 = vshrl.u32 %v964, 16
        %v981 = vshll.u32 %v964, 16
        %v983 = vrot.slane %v981, 1
        %v984 = vor.u32 %v979, %v983
        %v986 = vshrl.u32 %v965, 16
        %v988 = vshll.u32 %v965, 16
        %v990 = vrot.slane %v988, 1
        %v991 = vor.u32 %v986, %v990
        %v993 = vshrl.u32 %v966, 16
        %v995 = vshll.u32 %v966, 16
        %v997 = vrot.slane %v995, 1
        %v998 = vor.u32 %v993, %v997
        %v1000 = vshrl.u32 %v967, 16
        %v1002 = vshll.u32 %v967, 16
        %v1004 = vrot.slane %v1002, 1
        %v1005 = vor.u32 %v1000, %v1004
        %v1007 = vshrl.u32 %v968, 16
        %v1009 = vshll.u32 %v968, 16
        %v1011 = vrot.slane %v1009, 1
        %v1012 = vor.u32 %v1007, %v1011
        %v1014 = vshrl.u32 %v969, 16
        %v1016 = vshll.u32 %v969, 16
        %v1018 = vrot.slane %v1016, 1
        %v1019 = vor.u32 %v1014, %v1018
        %v1021 = vshrl.u32 %v970, 16
        %v1023 = vshll.u32 %v970, 16
        %v1025 = vrot.slane %v1023, 1
        %v1026 = vor.u32 %v1021, %v1025
        %vm1027 = vcmask 261120
        %v1037 = vsel %vm679, %v722, %v852
        %v1039 = vsel %vm679, %v723, %v854
        %v1041 = vsel %vm679, %v724, %v856
        %v1043 = vsel %vm679, %v725, %v858
        %v1045 = vsel %vm679, %v726, %v860
        %v1047 = vsel %vm679, %v727, %v862
        %v1049 = vsel %vm679, %v728, %v864
        %v1051 = vsel %vm679, %v729, %v866
        %vm1052 = vcmask 785408
        %v1054 = vsel %vm1052, %v1037, %v876
        %v1056 = vsel %vm1052, %v1039, %v878
        %v1058 = vsel %vm1052, %v1041, %v880
        %v1060 = vsel %vm1052, %v1043, %v882
        %v1062 = vsel %vm1052, %v1045, %v884
        %v1064 = vsel %vm1052, %v1047, %v886
        %v1066 = vsel %vm1052, %v1049, %v888
        %v1068 = vsel %vm1052, %v1051, %v890
        %v1070 = vsel %vm1027, %v876, %v892
        %v1072 = vsel %vm1027, %v878, %v894
        %v1074 = vsel %vm1027, %v880, %v896
        %v1076 = vsel %vm1027, %v882, %v898
        %v1078 = vsel %vm1027, %v884, %v900
        %v1080 = vsel %vm1027, %v886, %v902
        %v1082 = vsel %vm1027, %v888, %v904
        %v1084 = vsel %vm1027, %v890, %v906
        %v1086 = vsel %vm679, %v1070, %v932
        %v1088 = vsel %vm679, %v1072, %v934
        %v1090 = vsel %vm679, %v1074, %v936
        %v1092 = vsel %vm679, %v1076, %v938
        %v1094 = vsel %vm679, %v1078, %v940
        %v1096 = vsel %vm679, %v1080, %v942
        %v1098 = vsel %vm679, %v1082, %v944
        %v1100 = vsel %vm679, %v1084, %v946
        %v1101 = vsel %vm1052, %v1086, %v932
        %v1102 = vsel %vm1052, %v1088, %v934
        %v1103 = vsel %vm1052, %v1090, %v936
        %v1104 = vsel %vm1052, %v1092, %v938
        %v1105 = vsel %vm1052, %v1094, %v940
        %v1106 = vsel %vm1052, %v1096, %v942
        %v1107 = vsel %vm1052, %v1098, %v944
        %v1108 = vsel %vm1052, %v1100, %v946
        %v1125 = vunpack.c.l.b16 %v1054
        %v1126 = vunpack.c.l.b16 %v1101
        %v1127 = vunpack.c.l.b16 %v977
        %v1128 = vunpack.c.l.b16 %v1056
        %v1129 = vunpack.c.l.b16 %v1102
        %v1130 = vunpack.c.l.b16 %v984
        %v1131 = vunpack.c.l.b16 %v1058
        %v1132 = vunpack.c.l.b16 %v1103
        %v1133 = vunpack.c.l.b16 %v991
        %v1134 = vunpack.c.l.b16 %v1060
        %v1135 = vunpack.c.l.b16 %v1104
        %v1136 = vunpack.c.l.b16 %v998
        %v1137 = vunpack.c.l.b16 %v1062
        %v1138 = vunpack.c.l.b16 %v1105
        %v1139 = vunpack.c.l.b16 %v1005
        %v1140 = vunpack.c.l.b16 %v1064
        %v1141 = vunpack.c.l.b16 %v1106
        %v1142 = vunpack.c.l.b16 %v1012
        %v1143 = vunpack.c.l.b16 %v1066
        %v1144 = vunpack.c.l.b16 %v1107
        %v1145 = vunpack.c.l.b16 %v1019
        %v1146 = vunpack.c.l.b16 %v1068
        %v1147 = vunpack.c.l.b16 %v1108
        %v1148 = vunpack.c.l.b16 %v1026
        %v1149 = vld [vmem:[#allocation7] sm:$0xf]
        %v1150 = vld [vmem:[#allocation7 + $0x4] sm:$0xf]
        %v1151 = vld [vmem:[#allocation7 + $0x8] sm:$0xf]
        %v1152 = vld [vmem:[#allocation7 + $0xc] sm:$0xf]
        %v1153 = vld [vmem:[#allocation7 + $0x10] sm:$0xf]
        %v1154 = vld [vmem:[#allocation7 + $0x14] sm:$0xf]
        %v1155 = vld [vmem:[#allocation7 + $0x18] sm:$0xf]
        %v1156 = vld [vmem:[#allocation7 + $0x1c] sm:$0xf]
        %v1157 = vld [vmem:[#allocation7 + $0x20] sm:$0xf]
        %v1158 = vld [vmem:[#allocation7 + $0x24] sm:$0xf]
        %v1159 = vld [vmem:[#allocation7 + $0x28] sm:$0xf]
        %v1160 = vld [vmem:[#allocation7 + $0x2c] sm:$0xf]
        %v1161 = vld [vmem:[#allocation7 + $0x30] sm:$0xf]
        %v1162 = vld [vmem:[#allocation7 + $0x34] sm:$0xf]
        %v1163 = vld [vmem:[#allocation7 + $0x38] sm:$0xf]
        %v1164 = vld [vmem:[#allocation7 + $0x3c] sm:$0xf]
        %v1165 = vld [vmem:[#allocation7 + $0x40] sm:$0xf]
        %v1166 = vld [vmem:[#allocation7 + $0x44] sm:$0xf]
        %v1167 = vld [vmem:[#allocation7 + $0x48] sm:$0xf]
        %v1168 = vld [vmem:[#allocation7 + $0x4c] sm:$0xf]
        %v1169 = vld [vmem:[#allocation7 + $0x50] sm:$0xf]
        %v1170 = vld [vmem:[#allocation7 + $0x54] sm:$0xf]
        %v1171 = vld [vmem:[#allocation7 + $0x58] sm:$0xf]
        %v1172 = vld [vmem:[#allocation7 + $0x5c] sm:$0xf]
        %v1173 = vld [vmem:[#allocation7 + $0x60] sm:$0xf]
        %v1174 = vld [vmem:[#allocation7 + $0x64] sm:$0xf]
        %v1175 = vld [vmem:[#allocation7 + $0x68] sm:$0xf]
        %v1176 = vld [vmem:[#allocation7 + $0x6c] sm:$0xf]
        %v1177 = vld [vmem:[#allocation7 + $0x70] sm:$0xf]
        %v1178 = vld [vmem:[#allocation7 + $0x74] sm:$0xf]
        %v1179 = vld [vmem:[#allocation7 + $0x78] sm:$0xf]
        %v1180 = vld [vmem:[#allocation7 + $0x7c] sm:$0xf]
        %v1181 = vld [vmem:[#allocation7 + $0x80] sm:$0xf]
        %v1182 = vld [vmem:[#allocation7 + $0x84] sm:$0xf]
        %v1183 = vld [vmem:[#allocation7 + $0x88] sm:$0xf]
        %v1184 = vld [vmem:[#allocation7 + $0x8c] sm:$0xf]
        %v1185 = vpack.c.b16 %v1128, %v1125
        %v1186 = vpack.c.b16 %v1129, %v1126
        %v1187 = vpack.c.b16 %v1130, %v1127
        %v1188 = vpack.c.b16 %v1134, %v1131
        %v1189 = vpack.c.b16 %v1135, %v1132
        %v1190 = vpack.c.b16 %v1136, %v1133
        %v1191 = vpack.c.b16 %v1140, %v1137
        %v1192 = vpack.c.b16 %v1141, %v1138
        %v1193 = vpack.c.b16 %v1142, %v1139
        %v1194 = vpack.c.b16 %v1146, %v1143
        %v1195 = vpack.c.b16 %v1147, %v1144
        %v1196 = vpack.c.b16 %v1148, %v1145
        %v1241 = vunpack.c.l.b16 %v1149
        %v1242 = vunpack.c.l.b16 %v1150
        %v1243 = vunpack.c.l.b16 %v1151
        %v1244 = vunpack.c.l.b16 %v1152
        %v1245 = vunpack.c.l.b16 %v1153
        %v1246 = vunpack.c.l.b16 %v1154
        %v1247 = vunpack.c.l.b16 %v1155
        %v1248 = vunpack.c.l.b16 %v1156
        %v1249 = vunpack.c.l.b16 %v1157
        %v1250 = vunpack.c.l.b16 %v1158
        %v1251 = vunpack.c.l.b16 %v1159
        %v1252 = vunpack.c.l.b16 %v1160
        %v1253 = vunpack.c.l.b16 %v1161
        %v1254 = vunpack.c.l.b16 %v1162
        %v1255 = vunpack.c.l.b16 %v1163
        %v1256 = vunpack.c.l.b16 %v1164
        %v1257 = vunpack.c.l.b16 %v1165
        %v1258 = vunpack.c.l.b16 %v1166
        %v1259 = vunpack.c.l.b16 %v1167
        %v1260 = vunpack.c.l.b16 %v1168
        %v1261 = vunpack.c.l.b16 %v1169
        %v1262 = vunpack.c.l.b16 %v1170
        %v1263 = vunpack.c.l.b16 %v1171
        %v1264 = vunpack.c.l.b16 %v1172
        %v1265 = vunpack.c.l.b16 %v1173
        %v1266 = vunpack.c.l.b16 %v1174
        %v1267 = vunpack.c.l.b16 %v1175
        %v1268 = vunpack.c.l.b16 %v1176
        %v1269 = vunpack.c.l.b16 %v1177
        %v1270 = vunpack.c.l.b16 %v1178
        %v1271 = vunpack.c.l.b16 %v1179
        %v1272 = vunpack.c.l.b16 %v1180
        %v1273 = vunpack.c.l.b16 %v1181
        %v1274 = vunpack.c.l.b16 %v1182
        %v1275 = vunpack.c.l.b16 %v1183
        %v1276 = vunpack.c.l.b16 %v1184
        %v1277 = vpack.c.b16 %v1242, %v1241
        %v1278 = vpack.c.b16 %v1244, %v1243
        %v1279 = vpack.c.b16 %v1246, %v1245
        %v1280 = vpack.c.b16 %v1248, %v1247
        %v1281 = vpack.c.b16 %v1250, %v1249
        %v1282 = vpack.c.b16 %v1252, %v1251
        %v1283 = vpack.c.b16 %v1254, %v1253
        %v1284 = vpack.c.b16 %v1256, %v1255
        %v1285 = vpack.c.b16 %v1258, %v1257
        %v1286 = vpack.c.b16 %v1260, %v1259
        %v1287 = vpack.c.b16 %v1262, %v1261
        %v1288 = vpack.c.b16 %v1264, %v1263
        %v1289 = vpack.c.b16 %v1266, %v1265
        %v1290 = vpack.c.b16 %v1268, %v1267
        %v1291 = vpack.c.b16 %v1270, %v1269
        %v1292 = vpack.c.b16 %v1272, %v1271
        %v1293 = vpack.c.b16 %v1274, %v1273
        %v1294 = vpack.c.b16 %v1276, %v1275
        %v1314 = vsel %vm1027, %v1187, 0
        %v1317 = vsel %vm1027, %v1190, 0
        %v1320 = vsel %vm1027, %v1193, 0
        %v1323 = vsel %vm1027, %v1196, 0
        %1325 = vmatprep.subr.bf16.mxu0 0
        %1326 = vmatpush1.bf16.msra.mxu0 %v1277
        %1327 = vmatprep.subr.bf16.mxu0 0
        %1328 = vmatpush1.bf16.msra.mxu0 %v1278
        %1329 = vmatprep.subr.bf16.mxu0 0
        %1330 = vmatpush1.bf16.msra.mxu0 %v1279
        %1331 = vmatprep.subr.bf16.mxu0 0
        %1332 = vmatpush1.bf16.msra.mxu0 %v1280
        %1333 = vmatprep.subr.bf16.mxu0 0
        %1334 = vmatpush1.bf16.msra.mxu0 %v1281
        %1335 = vmatprep.subr.bf16.mxu0 0
        %1336 = vmatpush1.bf16.msra.mxu0 %v1282
        %1337 = vmatprep.subr.bf16.mxu0 0
        %1338 = vmatpush1.bf16.msra.mxu0 %v1283
        %1339 = vmatprep.subr.bf16.mxu0 0
        %1340 = vmatpush1.bf16.msra.mxu0 %v1284
        %1341 = vmatprep.subr.bf16.mxu0 0
        %1342 = vmatpush1.bf16.msra.mxu0 %v1285
        %1343 = vmatprep.subr.bf16.mxu0 0
        %1344 = vmatpush1.bf16.msra.mxu0 %v1286
        %1345 = vmatprep.subr.bf16.mxu0 0
        %1346 = vmatpush1.bf16.msra.mxu0 %v1287
        %1347 = vmatprep.subr.bf16.mxu0 0
        %1348 = vmatpush1.bf16.msra.mxu0 %v1288
        %1349 = vmatprep.subr.bf16.mxu0 0
        %1350 = vmatpush1.bf16.msra.mxu0 %v1289
        %1351 = vmatprep.subr.bf16.mxu0 0
        %1352 = vmatpush1.bf16.msra.mxu0 %v1290
        %1353 = vmatprep.subr.bf16.mxu0 0
        %1354 = vmatpush1.bf16.msra.mxu0 %v1291
        %1355 = vmatprep.subr.bf16.mxu0 0
        %1356 = vmatpush1.bf16.msra.mxu0 %v1292
        %1357 = vmatprep.mubr.bf16.mxu0 %v1186
        %1358 = vmatmul.mubr.bf16.gmra.mrb[0].mxu0 %v1185
        %v1359 = vpop.f32.mrb[0].mxu0
        %v1360 = vadd.f32 0.0, %v1359
        %v1361 = vpop.f32.mrb[0].mxu0
        %v1362 = vpop.f32.mrb[0].mxu0
        %v1363 = vadd.f32 0.0, %v1362
        %v1364 = vpop.f32.mrb[0].mxu0
        %1365 = vmatprep.mubr.bf16.mxu0 %v1189
        %1366 = vmatmul.mubr.bf16.gmra.mrb[0].mxu0 %v1188
        %v1367 = vpop.f32.mrb[0].mxu0
        %v1368 = vadd.f32 0.0, %v1367
        %v1369 = vpop.f32.mrb[0].mxu0
        %v1370 = vpop.f32.mrb[0].mxu0
        %v1371 = vadd.f32 0.0, %v1370
        %v1372 = vpop.f32.mrb[0].mxu0
        %1373 = vmatprep.mubr.bf16.mxu0 %v1192
        %1374 = vmatmul.mubr.bf16.gmra.mrb[0].mxu0 %v1191
        %v1375 = vpop.f32.mrb[0].mxu0
        %v1376 = vadd.f32 0.0, %v1375
        %v1377 = vpop.f32.mrb[0].mxu0
        %v1378 = vpop.f32.mrb[0].mxu0
        %v1379 = vadd.f32 0.0, %v1378
        %v1380 = vpop.f32.mrb[0].mxu0
        %1381 = vmatprep.mubr.bf16.mxu0 %v1195
        %1382 = vmatmul.mubr.bf16.gmra.mrb[0].mxu0 %v1194
        %v1383 = vpop.f32.mrb[0].mxu0
        %v1384 = vadd.f32 0.0, %v1383
        %v1385 = vpop.f32.mrb[0].mxu0
        %v1386 = vpop.f32.mrb[0].mxu0
        %v1387 = vadd.f32 0.0, %v1386
        %v1388 = vpop.f32.mrb[0].mxu0
        %1389 = vdwg.mxu0
        %1390 = vmatprep.subr.bf16.mxu0 0
        %1391 = vmatpush1.bf16.msra.mxu0 %v1293
        %1392 = vmatprep.subr.bf16.mxu0 0
        %1393 = vmatpush1.bf16.msra.mxu0 %v1294
        %1394 = vmatprep.subr.bf16.mxu0 0
        %1395 = vmatpush1.bf16.msra.mxu0 0
        %1396 = vmatprep.subr.bf16.mxu0 0
        %1397 = vmatpush1.bf16.msra.mxu0 0
        %1398 = vmatprep.subr.bf16.mxu0 0
        %1399 = vmatpush1.bf16.msra.mxu0 0
        %1400 = vmatprep.subr.bf16.mxu0 0
        %1401 = vmatpush1.bf16.msra.mxu0 0
        %1402 = vmatprep.subr.bf16.mxu0 0
        %1403 = vmatpush1.bf16.msra.mxu0 0
        %1404 = vmatprep.subr.bf16.mxu0 0
        %1405 = vmatpush1.bf16.msra.mxu0 0
        %1406 = vmatprep.subr.bf16.mxu0 0
        %1407 = vmatpush1.bf16.msra.mxu0 0
        %1408 = vmatprep.subr.bf16.mxu0 0
        %1409 = vmatpush1.bf16.msra.mxu0 0
        %1410 = vmatprep.subr.bf16.mxu0 0
        %1411 = vmatpush1.bf16.msra.mxu0 0
        %1412 = vmatprep.subr.bf16.mxu0 0
        %1413 = vmatpush1.bf16.msra.mxu0 0
        %1414 = vmatprep.subr.bf16.mxu0 0
        %1415 = vmatpush1.bf16.msra.mxu0 0
        %1416 = vmatprep.subr.bf16.mxu0 0
        %1417 = vmatpush1.bf16.msra.mxu0 0
        %1418 = vmatprep.subr.bf16.mxu0 0
        %1419 = vmatpush1.bf16.msra.mxu0 0
        %1420 = vmatprep.subr.bf16.mxu0 0
        %1421 = vmatpush1.bf16.msra.mxu0 0
        %1422 = vmatprep.mubr.bf16.mxu0 0
        %1423 = vmatmul.mubr.bf16.gmra.mrb[0].mxu0 %v1314
        %v1424 = vpop.f32.mrb[0].mxu0
        %v1425 = vadd.f32 %v1360, %v1424
        %v1426 = vpop.f32.mrb[0].mxu0
        %v1427 = vpop.f32.mrb[0].mxu0
        %v1428 = vadd.f32 %v1363, %v1427
        %v1429 = vpop.f32.mrb[0].mxu0
        %1430 = vmatprep.mubr.bf16.mxu0 0
        %1431 = vmatmul.mubr.bf16.gmra.mrb[0].mxu0 %v1317
        %v1432 = vpop.f32.mrb[0].mxu0
        %v1433 = vadd.f32 %v1368, %v1432
        %v1434 = vpop.f32.mrb[0].mxu0
        %v1435 = vpop.f32.mrb[0].mxu0
        %v1436 = vadd.f32 %v1371, %v1435
        %v1437 = vpop.f32.mrb[0].mxu0
        %1438 = vmatprep.mubr.bf16.mxu0 0
        %1439 = vmatmul.mubr.bf16.gmra.mrb[0].mxu0 %v1320
        %v1440 = vpop.f32.mrb[0].mxu0
        %v1441 = vadd.f32 %v1376, %v1440
        %v1442 = vpop.f32.mrb[0].mxu0
        %v1443 = vpop.f32.mrb[0].mxu0
        %v1444 = vadd.f32 %v1379, %v1443
        %v1445 = vpop.f32.mrb[0].mxu0
        %1446 = vmatprep.mubr.bf16.mxu0 0
        %1447 = vmatmul.mubr.bf16.gmra.mrb[0].mxu0 %v1323
        %v1448 = vpop.f32.mrb[0].mxu0
        %v1449 = vadd.f32 %v1384, %v1448
        %v1450 = vpop.f32.mrb[0].mxu0
        %v1451 = vpop.f32.mrb[0].mxu0
        %v1452 = vadd.f32 %v1387, %v1451
        %v1453 = vpop.f32.mrb[0].mxu0
        %1454 = vdwg.mxu0
        %v1455 = vld [vmem:[#allocation9] sm:$0x1]
        %v1457 = vlaneseq
        %v1458 = vshrl.u32 %v1457, 7
        %v1459 = vsub.s32 0, %v1458
        %v1460 = vrot.slane %v1455, %v1459
        %v1462 = vmul.f32 %v1425, %v1460
        %v1463 = vmul.f32 %v1428, %v1460
        %v1464 = vmul.f32 %v1433, %v1460
        %v1465 = vmul.f32 %v1436, %v1460
        %v1466 = vmul.f32 %v1441, %v1460
        %v1467 = vmul.f32 %v1444, %v1460
        %v1468 = vmul.f32 %v1449, %v1460
        %v1469 = vmul.f32 %v1452, %v1460
        %v1470 = vld [vmem:[#allocation10] sm:$0x1]
        %v1472 = vlaneseq
        %v1473 = vshrl.u32 %v1472, 7
        %v1474 = vsub.s32 0, %v1473
        %v1475 = vrot.slane %v1470, %v1474
        %v1477 = vadd.f32 %v1462, %v1475
        %v1478 = vadd.f32 %v1463, %v1475
        %v1479 = vadd.f32 %v1464, %v1475
        %v1480 = vadd.f32 %v1465, %v1475
        %v1481 = vadd.f32 %v1466, %v1475
        %v1482 = vadd.f32 %v1467, %v1475
        %v1483 = vadd.f32 %v1468, %v1475
        %v1484 = vadd.f32 %v1469, %v1475
        %vm1485 = vcmp.gt.f32.partialorder %v1477, 0.0
        %vm1486 = vcmp.gt.f32.partialorder %v1478, 0.0
        %vm1487 = vcmp.gt.f32.partialorder %v1479, 0.0
        %vm1488 = vcmp.gt.f32.partialorder %v1480, 0.0
        %vm1489 = vcmp.gt.f32.partialorder %v1481, 0.0
        %vm1490 = vcmp.gt.f32.partialorder %v1482, 0.0
        %vm1491 = vcmp.gt.f32.partialorder %v1483, 0.0
        %vm1492 = vcmp.gt.f32.partialorder %v1484, 0.0
        %v1493 = vmul.f32 %v1477, 0.1
        %v1494 = vmul.f32 %v1478, 0.1
        %v1495 = vmul.f32 %v1479, 0.1
        %v1496 = vmul.f32 %v1480, 0.1
        %v1497 = vmul.f32 %v1481, 0.1
        %v1498 = vmul.f32 %v1482, 0.1
        %v1499 = vmul.f32 %v1483, 0.1
        %v1500 = vmul.f32 %v1484, 0.1
        %v1501 = vsel %vm1485, %v1477, %v1493
        %v1502 = vsel %vm1486, %v1478, %v1494
        %v1503 = vsel %vm1487, %v1479, %v1495
        %v1504 = vsel %vm1488, %v1480, %v1496
        %v1505 = vsel %vm1489, %v1481, %v1497
        %v1506 = vsel %vm1490, %v1482, %v1498
        %v1507 = vsel %vm1491, %v1483, %v1499
        %v1508 = vsel %vm1492, %v1484, %v1500
        %s1509 = scalar_lea.vmem [#allocation2], 16
        %1510 = vst.msk [vmem:[%s1509 + $0x1] sm:$0xff] %vm679, %v1501
        %1511 = vst.msk [vmem:[%s1509 + $0x11] sm:$0xff] %vm679, %v1502
        %1512 = vst.msk [vmem:[%s1509 + $0x21] sm:$0xff] %vm679, %v1503
        %1513 = vst.msk [vmem:[%s1509 + $0x31] sm:$0xff] %vm679, %v1504
        %1514 = vst.msk [vmem:[%s1509 + $0x41] sm:$0xff] %vm679, %v1505
        %1515 = vst.msk [vmem:[%s1509 + $0x51] sm:$0xff] %vm679, %v1506
        %1516 = vst.msk [vmem:[%s1509 + $0x61] sm:$0xff] %vm679, %v1507
        %1517 = vst.msk [vmem:[%s1509 + $0x71] sm:$0xff] %vm679, %v1508
        %v1518 = vld [vmem:[#allocation2] sm:$0xff]
        %v1519 = vld [vmem:[#allocation2 + $0x10] sm:$0xff]
        %v1520 = vld [vmem:[#allocation2 + $0x20] sm:$0xff]
        %v1521 = vld [vmem:[#allocation2 + $0x30] sm:$0xff]
        %v1522 = vld [vmem:[#allocation2 + $0x40] sm:$0xff]
        %v1523 = vld [vmem:[#allocation2 + $0x50] sm:$0xff]
        %v1524 = vld [vmem:[#allocation2 + $0x60] sm:$0xff]
        %v1525 = vld [vmem:[#allocation2 + $0x70] sm:$0xff]
        %v1526 = vld [vmem:[#allocation2 + $0x1] sm:$0xff]
        %v1527 = vld [vmem:[#allocation2 + $0x11] sm:$0xff]
        %v1528 = vld [vmem:[#allocation2 + $0x21] sm:$0xff]
        %v1529 = vld [vmem:[#allocation2 + $0x31] sm:$0xff]
        %v1530 = vld [vmem:[#allocation2 + $0x41] sm:$0xff]
        %v1531 = vld [vmem:[#allocation2 + $0x51] sm:$0xff]
        %v1532 = vld [vmem:[#allocation2 + $0x61] sm:$0xff]
        %v1533 = vld [vmem:[#allocation2 + $0x71] sm:$0xff]
        %v1534 = vld [vmem:[#allocation2 + $0x2] sm:$0xff]
        %v1535 = vld [vmem:[#allocation2 + $0x12] sm:$0xff]
        %v1536 = vld [vmem:[#allocation2 + $0x22] sm:$0xff]
        %v1537 = vld [vmem:[#allocation2 + $0x32] sm:$0xff]
        %v1538 = vld [vmem:[#allocation2 + $0x42] sm:$0xff]
        %v1539 = vld [vmem:[#allocation2 + $0x52] sm:$0xff]
        %v1540 = vld [vmem:[#allocation2 + $0x62] sm:$0xff]
        %v1541 = vld [vmem:[#allocation2 + $0x72] sm:$0xff]
        %v1542 = vld [vmem:[%s1509] sm:$0xff]
        %v1543 = vld [vmem:[%s1509 + $0x10] sm:$0xff]
        %v1544 = vld [vmem:[%s1509 + $0x20] sm:$0xff]
        %v1545 = vld [vmem:[%s1509 + $0x30] sm:$0xff]
        %v1546 = vld [vmem:[%s1509 + $0x40] sm:$0xff]
        %v1547 = vld [vmem:[%s1509 + $0x50] sm:$0xff]
        %v1548 = vld [vmem:[%s1509 + $0x60] sm:$0xff]
        %v1549 = vld [vmem:[%s1509 + $0x70] sm:$0xff]
        %v1550 = vld [vmem:[%s1509 + $0x1] sm:$0xff]
        %v1551 = vld [vmem:[%s1509 + $0x11] sm:$0xff]
        %v1552 = vld [vmem:[%s1509 + $0x21] sm:$0xff]
        %v1553 = vld [vmem:[%s1509 + $0x31] sm:$0xff]
        %v1554 = vld [vmem:[%s1509 + $0x41] sm:$0xff]
        %v1555 = vld [vmem:[%s1509 + $0x51] sm:$0xff]
        %v1556 = vld [vmem:[%s1509 + $0x61] sm:$0xff]
        %v1557 = vld [vmem:[%s1509 + $0x71] sm:$0xff]
        %v1558 = vld [vmem:[%s1509 + $0x2] sm:$0xff]
        %v1559 = vld [vmem:[%s1509 + $0x12] sm:$0xff]
        %v1560 = vld [vmem:[%s1509 + $0x22] sm:$0xff]
        %v1561 = vld [vmem:[%s1509 + $0x32] sm:$0xff]
        %v1562 = vld [vmem:[%s1509 + $0x42] sm:$0xff]
        %v1563 = vld [vmem:[%s1509 + $0x52] sm:$0xff]
        %v1564 = vld [vmem:[%s1509 + $0x62] sm:$0xff]
        %v1565 = vld [vmem:[%s1509 + $0x72] sm:$0xff]
        %s1566 = scalar_lea.vmem [#allocation2], 32
        %v1567 = vld [vmem:[%s1566] sm:$0xff]
        %v1568 = vld [vmem:[%s1566 + $0x10] sm:$0xff]
        %v1569 = vld [vmem:[%s1566 + $0x20] sm:$0xff]
        %v1570 = vld [vmem:[%s1566 + $0x30] sm:$0xff]
        %v1571 = vld [vmem:[%s1566 + $0x40] sm:$0xff]
        %v1572 = vld [vmem:[%s1566 + $0x50] sm:$0xff]
        %v1573 = vld [vmem:[%s1566 + $0x60] sm:$0xff]
        %v1574 = vld [vmem:[%s1566 + $0x70] sm:$0xff]
        %v1575 = vld [vmem:[%s1566 + $0x1] sm:$0xff]
        %v1576 = vld [vmem:[%s1566 + $0x11] sm:$0xff]
        %v1577 = vld [vmem:[%s1566 + $0x21] sm:$0xff]
        %v1578 = vld [vmem:[%s1566 + $0x31] sm:$0xff]
        %v1579 = vld [vmem:[%s1566 + $0x41] sm:$0xff]
        %v1580 = vld [vmem:[%s1566 + $0x51] sm:$0xff]
        %v1581 = vld [vmem:[%s1566 + $0x61] sm:$0xff]
        %v1582 = vld [vmem:[%s1566 + $0x71] sm:$0xff]
        %v1583 = vld [vmem:[%s1566 + $0x2] sm:$0xff]
        %v1584 = vld [vmem:[%s1566 + $0x12] sm:$0xff]
        %v1585 = vld [vmem:[%s1566 + $0x22] sm:$0xff]
        %v1586 = vld [vmem:[%s1566 + $0x32] sm:$0xff]
        %v1587 = vld [vmem:[%s1566 + $0x42] sm:$0xff]
        %v1588 = vld [vmem:[%s1566 + $0x52] sm:$0xff]
        %v1589 = vld [vmem:[%s1566 + $0x62] sm:$0xff]
        %v1590 = vld [vmem:[%s1566 + $0x72] sm:$0xff]
        %1599 = vrot.lane.b32.xlu0 %v1526, 64
        %v1600 = vpop.permute.xlu0 %1599
        %1601 = vrot.lane.b32.xlu0 %v1527, 64
        %v1602 = vpop.permute.xlu0 %1601
        %1603 = vrot.lane.b32.xlu0 %v1528, 64
        %v1604 = vpop.permute.xlu0 %1603
        %1605 = vrot.lane.b32.xlu0 %v1529, 64
        %v1606 = vpop.permute.xlu0 %1605
        %1607 = vrot.lane.b32.xlu0 %v1530, 64
        %v1608 = vpop.permute.xlu0 %1607
        %1609 = vrot.lane.b32.xlu0 %v1531, 64
        %v1610 = vpop.permute.xlu0 %1609
        %1611 = vrot.lane.b32.xlu0 %v1532, 64
        %v1612 = vpop.permute.xlu0 %1611
        %1613 = vrot.lane.b32.xlu0 %v1533, 64
        %v1614 = vpop.permute.xlu0 %1613
        %1631 = vrot.lane.b32.xlu0 %v1542, 64
        %v1632 = vpop.permute.xlu0 %1631
        %1633 = vrot.lane.b32.xlu0 %v1543, 64
        %v1634 = vpop.permute.xlu0 %1633
        %1635 = vrot.lane.b32.xlu0 %v1544, 64
        %v1636 = vpop.permute.xlu0 %1635
        %1637 = vrot.lane.b32.xlu0 %v1545, 64
        %v1638 = vpop.permute.xlu0 %1637
        %1639 = vrot.lane.b32.xlu0 %v1546, 64
        %v1640 = vpop.permute.xlu0 %1639
        %1641 = vrot.lane.b32.xlu0 %v1547, 64
        %v1642 = vpop.permute.xlu0 %1641
        %1643 = vrot.lane.b32.xlu0 %v1548, 64
        %v1644 = vpop.permute.xlu0 %1643
        %1645 = vrot.lane.b32.xlu0 %v1549, 64
        %v1646 = vpop.permute.xlu0 %1645
        %1663 = vrot.lane.b32.xlu0 %v1558, 64
        %v1664 = vpop.permute.xlu0 %1663
        %1665 = vrot.lane.b32.xlu0 %v1559, 64
        %v1666 = vpop.permute.xlu0 %1665
        %1667 = vrot.lane.b32.xlu0 %v1560, 64
        %v1668 = vpop.permute.xlu0 %1667
        %1669 = vrot.lane.b32.xlu0 %v1561, 64
        %v1670 = vpop.permute.xlu0 %1669
        %1671 = vrot.lane.b32.xlu0 %v1562, 64
        %v1672 = vpop.permute.xlu0 %1671
        %1673 = vrot.lane.b32.xlu0 %v1563, 64
        %v1674 = vpop.permute.xlu0 %1673
        %1675 = vrot.lane.b32.xlu0 %v1564, 64
        %v1676 = vpop.permute.xlu0 %1675
        %1677 = vrot.lane.b32.xlu0 %v1565, 64
        %v1678 = vpop.permute.xlu0 %1677
        %1695 = vrot.lane.b32.xlu0 %v1575, 64
        %v1696 = vpop.permute.xlu0 %1695
        %1697 = vrot.lane.b32.xlu0 %v1576, 64
        %v1698 = vpop.permute.xlu0 %1697
        %1699 = vrot.lane.b32.xlu0 %v1577, 64
        %v1700 = vpop.permute.xlu0 %1699
        %1701 = vrot.lane.b32.xlu0 %v1578, 64
        %v1702 = vpop.permute.xlu0 %1701
        %1703 = vrot.lane.b32.xlu0 %v1579, 64
        %v1704 = vpop.permute.xlu0 %1703
        %1705 = vrot.lane.b32.xlu0 %v1580, 64
        %v1706 = vpop.permute.xlu0 %1705
        %1707 = vrot.lane.b32.xlu0 %v1581, 64
        %v1708 = vpop.permute.xlu0 %1707
        %1709 = vrot.lane.b32.xlu0 %v1582, 64
        %v1710 = vpop.permute.xlu0 %1709
        %v1719 = vsel %vm679, %v1518, %v1600
        %v1720 = vsel %vm679, %v1519, %v1602
        %v1721 = vsel %vm679, %v1520, %v1604
        %v1722 = vsel %vm679, %v1521, %v1606
        %v1723 = vsel %vm679, %v1522, %v1608
        %v1724 = vsel %vm679, %v1523, %v1610
        %v1725 = vsel %vm679, %v1524, %v1612
        %v1726 = vsel %vm679, %v1525, %v1614
        %v1727 = vsel %vm679, %v1534, %v1632
        %v1728 = vsel %vm679, %v1535, %v1634
        %v1729 = vsel %vm679, %v1536, %v1636
        %v1730 = vsel %vm679, %v1537, %v1638
        %v1731 = vsel %vm679, %v1538, %v1640
        %v1732 = vsel %vm679, %v1539, %v1642
        %v1733 = vsel %vm679, %v1540, %v1644
        %v1734 = vsel %vm679, %v1541, %v1646
        %v1735 = vsel %vm679, %v1550, %v1664
        %v1736 = vsel %vm679, %v1551, %v1666
        %v1737 = vsel %vm679, %v1552, %v1668
        %v1738 = vsel %vm679, %v1553, %v1670
        %v1739 = vsel %vm679, %v1554, %v1672
        %v1740 = vsel %vm679, %v1555, %v1674
        %v1741 = vsel %vm679, %v1556, %v1676
        %v1742 = vsel %vm679, %v1557, %v1678
        %v1743 = vsel %vm679, %v1567, %v1696
        %v1744 = vsel %vm679, %v1568, %v1698
        %v1745 = vsel %vm679, %v1569, %v1700
        %v1746 = vsel %vm679, %v1570, %v1702
        %v1747 = vsel %vm679, %v1571, %v1704
        %v1748 = vsel %vm679, %v1572, %v1706
        %v1749 = vsel %vm679, %v1573, %v1708
        %v1750 = vsel %vm679, %v1574, %v1710
        %v1751 = vpack.c.bf16 %v1720, %v1719
        %v1752 = vpack.c.bf16 %v1728, %v1727
        %v1753 = vpack.c.bf16 %v1736, %v1735
        %v1754 = vpack.c.bf16 %v1744, %v1743
        %v1755 = vpack.c.bf16 %v1584, %v1583
        %v1756 = vpack.c.bf16 %v1722, %v1721
        %v1757 = vpack.c.bf16 %v1730, %v1729
        %v1758 = vpack.c.bf16 %v1738, %v1737
        %v1759 = vpack.c.bf16 %v1746, %v1745
        %v1760 = vpack.c.bf16 %v1586, %v1585
        %v1761 = vpack.c.bf16 %v1724, %v1723
        %v1762 = vpack.c.bf16 %v1732, %v1731
        %v1763 = vpack.c.bf16 %v1740, %v1739
        %v1764 = vpack.c.bf16 %v1748, %v1747
        %v1765 = vpack.c.bf16 %v1588, %v1587
        %v1766 = vpack.c.bf16 %v1726, %v1725
        %v1767 = vpack.c.bf16 %v1734, %v1733
        %v1768 = vpack.c.bf16 %v1742, %v1741
        %v1769 = vpack.c.bf16 %v1750, %v1749
        %v1770 = vpack.c.bf16 %v1590, %v1589
        %v1771 = vld [vmem:[#allocation12] sm:$0xf]
        %v1772 = vld [vmem:[#allocation12 + $0x4] sm:$0xf]
        %v1773 = vld [vmem:[#allocation12 + $0x8] sm:$0xf]
        %v1774 = vld [vmem:[#allocation12 + $0xc] sm:$0xf]
        %v1775 = vld [vmem:[#allocation12 + $0x10] sm:$0xf]
        %v1776 = vld [vmem:[#allocation12 + $0x14] sm:$0xf]
        %v1777 = vld [vmem:[#allocation12 + $0x18] sm:$0xf]
        %v1778 = vld [vmem:[#allocation12 + $0x1c] sm:$0xf]
        %v1779 = vld [vmem:[#allocation12 + $0x20] sm:$0xf]
        %v1780 = vld [vmem:[#allocation12 + $0x24] sm:$0xf]
        %v1781 = vld [vmem:[#allocation12 + $0x28] sm:$0xf]
        %v1782 = vld [vmem:[#allocation12 + $0x2c] sm:$0xf]
        %v1783 = vld [vmem:[#allocation12 + $0x30] sm:$0xf]
        %v1784 = vld [vmem:[#allocation12 + $0x34] sm:$0xf]
        %v1785 = vld [vmem:[#allocation12 + $0x38] sm:$0xf]
        %v1786 = vld [vmem:[#allocation12 + $0x3c] sm:$0xf]
        %v1787 = vld [vmem:[#allocation12 + $0x40] sm:$0xf]
        %v1788 = vld [vmem:[#allocation12 + $0x44] sm:$0xf]
        %v1789 = vld [vmem:[#allocation12 + $0x48] sm:$0xf]
        %v1790 = vld [vmem:[#allocation12 + $0x4c] sm:$0xf]
        %v1791 = vld [vmem:[#allocation12 + $0x50] sm:$0xf]
        %v1792 = vld [vmem:[#allocation12 + $0x54] sm:$0xf]
        %v1793 = vld [vmem:[#allocation12 + $0x58] sm:$0xf]
        %v1794 = vld [vmem:[#allocation12 + $0x5c] sm:$0xf]
        %v1795 = vld [vmem:[#allocation12 + $0x60] sm:$0xf]
        %v1796 = vld [vmem:[#allocation12 + $0x64] sm:$0xf]
        %v1797 = vld [vmem:[#allocation12 + $0x68] sm:$0xf]
        %v1798 = vld [vmem:[#allocation12 + $0x6c] sm:$0xf]
        %v1799 = vld [vmem:[#allocation12 + $0x70] sm:$0xf]
        %v1800 = vld [vmem:[#allocation12 + $0x74] sm:$0xf]
        %v1801 = vld [vmem:[#allocation12 + $0x78] sm:$0xf]
        %v1802 = vld [vmem:[#allocation12 + $0x7c] sm:$0xf]
        %v1803 = vld [vmem:[#allocation12 + $0x80] sm:$0xf]
        %v1804 = vld [vmem:[#allocation12 + $0x84] sm:$0xf]
        %v1805 = vld [vmem:[#allocation12 + $0x88] sm:$0xf]
        %v1806 = vld [vmem:[#allocation12 + $0x8c] sm:$0xf]
        %v1807 = vld [vmem:[#allocation12 + $0x90] sm:$0xf]
        %v1808 = vld [vmem:[#allocation12 + $0x94] sm:$0xf]
        %v1809 = vld [vmem:[#allocation12 + $0x98] sm:$0xf]
        %v1810 = vld [vmem:[#allocation12 + $0x9c] sm:$0xf]
        %v1811 = vld [vmem:[#allocation12 + $0xa0] sm:$0xf]
        %v1812 = vld [vmem:[#allocation12 + $0xa4] sm:$0xf]
        %v1813 = vld [vmem:[#allocation12 + $0xa8] sm:$0xf]
        %v1814 = vld [vmem:[#allocation12 + $0xac] sm:$0xf]
        %v1815 = vld [vmem:[#allocation12 + $0xb0] sm:$0xf]
        %v1816 = vld [vmem:[#allocation12 + $0xb4] sm:$0xf]
        %v1817 = vld [vmem:[#allocation12 + $0xb8] sm:$0xf]
        %v1818 = vld [vmem:[#allocation12 + $0xbc] sm:$0xf]
        %v1819 = vld [vmem:[#allocation12 + $0xc0] sm:$0xf]
        %v1820 = vld [vmem:[#allocation12 + $0xc4] sm:$0xf]
        %v1821 = vld [vmem:[#allocation12 + $0xc8] sm:$0xf]
        %v1822 = vld [vmem:[#allocation12 + $0xcc] sm:$0xf]
        %v1823 = vld [vmem:[#allocation12 + $0xd0] sm:$0xf]
        %v1824 = vld [vmem:[#allocation12 + $0xd4] sm:$0xf]
        %v1825 = vld [vmem:[#allocation12 + $0xd8] sm:$0xf]
        %v1826 = vld [vmem:[#allocation12 + $0xdc] sm:$0xf]
        %v1827 = vld [vmem:[#allocation12 + $0xe0] sm:$0xf]
        %v1828 = vld [vmem:[#allocation12 + $0xe4] sm:$0xf]
        %v1829 = vld [vmem:[#allocation12 + $0xe8] sm:$0xf]
        %v1830 = vld [vmem:[#allocation12 + $0xec] sm:$0xf]
        %v1831 = vld [vmem:[#allocation12 + $0xf0] sm:$0xf]
        %v1832 = vld [vmem:[#allocation12 + $0xf4] sm:$0xf]
        %v1833 = vld [vmem:[#allocation12 + $0xf8] sm:$0xf]
        %v1834 = vld [vmem:[#allocation12 + $0xfc] sm:$0xf]
        %v1835 = vld [vmem:[#allocation12 + $0x100] sm:$0xf]
        %v1836 = vld [vmem:[#allocation12 + $0x104] sm:$0xf]
        %v1837 = vld [vmem:[#allocation12 + $0x108] sm:$0xf]
        %v1838 = vld [vmem:[#allocation12 + $0x10c] sm:$0xf]
        %v1839 = vld [vmem:[#allocation12 + $0x110] sm:$0xf]
        %v1840 = vld [vmem:[#allocation12 + $0x114] sm:$0xf]
        %v1841 = vld [vmem:[#allocation12 + $0x118] sm:$0xf]
        %v1842 = vld [vmem:[#allocation12 + $0x11c] sm:$0xf]
        %v1915 = vunpack.c.l.b16 %v1771
        %v1916 = vunpack.c.l.b16 %v1772
        %v1917 = vunpack.c.l.b16 %v1773
        %v1918 = vunpack.c.l.b16 %v1774
        %v1919 = vunpack.c.l.b16 %v1775
        %v1920 = vunpack.c.l.b16 %v1776
        %v1921 = vunpack.c.l.b16 %v1777
        %v1922 = vunpack.c.l.b16 %v1778
        %v1923 = vunpack.c.l.b16 %v1779
        %v1924 = vunpack.c.l.b16 %v1780
        %v1925 = vunpack.c.l.b16 %v1781
        %v1926 = vunpack.c.l.b16 %v1782
        %v1927 = vunpack.c.l.b16 %v1783
        %v1928 = vunpack.c.l.b16 %v1784
        %v1929 = vunpack.c.l.b16 %v1785
        %v1930 = vunpack.c.l.b16 %v1786
        %v1931 = vunpack.c.l.b16 %v1787
        %v1932 = vunpack.c.l.b16 %v1788
        %v1933 = vunpack.c.l.b16 %v1789
        %v1934 = vunpack.c.l.b16 %v1790
        %v1935 = vunpack.c.l.b16 %v1791
        %v1936 = vunpack.c.l.b16 %v1792
        %v1937 = vunpack.c.l.b16 %v1793
        %v1938 = vunpack.c.l.b16 %v1794
        %v1939 = vunpack.c.l.b16 %v1795
        %v1940 = vunpack.c.l.b16 %v1796
        %v1941 = vunpack.c.l.b16 %v1797
        %v1942 = vunpack.c.l.b16 %v1798
        %v1943 = vunpack.c.l.b16 %v1799
        %v1944 = vunpack.c.l.b16 %v1800
        %v1945 = vunpack.c.l.b16 %v1801
        %v1946 = vunpack.c.l.b16 %v1802
        %v1947 = vunpack.c.l.b16 %v1803
        %v1948 = vunpack.c.l.b16 %v1804
        %v1949 = vunpack.c.l.b16 %v1805
        %v1950 = vunpack.c.l.b16 %v1806
        %v1951 = vunpack.c.l.b16 %v1807
        %v1952 = vunpack.c.l.b16 %v1808
        %v1953 = vunpack.c.l.b16 %v1809
        %v1954 = vunpack.c.l.b16 %v1810
        %v1955 = vunpack.c.l.b16 %v1811
        %v1956 = vunpack.c.l.b16 %v1812
        %v1957 = vunpack.c.l.b16 %v1813
        %v1958 = vunpack.c.l.b16 %v1814
        %v1959 = vunpack.c.l.b16 %v1815
        %v1960 = vunpack.c.l.b16 %v1816
        %v1961 = vunpack.c.l.b16 %v1817
        %v1962 = vunpack.c.l.b16 %v1818
        %v1963 = vunpack.c.l.b16 %v1819
        %v1964 = vunpack.c.l.b16 %v1820
        %v1965 = vunpack.c.l.b16 %v1821
        %v1966 = vunpack.c.l.b16 %v1822
        %v1967 = vunpack.c.l.b16 %v1823
        %v1968 = vunpack.c.l.b16 %v1824
        %v1969 = vunpack.c.l.b16 %v1825
        %v1970 = vunpack.c.l.b16 %v1826
        %v1971 = vunpack.c.l.b16 %v1827
        %v1972 = vunpack.c.l.b16 %v1828
        %v1973 = vunpack.c.l.b16 %v1829
        %v1974 = vunpack.c.l.b16 %v1830
        %v1975 = vunpack.c.l.b16 %v1831
        %v1976 = vunpack.c.l.b16 %v1832
        %v1977 = vunpack.c.l.b16 %v1833
        %v1978 = vunpack.c.l.b16 %v1834
        %v1979 = vunpack.c.l.b16 %v1835
        %v1980 = vunpack.c.l.b16 %v1836
        %v1981 = vunpack.c.l.b16 %v1837
        %v1982 = vunpack.c.l.b16 %v1838
        %v1983 = vunpack.c.l.b16 %v1839
        %v1984 = vunpack.c.l.b16 %v1840
        %v1985 = vunpack.c.l.b16 %v1841
        %v1986 = vunpack.c.l.b16 %v1842
        %v1987 = vpack.c.b16 %v1916, %v1915
        %v1988 = vpack.c.b16 %v1918, %v1917
        %v1989 = vpack.c.b16 %v1920, %v1919
        %v1990 = vpack.c.b16 %v1922, %v1921
        %v1991 = vpack.c.b16 %v1924, %v1923
        %v1992 = vpack.c.b16 %v1926, %v1925
        %v1993 = vpack.c.b16 %v1928, %v1927
        %v1994 = vpack.c.b16 %v1930, %v1929
        %v1995 = vpack.c.b16 %v1932, %v1931
        %v1996 = vpack.c.b16 %v1934, %v1933
        %v1997 = vpack.c.b16 %v1936, %v1935
        %v1998 = vpack.c.b16 %v1938, %v1937
        %v1999 = vpack.c.b16 %v1940, %v1939
        %v2000 = vpack.c.b16 %v1942, %v1941
        %v2001 = vpack.c.b16 %v1944, %v1943
        %v2002 = vpack.c.b16 %v1946, %v1945
        %v2003 = vpack.c.b16 %v1948, %v1947
        %v2004 = vpack.c.b16 %v1950, %v1949
        %v2005 = vpack.c.b16 %v1952, %v1951
        %v2006 = vpack.c.b16 %v1954, %v1953
        %v2007 = vpack.c.b16 %v1956, %v1955
        %v2008 = vpack.c.b16 %v1958, %v1957
        %v2009 = vpack.c.b16 %v1960, %v1959
        %v2010 = vpack.c.b16 %v1962, %v1961
        %v2011 = vpack.c.b16 %v1964, %v1963
        %v2012 = vpack.c.b16 %v1966, %v1965
        %v2013 = vpack.c.b16 %v1968, %v1967
        %v2014 = vpack.c.b16 %v1970, %v1969
        %v2015 = vpack.c.b16 %v1972, %v1971
        %v2016 = vpack.c.b16 %v1974, %v1973
        %v2017 = vpack.c.b16 %v1976, %v1975
        %v2018 = vpack.c.b16 %v1978, %v1977
        %v2019 = vpack.c.b16 %v1980, %v1979
        %v2020 = vpack.c.b16 %v1982, %v1981
        %v2021 = vpack.c.b16 %v1984, %v1983
        %v2022 = vpack.c.b16 %v1986, %v1985
        %v2060 = vsel %vm679, %v1755, 0
        %v2063 = vsel %vm679, %v1760, 0
        %v2066 = vsel %vm679, %v1765, 0
        %v2069 = vsel %vm679, %v1770, 0
        %2071 = vmatprep.subr.bf16.mxu0 0
        %2072 = vmatpush1.bf16.msra.mxu0 %v1987
        %2073 = vmatprep.subr.bf16.mxu0 0
        %2074 = vmatpush1.bf16.msra.mxu0 %v1988
        %2075 = vmatprep.subr.bf16.mxu0 0
        %2076 = vmatpush1.bf16.msra.mxu0 %v1989
        %2077 = vmatprep.subr.bf16.mxu0 0
        %2078 = vmatpush1.bf16.msra.mxu0 %v1990
        %2079 = vmatprep.subr.bf16.mxu0 0
        %2080 = vmatpush1.bf16.msra.mxu0 %v1991
        %2081 = vmatprep.subr.bf16.mxu0 0
        %2082 = vmatpush1.bf16.msra.mxu0 %v1992
        %2083 = vmatprep.subr.bf16.mxu0 0
        %2084 = vmatpush1.bf16.msra.mxu0 %v1993
        %2085 = vmatprep.subr.bf16.mxu0 0
        %2086 = vmatpush1.bf16.msra.mxu0 %v1994
        %2087 = vmatprep.subr.bf16.mxu0 0
        %2088 = vmatpush1.bf16.msra.mxu0 %v1995
        %2089 = vmatprep.subr.bf16.mxu0 0
        %2090 = vmatpush1.bf16.msra.mxu0 %v1996
        %2091 = vmatprep.subr.bf16.mxu0 0
        %2092 = vmatpush1.bf16.msra.mxu0 %v1997
        %2093 = vmatprep.subr.bf16.mxu0 0
        %2094 = vmatpush1.bf16.msra.mxu0 %v1998
        %2095 = vmatprep.subr.bf16.mxu0 0
        %2096 = vmatpush1.bf16.msra.mxu0 %v1999
        %2097 = vmatprep.subr.bf16.mxu0 0
        %2098 = vmatpush1.bf16.msra.mxu0 %v2000
        %2099 = vmatprep.subr.bf16.mxu0 0
        %2100 = vmatpush1.bf16.msra.mxu0 %v2001
        %2101 = vmatprep.subr.bf16.mxu0 0
        %2102 = vmatpush1.bf16.msra.mxu0 %v2002
        %2103 = vmatprep.mubr.bf16.mxu0 %v1752
        %2104 = vmatmul.mubr.bf16.gmra.mrb[0].mxu0 %v1751
        %v2105 = vpop.f32.mrb[0].mxu0
        %v2106 = vadd.f32 0.0, %v2105
        %v2107 = vpop.f32.mrb[0].mxu0
        %v2108 = vpop.f32.mrb[0].mxu0
        %v2109 = vadd.f32 0.0, %v2108
        %v2110 = vpop.f32.mrb[0].mxu0
        %2111 = vmatprep.mubr.bf16.mxu0 %v1757
        %2112 = vmatmul.mubr.bf16.gmra.mrb[0].mxu0 %v1756
        %v2113 = vpop.f32.mrb[0].mxu0
        %v2114 = vadd.f32 0.0, %v2113
        %v2115 = vpop.f32.mrb[0].mxu0
        %v2116 = vpop.f32.mrb[0].mxu0
        %v2117 = vadd.f32 0.0, %v2116
        %v2118 = vpop.f32.mrb[0].mxu0
        %2119 = vmatprep.mubr.bf16.mxu0 %v1762
        %2120 = vmatmul.mubr.bf16.gmra.mrb[0].mxu0 %v1761
        %v2121 = vpop.f32.mrb[0].mxu0
        %v2122 = vadd.f32 0.0, %v2121
        %v2123 = vpop.f32.mrb[0].mxu0
        %v2124 = vpop.f32.mrb[0].mxu0
        %v2125 = vadd.f32 0.0, %v2124
        %v2126 = vpop.f32.mrb[0].mxu0
        %2127 = vmatprep.mubr.bf16.mxu0 %v1767
        %2128 = vmatmul.mubr.bf16.gmra.mrb[0].mxu0 %v1766
        %v2129 = vpop.f32.mrb[0].mxu0
        %v2130 = vadd.f32 0.0, %v2129
        %v2131 = vpop.f32.mrb[0].mxu0
        %v2132 = vpop.f32.mrb[0].mxu0
        %v2133 = vadd.f32 0.0, %v2132
        %v2134 = vpop.f32.mrb[0].mxu0
        %2135 = vdwg.mxu0
        %2136 = vmatprep.subr.bf16.mxu0 0
        %2137 = vmatpush1.bf16.msra.mxu0 %v2003
        %2138 = vmatprep.subr.bf16.mxu0 0
        %2139 = vmatpush1.bf16.msra.mxu0 %v2004
        %2140 = vmatprep.subr.bf16.mxu0 0
        %2141 = vmatpush1.bf16.msra.mxu0 %v2005
        %2142 = vmatprep.subr.bf16.mxu0 0
        %2143 = vmatpush1.bf16.msra.mxu0 %v2006
        %2144 = vmatprep.subr.bf16.mxu0 0
        %2145 = vmatpush1.bf16.msra.mxu0 %v2007
        %2146 = vmatprep.subr.bf16.mxu0 0
        %2147 = vmatpush1.bf16.msra.mxu0 %v2008
        %2148 = vmatprep.subr.bf16.mxu0 0
        %2149 = vmatpush1.bf16.msra.mxu0 %v2009
        %2150 = vmatprep.subr.bf16.mxu0 0
        %2151 = vmatpush1.bf16.msra.mxu0 %v2010
        %2152 = vmatprep.subr.bf16.mxu0 0
        %2153 = vmatpush1.bf16.msra.mxu0 %v2011
        %2154 = vmatprep.subr.bf16.mxu0 0
        %2155 = vmatpush1.bf16.msra.mxu0 %v2012
        %2156 = vmatprep.subr.bf16.mxu0 0
        %2157 = vmatpush1.bf16.msra.mxu0 %v2013
        %2158 = vmatprep.subr.bf16.mxu0 0
        %2159 = vmatpush1.bf16.msra.mxu0 %v2014
        %2160 = vmatprep.subr.bf16.mxu0 0
        %2161 = vmatpush1.bf16.msra.mxu0 %v2015
        %2162 = vmatprep.subr.bf16.mxu0 0
        %2163 = vmatpush1.bf16.msra.mxu0 %v2016
        %2164 = vmatprep.subr.bf16.mxu0 0
        %2165 = vmatpush1.bf16.msra.mxu0 %v2017
        %2166 = vmatprep.subr.bf16.mxu0 0
        %2167 = vmatpush1.bf16.msra.mxu0 %v2018
        %2168 = vmatprep.mubr.bf16.mxu0 %v1754
        %2169 = vmatmul.mubr.bf16.gmra.mrb[0].mxu0 %v1753
        %v2170 = vpop.f32.mrb[0].mxu0
        %v2171 = vadd.f32 %v2106, %v2170
        %v2172 = vpop.f32.mrb[0].mxu0
        %v2173 = vpop.f32.mrb[0].mxu0
        %v2174 = vadd.f32 %v2109, %v2173
        %v2175 = vpop.f32.mrb[0].mxu0
        %2176 = vmatprep.mubr.bf16.mxu0 %v1759
        %2177 = vmatmul.mubr.bf16.gmra.mrb[0].mxu0 %v1758
        %v2178 = vpop.f32.mrb[0].mxu0
        %v2179 = vadd.f32 %v2114, %v2178
        %v2180 = vpop.f32.mrb[0].mxu0
        %v2181 = vpop.f32.mrb[0].mxu0
        %v2182 = vadd.f32 %v2117, %v2181
        %v2183 = vpop.f32.mrb[0].mxu0
        %2184 = vmatprep.mubr.bf16.mxu0 %v1764
        %2185 = vmatmul.mubr.bf16.gmra.mrb[0].mxu0 %v1763
        %v2186 = vpop.f32.mrb[0].mxu0
        %v2187 = vadd.f32 %v2122, %v2186
        %v2188 = vpop.f32.mrb[0].mxu0
        %v2189 = vpop.f32.mrb[0].mxu0
        %v2190 = vadd.f32 %v2125, %v2189
        %v2191 = vpop.f32.mrb[0].mxu0
        %2192 = vmatprep.mubr.bf16.mxu0 %v1769
        %2193 = vmatmul.mubr.bf16.gmra.mrb[0].mxu0 %v1768
        %v2194 = vpop.f32.mrb[0].mxu0
        %v2195 = vadd.f32 %v2130, %v2194
        %v2196 = vpop.f32.mrb[0].mxu0
        %v2197 = vpop.f32.mrb[0].mxu0
        %v2198 = vadd.f32 %v2133, %v2197
        %v2199 = vpop.f32.mrb[0].mxu0
        %2200 = vdwg.mxu0
        %2201 = vmatprep.subr.bf16.mxu0 0
        %2202 = vmatpush1.bf16.msra.mxu0 %v2019
        %2203 = vmatprep.subr.bf16.mxu0 0
        %2204 = vmatpush1.bf16.msra.mxu0 %v2020
        %2205 = vmatprep.subr.bf16.mxu0 0
        %2206 = vmatpush1.bf16.msra.mxu0 %v2021
        %2207 = vmatprep.subr.bf16.mxu0 0
        %2208 = vmatpush1.bf16.msra.mxu0 %v2022
        %2209 = vmatprep.subr.bf16.mxu0 0
        %2210 = vmatpush1.bf16.msra.mxu0 0
        %2211 = vmatprep.subr.bf16.mxu0 0
        %2212 = vmatpush1.bf16.msra.mxu0 0
        %2213 = vmatprep.subr.bf16.mxu0 0
        %2214 = vmatpush1.bf16.msra.mxu0 0
        %2215 = vmatprep.subr.bf16.mxu0 0
        %2216 = vmatpush1.bf16.msra.mxu0 0
        %2217 = vmatprep.subr.bf16.mxu0 0
        %2218 = vmatpush1.bf16.msra.mxu0 0
        %2219 = vmatprep.subr.bf16.mxu0 0
        %2220 = vmatpush1.bf16.msra.mxu0 0
        %2221 = vmatprep.subr.bf16.mxu0 0
        %2222 = vmatpush1.bf16.msra.mxu0 0
        %2223 = vmatprep.subr.bf16.mxu0 0
        %2224 = vmatpush1.bf16.msra.mxu0 0
        %2225 = vmatprep.subr.bf16.mxu0 0
        %2226 = vmatpush1.bf16.msra.mxu0 0
        %2227 = vmatprep.subr.bf16.mxu0 0
        %2228 = vmatpush1.bf16.msra.mxu0 0
        %2229 = vmatprep.subr.bf16.mxu0 0
        %2230 = vmatpush1.bf16.msra.mxu0 0
        %2231 = vmatprep.subr.bf16.mxu0 0
        %2232 = vmatpush1.bf16.msra.mxu0 0
        %2233 = vmatprep.mubr.bf16.mxu0 0
        %2234 = vmatmul.mubr.bf16.gmra.mrb[0].mxu0 %v2060
        %v2235 = vpop.f32.mrb[0].mxu0
        %v2236 = vadd.f32 %v2171, %v2235
        %v2237 = vpop.f32.mrb[0].mxu0
        %v2238 = vpop.f32.mrb[0].mxu0
        %v2239 = vadd.f32 %v2174, %v2238
        %v2240 = vpop.f32.mrb[0].mxu0
        %2241 = vmatprep.mubr.bf16.mxu0 0
        %2242 = vmatmul.mubr.bf16.gmra.mrb[0].mxu0 %v2063
        %v2243 = vpop.f32.mrb[0].mxu0
        %v2244 = vadd.f32 %v2179, %v2243
        %v2245 = vpop.f32.mrb[0].mxu0
        %v2246 = vpop.f32.mrb[0].mxu0
        %v2247 = vadd.f32 %v2182, %v2246
        %v2248 = vpop.f32.mrb[0].mxu0
        %2249 = vmatprep.mubr.bf16.mxu0 0
        %2250 = vmatmul.mubr.bf16.gmra.mrb[0].mxu0 %v2066
        %v2251 = vpop.f32.mrb[0].mxu0
        %v2252 = vadd.f32 %v2187, %v2251
        %v2253 = vpop.f32.mrb[0].mxu0
        %v2254 = vpop.f32.mrb[0].mxu0
        %v2255 = vadd.f32 %v2190, %v2254
        %v2256 = vpop.f32.mrb[0].mxu0
        %2257 = vmatprep.mubr.bf16.mxu0 0
        %2258 = vmatmul.mubr.bf16.gmra.mrb[0].mxu0 %v2069
        %v2259 = vpop.f32.mrb[0].mxu0
        %v2260 = vadd.f32 %v2195, %v2259
        %v2261 = vpop.f32.mrb[0].mxu0
        %v2262 = vpop.f32.mrb[0].mxu0
        %v2263 = vadd.f32 %v2198, %v2262
        %v2264 = vpop.f32.mrb[0].mxu0
        %2265 = vdwg.mxu0
        %v2266 = vld [vmem:[#allocation13] sm:$0x1]
        %v2268 = vlaneseq
        %v2269 = vshrl.u32 %v2268, 7
        %v2270 = vsub.s32 0, %v2269
        %v2271 = vrot.slane %v2266, %v2270
        %v2273 = vmul.f32 %v2236, %v2271
        %v2274 = vmul.f32 %v2239, %v2271
        %v2275 = vmul.f32 %v2244, %v2271
        %v2276 = vmul.f32 %v2247, %v2271
        %v2277 = vmul.f32 %v2252, %v2271
        %v2278 = vmul.f32 %v2255, %v2271
        %v2279 = vmul.f32 %v2260, %v2271
        %v2280 = vmul.f32 %v2263, %v2271
        %v2281 = vld [vmem:[#allocation15] sm:$0x1]
        %v2283 = vlaneseq
        %v2284 = vshrl.u32 %v2283, 7
        %v2285 = vsub.s32 0, %v2284
        %v2286 = vrot.slane %v2281, %v2285
        %v2288 = vadd.f32 %v2273, %v2286
        %v2289 = vadd.f32 %v2274, %v2286
        %v2290 = vadd.f32 %v2275, %v2286
        %v2291 = vadd.f32 %v2276, %v2286
        %v2292 = vadd.f32 %v2277, %v2286
        %v2293 = vadd.f32 %v2278, %v2286
        %v2294 = vadd.f32 %v2279, %v2286
        %v2295 = vadd.f32 %v2280, %v2286
        %vm2296 = vcmp.gt.f32.partialorder %v2288, 0.0
        %vm2297 = vcmp.gt.f32.partialorder %v2289, 0.0
        %vm2298 = vcmp.gt.f32.partialorder %v2290, 0.0
        %vm2299 = vcmp.gt.f32.partialorder %v2291, 0.0
        %vm2300 = vcmp.gt.f32.partialorder %v2292, 0.0
        %vm2301 = vcmp.gt.f32.partialorder %v2293, 0.0
        %vm2302 = vcmp.gt.f32.partialorder %v2294, 0.0
        %vm2303 = vcmp.gt.f32.partialorder %v2295, 0.0
        %v2304 = vmul.f32 %v2288, 0.1
        %v2305 = vmul.f32 %v2289, 0.1
        %v2306 = vmul.f32 %v2290, 0.1
        %v2307 = vmul.f32 %v2291, 0.1
        %v2308 = vmul.f32 %v2292, 0.1
        %v2309 = vmul.f32 %v2293, 0.1
        %v2310 = vmul.f32 %v2294, 0.1
        %v2311 = vmul.f32 %v2295, 0.1
        %v2312 = vsel %vm2296, %v2288, %v2304
        %v2313 = vsel %vm2297, %v2289, %v2305
        %v2314 = vsel %vm2298, %v2290, %v2306
        %v2315 = vsel %vm2299, %v2291, %v2307
        %v2316 = vsel %vm2300, %v2292, %v2308
        %v2317 = vsel %vm2301, %v2293, %v2309
        %v2318 = vsel %vm2302, %v2294, %v2310
        %v2319 = vsel %vm2303, %v2295, %v2311
        %2320 = vst.msk [vmem:[%s1509 + $0x1] sm:$0xff] %vm679, %v2312
        %2321 = vst.msk [vmem:[%s1509 + $0x11] sm:$0xff] %vm679, %v2313
        %2322 = vst.msk [vmem:[%s1509 + $0x21] sm:$0xff] %vm679, %v2314
        %2323 = vst.msk [vmem:[%s1509 + $0x31] sm:$0xff] %vm679, %v2315
        %2324 = vst.msk [vmem:[%s1509 + $0x41] sm:$0xff] %vm679, %v2316
        %2325 = vst.msk [vmem:[%s1509 + $0x51] sm:$0xff] %vm679, %v2317
        %2326 = vst.msk [vmem:[%s1509 + $0x61] sm:$0xff] %vm679, %v2318
        %2327 = vst.msk [vmem:[%s1509 + $0x71] sm:$0xff] %vm679, %v2319
        %v2328 = vld [vmem:[#allocation2] ss:$2 sm:$0xf]
        %s2329 = scalar_lea.vmem [#allocation2], 32
        %v2330 = vld [vmem:[%s2329] ss:$2 sm:$0xf]
        %s2331 = scalar_lea.vmem [#allocation2], 64
        %v2332 = vld [vmem:[%s2331] ss:$2 sm:$0xf]
        %s2333 = scalar_lea.vmem [#allocation2], 96
        %v2334 = vld [vmem:[%s2333] ss:$2 sm:$0xf]
        %v2339 = vcombine.low %v2328, %v2330
        %v2340 = vcombine.low %v2332, %v2334
        %v2343 = vpack.c.bf16 %v2340, %v2339
        %v2344 = vld [vmem:[#allocation16] sm:$0xf]
        %v2345 = vld [vmem:[#allocation16 + $0x4] sm:$0xf]
        %v2346 = vld [vmem:[#allocation16 + $0x8] sm:$0xf]
        %v2347 = vld [vmem:[#allocation16 + $0xc] sm:$0xf]
        %v2348 = vld [vmem:[#allocation16 + $0x10] sm:$0xf]
        %v2349 = vld [vmem:[#allocation16 + $0x14] sm:$0xf]
        %v2350 = vld [vmem:[#allocation16 + $0x18] sm:$0xf]
        %v2351 = vld [vmem:[#allocation16 + $0x1c] sm:$0xf]
        %s2352 = scalar_lea.vmem [#allocation2], 1
        %v2353 = vld [vmem:[%s2352] ss:$2 sm:$0xf]
        %s2354 = scalar_lea.vmem [#allocation2], 33
        %v2355 = vld [vmem:[%s2354] ss:$2 sm:$0xf]
        %s2356 = scalar_lea.vmem [#allocation2], 65
        %v2357 = vld [vmem:[%s2356] ss:$2 sm:$0xf]
        %s2358 = scalar_lea.vmem [#allocation2], 97
        %v2359 = vld [vmem:[%s2358] ss:$2 sm:$0xf]
        %v2364 = vcombine.low %v2353, %v2355
        %v2365 = vcombine.low %v2357, %v2359
        %v2368 = vpack.c.bf16 %v2365, %v2364
        %v2369 = vld [vmem:[#allocation16 + $0x20] sm:$0xf]
        %v2370 = vld [vmem:[#allocation16 + $0x24] sm:$0xf]
        %v2371 = vld [vmem:[#allocation16 + $0x28] sm:$0xf]
        %v2372 = vld [vmem:[#allocation16 + $0x2c] sm:$0xf]
        %v2373 = vld [vmem:[#allocation16 + $0x30] sm:$0xf]
        %v2374 = vld [vmem:[#allocation16 + $0x34] sm:$0xf]
        %v2375 = vld [vmem:[#allocation16 + $0x38] sm:$0xf]
        %v2376 = vld [vmem:[#allocation16 + $0x3c] sm:$0xf]
        %v2385 = vunpack.c.l.b16 %v2369
        %v2386 = vunpack.c.l.b16 %v2370
        %v2387 = vunpack.c.l.b16 %v2371
        %v2388 = vunpack.c.l.b16 %v2372
        %v2389 = vunpack.c.l.b16 %v2373
        %v2390 = vunpack.c.l.b16 %v2374
        %v2391 = vunpack.c.l.b16 %v2375
        %v2392 = vunpack.c.l.b16 %v2376
        %v2393 = vpack.c.b16 %v2386, %v2385
        %v2394 = vpack.c.b16 %v2388, %v2387
        %v2395 = vpack.c.b16 %v2390, %v2389
        %v2396 = vpack.c.b16 %v2392, %v2391
        %v2402 = vsel %vm679, %v2368, 0
        %2404 = vmatprep.subr.bf16.mxu0 0
        %2405 = vmatpush1.bf16.msra.mxu0 %v2393
        %2406 = vmatprep.subr.bf16.mxu0 0
        %2407 = vmatpush1.bf16.msra.mxu0 %v2394
        %2408 = vmatprep.subr.bf16.mxu0 0
        %2409 = vmatpush1.bf16.msra.mxu0 %v2395
        %2410 = vmatprep.subr.bf16.mxu0 0
        %2411 = vmatpush1.bf16.msra.mxu0 %v2396
        %2412 = vmatprep.subr.bf16.mxu0 0
        %2413 = vmatpush1.bf16.msra.mxu0 0
        %2414 = vmatprep.subr.bf16.mxu0 0
        %2415 = vmatpush1.bf16.msra.mxu0 0
        %2416 = vmatprep.subr.bf16.mxu0 0
        %2417 = vmatpush1.bf16.msra.mxu0 0
        %2418 = vmatprep.subr.bf16.mxu0 0
        %2419 = vmatpush1.bf16.msra.mxu0 0
        %2420 = vmatprep.subr.bf16.mxu0 0
        %2421 = vmatpush1.bf16.msra.mxu0 0
        %2422 = vmatprep.subr.bf16.mxu0 0
        %2423 = vmatpush1.bf16.msra.mxu0 0
        %2424 = vmatprep.subr.bf16.mxu0 0
        %2425 = vmatpush1.bf16.msra.mxu0 0
        %2426 = vmatprep.subr.bf16.mxu0 0
        %2427 = vmatpush1.bf16.msra.mxu0 0
        %2428 = vmatprep.subr.bf16.mxu0 0
        %2429 = vmatpush1.bf16.msra.mxu0 0
        %2430 = vmatprep.subr.bf16.mxu0 0
        %2431 = vmatpush1.bf16.msra.mxu0 0
        %2432 = vmatprep.subr.bf16.mxu0 0
        %2433 = vmatpush1.bf16.msra.mxu0 0
        %2434 = vmatprep.subr.bf16.mxu0 0
        %2435 = vmatpush1.bf16.msra.mxu0 0
        %2436 = vmatprep.mubr.bf16.mxu0 0
        %2437 = vmatmul.mubr.bf16.gmra.mrb[0].mxu0 %v2402
        %v2438 = vpop.f32.mrb[0].mxu0
        %v2439 = vadd.f32 0.0, %v2438
        %v2440 = vpop.f32.mrb[0].mxu0
        %v2441 = vpop.f32.mrb[0].mxu0
        %v2442 = vadd.f32 0.0, %v2441
        %v2443 = vpop.f32.mrb[0].mxu0
        %2444 = vdwg.mxu0
        %v2453 = vunpack.c.l.b16 %v2344
        %v2454 = vunpack.c.l.b16 %v2345
        %v2455 = vunpack.c.l.b16 %v2346
        %v2456 = vunpack.c.l.b16 %v2347
        %v2457 = vunpack.c.l.b16 %v2348
        %v2458 = vunpack.c.l.b16 %v2349
        %v2459 = vunpack.c.l.b16 %v2350
        %v2460 = vunpack.c.l.b16 %v2351
        %v2461 = vpack.c.b16 %v2454, %v2453
        %v2462 = vpack.c.b16 %v2456, %v2455
        %v2463 = vpack.c.b16 %v2458, %v2457
        %v2464 = vpack.c.b16 %v2460, %v2459
        %v2470 = vsel %vm679, %v2343, 0
        %2472 = vmatprep.subr.bf16.mxu0 0
        %2473 = vmatpush1.bf16.msra.mxu0 %v2461
        %2474 = vmatprep.subr.bf16.mxu0 0
        %2475 = vmatpush1.bf16.msra.mxu0 %v2462
        %2476 = vmatprep.subr.bf16.mxu0 0
        %2477 = vmatpush1.bf16.msra.mxu0 %v2463
        %2478 = vmatprep.subr.bf16.mxu0 0
        %2479 = vmatpush1.bf16.msra.mxu0 %v2464
        %2480 = vmatprep.subr.bf16.mxu0 0
        %2481 = vmatpush1.bf16.msra.mxu0 0
        %2482 = vmatprep.subr.bf16.mxu0 0
        %2483 = vmatpush1.bf16.msra.mxu0 0
        %2484 = vmatprep.subr.bf16.mxu0 0
        %2485 = vmatpush1.bf16.msra.mxu0 0
        %2486 = vmatprep.subr.bf16.mxu0 0
        %2487 = vmatpush1.bf16.msra.mxu0 0
        %2488 = vmatprep.subr.bf16.mxu0 0
        %2489 = vmatpush1.bf16.msra.mxu0 0
        %2490 = vmatprep.subr.bf16.mxu0 0
        %2491 = vmatpush1.bf16.msra.mxu0 0
        %2492 = vmatprep.subr.bf16.mxu0 0
        %2493 = vmatpush1.bf16.msra.mxu0 0
        %2494 = vmatprep.subr.bf16.mxu0 0
        %2495 = vmatpush1.bf16.msra.mxu0 0
        %2496 = vmatprep.subr.bf16.mxu0 0
        %2497 = vmatpush1.bf16.msra.mxu0 0
        %2498 = vmatprep.subr.bf16.mxu0 0
        %2499 = vmatpush1.bf16.msra.mxu0 0
        %2500 = vmatprep.subr.bf16.mxu0 0
        %2501 = vmatpush1.bf16.msra.mxu0 0
        %2502 = vmatprep.subr.bf16.mxu0 0
        %2503 = vmatpush1.bf16.msra.mxu0 0
        %2504 = vmatprep.mubr.bf16.mxu0 0
        %2505 = vmatmul.mubr.bf16.gmra.mrb[0].mxu0 %v2470
        %v2506 = vpop.f32.mrb[0].mxu0
        %v2507 = vadd.f32 %v2439, %v2506
        %v2508 = vpop.f32.mrb[0].mxu0
        %v2509 = vpop.f32.mrb[0].mxu0
        %v2510 = vadd.f32 %v2442, %v2509
        %v2511 = vpop.f32.mrb[0].mxu0
        %2512 = vdwg.mxu0
        %s2513 = scalar_lea.vmem [#allocation2], 2
        %v2514 = vld [vmem:[%s2513] ss:$2 sm:$0xf]
        %s2515 = scalar_lea.vmem [#allocation2], 34
        %v2516 = vld [vmem:[%s2515] ss:$2 sm:$0xf]
        %s2517 = scalar_lea.vmem [#allocation2], 66
        %v2518 = vld [vmem:[%s2517] ss:$2 sm:$0xf]
        %s2519 = scalar_lea.vmem [#allocation2], 98
        %v2520 = vld [vmem:[%s2519] ss:$2 sm:$0xf]
        %v2525 = vcombine.low %v2514, %v2516
        %v2526 = vcombine.low %v2518, %v2520
        %v2529 = vpack.c.bf16 %v2526, %v2525
        %v2530 = vld [vmem:[#allocation16 + $0x40] sm:$0xf]
        %v2531 = vld [vmem:[#allocation16 + $0x44] sm:$0xf]
        %v2532 = vld [vmem:[#allocation16 + $0x48] sm:$0xf]
        %v2533 = vld [vmem:[#allocation16 + $0x4c] sm:$0xf]
        %v2534 = vld [vmem:[#allocation16 + $0x50] sm:$0xf]
        %v2535 = vld [vmem:[#allocation16 + $0x54] sm:$0xf]
        %v2536 = vld [vmem:[#allocation16 + $0x58] sm:$0xf]
        %v2537 = vld [vmem:[#allocation16 + $0x5c] sm:$0xf]
        %v2546 = vunpack.c.l.b16 %v2530
        %v2547 = vunpack.c.l.b16 %v2531
        %v2548 = vunpack.c.l.b16 %v2532
        %v2549 = vunpack.c.l.b16 %v2533
        %v2550 = vunpack.c.l.b16 %v2534
        %v2551 = vunpack.c.l.b16 %v2535
        %v2552 = vunpack.c.l.b16 %v2536
        %v2553 = vunpack.c.l.b16 %v2537
        %v2554 = vpack.c.b16 %v2547, %v2546
        %v2555 = vpack.c.b16 %v2549, %v2548
        %v2556 = vpack.c.b16 %v2551, %v2550
        %v2557 = vpack.c.b16 %v2553, %v2552
        %v2563 = vsel %vm679, %v2529, 0
        %2565 = vmatprep.subr.bf16.mxu0 0
        %2566 = vmatpush1.bf16.msra.mxu0 %v2554
        %2567 = vmatprep.subr.bf16.mxu0 0
        %2568 = vmatpush1.bf16.msra.mxu0 %v2555
        %2569 = vmatprep.subr.bf16.mxu0 0
        %2570 = vmatpush1.bf16.msra.mxu0 %v2556
        %2571 = vmatprep.subr.bf16.mxu0 0
        %2572 = vmatpush1.bf16.msra.mxu0 %v2557
        %2573 = vmatprep.subr.bf16.mxu0 0
        %2574 = vmatpush1.bf16.msra.mxu0 0
        %2575 = vmatprep.subr.bf16.mxu0 0
        %2576 = vmatpush1.bf16.msra.mxu0 0
        %2577 = vmatprep.subr.bf16.mxu0 0
        %2578 = vmatpush1.bf16.msra.mxu0 0
        %2579 = vmatprep.subr.bf16.mxu0 0
        %2580 = vmatpush1.bf16.msra.mxu0 0
        %2581 = vmatprep.subr.bf16.mxu0 0
        %2582 = vmatpush1.bf16.msra.mxu0 0
        %2583 = vmatprep.subr.bf16.mxu0 0
        %2584 = vmatpush1.bf16.msra.mxu0 0
        %2585 = vmatprep.subr.bf16.mxu0 0
        %2586 = vmatpush1.bf16.msra.mxu0 0
        %2587 = vmatprep.subr.bf16.mxu0 0
        %2588 = vmatpush1.bf16.msra.mxu0 0
        %2589 = vmatprep.subr.bf16.mxu0 0
        %2590 = vmatpush1.bf16.msra.mxu0 0
        %2591 = vmatprep.subr.bf16.mxu0 0
        %2592 = vmatpush1.bf16.msra.mxu0 0
        %2593 = vmatprep.subr.bf16.mxu0 0
        %2594 = vmatpush1.bf16.msra.mxu0 0
        %2595 = vmatprep.subr.bf16.mxu0 0
        %2596 = vmatpush1.bf16.msra.mxu0 0
        %2597 = vmatprep.mubr.bf16.mxu0 0
        %2598 = vmatmul.mubr.bf16.gmra.mrb[0].mxu0 %v2563
        %v2599 = vpop.f32.mrb[0].mxu0
        %v2600 = vadd.f32 0.0, %v2599
        %v2601 = vpop.f32.mrb[0].mxu0
        %v2602 = vpop.f32.mrb[0].mxu0
        %v2603 = vadd.f32 0.0, %v2602
        %v2604 = vpop.f32.mrb[0].mxu0
        %2605 = vdwg.mxu0
        %v2606 = vadd.f32 %v2507, %v2600
        %v2607 = vadd.f32 %v2510, %v2603
        %v2608 = vld [vmem:[%s1509] ss:$2 sm:$0xf]
        %s2609 = scalar_lea.vmem %s1509, 32 [#allocation2]
        %v2610 = vld [vmem:[%s2609] ss:$2 sm:$0xf]
        %s2611 = scalar_lea.vmem %s1509, 64 [#allocation2]
        %v2612 = vld [vmem:[%s2611] ss:$2 sm:$0xf]
        %s2613 = scalar_lea.vmem %s1509, 96 [#allocation2]
        %v2614 = vld [vmem:[%s2613] ss:$2 sm:$0xf]
        %v2619 = vcombine.low %v2608, %v2610
        %v2620 = vcombine.low %v2612, %v2614
        %v2623 = vpack.c.bf16 %v2620, %v2619
        %v2624 = vld [vmem:[#allocation16 + $0x60] sm:$0xf]
        %v2625 = vld [vmem:[#allocation16 + $0x64] sm:$0xf]
        %v2626 = vld [vmem:[#allocation16 + $0x68] sm:$0xf]
        %v2627 = vld [vmem:[#allocation16 + $0x6c] sm:$0xf]
        %v2628 = vld [vmem:[#allocation16 + $0x70] sm:$0xf]
        %v2629 = vld [vmem:[#allocation16 + $0x74] sm:$0xf]
        %v2630 = vld [vmem:[#allocation16 + $0x78] sm:$0xf]
        %v2631 = vld [vmem:[#allocation16 + $0x7c] sm:$0xf]
        %v2640 = vunpack.c.l.b16 %v2624
        %v2641 = vunpack.c.l.b16 %v2625
        %v2642 = vunpack.c.l.b16 %v2626
        %v2643 = vunpack.c.l.b16 %v2627
        %v2644 = vunpack.c.l.b16 %v2628
        %v2645 = vunpack.c.l.b16 %v2629
        %v2646 = vunpack.c.l.b16 %v2630
        %v2647 = vunpack.c.l.b16 %v2631
        %v2648 = vpack.c.b16 %v2641, %v2640
        %v2649 = vpack.c.b16 %v2643, %v2642
        %v2650 = vpack.c.b16 %v2645, %v2644
        %v2651 = vpack.c.b16 %v2647, %v2646
        %v2657 = vsel %vm679, %v2623, 0
        %2659 = vmatprep.subr.bf16.mxu0 0
        %2660 = vmatpush1.bf16.msra.mxu0 %v2648
        %2661 = vmatprep.subr.bf16.mxu0 0
        %2662 = vmatpush1.bf16.msra.mxu0 %v2649
        %2663 = vmatprep.subr.bf16.mxu0 0
        %2664 = vmatpush1.bf16.msra.mxu0 %v2650
        %2665 = vmatprep.subr.bf16.mxu0 0
        %2666 = vmatpush1.bf16.msra.mxu0 %v2651
        %2667 = vmatprep.subr.bf16.mxu0 0
        %2668 = vmatpush1.bf16.msra.mxu0 0
        %2669 = vmatprep.subr.bf16.mxu0 0
        %2670 = vmatpush1.bf16.msra.mxu0 0
        %2671 = vmatprep.subr.bf16.mxu0 0
        %2672 = vmatpush1.bf16.msra.mxu0 0
        %2673 = vmatprep.subr.bf16.mxu0 0
        %2674 = vmatpush1.bf16.msra.mxu0 0
        %2675 = vmatprep.subr.bf16.mxu0 0
        %2676 = vmatpush1.bf16.msra.mxu0 0
        %2677 = vmatprep.subr.bf16.mxu0 0
        %2678 = vmatpush1.bf16.msra.mxu0 0
        %2679 = vmatprep.subr.bf16.mxu0 0
        %2680 = vmatpush1.bf16.msra.mxu0 0
        %2681 = vmatprep.subr.bf16.mxu0 0
        %2682 = vmatpush1.bf16.msra.mxu0 0
        %2683 = vmatprep.subr.bf16.mxu0 0
        %2684 = vmatpush1.bf16.msra.mxu0 0
        %2685 = vmatprep.subr.bf16.mxu0 0
        %2686 = vmatpush1.bf16.msra.mxu0 0
        %2687 = vmatprep.subr.bf16.mxu0 0
        %2688 = vmatpush1.bf16.msra.mxu0 0
        %2689 = vmatprep.subr.bf16.mxu0 0
        %2690 = vmatpush1.bf16.msra.mxu0 0
        %2691 = vmatprep.mubr.bf16.mxu0 0
        %2692 = vmatmul.mubr.bf16.gmra.mrb[0].mxu0 %v2657
        %v2693 = vpop.f32.mrb[0].mxu0
        %v2694 = vadd.f32 0.0, %v2693
        %v2695 = vpop.f32.mrb[0].mxu0
        %v2696 = vpop.f32.mrb[0].mxu0
        %v2697 = vadd.f32 0.0, %v2696
        %v2698 = vpop.f32.mrb[0].mxu0
        %2699 = vdwg.mxu0
        %v2700 = vadd.f32 %v2606, %v2694
        %v2701 = vadd.f32 %v2607, %v2697
        %s2702 = scalar_lea.vmem %s1509, 1 [#allocation2]
        %v2703 = vld [vmem:[%s2702] ss:$2 sm:$0xf]
        %s2704 = scalar_lea.vmem %s1509, 33 [#allocation2]
        %v2705 = vld [vmem:[%s2704] ss:$2 sm:$0xf]
        %s2706 = scalar_lea.vmem %s1509, 65 [#allocation2]
        %v2707 = vld [vmem:[%s2706] ss:$2 sm:$0xf]
        %s2708 = scalar_lea.vmem %s1509, 97 [#allocation2]
        %v2709 = vld [vmem:[%s2708] ss:$2 sm:$0xf]
        %v2714 = vcombine.low %v2703, %v2705
        %v2715 = vcombine.low %v2707, %v2709
        %v2718 = vpack.c.bf16 %v2715, %v2714
        %v2719 = vld [vmem:[#allocation16 + $0x80] sm:$0xf]
        %v2720 = vld [vmem:[#allocation16 + $0x84] sm:$0xf]
        %v2721 = vld [vmem:[#allocation16 + $0x88] sm:$0xf]
        %v2722 = vld [vmem:[#allocation16 + $0x8c] sm:$0xf]
        %v2723 = vld [vmem:[#allocation16 + $0x90] sm:$0xf]
        %v2724 = vld [vmem:[#allocation16 + $0x94] sm:$0xf]
        %v2725 = vld [vmem:[#allocation16 + $0x98] sm:$0xf]
        %v2726 = vld [vmem:[#allocation16 + $0x9c] sm:$0xf]
        %v2735 = vunpack.c.l.b16 %v2719
        %v2736 = vunpack.c.l.b16 %v2720
        %v2737 = vunpack.c.l.b16 %v2721
        %v2738 = vunpack.c.l.b16 %v2722
        %v2739 = vunpack.c.l.b16 %v2723
        %v2740 = vunpack.c.l.b16 %v2724
        %v2741 = vunpack.c.l.b16 %v2725
        %v2742 = vunpack.c.l.b16 %v2726
        %v2743 = vpack.c.b16 %v2736, %v2735
        %v2744 = vpack.c.b16 %v2738, %v2737
        %v2745 = vpack.c.b16 %v2740, %v2739
        %v2746 = vpack.c.b16 %v2742, %v2741
        %v2752 = vsel %vm679, %v2718, 0
        %2754 = vmatprep.subr.bf16.mxu0 0
        %2755 = vmatpush1.bf16.msra.mxu0 %v2743
        %2756 = vmatprep.subr.bf16.mxu0 0
        %2757 = vmatpush1.bf16.msra.mxu0 %v2744
        %2758 = vmatprep.subr.bf16.mxu0 0
        %2759 = vmatpush1.bf16.msra.mxu0 %v2745
        %2760 = vmatprep.subr.bf16.mxu0 0
        %2761 = vmatpush1.bf16.msra.mxu0 %v2746
        %2762 = vmatprep.subr.bf16.mxu0 0
        %2763 = vmatpush1.bf16.msra.mxu0 0
        %2764 = vmatprep.subr.bf16.mxu0 0
        %2765 = vmatpush1.bf16.msra.mxu0 0
        %2766 = vmatprep.subr.bf16.mxu0 0
        %2767 = vmatpush1.bf16.msra.mxu0 0
        %2768 = vmatprep.subr.bf16.mxu0 0
        %2769 = vmatpush1.bf16.msra.mxu0 0
        %2770 = vmatprep.subr.bf16.mxu0 0
        %2771 = vmatpush1.bf16.msra.mxu0 0
        %2772 = vmatprep.subr.bf16.mxu0 0
        %2773 = vmatpush1.bf16.msra.mxu0 0
        %2774 = vmatprep.subr.bf16.mxu0 0
        %2775 = vmatpush1.bf16.msra.mxu0 0
        %2776 = vmatprep.subr.bf16.mxu0 0
        %2777 = vmatpush1.bf16.msra.mxu0 0
        %2778 = vmatprep.subr.bf16.mxu0 0
        %2779 = vmatpush1.bf16.msra.mxu0 0
        %2780 = vmatprep.subr.bf16.mxu0 0
        %2781 = vmatpush1.bf16.msra.mxu0 0
        %2782 = vmatprep.subr.bf16.mxu0 0
        %2783 = vmatpush1.bf16.msra.mxu0 0
        %2784 = vmatprep.subr.bf16.mxu0 0
        %2785 = vmatpush1.bf16.msra.mxu0 0
        %2786 = vmatprep.mubr.bf16.mxu0 0
        %2787 = vmatmul.mubr.bf16.gmra.mrb[0].mxu0 %v2752
        %v2788 = vpop.f32.mrb[0].mxu0
        %v2789 = vadd.f32 0.0, %v2788
        %v2790 = vpop.f32.mrb[0].mxu0
        %v2791 = vpop.f32.mrb[0].mxu0
        %v2792 = vadd.f32 0.0, %v2791
        %v2793 = vpop.f32.mrb[0].mxu0
        %2794 = vdwg.mxu0
        %v2795 = vadd.f32 %v2700, %v2789
        %v2796 = vadd.f32 %v2701, %v2792
        %s2797 = scalar_lea.vmem %s1509, 2 [#allocation2]
        %v2798 = vld [vmem:[%s2797] ss:$2 sm:$0xf]
        %s2799 = scalar_lea.vmem %s1509, 34 [#allocation2]
        %v2800 = vld [vmem:[%s2799] ss:$2 sm:$0xf]
        %s2801 = scalar_lea.vmem %s1509, 66 [#allocation2]
        %v2802 = vld [vmem:[%s2801] ss:$2 sm:$0xf]
        %s2803 = scalar_lea.vmem %s1509, 98 [#allocation2]
        %v2804 = vld [vmem:[%s2803] ss:$2 sm:$0xf]
        %v2809 = vcombine.low %v2798, %v2800
        %v2810 = vcombine.low %v2802, %v2804
        %v2813 = vpack.c.bf16 %v2810, %v2809
        %v2814 = vld [vmem:[#allocation16 + $0xa0] sm:$0xf]
        %v2815 = vld [vmem:[#allocation16 + $0xa4] sm:$0xf]
        %v2816 = vld [vmem:[#allocation16 + $0xa8] sm:$0xf]
        %v2817 = vld [vmem:[#allocation16 + $0xac] sm:$0xf]
        %v2818 = vld [vmem:[#allocation16 + $0xb0] sm:$0xf]
        %v2819 = vld [vmem:[#allocation16 + $0xb4] sm:$0xf]
        %v2820 = vld [vmem:[#allocation16 + $0xb8] sm:$0xf]
        %v2821 = vld [vmem:[#allocation16 + $0xbc] sm:$0xf]
        %v2830 = vunpack.c.l.b16 %v2814
        %v2831 = vunpack.c.l.b16 %v2815
        %v2832 = vunpack.c.l.b16 %v2816
        %v2833 = vunpack.c.l.b16 %v2817
        %v2834 = vunpack.c.l.b16 %v2818
        %v2835 = vunpack.c.l.b16 %v2819
        %v2836 = vunpack.c.l.b16 %v2820
        %v2837 = vunpack.c.l.b16 %v2821
        %v2838 = vpack.c.b16 %v2831, %v2830
        %v2839 = vpack.c.b16 %v2833, %v2832
        %v2840 = vpack.c.b16 %v2835, %v2834
        %v2841 = vpack.c.b16 %v2837, %v2836
        %v2847 = vsel %vm679, %v2813, 0
        %2849 = vmatprep.subr.bf16.mxu0 0
        %2850 = vmatpush1.bf16.msra.mxu0 %v2838
        %2851 = vmatprep.subr.bf16.mxu0 0
        %2852 = vmatpush1.bf16.msra.mxu0 %v2839
        %2853 = vmatprep.subr.bf16.mxu0 0
        %2854 = vmatpush1.bf16.msra.mxu0 %v2840
        %2855 = vmatprep.subr.bf16.mxu0 0
        %2856 = vmatpush1.bf16.msra.mxu0 %v2841
        %2857 = vmatprep.subr.bf16.mxu0 0
        %2858 = vmatpush1.bf16.msra.mxu0 0
        %2859 = vmatprep.subr.bf16.mxu0 0
        %2860 = vmatpush1.bf16.msra.mxu0 0
        %2861 = vmatprep.subr.bf16.mxu0 0
        %2862 = vmatpush1.bf16.msra.mxu0 0
        %2863 = vmatprep.subr.bf16.mxu0 0
        %2864 = vmatpush1.bf16.msra.mxu0 0
        %2865 = vmatprep.subr.bf16.mxu0 0
        %2866 = vmatpush1.bf16.msra.mxu0 0
        %2867 = vmatprep.subr.bf16.mxu0 0
        %2868 = vmatpush1.bf16.msra.mxu0 0
        %2869 = vmatprep.subr.bf16.mxu0 0
        %2870 = vmatpush1.bf16.msra.mxu0 0
        %2871 = vmatprep.subr.bf16.mxu0 0
        %2872 = vmatpush1.bf16.msra.mxu0 0
        %2873 = vmatprep.subr.bf16.mxu0 0
        %2874 = vmatpush1.bf16.msra.mxu0 0
        %2875 = vmatprep.subr.bf16.mxu0 0
        %2876 = vmatpush1.bf16.msra.mxu0 0
        %2877 = vmatprep.subr.bf16.mxu0 0
        %2878 = vmatpush1.bf16.msra.mxu0 0
        %2879 = vmatprep.subr.bf16.mxu0 0
        %2880 = vmatpush1.bf16.msra.mxu0 0
        %2881 = vmatprep.mubr.bf16.mxu0 0
        %2882 = vmatmul.mubr.bf16.gmra.mrb[0].mxu0 %v2847
        %v2883 = vpop.f32.mrb[0].mxu0
        %v2884 = vadd.f32 0.0, %v2883
        %v2885 = vpop.f32.mrb[0].mxu0
        %v2886 = vpop.f32.mrb[0].mxu0
        %v2887 = vadd.f32 0.0, %v2886
        %v2888 = vpop.f32.mrb[0].mxu0
        %2889 = vdwg.mxu0
        %v2890 = vadd.f32 %v2795, %v2884
        %v2891 = vadd.f32 %v2796, %v2887
        %v2892 = vld [vmem:[%s1566] ss:$2 sm:$0xf]
        %s2893 = scalar_lea.vmem %s1566, 32 [#allocation2]
        %v2894 = vld [vmem:[%s2893] ss:$2 sm:$0xf]
        %s2895 = scalar_lea.vmem %s1566, 64 [#allocation2]
        %v2896 = vld [vmem:[%s2895] ss:$2 sm:$0xf]
        %s2897 = scalar_lea.vmem %s1566, 96 [#allocation2]
        %v2898 = vld [vmem:[%s2897] ss:$2 sm:$0xf]
        %v2903 = vcombine.low %v2892, %v2894
        %v2904 = vcombine.low %v2896, %v2898
        %v2907 = vpack.c.bf16 %v2904, %v2903
        %v2908 = vld [vmem:[#allocation16 + $0xc0] sm:$0xf]
        %v2909 = vld [vmem:[#allocation16 + $0xc4] sm:$0xf]
        %v2910 = vld [vmem:[#allocation16 + $0xc8] sm:$0xf]
        %v2911 = vld [vmem:[#allocation16 + $0xcc] sm:$0xf]
        %v2912 = vld [vmem:[#allocation16 + $0xd0] sm:$0xf]
        %v2913 = vld [vmem:[#allocation16 + $0xd4] sm:$0xf]
        %v2914 = vld [vmem:[#allocation16 + $0xd8] sm:$0xf]
        %v2915 = vld [vmem:[#allocation16 + $0xdc] sm:$0xf]
        %v2924 = vunpack.c.l.b16 %v2908
        %v2925 = vunpack.c.l.b16 %v2909
        %v2926 = vunpack.c.l.b16 %v2910
        %v2927 = vunpack.c.l.b16 %v2911
        %v2928 = vunpack.c.l.b16 %v2912
        %v2929 = vunpack.c.l.b16 %v2913
        %v2930 = vunpack.c.l.b16 %v2914
        %v2931 = vunpack.c.l.b16 %v2915
        %v2932 = vpack.c.b16 %v2925, %v2924
        %v2933 = vpack.c.b16 %v2927, %v2926
        %v2934 = vpack.c.b16 %v2929, %v2928
        %v2935 = vpack.c.b16 %v2931, %v2930
        %v2941 = vsel %vm679, %v2907, 0
        %2943 = vmatprep.subr.bf16.mxu0 0
        %2944 = vmatpush1.bf16.msra.mxu0 %v2932
        %2945 = vmatprep.subr.bf16.mxu0 0
        %2946 = vmatpush1.bf16.msra.mxu0 %v2933
        %2947 = vmatprep.subr.bf16.mxu0 0
        %2948 = vmatpush1.bf16.msra.mxu0 %v2934
        %2949 = vmatprep.subr.bf16.mxu0 0
        %2950 = vmatpush1.bf16.msra.mxu0 %v2935
        %2951 = vmatprep.subr.bf16.mxu0 0
        %2952 = vmatpush1.bf16.msra.mxu0 0
        %2953 = vmatprep.subr.bf16.mxu0 0
        %2954 = vmatpush1.bf16.msra.mxu0 0
        %2955 = vmatprep.subr.bf16.mxu0 0
        %2956 = vmatpush1.bf16.msra.mxu0 0
        %2957 = vmatprep.subr.bf16.mxu0 0
        %2958 = vmatpush1.bf16.msra.mxu0 0
        %2959 = vmatprep.subr.bf16.mxu0 0
        %2960 = vmatpush1.bf16.msra.mxu0 0
        %2961 = vmatprep.subr.bf16.mxu0 0
        %2962 = vmatpush1.bf16.msra.mxu0 0
        %2963 = vmatprep.subr.bf16.mxu0 0
        %2964 = vmatpush1.bf16.msra.mxu0 0
        %2965 = vmatprep.subr.bf16.mxu0 0
        %2966 = vmatpush1.bf16.msra.mxu0 0
        %2967 = vmatprep.subr.bf16.mxu0 0
        %2968 = vmatpush1.bf16.msra.mxu0 0
        %2969 = vmatprep.subr.bf16.mxu0 0
        %2970 = vmatpush1.bf16.msra.mxu0 0
        %2971 = vmatprep.subr.bf16.mxu0 0
        %2972 = vmatpush1.bf16.msra.mxu0 0
        %2973 = vmatprep.subr.bf16.mxu0 0
        %2974 = vmatpush1.bf16.msra.mxu0 0
        %2975 = vmatprep.mubr.bf16.mxu0 0
        %2976 = vmatmul.mubr.bf16.gmra.mrb[0].mxu0 %v2941
        %v2977 = vpop.f32.mrb[0].mxu0
        %v2978 = vadd.f32 0.0, %v2977
        %v2979 = vpop.f32.mrb[0].mxu0
        %v2980 = vpop.f32.mrb[0].mxu0
        %v2981 = vadd.f32 0.0, %v2980
        %v2982 = vpop.f32.mrb[0].mxu0
        %2983 = vdwg.mxu0
        %v2984 = vadd.f32 %v2890, %v2978
        %v2985 = vadd.f32 %v2891, %v2981
        %s2986 = scalar_lea.vmem %s1566, 1 [#allocation2]
        %v2987 = vld [vmem:[%s2986] ss:$2 sm:$0xf]
        %s2988 = scalar_lea.vmem %s1566, 33 [#allocation2]
        %v2989 = vld [vmem:[%s2988] ss:$2 sm:$0xf]
        %s2990 = scalar_lea.vmem %s1566, 65 [#allocation2]
        %v2991 = vld [vmem:[%s2990] ss:$2 sm:$0xf]
        %s2992 = scalar_lea.vmem %s1566, 97 [#allocation2]
        %v2993 = vld [vmem:[%s2992] ss:$2 sm:$0xf]
        %v2998 = vcombine.low %v2987, %v2989
        %v2999 = vcombine.low %v2991, %v2993
        %v3002 = vpack.c.bf16 %v2999, %v2998
        %v3003 = vld [vmem:[#allocation16 + $0xe0] sm:$0xf]
        %v3004 = vld [vmem:[#allocation16 + $0xe4] sm:$0xf]
        %v3005 = vld [vmem:[#allocation16 + $0xe8] sm:$0xf]
        %v3006 = vld [vmem:[#allocation16 + $0xec] sm:$0xf]
        %v3007 = vld [vmem:[#allocation16 + $0xf0] sm:$0xf]
        %v3008 = vld [vmem:[#allocation16 + $0xf4] sm:$0xf]
        %v3009 = vld [vmem:[#allocation16 + $0xf8] sm:$0xf]
        %v3010 = vld [vmem:[#allocation16 + $0xfc] sm:$0xf]
        %v3019 = vunpack.c.l.b16 %v3003
        %v3020 = vunpack.c.l.b16 %v3004
        %v3021 = vunpack.c.l.b16 %v3005
        %v3022 = vunpack.c.l.b16 %v3006
        %v3023 = vunpack.c.l.b16 %v3007
        %v3024 = vunpack.c.l.b16 %v3008
        %v3025 = vunpack.c.l.b16 %v3009
        %v3026 = vunpack.c.l.b16 %v3010
        %v3027 = vpack.c.b16 %v3020, %v3019
        %v3028 = vpack.c.b16 %v3022, %v3021
        %v3029 = vpack.c.b16 %v3024, %v3023
        %v3030 = vpack.c.b16 %v3026, %v3025
        %v3036 = vsel %vm679, %v3002, 0
        %3038 = vmatprep.subr.bf16.mxu0 0
        %3039 = vmatpush1.bf16.msra.mxu0 %v3027
        %3040 = vmatprep.subr.bf16.mxu0 0
        %3041 = vmatpush1.bf16.msra.mxu0 %v3028
        %3042 = vmatprep.subr.bf16.mxu0 0
        %3043 = vmatpush1.bf16.msra.mxu0 %v3029
        %3044 = vmatprep.subr.bf16.mxu0 0
        %3045 = vmatpush1.bf16.msra.mxu0 %v3030
        %3046 = vmatprep.subr.bf16.mxu0 0
        %3047 = vmatpush1.bf16.msra.mxu0 0
        %3048 = vmatprep.subr.bf16.mxu0 0
        %3049 = vmatpush1.bf16.msra.mxu0 0
        %3050 = vmatprep.subr.bf16.mxu0 0
        %3051 = vmatpush1.bf16.msra.mxu0 0
        %3052 = vmatprep.subr.bf16.mxu0 0
        %3053 = vmatpush1.bf16.msra.mxu0 0
        %3054 = vmatprep.subr.bf16.mxu0 0
        %3055 = vmatpush1.bf16.msra.mxu0 0
        %3056 = vmatprep.subr.bf16.mxu0 0
        %3057 = vmatpush1.bf16.msra.mxu0 0
        %3058 = vmatprep.subr.bf16.mxu0 0
        %3059 = vmatpush1.bf16.msra.mxu0 0
        %3060 = vmatprep.subr.bf16.mxu0 0
        %3061 = vmatpush1.bf16.msra.mxu0 0
        %3062 = vmatprep.subr.bf16.mxu0 0
        %3063 = vmatpush1.bf16.msra.mxu0 0
        %3064 = vmatprep.subr.bf16.mxu0 0
        %3065 = vmatpush1.bf16.msra.mxu0 0
        %3066 = vmatprep.subr.bf16.mxu0 0
        %3067 = vmatpush1.bf16.msra.mxu0 0
        %3068 = vmatprep.subr.bf16.mxu0 0
        %3069 = vmatpush1.bf16.msra.mxu0 0
        %3070 = vmatprep.mubr.bf16.mxu0 0
        %3071 = vmatmul.mubr.bf16.gmra.mrb[0].mxu0 %v3036
        %v3072 = vpop.f32.mrb[0].mxu0
        %v3073 = vadd.f32 0.0, %v3072
        %v3074 = vpop.f32.mrb[0].mxu0
        %v3075 = vpop.f32.mrb[0].mxu0
        %v3076 = vadd.f32 0.0, %v3075
        %v3077 = vpop.f32.mrb[0].mxu0
        %3078 = vdwg.mxu0
        %v3079 = vadd.f32 %v2984, %v3073
        %v3080 = vadd.f32 %v2985, %v3076
        %s3081 = scalar_lea.vmem %s1566, 2 [#allocation2]
        %v3082 = vld [vmem:[%s3081] ss:$2 sm:$0xf]
        %s3083 = scalar_lea.vmem %s1566, 34 [#allocation2]
        %v3084 = vld [vmem:[%s3083] ss:$2 sm:$0xf]
        %s3085 = scalar_lea.vmem %s1566, 66 [#allocation2]
        %v3086 = vld [vmem:[%s3085] ss:$2 sm:$0xf]
        %s3087 = scalar_lea.vmem %s1566, 98 [#allocation2]
        %v3088 = vld [vmem:[%s3087] ss:$2 sm:$0xf]
        %v3093 = vcombine.low %v3082, %v3084
        %v3094 = vcombine.low %v3086, %v3088
        %v3097 = vpack.c.bf16 %v3094, %v3093
        %v3098 = vld [vmem:[#allocation16 + $0x100] sm:$0xf]
        %v3099 = vld [vmem:[#allocation16 + $0x104] sm:$0xf]
        %v3100 = vld [vmem:[#allocation16 + $0x108] sm:$0xf]
        %v3101 = vld [vmem:[#allocation16 + $0x10c] sm:$0xf]
        %v3102 = vld [vmem:[#allocation16 + $0x110] sm:$0xf]
        %v3103 = vld [vmem:[#allocation16 + $0x114] sm:$0xf]
        %v3104 = vld [vmem:[#allocation16 + $0x118] sm:$0xf]
        %v3105 = vld [vmem:[#allocation16 + $0x11c] sm:$0xf]
        %v3114 = vunpack.c.l.b16 %v3098
        %v3115 = vunpack.c.l.b16 %v3099
        %v3116 = vunpack.c.l.b16 %v3100
        %v3117 = vunpack.c.l.b16 %v3101
        %v3118 = vunpack.c.l.b16 %v3102
        %v3119 = vunpack.c.l.b16 %v3103
        %v3120 = vunpack.c.l.b16 %v3104
        %v3121 = vunpack.c.l.b16 %v3105
        %v3122 = vpack.c.b16 %v3115, %v3114
        %v3123 = vpack.c.b16 %v3117, %v3116
        %v3124 = vpack.c.b16 %v3119, %v3118
        %v3125 = vpack.c.b16 %v3121, %v3120
        %v3131 = vsel %vm679, %v3097, 0
        %3133 = vmatprep.subr.bf16.mxu0 0
        %3134 = vmatpush1.bf16.msra.mxu0 %v3122
        %3135 = vmatprep.subr.bf16.mxu0 0
        %3136 = vmatpush1.bf16.msra.mxu0 %v3123
        %3137 = vmatprep.subr.bf16.mxu0 0
        %3138 = vmatpush1.bf16.msra.mxu0 %v3124
        %3139 = vmatprep.subr.bf16.mxu0 0
        %3140 = vmatpush1.bf16.msra.mxu0 %v3125
        %3141 = vmatprep.subr.bf16.mxu0 0
        %3142 = vmatpush1.bf16.msra.mxu0 0
        %3143 = vmatprep.subr.bf16.mxu0 0
        %3144 = vmatpush1.bf16.msra.mxu0 0
        %3145 = vmatprep.subr.bf16.mxu0 0
        %3146 = vmatpush1.bf16.msra.mxu0 0
        %3147 = vmatprep.subr.bf16.mxu0 0
        %3148 = vmatpush1.bf16.msra.mxu0 0
        %3149 = vmatprep.subr.bf16.mxu0 0
        %3150 = vmatpush1.bf16.msra.mxu0 0
        %3151 = vmatprep.subr.bf16.mxu0 0
        %3152 = vmatpush1.bf16.msra.mxu0 0
        %3153 = vmatprep.subr.bf16.mxu0 0
        %3154 = vmatpush1.bf16.msra.mxu0 0
        %3155 = vmatprep.subr.bf16.mxu0 0
        %3156 = vmatpush1.bf16.msra.mxu0 0
        %3157 = vmatprep.subr.bf16.mxu0 0
        %3158 = vmatpush1.bf16.msra.mxu0 0
        %3159 = vmatprep.subr.bf16.mxu0 0
        %3160 = vmatpush1.bf16.msra.mxu0 0
        %3161 = vmatprep.subr.bf16.mxu0 0
        %3162 = vmatpush1.bf16.msra.mxu0 0
        %3163 = vmatprep.subr.bf16.mxu0 0
        %3164 = vmatpush1.bf16.msra.mxu0 0
        %3165 = vmatprep.mubr.bf16.mxu0 0
        %3166 = vmatmul.mubr.bf16.gmra.mrb[0].mxu0 %v3131
        %v3167 = vpop.f32.mrb[0].mxu0
        %v3168 = vadd.f32 0.0, %v3167
        %v3169 = vpop.f32.mrb[0].mxu0
        %v3170 = vpop.f32.mrb[0].mxu0
        %v3171 = vadd.f32 0.0, %v3170
        %v3172 = vpop.f32.mrb[0].mxu0
        %3173 = vdwg.mxu0
        %v3174 = vadd.f32 %v3079, %v3168
        %v3175 = vadd.f32 %v3080, %v3171
        %v3176 = vld [vmem:[#allocation18] sm:$0x1]
        %v3178 = vlaneseq
        %v3179 = vshrl.u32 %v3178, 7
        %v3180 = vsub.s32 0, %v3179
        %v3181 = vrot.slane %v3176, %v3180
        %v3183 = vmul.f32 %v3174, %v3181
        %v3184 = vmul.f32 %v3175, %v3181
        %v3185 = vld [vmem:[#allocation19] sm:$0x1]
        %v3187 = vlaneseq
        %v3188 = vshrl.u32 %v3187, 7
        %v3189 = vsub.s32 0, %v3188
        %v3190 = vrot.slane %v3185, %v3189
        %v3192 = vadd.f32 %v3183, %v3190
        %v3193 = vadd.f32 %v3184, %v3190
        %vm3194 = vcmp.gt.f32.partialorder %v3192, 0.0
        %vm3195 = vcmp.gt.f32.partialorder %v3193, 0.0
        %v3196 = vmul.f32 %v3192, 0.1
        %v3197 = vmul.f32 %v3193, 0.1
        %v3198 = vsel %vm3194, %v3192, %v3196
        %v3199 = vsel %vm3195, %v3193, %v3197
        %v3202 = vcombine.high %v3198, %v3198
        %v3203 = vcombine.high %v3199, %v3199
        %s3206 = scalar_lea.vmem [#allocation3], 8
        %3207 = vst [vmem:[%s3206 + $0x1] sm:$0xf] %v3198
        %3208 = vst [vmem:[%s3206 + $0x9] sm:$0xf] %v3202
        %3209 = vst [vmem:[%s3206 + $0x11] sm:$0xf] %v3199
        %3210 = vst [vmem:[%s3206 + $0x19] sm:$0xf] %v3203
        %v3211 = vld [vmem:[#allocation3] sm:$0xf]
        %v3212 = vld [vmem:[#allocation3 + $0x8] sm:$0xf]
        %v3213 = vld [vmem:[#allocation3 + $0x10] sm:$0xf]
        %v3214 = vld [vmem:[#allocation3 + $0x18] sm:$0xf]
        %v3219 = vcombine.low %v3211, %v3212
        %v3220 = vcombine.low %v3213, %v3214
        %v3223 = vpack.c.bf16 %v3220, %v3219
        %v3224 = vld [vmem:[#allocation21] sm:$0xf]
        %v3225 = vld [vmem:[#allocation21 + $0x4] sm:$0xf]
        %v3226 = vld [vmem:[#allocation21 + $0x8] sm:$0xf]
        %v3227 = vld [vmem:[#allocation21 + $0xc] sm:$0xf]
        %v3228 = vld [vmem:[#allocation21 + $0x10] sm:$0xf]
        %v3229 = vld [vmem:[#allocation21 + $0x14] sm:$0xf]
        %v3230 = vld [vmem:[#allocation21 + $0x18] sm:$0xf]
        %v3231 = vld [vmem:[#allocation21 + $0x1c] sm:$0xf]
        %v3232 = vld [vmem:[#allocation21 + $0x20] sm:$0xf]
        %v3233 = vld [vmem:[#allocation21 + $0x24] sm:$0xf]
        %v3234 = vld [vmem:[#allocation21 + $0x28] sm:$0xf]
        %v3235 = vld [vmem:[#allocation21 + $0x2c] sm:$0xf]
        %v3236 = vld [vmem:[#allocation21 + $0x30] sm:$0xf]
        %v3237 = vld [vmem:[#allocation21 + $0x34] sm:$0xf]
        %v3238 = vld [vmem:[#allocation21 + $0x38] sm:$0xf]
        %v3239 = vld [vmem:[#allocation21 + $0x3c] sm:$0xf]
        %v3240 = vld [vmem:[#allocation3 + $0x1] sm:$0xf]
        %v3241 = vld [vmem:[#allocation3 + $0x9] sm:$0xf]
        %v3242 = vld [vmem:[#allocation3 + $0x11] sm:$0xf]
        %v3243 = vld [vmem:[#allocation3 + $0x19] sm:$0xf]
        %v3248 = vcombine.low %v3240, %v3241
        %v3249 = vcombine.low %v3242, %v3243
        %v3252 = vpack.c.bf16 %v3249, %v3248
        %v3253 = vld [vmem:[#allocation21 + $0x40] sm:$0xf]
        %v3254 = vld [vmem:[#allocation21 + $0x44] sm:$0xf]
        %v3255 = vld [vmem:[#allocation21 + $0x48] sm:$0xf]
        %v3256 = vld [vmem:[#allocation21 + $0x4c] sm:$0xf]
        %v3257 = vld [vmem:[#allocation21 + $0x50] sm:$0xf]
        %v3258 = vld [vmem:[#allocation21 + $0x54] sm:$0xf]
        %v3259 = vld [vmem:[#allocation21 + $0x58] sm:$0xf]
        %v3260 = vld [vmem:[#allocation21 + $0x5c] sm:$0xf]
        %v3261 = vld [vmem:[#allocation21 + $0x60] sm:$0xf]
        %v3262 = vld [vmem:[#allocation21 + $0x64] sm:$0xf]
        %v3263 = vld [vmem:[#allocation21 + $0x68] sm:$0xf]
        %v3264 = vld [vmem:[#allocation21 + $0x6c] sm:$0xf]
        %v3265 = vld [vmem:[#allocation21 + $0x70] sm:$0xf]
        %v3266 = vld [vmem:[#allocation21 + $0x74] sm:$0xf]
        %v3267 = vld [vmem:[#allocation21 + $0x78] sm:$0xf]
        %v3268 = vld [vmem:[#allocation21 + $0x7c] sm:$0xf]
        %v3285 = vunpack.c.l.b16 %v3253
        %v3286 = vunpack.c.l.b16 %v3254
        %v3287 = vunpack.c.l.b16 %v3255
        %v3288 = vunpack.c.l.b16 %v3256
        %v3289 = vunpack.c.l.b16 %v3257
        %v3290 = vunpack.c.l.b16 %v3258
        %v3291 = vunpack.c.l.b16 %v3259
        %v3292 = vunpack.c.l.b16 %v3260
        %v3293 = vunpack.c.l.b16 %v3261
        %v3294 = vunpack.c.l.b16 %v3262
        %v3295 = vunpack.c.l.b16 %v3263
        %v3296 = vunpack.c.l.b16 %v3264
        %v3297 = vunpack.c.l.b16 %v3265
        %v3298 = vunpack.c.l.b16 %v3266
        %v3299 = vunpack.c.l.b16 %v3267
        %v3300 = vunpack.c.l.b16 %v3268
        %v3301 = vpack.c.b16 %v3286, %v3285
        %v3302 = vpack.c.b16 %v3288, %v3287
        %v3303 = vpack.c.b16 %v3290, %v3289
        %v3304 = vpack.c.b16 %v3292, %v3291
        %v3305 = vpack.c.b16 %v3294, %v3293
        %v3306 = vpack.c.b16 %v3296, %v3295
        %v3307 = vpack.c.b16 %v3298, %v3297
        %v3308 = vpack.c.b16 %v3300, %v3299
        %3317 = vmatprep.subr.bf16.mxu0 0
        %3318 = vmatpush1.bf16.msra.mxu0 %v3301
        %3319 = vmatprep.subr.bf16.mxu0 0
        %3320 = vmatpush1.bf16.msra.mxu0 %v3302
        %3321 = vmatprep.subr.bf16.mxu0 0
        %3322 = vmatpush1.bf16.msra.mxu0 %v3303
        %3323 = vmatprep.subr.bf16.mxu0 0
        %3324 = vmatpush1.bf16.msra.mxu0 %v3304
        %3325 = vmatprep.subr.bf16.mxu0 0
        %3326 = vmatpush1.bf16.msra.mxu0 %v3305
        %3327 = vmatprep.subr.bf16.mxu0 0
        %3328 = vmatpush1.bf16.msra.mxu0 %v3306
        %3329 = vmatprep.subr.bf16.mxu0 0
        %3330 = vmatpush1.bf16.msra.mxu0 %v3307
        %3331 = vmatprep.subr.bf16.mxu0 0
        %3332 = vmatpush1.bf16.msra.mxu0 %v3308
        %3333 = vmatprep.subr.bf16.mxu0 0
        %3334 = vmatpush1.bf16.msra.mxu0 0
        %3335 = vmatprep.subr.bf16.mxu0 0
        %3336 = vmatpush1.bf16.msra.mxu0 0
        %3337 = vmatprep.subr.bf16.mxu0 0
        %3338 = vmatpush1.bf16.msra.mxu0 0
        %3339 = vmatprep.subr.bf16.mxu0 0
        %3340 = vmatpush1.bf16.msra.mxu0 0
        %3341 = vmatprep.subr.bf16.mxu0 0
        %3342 = vmatpush1.bf16.msra.mxu0 0
        %3343 = vmatprep.subr.bf16.mxu0 0
        %3344 = vmatpush1.bf16.msra.mxu0 0
        %3345 = vmatprep.subr.bf16.mxu0 0
        %3346 = vmatpush1.bf16.msra.mxu0 0
        %3347 = vmatprep.subr.bf16.mxu0 0
        %3348 = vmatpush1.bf16.msra.mxu0 0
        %3349 = vmatprep.mubr.bf16.mxu0 0
        %3350 = vmatmul.mubr.bf16.gmra.mrb[0].mxu0 %v3252
        %v3351 = vpop.f32.mrb[0].mxu0
        %v3352 = vadd.f32 0.0, %v3351
        %v3353 = vpop.f32.mrb[0].mxu0
        %v3354 = vpop.f32.mrb[0].mxu0
        %v3355 = vadd.f32 0.0, %v3354
        %v3356 = vpop.f32.mrb[0].mxu0
        %3357 = vdwg.mxu0
        %v3374 = vunpack.c.l.b16 %v3224
        %v3375 = vunpack.c.l.b16 %v3225
        %v3376 = vunpack.c.l.b16 %v3226
        %v3377 = vunpack.c.l.b16 %v3227
        %v3378 = vunpack.c.l.b16 %v3228
        %v3379 = vunpack.c.l.b16 %v3229
        %v3380 = vunpack.c.l.b16 %v3230
        %v3381 = vunpack.c.l.b16 %v3231
        %v3382 = vunpack.c.l.b16 %v3232
        %v3383 = vunpack.c.l.b16 %v3233
        %v3384 = vunpack.c.l.b16 %v3234
        %v3385 = vunpack.c.l.b16 %v3235
        %v3386 = vunpack.c.l.b16 %v3236
        %v3387 = vunpack.c.l.b16 %v3237
        %v3388 = vunpack.c.l.b16 %v3238
        %v3389 = vunpack.c.l.b16 %v3239
        %v3390 = vpack.c.b16 %v3375, %v3374
        %v3391 = vpack.c.b16 %v3377, %v3376
        %v3392 = vpack.c.b16 %v3379, %v3378
        %v3393 = vpack.c.b16 %v3381, %v3380
        %v3394 = vpack.c.b16 %v3383, %v3382
        %v3395 = vpack.c.b16 %v3385, %v3384
        %v3396 = vpack.c.b16 %v3387, %v3386
        %v3397 = vpack.c.b16 %v3389, %v3388
        %3406 = vmatprep.subr.bf16.mxu0 0
        %3407 = vmatpush1.bf16.msra.mxu0 %v3390
        %3408 = vmatprep.subr.bf16.mxu0 0
        %3409 = vmatpush1.bf16.msra.mxu0 %v3391
        %3410 = vmatprep.subr.bf16.mxu0 0
        %3411 = vmatpush1.bf16.msra.mxu0 %v3392
        %3412 = vmatprep.subr.bf16.mxu0 0
        %3413 = vmatpush1.bf16.msra.mxu0 %v3393
        %3414 = vmatprep.subr.bf16.mxu0 0
        %3415 = vmatpush1.bf16.msra.mxu0 %v3394
        %3416 = vmatprep.subr.bf16.mxu0 0
        %3417 = vmatpush1.bf16.msra.mxu0 %v3395
        %3418 = vmatprep.subr.bf16.mxu0 0
        %3419 = vmatpush1.bf16.msra.mxu0 %v3396
        %3420 = vmatprep.subr.bf16.mxu0 0
        %3421 = vmatpush1.bf16.msra.mxu0 %v3397
        %3422 = vmatprep.subr.bf16.mxu0 0
        %3423 = vmatpush1.bf16.msra.mxu0 0
        %3424 = vmatprep.subr.bf16.mxu0 0
        %3425 = vmatpush1.bf16.msra.mxu0 0
        %3426 = vmatprep.subr.bf16.mxu0 0
        %3427 = vmatpush1.bf16.msra.mxu0 0
        %3428 = vmatprep.subr.bf16.mxu0 0
        %3429 = vmatpush1.bf16.msra.mxu0 0
        %3430 = vmatprep.subr.bf16.mxu0 0
        %3431 = vmatpush1.bf16.msra.mxu0 0
        %3432 = vmatprep.subr.bf16.mxu0 0
        %3433 = vmatpush1.bf16.msra.mxu0 0
        %3434 = vmatprep.subr.bf16.mxu0 0
        %3435 = vmatpush1.bf16.msra.mxu0 0
        %3436 = vmatprep.subr.bf16.mxu0 0
        %3437 = vmatpush1.bf16.msra.mxu0 0
        %3438 = vmatprep.mubr.bf16.mxu0 0
        %3439 = vmatmul.mubr.bf16.gmra.mrb[0].mxu0 %v3223
        %v3440 = vpop.f32.mrb[0].mxu0
        %v3441 = vadd.f32 %v3352, %v3440
        %v3442 = vpop.f32.mrb[0].mxu0
        %v3443 = vpop.f32.mrb[0].mxu0
        %v3444 = vadd.f32 %v3355, %v3443
        %v3445 = vpop.f32.mrb[0].mxu0
        %3446 = vdwg.mxu0
        %v3447 = vld [vmem:[#allocation3 + $0x2] sm:$0xf]
        %v3448 = vld [vmem:[#allocation3 + $0xa] sm:$0xf]
        %v3449 = vld [vmem:[#allocation3 + $0x12] sm:$0xf]
        %v3450 = vld [vmem:[#allocation3 + $0x1a] sm:$0xf]
        %v3455 = vcombine.low %v3447, %v3448
        %v3456 = vcombine.low %v3449, %v3450
        %v3459 = vpack.c.bf16 %v3456, %v3455
        %v3460 = vld [vmem:[#allocation21 + $0x80] sm:$0xf]
        %v3461 = vld [vmem:[#allocation21 + $0x84] sm:$0xf]
        %v3462 = vld [vmem:[#allocation21 + $0x88] sm:$0xf]
        %v3463 = vld [vmem:[#allocation21 + $0x8c] sm:$0xf]
        %v3464 = vld [vmem:[#allocation21 + $0x90] sm:$0xf]
        %v3465 = vld [vmem:[#allocation21 + $0x94] sm:$0xf]
        %v3466 = vld [vmem:[#allocation21 + $0x98] sm:$0xf]
        %v3467 = vld [vmem:[#allocation21 + $0x9c] sm:$0xf]
        %v3468 = vld [vmem:[#allocation21 + $0xa0] sm:$0xf]
        %v3469 = vld [vmem:[#allocation21 + $0xa4] sm:$0xf]
        %v3470 = vld [vmem:[#allocation21 + $0xa8] sm:$0xf]
        %v3471 = vld [vmem:[#allocation21 + $0xac] sm:$0xf]
        %v3472 = vld [vmem:[#allocation21 + $0xb0] sm:$0xf]
        %v3473 = vld [vmem:[#allocation21 + $0xb4] sm:$0xf]
        %v3474 = vld [vmem:[#allocation21 + $0xb8] sm:$0xf]
        %v3475 = vld [vmem:[#allocation21 + $0xbc] sm:$0xf]
        %v3492 = vunpack.c.l.b16 %v3460
        %v3493 = vunpack.c.l.b16 %v3461
        %v3494 = vunpack.c.l.b16 %v3462
        %v3495 = vunpack.c.l.b16 %v3463
        %v3496 = vunpack.c.l.b16 %v3464
        %v3497 = vunpack.c.l.b16 %v3465
        %v3498 = vunpack.c.l.b16 %v3466
        %v3499 = vunpack.c.l.b16 %v3467
        %v3500 = vunpack.c.l.b16 %v3468
        %v3501 = vunpack.c.l.b16 %v3469
        %v3502 = vunpack.c.l.b16 %v3470
        %v3503 = vunpack.c.l.b16 %v3471
        %v3504 = vunpack.c.l.b16 %v3472
        %v3505 = vunpack.c.l.b16 %v3473
        %v3506 = vunpack.c.l.b16 %v3474
        %v3507 = vunpack.c.l.b16 %v3475
        %v3508 = vpack.c.b16 %v3493, %v3492
        %v3509 = vpack.c.b16 %v3495, %v3494
        %v3510 = vpack.c.b16 %v3497, %v3496
        %v3511 = vpack.c.b16 %v3499, %v3498
        %v3512 = vpack.c.b16 %v3501, %v3500
        %v3513 = vpack.c.b16 %v3503, %v3502
        %v3514 = vpack.c.b16 %v3505, %v3504
        %v3515 = vpack.c.b16 %v3507, %v3506
        %3524 = vmatprep.subr.bf16.mxu0 0
        %3525 = vmatpush1.bf16.msra.mxu0 %v3508
        %3526 = vmatprep.subr.bf16.mxu0 0
        %3527 = vmatpush1.bf16.msra.mxu0 %v3509
        %3528 = vmatprep.subr.bf16.mxu0 0
        %3529 = vmatpush1.bf16.msra.mxu0 %v3510
        %3530 = vmatprep.subr.bf16.mxu0 0
        %3531 = vmatpush1.bf16.msra.mxu0 %v3511
        %3532 = vmatprep.subr.bf16.mxu0 0
        %3533 = vmatpush1.bf16.msra.mxu0 %v3512
        %3534 = vmatprep.subr.bf16.mxu0 0
        %3535 = vmatpush1.bf16.msra.mxu0 %v3513
        %3536 = vmatprep.subr.bf16.mxu0 0
        %3537 = vmatpush1.bf16.msra.mxu0 %v3514
        %3538 = vmatprep.subr.bf16.mxu0 0
        %3539 = vmatpush1.bf16.msra.mxu0 %v3515
        %3540 = vmatprep.subr.bf16.mxu0 0
        %3541 = vmatpush1.bf16.msra.mxu0 0
        %3542 = vmatprep.subr.bf16.mxu0 0
        %3543 = vmatpush1.bf16.msra.mxu0 0
        %3544 = vmatprep.subr.bf16.mxu0 0
        %3545 = vmatpush1.bf16.msra.mxu0 0
        %3546 = vmatprep.subr.bf16.mxu0 0
        %3547 = vmatpush1.bf16.msra.mxu0 0
        %3548 = vmatprep.subr.bf16.mxu0 0
        %3549 = vmatpush1.bf16.msra.mxu0 0
        %3550 = vmatprep.subr.bf16.mxu0 0
        %3551 = vmatpush1.bf16.msra.mxu0 0
        %3552 = vmatprep.subr.bf16.mxu0 0
        %3553 = vmatpush1.bf16.msra.mxu0 0
        %3554 = vmatprep.subr.bf16.mxu0 0
        %3555 = vmatpush1.bf16.msra.mxu0 0
        %3556 = vmatprep.mubr.bf16.mxu0 0
        %3557 = vmatmul.mubr.bf16.gmra.mrb[0].mxu0 %v3459
        %v3558 = vpop.f32.mrb[0].mxu0
        %v3559 = vadd.f32 0.0, %v3558
        %v3560 = vpop.f32.mrb[0].mxu0
        %v3561 = vpop.f32.mrb[0].mxu0
        %v3562 = vadd.f32 0.0, %v3561
        %v3563 = vpop.f32.mrb[0].mxu0
        %3564 = vdwg.mxu0
        %v3565 = vadd.f32 %v3441, %v3559
        %v3566 = vadd.f32 %v3444, %v3562
        %v3567 = vld [vmem:[%s3206] sm:$0xf]
        %v3568 = vld [vmem:[%s3206 + $0x8] sm:$0xf]
        %v3569 = vld [vmem:[%s3206 + $0x10] sm:$0xf]
        %v3570 = vld [vmem:[%s3206 + $0x18] sm:$0xf]
        %v3575 = vcombine.low %v3567, %v3568
        %v3576 = vcombine.low %v3569, %v3570
        %v3579 = vpack.c.bf16 %v3576, %v3575
        %v3580 = vld [vmem:[#allocation21 + $0xc0] sm:$0xf]
        %v3581 = vld [vmem:[#allocation21 + $0xc4] sm:$0xf]
        %v3582 = vld [vmem:[#allocation21 + $0xc8] sm:$0xf]
        %v3583 = vld [vmem:[#allocation21 + $0xcc] sm:$0xf]
        %v3584 = vld [vmem:[#allocation21 + $0xd0] sm:$0xf]
        %v3585 = vld [vmem:[#allocation21 + $0xd4] sm:$0xf]
        %v3586 = vld [vmem:[#allocation21 + $0xd8] sm:$0xf]
        %v3587 = vld [vmem:[#allocation21 + $0xdc] sm:$0xf]
        %v3588 = vld [vmem:[#allocation21 + $0xe0] sm:$0xf]
        %v3589 = vld [vmem:[#allocation21 + $0xe4] sm:$0xf]
        %v3590 = vld [vmem:[#allocation21 + $0xe8] sm:$0xf]
        %v3591 = vld [vmem:[#allocation21 + $0xec] sm:$0xf]
        %v3592 = vld [vmem:[#allocation21 + $0xf0] sm:$0xf]
        %v3593 = vld [vmem:[#allocation21 + $0xf4] sm:$0xf]
        %v3594 = vld [vmem:[#allocation21 + $0xf8] sm:$0xf]
        %v3595 = vld [vmem:[#allocation21 + $0xfc] sm:$0xf]
        %v3612 = vunpack.c.l.b16 %v3580
        %v3613 = vunpack.c.l.b16 %v3581
        %v3614 = vunpack.c.l.b16 %v3582
        %v3615 = vunpack.c.l.b16 %v3583
        %v3616 = vunpack.c.l.b16 %v3584
        %v3617 = vunpack.c.l.b16 %v3585
        %v3618 = vunpack.c.l.b16 %v3586
        %v3619 = vunpack.c.l.b16 %v3587
        %v3620 = vunpack.c.l.b16 %v3588
        %v3621 = vunpack.c.l.b16 %v3589
        %v3622 = vunpack.c.l.b16 %v3590
        %v3623 = vunpack.c.l.b16 %v3591
        %v3624 = vunpack.c.l.b16 %v3592
        %v3625 = vunpack.c.l.b16 %v3593
        %v3626 = vunpack.c.l.b16 %v3594
        %v3627 = vunpack.c.l.b16 %v3595
        %v3628 = vpack.c.b16 %v3613, %v3612
        %v3629 = vpack.c.b16 %v3615, %v3614
        %v3630 = vpack.c.b16 %v3617, %v3616
        %v3631 = vpack.c.b16 %v3619, %v3618
        %v3632 = vpack.c.b16 %v3621, %v3620
        %v3633 = vpack.c.b16 %v3623, %v3622
        %v3634 = vpack.c.b16 %v3625, %v3624
        %v3635 = vpack.c.b16 %v3627, %v3626
        %3644 = vmatprep.subr.bf16.mxu0 0
        %3645 = vmatpush1.bf16.msra.mxu0 %v3628
        %3646 = vmatprep.subr.bf16.mxu0 0
        %3647 = vmatpush1.bf16.msra.mxu0 %v3629
        %3648 = vmatprep.subr.bf16.mxu0 0
        %3649 = vmatpush1.bf16.msra.mxu0 %v3630
        %3650 = vmatprep.subr.bf16.mxu0 0
        %3651 = vmatpush1.bf16.msra.mxu0 %v3631
        %3652 = vmatprep.subr.bf16.mxu0 0
        %3653 = vmatpush1.bf16.msra.mxu0 %v3632
        %3654 = vmatprep.subr.bf16.mxu0 0
        %3655 = vmatpush1.bf16.msra.mxu0 %v3633
        %3656 = vmatprep.subr.bf16.mxu0 0
        %3657 = vmatpush1.bf16.msra.mxu0 %v3634
        %3658 = vmatprep.subr.bf16.mxu0 0
        %3659 = vmatpush1.bf16.msra.mxu0 %v3635
        %3660 = vmatprep.subr.bf16.mxu0 0
        %3661 = vmatpush1.bf16.msra.mxu0 0
        %3662 = vmatprep.subr.bf16.mxu0 0
        %3663 = vmatpush1.bf16.msra.mxu0 0
        %3664 = vmatprep.subr.bf16.mxu0 0
        %3665 = vmatpush1.bf16.msra.mxu0 0
        %3666 = vmatprep.subr.bf16.mxu0 0
        %3667 = vmatpush1.bf16.msra.mxu0 0
        %3668 = vmatprep.subr.bf16.mxu0 0
        %3669 = vmatpush1.bf16.msra.mxu0 0
        %3670 = vmatprep.subr.bf16.mxu0 0
        %3671 = vmatpush1.bf16.msra.mxu0 0
        %3672 = vmatprep.subr.bf16.mxu0 0
        %3673 = vmatpush1.bf16.msra.mxu0 0
        %3674 = vmatprep.subr.bf16.mxu0 0
        %3675 = vmatpush1.bf16.msra.mxu0 0
        %3676 = vmatprep.mubr.bf16.mxu0 0
        %3677 = vmatmul.mubr.bf16.gmra.mrb[0].mxu0 %v3579
        %v3678 = vpop.f32.mrb[0].mxu0
        %v3679 = vadd.f32 0.0, %v3678
        %v3680 = vpop.f32.mrb[0].mxu0
        %v3681 = vpop.f32.mrb[0].mxu0
        %v3682 = vadd.f32 0.0, %v3681
        %v3683 = vpop.f32.mrb[0].mxu0
        %3684 = vdwg.mxu0
        %v3685 = vadd.f32 %v3565, %v3679
        %v3686 = vadd.f32 %v3566, %v3682
        %v3687 = vld [vmem:[%s3206 + $0x1] sm:$0xf]
        %v3688 = vld [vmem:[%s3206 + $0x9] sm:$0xf]
        %v3689 = vld [vmem:[%s3206 + $0x11] sm:$0xf]
        %v3690 = vld [vmem:[%s3206 + $0x19] sm:$0xf]
        %v3695 = vcombine.low %v3687, %v3688
        %v3696 = vcombine.low %v3689, %v3690
        %v3699 = vpack.c.bf16 %v3696, %v3695
        %v3700 = vld [vmem:[#allocation21 + $0x100] sm:$0xf]
        %v3701 = vld [vmem:[#allocation21 + $0x104] sm:$0xf]
        %v3702 = vld [vmem:[#allocation21 + $0x108] sm:$0xf]
        %v3703 = vld [vmem:[#allocation21 + $0x10c] sm:$0xf]
        %v3704 = vld [vmem:[#allocation21 + $0x110] sm:$0xf]
        %v3705 = vld [vmem:[#allocation21 + $0x114] sm:$0xf]
        %v3706 = vld [vmem:[#allocation21 + $0x118] sm:$0xf]
        %v3707 = vld [vmem:[#allocation21 + $0x11c] sm:$0xf]
        %v3708 = vld [vmem:[#allocation21 + $0x120] sm:$0xf]
        %v3709 = vld [vmem:[#allocation21 + $0x124] sm:$0xf]
        %v3710 = vld [vmem:[#allocation21 + $0x128] sm:$0xf]
        %v3711 = vld [vmem:[#allocation21 + $0x12c] sm:$0xf]
        %v3712 = vld [vmem:[#allocation21 + $0x130] sm:$0xf]
        %v3713 = vld [vmem:[#allocation21 + $0x134] sm:$0xf]
        %v3714 = vld [vmem:[#allocation21 + $0x138] sm:$0xf]
        %v3715 = vld [vmem:[#allocation21 + $0x13c] sm:$0xf]
        %v3732 = vunpack.c.l.b16 %v3700
        %v3733 = vunpack.c.l.b16 %v3701
        %v3734 = vunpack.c.l.b16 %v3702
        %v3735 = vunpack.c.l.b16 %v3703
        %v3736 = vunpack.c.l.b16 %v3704
        %v3737 = vunpack.c.l.b16 %v3705
        %v3738 = vunpack.c.l.b16 %v3706
        %v3739 = vunpack.c.l.b16 %v3707
        %v3740 = vunpack.c.l.b16 %v3708
        %v3741 = vunpack.c.l.b16 %v3709
        %v3742 = vunpack.c.l.b16 %v3710
        %v3743 = vunpack.c.l.b16 %v3711
        %v3744 = vunpack.c.l.b16 %v3712
        %v3745 = vunpack.c.l.b16 %v3713
        %v3746 = vunpack.c.l.b16 %v3714
        %v3747 = vunpack.c.l.b16 %v3715
        %v3748 = vpack.c.b16 %v3733, %v3732
        %v3749 = vpack.c.b16 %v3735, %v3734
        %v3750 = vpack.c.b16 %v3737, %v3736
        %v3751 = vpack.c.b16 %v3739, %v3738
        %v3752 = vpack.c.b16 %v3741, %v3740
        %v3753 = vpack.c.b16 %v3743, %v3742
        %v3754 = vpack.c.b16 %v3745, %v3744
        %v3755 = vpack.c.b16 %v3747, %v3746
        %3764 = vmatprep.subr.bf16.mxu0 0
        %3765 = vmatpush1.bf16.msra.mxu0 %v3748
        %3766 = vmatprep.subr.bf16.mxu0 0
        %3767 = vmatpush1.bf16.msra.mxu0 %v3749
        %3768 = vmatprep.subr.bf16.mxu0 0
        %3769 = vmatpush1.bf16.msra.mxu0 %v3750
        %3770 = vmatprep.subr.bf16.mxu0 0
        %3771 = vmatpush1.bf16.msra.mxu0 %v3751
        %3772 = vmatprep.subr.bf16.mxu0 0
        %3773 = vmatpush1.bf16.msra.mxu0 %v3752
        %3774 = vmatprep.subr.bf16.mxu0 0
        %3775 = vmatpush1.bf16.msra.mxu0 %v3753
        %3776 = vmatprep.subr.bf16.mxu0 0
        %3777 = vmatpush1.bf16.msra.mxu0 %v3754
        %3778 = vmatprep.subr.bf16.mxu0 0
        %3779 = vmatpush1.bf16.msra.mxu0 %v3755
        %3780 = vmatprep.subr.bf16.mxu0 0
        %3781 = vmatpush1.bf16.msra.mxu0 0
        %3782 = vmatprep.subr.bf16.mxu0 0
        %3783 = vmatpush1.bf16.msra.mxu0 0
        %3784 = vmatprep.subr.bf16.mxu0 0
        %3785 = vmatpush1.bf16.msra.mxu0 0
        %3786 = vmatprep.subr.bf16.mxu0 0
        %3787 = vmatpush1.bf16.msra.mxu0 0
        %3788 = vmatprep.subr.bf16.mxu0 0
        %3789 = vmatpush1.bf16.msra.mxu0 0
        %3790 = vmatprep.subr.bf16.mxu0 0
        %3791 = vmatpush1.bf16.msra.mxu0 0
        %3792 = vmatprep.subr.bf16.mxu0 0
        %3793 = vmatpush1.bf16.msra.mxu0 0
        %3794 = vmatprep.subr.bf16.mxu0 0
        %3795 = vmatpush1.bf16.msra.mxu0 0
        %3796 = vmatprep.mubr.bf16.mxu0 0
        %3797 = vmatmul.mubr.bf16.gmra.mrb[0].mxu0 %v3699
        %v3798 = vpop.f32.mrb[0].mxu0
        %v3799 = vadd.f32 0.0, %v3798
        %v3800 = vpop.f32.mrb[0].mxu0
        %v3801 = vpop.f32.mrb[0].mxu0
        %v3802 = vadd.f32 0.0, %v3801
        %v3803 = vpop.f32.mrb[0].mxu0
        %3804 = vdwg.mxu0
        %v3805 = vadd.f32 %v3685, %v3799
        %v3806 = vadd.f32 %v3686, %v3802
        %v3807 = vld [vmem:[%s3206 + $0x2] sm:$0xf]
        %v3808 = vld [vmem:[%s3206 + $0xa] sm:$0xf]
        %v3809 = vld [vmem:[%s3206 + $0x12] sm:$0xf]
        %v3810 = vld [vmem:[%s3206 + $0x1a] sm:$0xf]
        %v3815 = vcombine.low %v3807, %v3808
        %v3816 = vcombine.low %v3809, %v3810
        %v3819 = vpack.c.bf16 %v3816, %v3815
        %v3820 = vld [vmem:[#allocation21 + $0x140] sm:$0xf]
        %v3821 = vld [vmem:[#allocation21 + $0x144] sm:$0xf]
        %v3822 = vld [vmem:[#allocation21 + $0x148] sm:$0xf]
        %v3823 = vld [vmem:[#allocation21 + $0x14c] sm:$0xf]
        %v3824 = vld [vmem:[#allocation21 + $0x150] sm:$0xf]
        %v3825 = vld [vmem:[#allocation21 + $0x154] sm:$0xf]
        %v3826 = vld [vmem:[#allocation21 + $0x158] sm:$0xf]
        %v3827 = vld [vmem:[#allocation21 + $0x15c] sm:$0xf]
        %v3828 = vld [vmem:[#allocation21 + $0x160] sm:$0xf]
        %v3829 = vld [vmem:[#allocation21 + $0x164] sm:$0xf]
        %v3830 = vld [vmem:[#allocation21 + $0x168] sm:$0xf]
        %v3831 = vld [vmem:[#allocation21 + $0x16c] sm:$0xf]
        %v3832 = vld [vmem:[#allocation21 + $0x170] sm:$0xf]
        %v3833 = vld [vmem:[#allocation21 + $0x174] sm:$0xf]
        %v3834 = vld [vmem:[#allocation21 + $0x178] sm:$0xf]
        %v3835 = vld [vmem:[#allocation21 + $0x17c] sm:$0xf]
        %v3852 = vunpack.c.l.b16 %v3820
        %v3853 = vunpack.c.l.b16 %v3821
        %v3854 = vunpack.c.l.b16 %v3822
        %v3855 = vunpack.c.l.b16 %v3823
        %v3856 = vunpack.c.l.b16 %v3824
        %v3857 = vunpack.c.l.b16 %v3825
        %v3858 = vunpack.c.l.b16 %v3826
        %v3859 = vunpack.c.l.b16 %v3827
        %v3860 = vunpack.c.l.b16 %v3828
        %v3861 = vunpack.c.l.b16 %v3829
        %v3862 = vunpack.c.l.b16 %v3830
        %v3863 = vunpack.c.l.b16 %v3831
        %v3864 = vunpack.c.l.b16 %v3832
        %v3865 = vunpack.c.l.b16 %v3833
        %v3866 = vunpack.c.l.b16 %v3834
        %v3867 = vunpack.c.l.b16 %v3835
        %v3868 = vpack.c.b16 %v3853, %v3852
        %v3869 = vpack.c.b16 %v3855, %v3854
        %v3870 = vpack.c.b16 %v3857, %v3856
        %v3871 = vpack.c.b16 %v3859, %v3858
        %v3872 = vpack.c.b16 %v3861, %v3860
        %v3873 = vpack.c.b16 %v3863, %v3862
        %v3874 = vpack.c.b16 %v3865, %v3864
        %v3875 = vpack.c.b16 %v3867, %v3866
        %3884 = vmatprep.subr.bf16.mxu0 0
        %3885 = vmatpush1.bf16.msra.mxu0 %v3868
        %3886 = vmatprep.subr.bf16.mxu0 0
        %3887 = vmatpush1.bf16.msra.mxu0 %v3869
        %3888 = vmatprep.subr.bf16.mxu0 0
        %3889 = vmatpush1.bf16.msra.mxu0 %v3870
        %3890 = vmatprep.subr.bf16.mxu0 0
        %3891 = vmatpush1.bf16.msra.mxu0 %v3871
        %3892 = vmatprep.subr.bf16.mxu0 0
        %3893 = vmatpush1.bf16.msra.mxu0 %v3872
        %3894 = vmatprep.subr.bf16.mxu0 0
        %3895 = vmatpush1.bf16.msra.mxu0 %v3873
        %3896 = vmatprep.subr.bf16.mxu0 0
        %3897 = vmatpush1.bf16.msra.mxu0 %v3874
        %3898 = vmatprep.subr.bf16.mxu0 0
        %3899 = vmatpush1.bf16.msra.mxu0 %v3875
        %3900 = vmatprep.subr.bf16.mxu0 0
        %3901 = vmatpush1.bf16.msra.mxu0 0
        %3902 = vmatprep.subr.bf16.mxu0 0
        %3903 = vmatpush1.bf16.msra.mxu0 0
        %3904 = vmatprep.subr.bf16.mxu0 0
        %3905 = vmatpush1.bf16.msra.mxu0 0
        %3906 = vmatprep.subr.bf16.mxu0 0
        %3907 = vmatpush1.bf16.msra.mxu0 0
        %3908 = vmatprep.subr.bf16.mxu0 0
        %3909 = vmatpush1.bf16.msra.mxu0 0
        %3910 = vmatprep.subr.bf16.mxu0 0
        %3911 = vmatpush1.bf16.msra.mxu0 0
        %3912 = vmatprep.subr.bf16.mxu0 0
        %3913 = vmatpush1.bf16.msra.mxu0 0
        %3914 = vmatprep.subr.bf16.mxu0 0
        %3915 = vmatpush1.bf16.msra.mxu0 0
        %3916 = vmatprep.mubr.bf16.mxu0 0
        %3917 = vmatmul.mubr.bf16.gmra.mrb[0].mxu0 %v3819
        %v3918 = vpop.f32.mrb[0].mxu0
        %v3919 = vadd.f32 0.0, %v3918
        %v3920 = vpop.f32.mrb[0].mxu0
        %v3921 = vpop.f32.mrb[0].mxu0
        %v3922 = vadd.f32 0.0, %v3921
        %v3923 = vpop.f32.mrb[0].mxu0
        %3924 = vdwg.mxu0
        %v3925 = vadd.f32 %v3805, %v3919
        %v3926 = vadd.f32 %v3806, %v3922
        %s3927 = scalar_lea.vmem [#allocation3], 16
        %v3928 = vld [vmem:[%s3927] sm:$0xf]
        %v3929 = vld [vmem:[%s3927 + $0x8] sm:$0xf]
        %v3930 = vld [vmem:[%s3927 + $0x10] sm:$0xf]
        %v3931 = vld [vmem:[%s3927 + $0x18] sm:$0xf]
        %v3936 = vcombine.low %v3928, %v3929
        %v3937 = vcombine.low %v3930, %v3931
        %v3940 = vpack.c.bf16 %v3937, %v3936
        %v3941 = vld [vmem:[#allocation21 + $0x180] sm:$0xf]
        %v3942 = vld [vmem:[#allocation21 + $0x184] sm:$0xf]
        %v3943 = vld [vmem:[#allocation21 + $0x188] sm:$0xf]
        %v3944 = vld [vmem:[#allocation21 + $0x18c] sm:$0xf]
        %v3945 = vld [vmem:[#allocation21 + $0x190] sm:$0xf]
        %v3946 = vld [vmem:[#allocation21 + $0x194] sm:$0xf]
        %v3947 = vld [vmem:[#allocation21 + $0x198] sm:$0xf]
        %v3948 = vld [vmem:[#allocation21 + $0x19c] sm:$0xf]
        %v3949 = vld [vmem:[#allocation21 + $0x1a0] sm:$0xf]
        %v3950 = vld [vmem:[#allocation21 + $0x1a4] sm:$0xf]
        %v3951 = vld [vmem:[#allocation21 + $0x1a8] sm:$0xf]
        %v3952 = vld [vmem:[#allocation21 + $0x1ac] sm:$0xf]
        %v3953 = vld [vmem:[#allocation21 + $0x1b0] sm:$0xf]
        %v3954 = vld [vmem:[#allocation21 + $0x1b4] sm:$0xf]
        %v3955 = vld [vmem:[#allocation21 + $0x1b8] sm:$0xf]
        %v3956 = vld [vmem:[#allocation21 + $0x1bc] sm:$0xf]
        %v3973 = vunpack.c.l.b16 %v3941
        %v3974 = vunpack.c.l.b16 %v3942
        %v3975 = vunpack.c.l.b16 %v3943
        %v3976 = vunpack.c.l.b16 %v3944
        %v3977 = vunpack.c.l.b16 %v3945
        %v3978 = vunpack.c.l.b16 %v3946
        %v3979 = vunpack.c.l.b16 %v3947
        %v3980 = vunpack.c.l.b16 %v3948
        %v3981 = vunpack.c.l.b16 %v3949
        %v3982 = vunpack.c.l.b16 %v3950
        %v3983 = vunpack.c.l.b16 %v3951
        %v3984 = vunpack.c.l.b16 %v3952
        %v3985 = vunpack.c.l.b16 %v3953
        %v3986 = vunpack.c.l.b16 %v3954
        %v3987 = vunpack.c.l.b16 %v3955
        %v3988 = vunpack.c.l.b16 %v3956
        %v3989 = vpack.c.b16 %v3974, %v3973
        %v3990 = vpack.c.b16 %v3976, %v3975
        %v3991 = vpack.c.b16 %v3978, %v3977
        %v3992 = vpack.c.b16 %v3980, %v3979
        %v3993 = vpack.c.b16 %v3982, %v3981
        %v3994 = vpack.c.b16 %v3984, %v3983
        %v3995 = vpack.c.b16 %v3986, %v3985
        %v3996 = vpack.c.b16 %v3988, %v3987
        %4005 = vmatprep.subr.bf16.mxu0 0
        %4006 = vmatpush1.bf16.msra.mxu0 %v3989
        %4007 = vmatprep.subr.bf16.mxu0 0
        %4008 = vmatpush1.bf16.msra.mxu0 %v3990
        %4009 = vmatprep.subr.bf16.mxu0 0
        %4010 = vmatpush1.bf16.msra.mxu0 %v3991
        %4011 = vmatprep.subr.bf16.mxu0 0
        %4012 = vmatpush1.bf16.msra.mxu0 %v3992
        %4013 = vmatprep.subr.bf16.mxu0 0
        %4014 = vmatpush1.bf16.msra.mxu0 %v3993
        %4015 = vmatprep.subr.bf16.mxu0 0
        %4016 = vmatpush1.bf16.msra.mxu0 %v3994
        %4017 = vmatprep.subr.bf16.mxu0 0
        %4018 = vmatpush1.bf16.msra.mxu0 %v3995
        %4019 = vmatprep.subr.bf16.mxu0 0
        %4020 = vmatpush1.bf16.msra.mxu0 %v3996
        %4021 = vmatprep.subr.bf16.mxu0 0
        %4022 = vmatpush1.bf16.msra.mxu0 0
        %4023 = vmatprep.subr.bf16.mxu0 0
        %4024 = vmatpush1.bf16.msra.mxu0 0
        %4025 = vmatprep.subr.bf16.mxu0 0
        %4026 = vmatpush1.bf16.msra.mxu0 0
        %4027 = vmatprep.subr.bf16.mxu0 0
        %4028 = vmatpush1.bf16.msra.mxu0 0
        %4029 = vmatprep.subr.bf16.mxu0 0
        %4030 = vmatpush1.bf16.msra.mxu0 0
        %4031 = vmatprep.subr.bf16.mxu0 0
        %4032 = vmatpush1.bf16.msra.mxu0 0
        %4033 = vmatprep.subr.bf16.mxu0 0
        %4034 = vmatpush1.bf16.msra.mxu0 0
        %4035 = vmatprep.subr.bf16.mxu0 0
        %4036 = vmatpush1.bf16.msra.mxu0 0
        %4037 = vmatprep.mubr.bf16.mxu0 0
        %4038 = vmatmul.mubr.bf16.gmra.mrb[0].mxu0 %v3940
        %v4039 = vpop.f32.mrb[0].mxu0
        %v4040 = vadd.f32 0.0, %v4039
        %v4041 = vpop.f32.mrb[0].mxu0
        %v4042 = vpop.f32.mrb[0].mxu0
        %v4043 = vadd.f32 0.0, %v4042
        %v4044 = vpop.f32.mrb[0].mxu0
        %4045 = vdwg.mxu0
        %v4046 = vadd.f32 %v3925, %v4040
        %v4047 = vadd.f32 %v3926, %v4043
        %v4048 = vld [vmem:[%s3927 + $0x1] sm:$0xf]
        %v4049 = vld [vmem:[%s3927 + $0x9] sm:$0xf]
        %v4050 = vld [vmem:[%s3927 + $0x11] sm:$0xf]
        %v4051 = vld [vmem:[%s3927 + $0x19] sm:$0xf]
        %v4056 = vcombine.low %v4048, %v4049
        %v4057 = vcombine.low %v4050, %v4051
        %v4060 = vpack.c.bf16 %v4057, %v4056
        %v4061 = vld [vmem:[#allocation21 + $0x1c0] sm:$0xf]
        %v4062 = vld [vmem:[#allocation21 + $0x1c4] sm:$0xf]
        %v4063 = vld [vmem:[#allocation21 + $0x1c8] sm:$0xf]
        %v4064 = vld [vmem:[#allocation21 + $0x1cc] sm:$0xf]
        %v4065 = vld [vmem:[#allocation21 + $0x1d0] sm:$0xf]
        %v4066 = vld [vmem:[#allocation21 + $0x1d4] sm:$0xf]
        %v4067 = vld [vmem:[#allocation21 + $0x1d8] sm:$0xf]
        %v4068 = vld [vmem:[#allocation21 + $0x1dc] sm:$0xf]
        %v4069 = vld [vmem:[#allocation21 + $0x1e0] sm:$0xf]
        %v4070 = vld [vmem:[#allocation21 + $0x1e4] sm:$0xf]
        %v4071 = vld [vmem:[#allocation21 + $0x1e8] sm:$0xf]
        %v4072 = vld [vmem:[#allocation21 + $0x1ec] sm:$0xf]
        %v4073 = vld [vmem:[#allocation21 + $0x1f0] sm:$0xf]
        %v4074 = vld [vmem:[#allocation21 + $0x1f4] sm:$0xf]
        %v4075 = vld [vmem:[#allocation21 + $0x1f8] sm:$0xf]
        %v4076 = vld [vmem:[#allocation21 + $0x1fc] sm:$0xf]
        %v4093 = vunpack.c.l.b16 %v4061
        %v4094 = vunpack.c.l.b16 %v4062
        %v4095 = vunpack.c.l.b16 %v4063
        %v4096 = vunpack.c.l.b16 %v4064
        %v4097 = vunpack.c.l.b16 %v4065
        %v4098 = vunpack.c.l.b16 %v4066
        %v4099 = vunpack.c.l.b16 %v4067
        %v4100 = vunpack.c.l.b16 %v4068
        %v4101 = vunpack.c.l.b16 %v4069
        %v4102 = vunpack.c.l.b16 %v4070
        %v4103 = vunpack.c.l.b16 %v4071
        %v4104 = vunpack.c.l.b16 %v4072
        %v4105 = vunpack.c.l.b16 %v4073
        %v4106 = vunpack.c.l.b16 %v4074
        %v4107 = vunpack.c.l.b16 %v4075
        %v4108 = vunpack.c.l.b16 %v4076
        %v4109 = vpack.c.b16 %v4094, %v4093
        %v4110 = vpack.c.b16 %v4096, %v4095
        %v4111 = vpack.c.b16 %v4098, %v4097
        %v4112 = vpack.c.b16 %v4100, %v4099
        %v4113 = vpack.c.b16 %v4102, %v4101
        %v4114 = vpack.c.b16 %v4104, %v4103
        %v4115 = vpack.c.b16 %v4106, %v4105
        %v4116 = vpack.c.b16 %v4108, %v4107
        %4125 = vmatprep.subr.bf16.mxu0 0
        %4126 = vmatpush1.bf16.msra.mxu0 %v4109
        %4127 = vmatprep.subr.bf16.mxu0 0
        %4128 = vmatpush1.bf16.msra.mxu0 %v4110
        %4129 = vmatprep.subr.bf16.mxu0 0
        %4130 = vmatpush1.bf16.msra.mxu0 %v4111
        %4131 = vmatprep.subr.bf16.mxu0 0
        %4132 = vmatpush1.bf16.msra.mxu0 %v4112
        %4133 = vmatprep.subr.bf16.mxu0 0
        %4134 = vmatpush1.bf16.msra.mxu0 %v4113
        %4135 = vmatprep.subr.bf16.mxu0 0
        %4136 = vmatpush1.bf16.msra.mxu0 %v4114
        %4137 = vmatprep.subr.bf16.mxu0 0
        %4138 = vmatpush1.bf16.msra.mxu0 %v4115
        %4139 = vmatprep.subr.bf16.mxu0 0
        %4140 = vmatpush1.bf16.msra.mxu0 %v4116
        %4141 = vmatprep.subr.bf16.mxu0 0
        %4142 = vmatpush1.bf16.msra.mxu0 0
        %4143 = vmatprep.subr.bf16.mxu0 0
        %4144 = vmatpush1.bf16.msra.mxu0 0
        %4145 = vmatprep.subr.bf16.mxu0 0
        %4146 = vmatpush1.bf16.msra.mxu0 0
        %4147 = vmatprep.subr.bf16.mxu0 0
        %4148 = vmatpush1.bf16.msra.mxu0 0
        %4149 = vmatprep.subr.bf16.mxu0 0
        %4150 = vmatpush1.bf16.msra.mxu0 0
        %4151 = vmatprep.subr.bf16.mxu0 0
        %4152 = vmatpush1.bf16.msra.mxu0 0
        %4153 = vmatprep.subr.bf16.mxu0 0
        %4154 = vmatpush1.bf16.msra.mxu0 0
        %4155 = vmatprep.subr.bf16.mxu0 0
        %4156 = vmatpush1.bf16.msra.mxu0 0
        %4157 = vmatprep.mubr.bf16.mxu0 0
        %4158 = vmatmul.mubr.bf16.gmra.mrb[0].mxu0 %v4060
        %v4159 = vpop.f32.mrb[0].mxu0
        %v4160 = vadd.f32 0.0, %v4159
        %v4161 = vpop.f32.mrb[0].mxu0
        %v4162 = vpop.f32.mrb[0].mxu0
        %v4163 = vadd.f32 0.0, %v4162
        %v4164 = vpop.f32.mrb[0].mxu0
        %4165 = vdwg.mxu0
        %v4166 = vadd.f32 %v4046, %v4160
        %v4167 = vadd.f32 %v4047, %v4163
        %v4168 = vld [vmem:[%s3927 + $0x2] sm:$0xf]
        %v4169 = vld [vmem:[%s3927 + $0xa] sm:$0xf]
        %v4170 = vld [vmem:[%s3927 + $0x12] sm:$0xf]
        %v4171 = vld [vmem:[%s3927 + $0x1a] sm:$0xf]
        %v4176 = vcombine.low %v4168, %v4169
        %v4177 = vcombine.low %v4170, %v4171
        %v4180 = vpack.c.bf16 %v4177, %v4176
        %v4181 = vld [vmem:[#allocation21 + $0x200] sm:$0xf]
        %v4182 = vld [vmem:[#allocation21 + $0x204] sm:$0xf]
        %v4183 = vld [vmem:[#allocation21 + $0x208] sm:$0xf]
        %v4184 = vld [vmem:[#allocation21 + $0x20c] sm:$0xf]
        %v4185 = vld [vmem:[#allocation21 + $0x210] sm:$0xf]
        %v4186 = vld [vmem:[#allocation21 + $0x214] sm:$0xf]
        %v4187 = vld [vmem:[#allocation21 + $0x218] sm:$0xf]
        %v4188 = vld [vmem:[#allocation21 + $0x21c] sm:$0xf]
        %v4189 = vld [vmem:[#allocation21 + $0x220] sm:$0xf]
        %v4190 = vld [vmem:[#allocation21 + $0x224] sm:$0xf]
        %v4191 = vld [vmem:[#allocation21 + $0x228] sm:$0xf]
        %v4192 = vld [vmem:[#allocation21 + $0x22c] sm:$0xf]
        %v4193 = vld [vmem:[#allocation21 + $0x230] sm:$0xf]
        %v4194 = vld [vmem:[#allocation21 + $0x234] sm:$0xf]
        %v4195 = vld [vmem:[#allocation21 + $0x238] sm:$0xf]
        %v4196 = vld [vmem:[#allocation21 + $0x23c] sm:$0xf]
        %v4213 = vunpack.c.l.b16 %v4181
        %v4214 = vunpack.c.l.b16 %v4182
        %v4215 = vunpack.c.l.b16 %v4183
        %v4216 = vunpack.c.l.b16 %v4184
        %v4217 = vunpack.c.l.b16 %v4185
        %v4218 = vunpack.c.l.b16 %v4186
        %v4219 = vunpack.c.l.b16 %v4187
        %v4220 = vunpack.c.l.b16 %v4188
        %v4221 = vunpack.c.l.b16 %v4189
        %v4222 = vunpack.c.l.b16 %v4190
        %v4223 = vunpack.c.l.b16 %v4191
        %v4224 = vunpack.c.l.b16 %v4192
        %v4225 = vunpack.c.l.b16 %v4193
        %v4226 = vunpack.c.l.b16 %v4194
        %v4227 = vunpack.c.l.b16 %v4195
        %v4228 = vunpack.c.l.b16 %v4196
        %v4229 = vpack.c.b16 %v4214, %v4213
        %v4230 = vpack.c.b16 %v4216, %v4215
        %v4231 = vpack.c.b16 %v4218, %v4217
        %v4232 = vpack.c.b16 %v4220, %v4219
        %v4233 = vpack.c.b16 %v4222, %v4221
        %v4234 = vpack.c.b16 %v4224, %v4223
        %v4235 = vpack.c.b16 %v4226, %v4225
        %v4236 = vpack.c.b16 %v4228, %v4227
        %4245 = vmatprep.subr.bf16.mxu0 0
        %4246 = vmatpush1.bf16.msra.mxu0 %v4229
        %4247 = vmatprep.subr.bf16.mxu0 0
        %4248 = vmatpush1.bf16.msra.mxu0 %v4230
        %4249 = vmatprep.subr.bf16.mxu0 0
        %4250 = vmatpush1.bf16.msra.mxu0 %v4231
        %4251 = vmatprep.subr.bf16.mxu0 0
        %4252 = vmatpush1.bf16.msra.mxu0 %v4232
        %4253 = vmatprep.subr.bf16.mxu0 0
        %4254 = vmatpush1.bf16.msra.mxu0 %v4233
        %4255 = vmatprep.subr.bf16.mxu0 0
        %4256 = vmatpush1.bf16.msra.mxu0 %v4234
        %4257 = vmatprep.subr.bf16.mxu0 0
        %4258 = vmatpush1.bf16.msra.mxu0 %v4235
        %4259 = vmatprep.subr.bf16.mxu0 0
        %4260 = vmatpush1.bf16.msra.mxu0 %v4236
        %4261 = vmatprep.subr.bf16.mxu0 0
        %4262 = vmatpush1.bf16.msra.mxu0 0
        %4263 = vmatprep.subr.bf16.mxu0 0
        %4264 = vmatpush1.bf16.msra.mxu0 0
        %4265 = vmatprep.subr.bf16.mxu0 0
        %4266 = vmatpush1.bf16.msra.mxu0 0
        %4267 = vmatprep.subr.bf16.mxu0 0
        %4268 = vmatpush1.bf16.msra.mxu0 0
        %4269 = vmatprep.subr.bf16.mxu0 0
        %4270 = vmatpush1.bf16.msra.mxu0 0
        %4271 = vmatprep.subr.bf16.mxu0 0
        %4272 = vmatpush1.bf16.msra.mxu0 0
        %4273 = vmatprep.subr.bf16.mxu0 0
        %4274 = vmatpush1.bf16.msra.mxu0 0
        %4275 = vmatprep.subr.bf16.mxu0 0
        %4276 = vmatpush1.bf16.msra.mxu0 0
        %4277 = vmatprep.mubr.bf16.mxu0 0
        %4278 = vmatmul.mubr.bf16.gmra.mrb[0].mxu0 %v4180
        %v4279 = vpop.f32.mrb[0].mxu0
        %v4280 = vadd.f32 0.0, %v4279
        %v4281 = vpop.f32.mrb[0].mxu0
        %v4282 = vpop.f32.mrb[0].mxu0
        %v4283 = vadd.f32 0.0, %v4282
        %v4284 = vpop.f32.mrb[0].mxu0
        %4285 = vdwg.mxu0
        %v4286 = vadd.f32 %v4166, %v4280
        %v4287 = vadd.f32 %v4167, %v4283
        %v4288 = vld [vmem:[#allocation22] sm:$0x1]
        %v4290 = vlaneseq
        %v4291 = vshrl.u32 %v4290, 7
        %v4292 = vsub.s32 0, %v4291
        %v4293 = vrot.slane %v4288, %v4292
        %v4295 = vmul.f32 %v4286, %v4293
        %v4296 = vmul.f32 %v4287, %v4293
        %v4297 = vld [vmem:[#allocation24] sm:$0x1]
        %v4299 = vlaneseq
        %v4300 = vshrl.u32 %v4299, 7
        %v4301 = vsub.s32 0, %v4300
        %v4302 = vrot.slane %v4297, %v4301
        %v4304 = vadd.f32 %v4295, %v4302
        %v4305 = vadd.f32 %v4296, %v4302
        %vm4306 = vcmp.gt.f32.partialorder %v4304, 0.0
        %vm4307 = vcmp.gt.f32.partialorder %v4305, 0.0
        %v4308 = vmul.f32 %v4304, 0.1
        %v4309 = vmul.f32 %v4305, 0.1
        %v4310 = vsel %vm4306, %v4304, %v4308
        %v4311 = vsel %vm4307, %v4305, %v4309
        %v4314 = vcombine.high %v4310, %v4310
        %v4315 = vcombine.high %v4311, %v4311
        %v4318 = vld [vmem:[%s629] sm:$0x1]
        %v4320 = vlaneseq
        %v4321 = vshrl.u32 %v4320, 7
        %v4322 = vsub.s32 0, %v4321
        %v4323 = vrot.slane %v4318, %v4322
        %v4325 = vadd.f32 %v4310, %v4323
        %v4326 = vadd.f32 %v4314, %v4323
        %v4327 = vadd.f32 %v4311, %v4323
        %v4328 = vadd.f32 %v4315, %v4323
        %v4334 = vunpack.c.l.s4 1966171168
        %v4335 = vunpack.c.0.s8 %v4334
        %v4336 = vlaneseq
        %v4337 = vshrl.u32 %v4336, 7
        %v4338 = vsub.s32 %v4335, %v4337
        %v4339 = vrot.slane %v4325, %v4338
        %v4340 = vcombine.high %v4339, %v4339
        %v4342 = vunpack.c.l.s4 1966171168
        %v4343 = vunpack.c.0.s8 %v4342
        %v4344 = vlaneseq
        %v4345 = vshrl.u32 %v4344, 7
        %v4346 = vsub.s32 %v4343, %v4345
        %v4347 = vrot.slane %v4339, %v4346
        %v4349 = vunpack.c.l.s4 1966171168
        %v4350 = vunpack.c.0.s8 %v4349
        %v4351 = vlaneseq
        %v4352 = vshrl.u32 %v4351, 7
        %v4353 = vsub.s32 %v4350, %v4352
        %v4354 = vrot.slane %v4340, %v4353
        %v4355 = vcombine.high %v4347, %v4347
        %v4356 = vcombine.high %v4354, %v4354
        %v4358 = vunpack.c.l.s4 1966171168
        %v4359 = vunpack.c.0.s8 %v4358
        %v4360 = vlaneseq
        %v4361 = vshrl.u32 %v4360, 7
        %v4362 = vsub.s32 %v4359, %v4361
        %v4363 = vrot.slane %v4326, %v4362
        %v4364 = vcombine.high %v4363, %v4363
        %v4366 = vunpack.c.l.s4 1966171168
        %v4367 = vunpack.c.0.s8 %v4366
        %v4368 = vlaneseq
        %v4369 = vshrl.u32 %v4368, 7
        %v4370 = vsub.s32 %v4367, %v4369
        %v4371 = vrot.slane %v4363, %v4370
        %v4373 = vunpack.c.l.s4 1966171168
        %v4374 = vunpack.c.0.s8 %v4373
        %v4375 = vlaneseq
        %v4376 = vshrl.u32 %v4375, 7
        %v4377 = vsub.s32 %v4374, %v4376
        %v4378 = vrot.slane %v4364, %v4377
        %v4379 = vcombine.high %v4371, %v4371
        %v4380 = vcombine.high %v4378, %v4378
        %v4382 = vunpack.c.l.s4 1966171168
        %v4383 = vunpack.c.0.s8 %v4382
        %v4384 = vlaneseq
        %v4385 = vshrl.u32 %v4384, 7
        %v4386 = vsub.s32 %v4383, %v4385
        %v4387 = vrot.slane %v4327, %v4386
        %v4388 = vcombine.high %v4387, %v4387
        %v4390 = vunpack.c.l.s4 1966171168
        %v4391 = vunpack.c.0.s8 %v4390
        %v4392 = vlaneseq
        %v4393 = vshrl.u32 %v4392, 7
        %v4394 = vsub.s32 %v4391, %v4393
        %v4395 = vrot.slane %v4387, %v4394
        %v4397 = vunpack.c.l.s4 1966171168
        %v4398 = vunpack.c.0.s8 %v4397
        %v4399 = vlaneseq
        %v4400 = vshrl.u32 %v4399, 7
        %v4401 = vsub.s32 %v4398, %v4400
        %v4402 = vrot.slane %v4388, %v4401
        %v4403 = vcombine.high %v4395, %v4395
        %v4404 = vcombine.high %v4402, %v4402
        %v4406 = vunpack.c.l.s4 1966171168
        %v4407 = vunpack.c.0.s8 %v4406
        %v4408 = vlaneseq
        %v4409 = vshrl.u32 %v4408, 7
        %v4410 = vsub.s32 %v4407, %v4409
        %v4411 = vrot.slane %v4328, %v4410
        %v4412 = vcombine.high %v4411, %v4411
        %v4414 = vunpack.c.l.s4 1966171168
        %v4415 = vunpack.c.0.s8 %v4414
        %v4416 = vlaneseq
        %v4417 = vshrl.u32 %v4416, 7
        %v4418 = vsub.s32 %v4415, %v4417
        %v4419 = vrot.slane %v4411, %v4418
        %v4421 = vunpack.c.l.s4 1966171168
        %v4422 = vunpack.c.0.s8 %v4421
        %v4423 = vlaneseq
        %v4424 = vshrl.u32 %v4423, 7
        %v4425 = vsub.s32 %v4422, %v4424
        %v4426 = vrot.slane %v4412, %v4425
        %v4427 = vcombine.high %v4419, %v4419
        %v4428 = vcombine.high %v4426, %v4426
        %v4429 = vlaneseq
        %v4430 = vshrl.u32 %v4429, 7
        %v4431 = vsub.s32 0, %v4430
        %v4432 = vrot.slane %v4347, %v4431
        %v4433 = vlaneseq
        %v4434 = vshrl.u32 %v4433, 7
        %v4435 = vsub.s32 0, %v4434
        %v4436 = vrot.slane %v4354, %v4435
        %v4437 = vlaneseq
        %v4438 = vshrl.u32 %v4437, 7
        %v4439 = vsub.s32 0, %v4438
        %v4440 = vrot.slane %v4355, %v4439
        %v4441 = vlaneseq
        %v4442 = vshrl.u32 %v4441, 7
        %v4443 = vsub.s32 0, %v4442
        %v4444 = vrot.slane %v4356, %v4443
        %v4445 = vlaneseq
        %v4446 = vshrl.u32 %v4445, 7
        %v4447 = vsub.s32 0, %v4446
        %v4448 = vrot.slane %v4371, %v4447
        %v4449 = vlaneseq
        %v4450 = vshrl.u32 %v4449, 7
        %v4451 = vsub.s32 0, %v4450
        %v4452 = vrot.slane %v4378, %v4451
        %v4453 = vlaneseq
        %v4454 = vshrl.u32 %v4453, 7
        %v4455 = vsub.s32 0, %v4454
        %v4456 = vrot.slane %v4379, %v4455
        %v4457 = vlaneseq
        %v4458 = vshrl.u32 %v4457, 7
        %v4459 = vsub.s32 0, %v4458
        %v4460 = vrot.slane %v4380, %v4459
        %v4461 = vlaneseq
        %v4462 = vshrl.u32 %v4461, 7
        %v4463 = vsub.s32 0, %v4462
        %v4464 = vrot.slane %v4395, %v4463
        %v4465 = vlaneseq
        %v4466 = vshrl.u32 %v4465, 7
        %v4467 = vsub.s32 0, %v4466
        %v4468 = vrot.slane %v4402, %v4467
        %v4469 = vlaneseq
        %v4470 = vshrl.u32 %v4469, 7
        %v4471 = vsub.s32 0, %v4470
        %v4472 = vrot.slane %v4403, %v4471
        %v4473 = vlaneseq
        %v4474 = vshrl.u32 %v4473, 7
        %v4475 = vsub.s32 0, %v4474
        %v4476 = vrot.slane %v4404, %v4475
        %v4477 = vlaneseq
        %v4478 = vshrl.u32 %v4477, 7
        %v4479 = vsub.s32 0, %v4478
        %v4480 = vrot.slane %v4419, %v4479
        %v4481 = vlaneseq
        %v4482 = vshrl.u32 %v4481, 7
        %v4483 = vsub.s32 0, %v4482
        %v4484 = vrot.slane %v4426, %v4483
        %v4485 = vlaneseq
        %v4486 = vshrl.u32 %v4485, 7
        %v4487 = vsub.s32 0, %v4486
        %v4488 = vrot.slane %v4427, %v4487
        %v4489 = vlaneseq
        %v4490 = vshrl.u32 %v4489, 7
        %v4491 = vsub.s32 0, %v4490
        %v4492 = vrot.slane %v4428, %v4491
        %v4493 = vcombine.low %v4432, %v4436
        %v4494 = vcombine.low %v4440, %v4444
        %v4495 = vcombine.low %v4448, %v4452
        %v4496 = vcombine.low %v4456, %v4460
        %v4497 = vcombine.low %v4464, %v4468
        %v4498 = vcombine.low %v4472, %v4476
        %v4499 = vcombine.low %v4480, %v4484
        %v4500 = vcombine.low %v4488, %v4492
        %4509 = vst [vmem:[%s677] sm:$0xff] %v4493
        %4510 = vst [vmem:[%s677 + $0x8] sm:$0xff] %v4494
        %4511 = vst [vmem:[%s677 + $0x10] sm:$0xff] %v4493
        %4512 = vst [vmem:[%s677 + $0x18] sm:$0xff] %v4494
        %4513 = vst [vmem:[%s677 + $0x20] sm:$0xff] %v4493
        %4514 = vst [vmem:[%s677 + $0x28] sm:$0xff] %v4494
        %4515 = vst [vmem:[%s677 + $0x30] sm:$0xff] %v4493
        %4516 = vst [vmem:[%s677 + $0x38] sm:$0xff] %v4494
        %4517 = vst [vmem:[%s677 + $0x40] sm:$0xff] %v4495
        %4518 = vst [vmem:[%s677 + $0x48] sm:$0xff] %v4496
        %4519 = vst [vmem:[%s677 + $0x50] sm:$0xff] %v4495
        %4520 = vst [vmem:[%s677 + $0x58] sm:$0xff] %v4496
        %4521 = vst [vmem:[%s677 + $0x60] sm:$0xff] %v4495
        %4522 = vst [vmem:[%s677 + $0x68] sm:$0xff] %v4496
        %4523 = vst [vmem:[%s677 + $0x70] sm:$0xff] %v4495
        %4524 = vst [vmem:[%s677 + $0x78] sm:$0xff] %v4496
        %4525 = vst [vmem:[%s677 + $0x80] sm:$0xff] %v4497
        %4526 = vst [vmem:[%s677 + $0x88] sm:$0xff] %v4498
        %4527 = vst [vmem:[%s677 + $0x90] sm:$0xff] %v4497
        %4528 = vst [vmem:[%s677 + $0x98] sm:$0xff] %v4498
        %4529 = vst [vmem:[%s677 + $0xa0] sm:$0xff] %v4497
        %4530 = vst [vmem:[%s677 + $0xa8] sm:$0xff] %v4498
        %4531 = vst [vmem:[%s677 + $0xb0] sm:$0xff] %v4497
        %4532 = vst [vmem:[%s677 + $0xb8] sm:$0xff] %v4498
        %4533 = vst [vmem:[%s677 + $0xc0] sm:$0xff] %v4499
        %4534 = vst [vmem:[%s677 + $0xc8] sm:$0xff] %v4500
        %4535 = vst [vmem:[%s677 + $0xd0] sm:$0xff] %v4499
        %4536 = vst [vmem:[%s677 + $0xd8] sm:$0xff] %v4500
        %4537 = vst [vmem:[%s677 + $0xe0] sm:$0xff] %v4499
        %4538 = vst [vmem:[%s677 + $0xe8] sm:$0xff] %v4500
        %4539 = vst [vmem:[%s677 + $0xf0] sm:$0xff] %v4499
        %4540 = vst [vmem:[%s677 + $0xf8] sm:$0xff] %v4500
        %s4541 = sand.u32 %s352, 1
        %s4542 = scalar_lea.sflag [#allocation6], %s4541
        %s4543 = sand.u32 %s352, 1
        %s4544 = smul.addr %s4543, 256
        %s4545 = scalar_lea.vmem [#allocation27], %s4544
        // Predicated region
        $region133: #{ranker_128_up_forward.3} parent=75 // pred_check
          %p4546 = pneg %p362
        $region134: #{ranker_128_up_forward.3} parent=75 // pred_check_branch
          %4548 = sbr.rel (%p4546) target = $region136
        $region135: #{ranker_128_up_forward.3} parent=75 // pred_region
          %s4550 = ssub.s32 4096, 4096
          %4551 = vsyncadd %s4542, %s4550
          %s4552 = smul.addr %s40, 32
          %s4553 = smul.addr %s4552, 128
          %s4554 = scalar_lea.hbm %s14, %s4553
          %s4555 = sshll.u32 %s4545, 4
          %s4556 = int_to_ptr.vmem [resolvable:$true] %s4555
          %4561 = dma.vmem_to_hbm [thread:$0]  %s4556, 4096, %s4554, %s4542, 128, 128, 8
        $region136: #{ranker_128_up_forward.3} parent=75 // pred_fallthru
          _
      $region76: #{ranker_128_up_forward.3} parent=5 // pred_fallthru
        _
      %p4562 = scmp.le.s32.totalorder 2, %s35
      // Predicated region
      $region137: #{ranker_128_up_forward.3} parent=5 // pred_check
        %p4563 = pneg %p4562
      $region138: #{ranker_128_up_forward.3} parent=5 // pred_check_branch
        %4565 = sbr.rel (%p4563) target = $region140
      $region139: #{ranker_128_up_forward.3} parent=5 // pred_region
        %s4566 = ssub.s32 %s35, 2
        // Predicated region
        $region141: #{ranker_128_up_forward.3} parent=139 // pred_check
          %p4567 = pneg %p368
        $region142: #{ranker_128_up_forward.3} parent=139 // pred_check_branch
          %4569 = sbr.rel (%p4567) target = $region144
        $region143: #{ranker_128_up_forward.3} parent=139 // pred_region
          %s4570 = sand.u32 %s353, 1
          %s4571 = scalar_lea.sflag [#allocation6], %s4570
          %s4572 = sand.u32 %s353, 1
          %s4573 = smul.addr %s4572, 256
          %s4574 = scalar_lea.vmem [#allocation27], %s4573
          %4575 = dma.done %s4571, 4096
        $region144: #{ranker_128_up_forward.3} parent=139 // pred_fallthru
          _
      $region140: #{ranker_128_up_forward.3} parent=5 // pred_fallthru
        _
    $region6: #{ranker_128_up_forward.3} parent=1 // loop_footer
      %s39 = sadd.s32 1, %s35
    $region7: #{ranker_128_up_forward.3} parent=1 // loop_footer_branch
      %34 = sbr.rel target = $region3
    $region8: #{ranker_128_up_forward.3} parent=1 // loop_exit
      _
    %4576 = vsyncpa [#allocation5], 1
    %s4577 = scalar_lea.sflag [#allocation5], 1
    %4578 = vsyncpa %s4577, 1
    %4579 = vsyncpa [#allocation8], 1
    %4580 = vsyncpa [#allocation11], 1
    %4581 = vsyncpa [#allocation14], 1
    %4582 = vsyncpa [#allocation17], 1
    %4583 = vsyncpa [#allocation20], 1
    %4584 = vsyncpa [#allocation23], 1
    %4585 = vsyncpa [#allocation26], 1
    %s4586 = scalar_lea.sflag [#allocation26], 1
    %4587 = vsyncpa %s4586, 1
    %4588 = vsyncpa [#allocation6], 1
    %s4589 = scalar_lea.sflag [#allocation6], 1
    %4590 = vsyncpa %s4589, 1

</llo_original>
